<compile_context>
chip_gen: v5e
topology: v5e:2x2
jax: 0.10.0
libtpu: 0.0.40
codegen_flags: <defaults>
</compile_context>

<pallas_src>
import functools

import numpy as np
import jax
import jax.numpy as jnp
from jax.experimental import pallas as pl
from jax.experimental.pallas import tpu as pltpu


_VMEM_LIMIT = 64 * 1024 * 1024  # TODO(synk): derive per TPU generation.


def _round_up(x, m):
    return (x + m - 1) // m * m


def _pad_len(n):
    """Flat length of a padded-grid activation buffer (+ tap-overread slack)."""
    return _round_up(n + 8, 16)


def _geom(H, W, stride):
    """Geometry of one fused conv call on an HxW input image.

    Inputs/outputs use the "padded-flat" layout: the zero-padded image flattened
    row-major with row width Wg; the valid interior starts at flat offset Wg+1.
    For stride 2 the input is the space-to-depth form (4*Cin channels, row width
    W//2+2), so the conv becomes a stride-1 2x2-tap conv whose output grid
    already has the next layer's row width.
    """
    if stride == 1:
        Ho, Wo = H, W
        Wg = W + 2
        taps = tuple(kh * Wg + kw for kh in range(3) for kw in range(3))
    else:
        assert H % 2 == 0 and W % 2 == 0
        Ho, Wo = H // 2, W // 2
        Wg = Wo + 2
        taps = tuple(ph * Wg + pw for ph in range(2) for pw in range(2))
    return dict(Ho=Ho, Wo=Wo, Wg=Wg, taps=taps, Lo=Ho * Wg,
                Lpad_out=_pad_len((Ho + 2) * (Wo + 2)),
                inv_n=1.0 / float(Ho * Wo))


# ----------------------------------------------------------------------------
# Pallas kernels
# ----------------------------------------------------------------------------
def _col_mask(lo, wg, wo):
    """1.0 for valid output columns (j < Wo on the Wg-wide flat grid), else 0."""
    col = jax.lax.broadcasted_iota(jnp.int32, (lo, 1), 0) % wg
    return (col < wo).astype(jnp.float32)


def _pad_rows(y, top, total):
    """Embed y at row offset `top` of a zero [total, C] buffer (padded-flat form)."""
    c = y.shape[1]
    return jnp.concatenate(
        [jnp.zeros((top, c), y.dtype), y,
         jnp.zeros((total - top - y.shape[0], c), y.dtype)], axis=0)


def _conv_in(x, w_ref, b_ref, g_ref, bt_ref, mask, taps, lo, inv_n):
    """Wide-K conv (single MXU dot) + bias + masked InstanceNorm2d(affine)."""
    # Concatenate the shifted windows along lanes -> one [Lo, K] operand.
    xcat = jnp.concatenate([x[off:off + lo, :] for off in taps], axis=-1)
    acc = jnp.dot(xcat.astype(jnp.bfloat16), w_ref[...],
                  preferred_element_type=jnp.float32)
    acc = (acc + b_ref[...]) * mask                 # zero the pad-column rows
    mean = jnp.sum(acc, axis=0, keepdims=True) * inv_n
    var = jnp.maximum(jnp.sum(acc * acc, axis=0, keepdims=True) * inv_n
                      - mean * mean, 0.0)           # clamp (review: cancellation)
    return (acc - mean) * jax.lax.rsqrt(var + 1e-5) * g_ref[...] + bt_ref[...]


def _conv_in_relu_kernel(x_ref, w_ref, b_ref, g_ref, bt_ref, o_ref, *,
                         taps, lo, wg, wo, inv_n):
    """Fused conv + InstanceNorm(affine) + ReLU; output written in the next
    stride-1 layer's padded-flat layout (zeros everywhere except the interior)."""
    x = x_ref[0].astype(jnp.float32)                # one upcast pass of the bf16 tile
    mask = _col_mask(lo, wg, wo)
    y = _conv_in(x, w_ref, b_ref, g_ref, bt_ref, mask, taps, lo, inv_n)
    y = jnp.maximum(y, 0.0) * mask
    o_ref[0] = _pad_rows(y, wg + 1, o_ref.shape[1]).astype(o_ref.dtype)


def _res_block_kernel(x_ref, wa_ref, ba_ref, ga_ref, bta_ref,
                      wb_ref, bb_ref, gb_ref, btb_ref, o_ref, *,
                      taps, lo, wg, wo, inv_n):
    """Whole residual block in one kernel; the intermediate activation z stays
    resident in VMEM (never written to HBM)."""
    x = x_ref[0].astype(jnp.float32)
    mask = _col_mask(lo, wg, wo)

    z = _conv_in(x, wa_ref, ba_ref, ga_ref, bta_ref, mask, taps, lo, inv_n)
    z = jnp.maximum(z, 0.0) * mask
    zpad = _pad_rows(z, wg + 1, x.shape[0])         # padded-flat view of z, in VMEM

    y = _conv_in(zpad, wb_ref, bb_ref, gb_ref, btb_ref, mask, taps, lo, inv_n)
    y = jnp.maximum(y + x[wg + 1:wg + 1 + lo, :], 0.0) * mask
    o_ref[0] = _pad_rows(y, wg + 1, o_ref.shape[1]).astype(o_ref.dtype)


def _mlp_head_kernel(x_ref, w1, b1, w2, b2, w3, b3, w4, b4, o_ref):
    """fc1+ReLU -> fc2+ReLU -> fc3+tanh -> last, all resident in VMEM."""
    def dense(h, w_ref, b_ref):
        return jnp.dot(h.astype(jnp.bfloat16), w_ref[...],
                       preferred_element_type=jnp.float32) + b_ref[...]
    h = jnp.maximum(dense(x_ref[...], w1, b1), 0.0)
    h = jnp.maximum(dense(h, w2, b2), 0.0)
    h = jnp.tanh(dense(h, w3, b3))
    o_ref[...] = dense(h, w4, b4).astype(o_ref.dtype)


# ----------------------------------------------------------------------------
# Pallas wrappers
# ----------------------------------------------------------------------------
def conv_in_relu(xf, params, geom):
    w, b, g, bt = params
    B, Lpad_in, cin_eff = xf.shape
    cout = w.shape[1]
    kern = functools.partial(_conv_in_relu_kernel, taps=geom["taps"], lo=geom["Lo"],
                             wg=geom["Wg"], wo=geom["Wo"], inv_n=geom["inv_n"])
    return pl.pallas_call(
        kern,
        out_shape=jax.ShapeDtypeStruct((B, geom["Lpad_out"], cout), jnp.bfloat16),
        grid=(B,),
        in_specs=[pl.BlockSpec((1, Lpad_in, cin_eff), lambda i: (i, 0, 0))]
                 + [pl.BlockSpec(a.shape, lambda i: (0, 0)) for a in (w, b, g, bt)],
        out_specs=pl.BlockSpec((1, geom["Lpad_out"], cout), lambda i: (i, 0, 0)),
        compiler_params=pltpu.CompilerParams(
            dimension_semantics=("parallel",),
            vmem_limit_bytes=_VMEM_LIMIT),
    )(xf, w, b, g, bt)


def res_block(xf, params, geom):
    B, Lpad, c = xf.shape
    assert Lpad == geom["Lpad_out"]
    kern = functools.partial(_res_block_kernel, taps=geom["taps"], lo=geom["Lo"],
                             wg=geom["Wg"], wo=geom["Wo"], inv_n=geom["inv_n"])
    return pl.pallas_call(
        kern,
        out_shape=jax.ShapeDtypeStruct((B, Lpad, c), jnp.bfloat16),
        grid=(B,),
        in_specs=[pl.BlockSpec((1, Lpad, c), lambda i: (i, 0, 0))]
                 + [pl.BlockSpec(a.shape, lambda i: (0, 0)) for a in params],
        out_specs=pl.BlockSpec((1, Lpad, c), lambda i: (i, 0, 0)),
        compiler_params=pltpu.CompilerParams(
            dimension_semantics=("parallel",),
            vmem_limit_bytes=_VMEM_LIMIT),
    )(xf, *params)


def mlp_head(h, kp):
    B = h.shape[0]
    latent = kp["last_w"].shape[1]
    return pl.pallas_call(
        _mlp_head_kernel,
        out_shape=jax.ShapeDtypeStruct((B, latent), jnp.float32),
        compiler_params=pltpu.CompilerParams(vmem_limit_bytes=_VMEM_LIMIT),
    )(h, kp["fc1_w"], kp["fc1_b"], kp["fc2_w"], kp["fc2_b"],
      kp["fc3_w"], kp["fc3_b"], kp["last_w"], kp["last_b"])


# ----------------------------------------------------------------------------
# XLA-side layout glue (input prep once; small bf16 s2d shuffle per stride-2 conv)
# ----------------------------------------------------------------------------
def _to_padded_flat(x_nhwc):
    """One-time input prep: NHWC -> zero-padded, spatially-flattened bf16."""
    B, H, W, C = x_nhwc.shape
    Hp, Wp = H + 2, W + 2
    Lpad = _pad_len(Hp * Wp)
    xp = jnp.pad(x_nhwc, ((0, 0), (1, 1), (1, 1), (0, 0))).reshape(B, Hp * Wp, C)
    xp = jnp.pad(xp, ((0, 0), (0, Lpad - Hp * Wp), (0, 0)))
    return xp.astype(jnp.bfloat16)


def _s2d_from_flat(yflat, H, W, C):
    """Space-to-depth shuffle of a padded-flat bf16 activation for a stride-2 conv.

    TODO(synk): fold this (small, bf16) shuffle into the producing kernel's
    output store so the stride-2 path also has no XLA-side prep.
    """
    B = yflat.shape[0]
    Hp, Wp = H + 2, W + 2
    Hs, Ws = Hp // 2, Wp // 2
    Wg = Ws + 1                                   # extra zero column -> row width W//2 + 2
    g = yflat[:, :Hp * Wp, :].reshape(B, Hs, 2, Ws, 2, C)
    g = g.transpose(0, 1, 3, 2, 4, 5).reshape(B, Hs, Ws, 4 * C)
    g = jnp.pad(g, ((0, 0), (0, 0), (0, 1), (0, 0))).reshape(B, Hs * Wg, 4 * C)
    Lpad = _pad_len(Hs * Wg)
    return jnp.pad(g, ((0, 0), (0, Lpad - Hs * Wg), (0, 0)))


# ----------------------------------------------------------------------------
# Host-side one-time weight packing
# ----------------------------------------------------------------------------
def _w_wide_s1(w):
    """Torch [Cout,Cin,3,3] stride-1 conv -> wide-K [9*Cin, Cout] bf16."""
    cout, cin = w.shape[0], w.shape[1]
    return jnp.transpose(w, (2, 3, 1, 0)).reshape(9 * cin, cout).astype(jnp.bfloat16)


def _w_wide_s2(w):
    """Torch [Cout,Cin,3,3] stride-2 conv -> [16*Cin, Cout] bf16 for the s2d form."""
    cout, cin = w.shape[0], w.shape[1]
    wn = np.asarray(w)
    we = np.zeros((2, 2, 2, 2, cin, cout), np.float32)   # [ph, pw, di, dj, ci, co]
    for ph in range(2):
        for pw in range(2):
            for di in range(2):
                for dj in range(2):
                    kh, kw = 2 * ph + di, 2 * pw + dj
                    if kh < 3 and kw < 3:
                        we[ph, pw, di, dj] = wn[:, :, kh, kw].T
    return jnp.asarray(we.reshape(16 * cin, cout), dtype=jnp.bfloat16)


def _fc1_eff(fc1_w, C, H, W, Lpad):
    """Fold the NCHW flatten into fc1: scatter the torch-ordered rows so fc1
    consumes the padded-flat [Lpad, C] activation (reshaped to [Lpad*C]) directly."""
    Wp = W + 2
    wn = np.asarray(fc1_w)
    eff = np.zeros((Lpad * C, wn.shape[1]), np.float32)
    c, i, j = np.meshgrid(np.arange(C), np.arange(H), np.arange(W), indexing="ij")
    src = (c * H * W + i * W + j).ravel()
    dst = ((Wp + 1 + i * Wp + j) * C + c).ravel()
    eff[dst] = wn[src]
    return jnp.asarray(eff, dtype=jnp.bfloat16)


# ----------------------------------------------------------------------------
# Model config, params, forward
# ----------------------------------------------------------------------------
def build_config(img, start_ch):
    stages = []
    total = img * img * start_ch
    size, ch = img, start_ch
    while total > 512 and size > 4:
        stages.append((ch, ch * 2))
        ch *= 2
        total //= 2
        size //= 2
    return {"stages": stages, "flat": total, "final_size": size, "final_ch": ch}


def init_params(key, cfg, in_ch, start_ch, hidden, latent):
    ks = iter(jax.random.split(key, 64))
    p = {}

    def conv_p(name, cin, cout):
        scale = 1.0 / np.sqrt(cin * 9.0)
        p[name + "_w"] = jax.random.normal(next(ks), (cout, cin, 3, 3), jnp.float32) * scale
        p[name + "_b"] = jax.random.normal(next(ks), (cout,), jnp.float32) * 0.01

    def in_p(name, c):
        p[name + "_g"] = 1.0 + 0.1 * jax.random.normal(next(ks), (c,), jnp.float32)
        p[name + "_b"] = 0.1 * jax.random.normal(next(ks), (c,), jnp.float32)

    def lin_p(name, fin, fout):
        scale = 1.0 / np.sqrt(float(fin))
        p[name + "_w"] = jax.random.normal(next(ks), (fin, fout), jnp.float32) * scale
        p[name + "_b"] = jax.random.normal(next(ks), (fout,), jnp.float32) * 0.01

    conv_p("conv1", in_ch, start_ch)
    in_p("in1", start_ch)
    for s, (cin, cout) in enumerate(cfg["stages"]):
        conv_p(f"down{s}", cin, cout)
        in_p(f"din{s}", cout)
        conv_p(f"res{s}a", cout, cout)
        in_p(f"rin{s}a", cout)
        conv_p(f"res{s}b", cout, cout)
        in_p(f"rin{s}b", cout)
    lin_p("fc1", cfg["flat"], hidden)
    lin_p("fc2", hidden, hidden)
    lin_p("fc3", hidden, latent)
    lin_p("last", latent, latent)
    return p


def prepare_params(p, cfg):
    """One-time host-side repack of torch-layout params into kernel-ready form."""
    def vec(a):
        return a.reshape(1, -1).astype(jnp.float32)

    kp = {"conv1": (_w_wide_s1(p["conv1_w"]), vec(p["conv1_b"]),
                    vec(p["in1_g"]), vec(p["in1_b"]))}
    for s in range(len(cfg["stages"])):
        kp[f"down{s}"] = (_w_wide_s2(p[f"down{s}_w"]), vec(p[f"down{s}_b"]),
                          vec(p[f"din{s}_g"]), vec(p[f"din{s}_b"]))
        kp[f"res{s}"] = (_w_wide_s1(p[f"res{s}a_w"]), vec(p[f"res{s}a_b"]),
                         vec(p[f"rin{s}a_g"]), vec(p[f"rin{s}a_b"]),
                         _w_wide_s1(p[f"res{s}b_w"]), vec(p[f"res{s}b_b"]),
                         vec(p[f"rin{s}b_g"]), vec(p[f"rin{s}b_b"]))
    size, ch = cfg["final_size"], cfg["final_ch"]
    kp["fc1_w"] = _fc1_eff(p["fc1_w"], ch, size, size, _pad_len((size + 2) ** 2))
    kp["fc1_b"] = vec(p["fc1_b"])
    for name in ("fc2", "fc3", "last"):
        kp[name + "_w"] = p[name + "_w"].astype(jnp.bfloat16)
        kp[name + "_b"] = vec(p[name + "_b"])
    return kp


def _forward_pallas(x_nchw, kp, cfg, img, start_ch):
    x = jnp.transpose(x_nchw, (0, 2, 3, 1))              # NHWC, once at the input
    y = conv_in_relu(_to_padded_flat(x), kp["conv1"], _geom(img, img, 1))
    size, ch = img, start_ch
    for s in range(len(cfg["stages"])):
        xs2 = _s2d_from_flat(y, size, size, ch)
        y = conv_in_relu(xs2, kp[f"down{s}"], _geom(size, size, 2))
        size, ch = size // 2, ch * 2
        y = res_block(y, kp[f"res{s}"], _geom(size, size, 1))
    # Padded-flat bf16 -> [B, Lpad*C]; fc1's rows were pre-permuted to this layout.
    h = y.reshape(y.shape[0], -1)
    return mlp_head(h, kp)


# ----------------------------------------------------------------------------
# Pure-JAX reference with the same quantization points, for a sanity check
# ----------------------------------------------------------------------------
def _q(a):
    return a.astype(jnp.bfloat16).astype(jnp.float32)


def _ref_conv(x, w, b, stride):
    y = jax.lax.conv_general_dilated(
        _q(x), _q(w), window_strides=(stride, stride), padding=((1, 1), (1, 1)),
        dimension_numbers=("NCHW", "OIHW", "NCHW"),
        precision=jax.lax.Precision.HIGHEST)
    return y + b[None, :, None, None]


def _ref_in(x, g, b):
    mean = jnp.mean(x, axis=(2, 3), keepdims=True)
    var = jnp.mean((x - mean) ** 2, axis=(2, 3), keepdims=True)
    return ((x - mean) * jax.lax.rsqrt(var + 1e-5) * g[None, :, None, None]
            + b[None, :, None, None])


def _ref_linear(h, w, b):
    return jnp.dot(_q(h), _q(w), preferred_element_type=jnp.float32,
                   precision=jax.lax.Precision.HIGHEST) + b[None, :]


def _forward_ref(x, p, cfg):
    y = jax.nn.relu(_ref_in(_ref_conv(x, p["conv1_w"], p["conv1_b"], 1),
                            p["in1_g"], p["in1_b"]))
    for s in range(len(cfg["stages"])):
        y = jax.nn.relu(_ref_in(_ref_conv(y, p[f"down{s}_w"], p[f"down{s}_b"], 2),
                                p[f"din{s}_g"], p[f"din{s}_b"]))
        r = _q(y)                                   # residual is re-read as bf16
        z = jax.nn.relu(_ref_in(_ref_conv(y, p[f"res{s}a_w"], p[f"res{s}a_b"], 1),
                                p[f"rin{s}a_g"], p[f"rin{s}a_b"]))
        z = _ref_in(_ref_conv(z, p[f"res{s}b_w"], p[f"res{s}b_b"], 1),
                    p[f"rin{s}b_g"], p[f"rin{s}b_b"])
        y = jax.nn.relu(z + r)
    h = y.reshape(y.shape[0], -1)
    h = jax.nn.relu(_ref_linear(h, p["fc1_w"], p["fc1_b"]))
    h = jax.nn.relu(_ref_linear(h, p["fc2_w"], p["fc2_b"]))
    h = jnp.tanh(_ref_linear(h, p["fc3_w"], p["fc3_b"]))
    return _ref_linear(h, p["last_w"], p["last_b"])


# ----------------------------------------------------------------------------
if __name__ == "__main__":
    # Small config consistent with the module:
    # input_image_size=16, input_image_channels=3, start_channels=4,
    # hidden_size=32, latent_size=16 -> one downsample stage, flatten size 512.
    B, IN_CH, IMG = 2, 3, 16
    START_CH, HIDDEN, LATENT = 4, 32, 16

    cfg = build_config(IMG, START_CH)
    key = jax.random.PRNGKey(0)
    k_params, k_x = jax.random.split(key)
    params = init_params(k_params, cfg, IN_CH, START_CH, HIDDEN, LATENT)
    kparams = prepare_params(params, cfg)
    x = jax.random.normal(k_x, (B, IN_CH, IMG, IMG), jnp.float32)

    fwd = jax.jit(lambda xx, pp: _forward_pallas(xx, pp, cfg, IMG, START_CH))
    out = jax.block_until_ready(fwd(x, kparams))

    ref_fwd = jax.jit(lambda xx, pp: _forward_ref(xx, pp, cfg))
    ref = jax.block_until_ready(ref_fwd(x, params))

    assert out.shape == (B, LATENT), out.shape
    assert bool(jnp.all(jnp.isfinite(out)))
    max_err = float(jnp.max(jnp.abs(out - ref)))
    assert max_err < 0.1, f"max abs diff vs reference = {max_err}"
    print("KERNEL_OK")
</pallas_src>

<mosaic_0001>
module attributes {stable_mosaic.version = 11 : i64} {
  func.func @_conv_in_relu_kernel(%arg0: i32, %arg1: memref<1x336x3xbf16, #tpu.memory_space<vmem>>, %arg2: memref<27x4xbf16, #tpu.memory_space<vmem>>, %arg3: memref<1x4xf32, #tpu.memory_space<vmem>>, %arg4: memref<1x4xf32, #tpu.memory_space<vmem>>, %arg5: memref<1x4xf32, #tpu.memory_space<vmem>>, %arg6: memref<1x336x4xbf16, #tpu.memory_space<vmem>>) attributes {dimension_semantics = [#tpu.dimension_semantics<parallel>], iteration_bounds = array<i64: 2>, scalar_prefetch = 0 : i64, scratch_operands = 0 : i64, tpu.core_type = #tpu.core_type<tc>, window_params = [{transform_indices = @transform_0, window_bounds = array<i64: 1, 336, 3>}, {pipeline_mode = #tpu.pipeline_mode<synchronous>, transform_indices = @transform_1, window_bounds = array<i64: 27, 4>}, {pipeline_mode = #tpu.pipeline_mode<synchronous>, transform_indices = @transform_2, window_bounds = array<i64: 1, 4>}, {pipeline_mode = #tpu.pipeline_mode<synchronous>, transform_indices = @transform_3, window_bounds = array<i64: 1, 4>}, {pipeline_mode = #tpu.pipeline_mode<synchronous>, transform_indices = @transform_4, window_bounds = array<i64: 1, 4>}, {transform_indices = @transform_5, window_bounds = array<i64: 1, 336, 4>}]} {
    %c0 = arith.constant 0 : index
    %c0_0 = arith.constant 0 : index
    %c0_1 = arith.constant 0 : index
    %0 = vector.load %arg1[%c0, %c0_0, %c0_1] : memref<1x336x3xbf16, #tpu.memory_space<vmem>>, vector<1x336x3xbf16>
    %1 = vector.shape_cast %0 : vector<1x336x3xbf16> to vector<336x3xbf16>
    %2 = arith.extf %1 : vector<336x3xbf16> to vector<336x3xf32>
    %3 = tpu.iota {dimensions = array<i32: 0>} : vector<288x1xi32>
    %c18_i32 = arith.constant 18 : i32
    %c0_i32 = arith.constant 0 : i32
    %4 = arith.cmpi eq, %c18_i32, %c0_i32 : i32
    %c1_i32 = arith.constant 1 : i32
    %5 = arith.select %4, %c1_i32, %c18_i32 : i32
    %6 = vector.broadcast %5 : i32 to vector<288x1xi32>
    %7 = arith.remsi %3, %6 : vector<288x1xi32>
    %c0_i32_2 = arith.constant 0 : i32
    %8 = vector.broadcast %c0_i32_2 : i32 to vector<288x1xi32>
    %9 = arith.cmpi ne, %7, %8 : vector<288x1xi32>
    %c0_i32_3 = arith.constant 0 : i32
    %10 = vector.broadcast %c0_i32_3 : i32 to vector<288x1xi32>
    %11 = arith.cmpi slt, %7, %10 : vector<288x1xi32>
    %c0_i32_4 = arith.constant 0 : i32
    %12 = arith.cmpi slt, %5, %c0_i32_4 : i32
    %13 = vector.broadcast %12 : i1 to vector<288x1xi1>
    %14 = vector.broadcast %13 : vector<288x1xi1> to vector<288x1xi1>
    %15 = arith.xori %11, %14 : vector<288x1xi1>
    %16 = arith.andi %15, %9 : vector<288x1xi1>
    %17 = vector.broadcast %5 : i32 to vector<288x1xi32>
    %18 = arith.addi %7, %17 : vector<288x1xi32>
    %19 = arith.select %16, %18, %7 : vector<288x1xi1>, vector<288x1xi32>
    %c16_i32 = arith.constant 16 : i32
    %20 = vector.broadcast %c16_i32 : i32 to vector<288x1xi32>
    %21 = arith.cmpi slt, %19, %20 : vector<288x1xi32>
    %22 = arith.extui %21 : vector<288x1xi1> to vector<288x1xi32>
    %23 = arith.sitofp %22 : vector<288x1xi32> to vector<288x1xf32>
    %24 = vector.extract_strided_slice %2 {offsets = [0, 0], sizes = [288, 3], strides = [1, 1]} : vector<336x3xf32> to vector<288x3xf32>
    %25 = vector.extract_strided_slice %2 {offsets = [1, 0], sizes = [288, 3], strides = [1, 1]} : vector<336x3xf32> to vector<288x3xf32>
    %26 = vector.extract_strided_slice %2 {offsets = [2, 0], sizes = [288, 3], strides = [1, 1]} : vector<336x3xf32> to vector<288x3xf32>
    %27 = vector.extract_strided_slice %2 {offsets = [18, 0], sizes = [288, 3], strides = [1, 1]} : vector<336x3xf32> to vector<288x3xf32>
    %28 = vector.extract_strided_slice %2 {offsets = [19, 0], sizes = [288, 3], strides = [1, 1]} : vector<336x3xf32> to vector<288x3xf32>
    %29 = vector.extract_strided_slice %2 {offsets = [20, 0], sizes = [288, 3], strides = [1, 1]} : vector<336x3xf32> to vector<288x3xf32>
    %30 = vector.extract_strided_slice %2 {offsets = [36, 0], sizes = [288, 3], strides = [1, 1]} : vector<336x3xf32> to vector<288x3xf32>
    %31 = vector.extract_strided_slice %2 {offsets = [37, 0], sizes = [288, 3], strides = [1, 1]} : vector<336x3xf32> to vector<288x3xf32>
    %32 = vector.extract_strided_slice %2 {offsets = [38, 0], sizes = [288, 3], strides = [1, 1]} : vector<336x3xf32> to vector<288x3xf32>
    %33 = tpu.concatenate %24, %25, %26, %27, %28, %29, %30, %31, %32 in 1 : vector<288x3xf32>, vector<288x3xf32>, vector<288x3xf32>, vector<288x3xf32>, vector<288x3xf32>, vector<288x3xf32>, vector<288x3xf32>, vector<288x3xf32>, vector<288x3xf32> -> vector<288x27xf32>
    %34 = arith.truncf %33 : vector<288x27xf32> to vector<288x27xbf16>
    %c0_5 = arith.constant 0 : index
    %c0_6 = arith.constant 0 : index
    %35 = vector.load %arg2[%c0_5, %c0_6] : memref<27x4xbf16, #tpu.memory_space<vmem>>, vector<27x4xbf16>
    %cst = arith.constant dense<0.000000e+00> : vector<288x4xf32>
    %36 = tpu.matmul %34, %35, %cst {dimension_numbers = #tpu.dot_dimension_numbers<[1], [0], [0], [1], [0, 0, 1, 1], [], []>} : vector<288x27xbf16>, vector<27x4xbf16>, vector<288x4xf32> -> vector<288x4xf32>
    %c0_7 = arith.constant 0 : index
    %c0_8 = arith.constant 0 : index
    %37 = vector.load %arg3[%c0_7, %c0_8] : memref<1x4xf32, #tpu.memory_space<vmem>>, vector<1x4xf32>
    %38 = vector.broadcast %37 : vector<1x4xf32> to vector<288x4xf32>
    %39 = arith.addf %36, %38 : vector<288x4xf32>
    %40 = vector.broadcast %23 : vector<288x1xf32> to vector<288x4xf32>
    %41 = arith.mulf %39, %40 : vector<288x4xf32>
    %cst_9 = arith.constant dense<0.000000e+00> : vector<4xf32>
    %42 = vector.multi_reduction <add>, %41, %cst_9 [0] : vector<288x4xf32> to vector<4xf32>
    %43 = vector.shape_cast %42 : vector<4xf32> to vector<1x4xf32>
    %cst_10 = arith.constant 3.906250e-03 : f32
    %44 = vector.broadcast %cst_10 : f32 to vector<1x4xf32>
    %45 = arith.mulf %43, %44 : vector<1x4xf32>
    %46 = arith.mulf %41, %41 : vector<288x4xf32>
    %cst_11 = arith.constant dense<0.000000e+00> : vector<4xf32>
    %47 = vector.multi_reduction <add>, %46, %cst_11 [0] : vector<288x4xf32> to vector<4xf32>
    %48 = vector.shape_cast %47 : vector<4xf32> to vector<1x4xf32>
    %cst_12 = arith.constant 3.906250e-03 : f32
    %49 = vector.broadcast %cst_12 : f32 to vector<1x4xf32>
    %50 = arith.mulf %48, %49 : vector<1x4xf32>
    %51 = arith.mulf %45, %45 : vector<1x4xf32>
    %52 = arith.subf %50, %51 : vector<1x4xf32>
    %cst_13 = arith.constant 0.000000e+00 : f32
    %53 = vector.broadcast %cst_13 : f32 to vector<1x4xf32>
    %54 = arith.maximumf %52, %53 : vector<1x4xf32>
    %55 = vector.broadcast %45 : vector<1x4xf32> to vector<288x4xf32>
    %56 = arith.subf %41, %55 : vector<288x4xf32>
    %cst_14 = arith.constant 9.99999974E-6 : f32
    %57 = vector.broadcast %cst_14 : f32 to vector<1x4xf32>
    %58 = arith.addf %54, %57 : vector<1x4xf32>
    %59 = math.rsqrt %58 : vector<1x4xf32>
    %60 = vector.broadcast %59 : vector<1x4xf32> to vector<288x4xf32>
    %61 = arith.mulf %56, %60 : vector<288x4xf32>
    %c0_15 = arith.constant 0 : index
    %c0_16 = arith.constant 0 : index
    %62 = vector.load %arg4[%c0_15, %c0_16] : memref<1x4xf32, #tpu.memory_space<vmem>>, vector<1x4xf32>
    %63 = vector.broadcast %62 : vector<1x4xf32> to vector<288x4xf32>
    %64 = arith.mulf %61, %63 : vector<288x4xf32>
    %c0_17 = arith.constant 0 : index
    %c0_18 = arith.constant 0 : index
    %65 = vector.load %arg5[%c0_17, %c0_18] : memref<1x4xf32, #tpu.memory_space<vmem>>, vector<1x4xf32>
    %66 = vector.broadcast %65 : vector<1x4xf32> to vector<288x4xf32>
    %67 = arith.addf %64, %66 : vector<288x4xf32>
    %cst_19 = arith.constant 0.000000e+00 : f32
    %68 = vector.broadcast %cst_19 : f32 to vector<288x4xf32>
    %69 = arith.maximumf %67, %68 : vector<288x4xf32>
    %70 = vector.broadcast %23 : vector<288x1xf32> to vector<288x4xf32>
    %71 = arith.mulf %69, %70 : vector<288x4xf32>
    %cst_20 = arith.constant 0.000000e+00 : f32
    %72 = vector.broadcast %cst_20 : f32 to vector<19x4xf32>
    %cst_21 = arith.constant 0.000000e+00 : f32
    %73 = vector.broadcast %cst_21 : f32 to vector<29x4xf32>
    %74 = tpu.concatenate %72, %71, %73 in 0 : vector<19x4xf32>, vector<288x4xf32>, vector<29x4xf32> -> vector<336x4xf32>
    %75 = arith.truncf %74 : vector<336x4xf32> to vector<336x4xbf16>
    %c0_22 = arith.constant 0 : index
    %c0_23 = arith.constant 0 : index
    %c0_24 = arith.constant 0 : index
    %76 = vector.load %arg6[%c0_22, %c0_23, %c0_24] : memref<1x336x4xbf16, #tpu.memory_space<vmem>>, vector<1x336x4xbf16>
    %77 = vector.shape_cast %76 : vector<1x336x4xbf16> to vector<336x4xbf16>
    %78 = vector.shape_cast %75 : vector<336x4xbf16> to vector<1x336x4xbf16>
    tpu.vector_store %arg6[%c0_22, %c0_23, %c0_24], %78 {strides = array<i32>} : memref<1x336x4xbf16, #tpu.memory_space<vmem>>, vector<1x336x4xbf16>,
    return
  }
  func.func @transform_0(%arg0: i32) -> (i32, i32, i32) {
    %c0_i32 = arith.constant 0 : i32
    %c0_i32_0 = arith.constant 0 : i32
    %c0_i32_1 = arith.constant 0 : i32
    return %arg0, %c0_i32, %c0_i32_0 : i32, i32, i32
  }
  func.func @transform_1(%arg0: i32) -> (i32, i32) {
    %c0_i32 = arith.constant 0 : i32
    %c0_i32_0 = arith.constant 0 : i32
    %c0_i32_1 = arith.constant 0 : i32
    return %c0_i32, %c0_i32_0 : i32, i32
  }
  func.func @transform_2(%arg0: i32) -> (i32, i32) {
    %c0_i32 = arith.constant 0 : i32
    %c0_i32_0 = arith.constant 0 : i32
    %c0_i32_1 = arith.constant 0 : i32
    return %c0_i32, %c0_i32_0 : i32, i32
  }
  func.func @transform_3(%arg0: i32) -> (i32, i32) {
    %c0_i32 = arith.constant 0 : i32
    %c0_i32_0 = arith.constant 0 : i32
    %c0_i32_1 = arith.constant 0 : i32
    return %c0_i32, %c0_i32_0 : i32, i32
  }
  func.func @transform_4(%arg0: i32) -> (i32, i32) {
    %c0_i32 = arith.constant 0 : i32
    %c0_i32_0 = arith.constant 0 : i32
    %c0_i32_1 = arith.constant 0 : i32
    return %c0_i32, %c0_i32_0 : i32, i32
  }
  func.func @transform_5(%arg0: i32) -> (i32, i32, i32) {
    %c0_i32 = arith.constant 0 : i32
    %c0_i32_0 = arith.constant 0 : i32
    %c0_i32_1 = arith.constant 0 : i32
    return %arg0, %c0_i32, %c0_i32_0 : i32, i32, i32
  }
}

module attributes {stable_mosaic.version = 11 : i64} {
  func.func @_conv_in_relu_kernel(%arg0: i32, %arg1: memref<1x112x16xbf16, #tpu.memory_space<vmem>>, %arg2: memref<64x8xbf16, #tpu.memory_space<vmem>>, %arg3: memref<1x8xf32, #tpu.memory_space<vmem>>, %arg4: memref<1x8xf32, #tpu.memory_space<vmem>>, %arg5: memref<1x8xf32, #tpu.memory_space<vmem>>, %arg6: memref<1x112x8xbf16, #tpu.memory_space<vmem>>) attributes {dimension_semantics = [#tpu.dimension_semantics<parallel>], iteration_bounds = array<i64: 2>, scalar_prefetch = 0 : i64, scratch_operands = 0 : i64, tpu.core_type = #tpu.core_type<tc>, window_params = [{transform_indices = @transform_0, window_bounds = array<i64: 1, 112, 16>}, {pipeline_mode = #tpu.pipeline_mode<synchronous>, transform_indices = @transform_1, window_bounds = array<i64: 64, 8>}, {pipeline_mode = #tpu.pipeline_mode<synchronous>, transform_indices = @transform_2, window_bounds = array<i64: 1, 8>}, {pipeline_mode = #tpu.pipeline_mode<synchronous>, transform_indices = @transform_3, window_bounds = array<i64: 1, 8>}, {pipeline_mode = #tpu.pipeline_mode<synchronous>, transform_indices = @transform_4, window_bounds = array<i64: 1, 8>}, {transform_indices = @transform_5, window_bounds = array<i64: 1, 112, 8>}]} {
    %c0 = arith.constant 0 : index
    %c0_0 = arith.constant 0 : index
    %c0_1 = arith.constant 0 : index
    %0 = vector.load %arg1[%c0, %c0_0, %c0_1] : memref<1x112x16xbf16, #tpu.memory_space<vmem>>, vector<1x112x16xbf16>
    %1 = vector.shape_cast %0 : vector<1x112x16xbf16> to vector<112x16xbf16>
    %2 = arith.extf %1 : vector<112x16xbf16> to vector<112x16xf32>
    %3 = tpu.iota {dimensions = array<i32: 0>} : vector<80x1xi32>
    %c10_i32 = arith.constant 10 : i32
    %c0_i32 = arith.constant 0 : i32
    %4 = arith.cmpi eq, %c10_i32, %c0_i32 : i32
    %c1_i32 = arith.constant 1 : i32
    %5 = arith.select %4, %c1_i32, %c10_i32 : i32
    %6 = vector.broadcast %5 : i32 to vector<80x1xi32>
    %7 = arith.remsi %3, %6 : vector<80x1xi32>
    %c0_i32_2 = arith.constant 0 : i32
    %8 = vector.broadcast %c0_i32_2 : i32 to vector<80x1xi32>
    %9 = arith.cmpi ne, %7, %8 : vector<80x1xi32>
    %c0_i32_3 = arith.constant 0 : i32
    %10 = vector.broadcast %c0_i32_3 : i32 to vector<80x1xi32>
    %11 = arith.cmpi slt, %7, %10 : vector<80x1xi32>
    %c0_i32_4 = arith.constant 0 : i32
    %12 = arith.cmpi slt, %5, %c0_i32_4 : i32
    %13 = vector.broadcast %12 : i1 to vector<80x1xi1>
    %14 = vector.broadcast %13 : vector<80x1xi1> to vector<80x1xi1>
    %15 = arith.xori %11, %14 : vector<80x1xi1>
    %16 = arith.andi %15, %9 : vector<80x1xi1>
    %17 = vector.broadcast %5 : i32 to vector<80x1xi32>
    %18 = arith.addi %7, %17 : vector<80x1xi32>
    %19 = arith.select %16, %18, %7 : vector<80x1xi1>, vector<80x1xi32>
    %c8_i32 = arith.constant 8 : i32
    %20 = vector.broadcast %c8_i32 : i32 to vector<80x1xi32>
    %21 = arith.cmpi slt, %19, %20 : vector<80x1xi32>
    %22 = arith.extui %21 : vector<80x1xi1> to vector<80x1xi32>
    %23 = arith.sitofp %22 : vector<80x1xi32> to vector<80x1xf32>
    %24 = vector.extract_strided_slice %2 {offsets = [0, 0], sizes = [80, 16], strides = [1, 1]} : vector<112x16xf32> to vector<80x16xf32>
    %25 = vector.extract_strided_slice %2 {offsets = [1, 0], sizes = [80, 16], strides = [1, 1]} : vector<112x16xf32> to vector<80x16xf32>
    %26 = vector.extract_strided_slice %2 {offsets = [10, 0], sizes = [80, 16], strides = [1, 1]} : vector<112x16xf32> to vector<80x16xf32>
    %27 = vector.extract_strided_slice %2 {offsets = [11, 0], sizes = [80, 16], strides = [1, 1]} : vector<112x16xf32> to vector<80x16xf32>
    %28 = tpu.concatenate %24, %25, %26, %27 in 1 : vector<80x16xf32>, vector<80x16xf32>, vector<80x16xf32>, vector<80x16xf32> -> vector<80x64xf32>
    %29 = arith.truncf %28 : vector<80x64xf32> to vector<80x64xbf16>
    %c0_5 = arith.constant 0 : index
    %c0_6 = arith.constant 0 : index
    %30 = vector.load %arg2[%c0_5, %c0_6] : memref<64x8xbf16, #tpu.memory_space<vmem>>, vector<64x8xbf16>
    %cst = arith.constant dense<0.000000e+00> : vector<80x8xf32>
    %31 = tpu.matmul %29, %30, %cst {dimension_numbers = #tpu.dot_dimension_numbers<[1], [0], [0], [1], [0, 0, 1, 1], [], []>} : vector<80x64xbf16>, vector<64x8xbf16>, vector<80x8xf32> -> vector<80x8xf32>
    %c0_7 = arith.constant 0 : index
    %c0_8 = arith.constant 0 : index
    %32 = vector.load %arg3[%c0_7, %c0_8] : memref<1x8xf32, #tpu.memory_space<vmem>>, vector<1x8xf32>
    %33 = vector.broadcast %32 : vector<1x8xf32> to vector<80x8xf32>
    %34 = arith.addf %31, %33 : vector<80x8xf32>
    %35 = vector.broadcast %23 : vector<80x1xf32> to vector<80x8xf32>
    %36 = arith.mulf %34, %35 : vector<80x8xf32>
    %cst_9 = arith.constant dense<0.000000e+00> : vector<8xf32>
    %37 = vector.multi_reduction <add>, %36, %cst_9 [0] : vector<80x8xf32> to vector<8xf32>
    %38 = vector.shape_cast %37 : vector<8xf32> to vector<1x8xf32>
    %cst_10 = arith.constant 1.562500e-02 : f32
    %39 = vector.broadcast %cst_10 : f32 to vector<1x8xf32>
    %40 = arith.mulf %38, %39 : vector<1x8xf32>
    %41 = arith.mulf %36, %36 : vector<80x8xf32>
    %cst_11 = arith.constant dense<0.000000e+00> : vector<8xf32>
    %42 = vector.multi_reduction <add>, %41, %cst_11 [0] : vector<80x8xf32> to vector<8xf32>
    %43 = vector.shape_cast %42 : vector<8xf32> to vector<1x8xf32>
    %cst_12 = arith.constant 1.562500e-02 : f32
    %44 = vector.broadcast %cst_12 : f32 to vector<1x8xf32>
    %45 = arith.mulf %43, %44 : vector<1x8xf32>
    %46 = arith.mulf %40, %40 : vector<1x8xf32>
    %47 = arith.subf %45, %46 : vector<1x8xf32>
    %cst_13 = arith.constant 0.000000e+00 : f32
    %48 = vector.broadcast %cst_13 : f32 to vector<1x8xf32>
    %49 = arith.maximumf %47, %48 : vector<1x8xf32>
    %50 = vector.broadcast %40 : vector<1x8xf32> to vector<80x8xf32>
    %51 = arith.subf %36, %50 : vector<80x8xf32>
    %cst_14 = arith.constant 9.99999974E-6 : f32
    %52 = vector.broadcast %cst_14 : f32 to vector<1x8xf32>
    %53 = arith.addf %49, %52 : vector<1x8xf32>
    %54 = math.rsqrt %53 : vector<1x8xf32>
    %55 = vector.broadcast %54 : vector<1x8xf32> to vector<80x8xf32>
    %56 = arith.mulf %51, %55 : vector<80x8xf32>
    %c0_15 = arith.constant 0 : index
    %c0_16 = arith.constant 0 : index
    %57 = vector.load %arg4[%c0_15, %c0_16] : memref<1x8xf32, #tpu.memory_space<vmem>>, vector<1x8xf32>
    %58 = vector.broadcast %57 : vector<1x8xf32> to vector<80x8xf32>
    %59 = arith.mulf %56, %58 : vector<80x8xf32>
    %c0_17 = arith.constant 0 : index
    %c0_18 = arith.constant 0 : index
    %60 = vector.load %arg5[%c0_17, %c0_18] : memref<1x8xf32, #tpu.memory_space<vmem>>, vector<1x8xf32>
    %61 = vector.broadcast %60 : vector<1x8xf32> to vector<80x8xf32>
    %62 = arith.addf %59, %61 : vector<80x8xf32>
    %cst_19 = arith.constant 0.000000e+00 : f32
    %63 = vector.broadcast %cst_19 : f32 to vector<80x8xf32>
    %64 = arith.maximumf %62, %63 : vector<80x8xf32>
    %65 = vector.broadcast %23 : vector<80x1xf32> to vector<80x8xf32>
    %66 = arith.mulf %64, %65 : vector<80x8xf32>
    %cst_20 = arith.constant 0.000000e+00 : f32
    %67 = vector.broadcast %cst_20 : f32 to vector<11x8xf32>
    %cst_21 = arith.constant 0.000000e+00 : f32
    %68 = vector.broadcast %cst_21 : f32 to vector<21x8xf32>
    %69 = tpu.concatenate %67, %66, %68 in 0 : vector<11x8xf32>, vector<80x8xf32>, vector<21x8xf32> -> vector<112x8xf32>
    %70 = arith.truncf %69 : vector<112x8xf32> to vector<112x8xbf16>
    %c0_22 = arith.constant 0 : index
    %c0_23 = arith.constant 0 : index
    %c0_24 = arith.constant 0 : index
    %71 = vector.load %arg6[%c0_22, %c0_23, %c0_24] : memref<1x112x8xbf16, #tpu.memory_space<vmem>>, vector<1x112x8xbf16>
    %72 = vector.shape_cast %71 : vector<1x112x8xbf16> to vector<112x8xbf16>
    %73 = vector.shape_cast %70 : vector<112x8xbf16> to vector<1x112x8xbf16>
    tpu.vector_store %arg6[%c0_22, %c0_23, %c0_24], %73 {strides = array<i32>} : memref<1x112x8xbf16, #tpu.memory_space<vmem>>, vector<1x112x8xbf16>,
    return
  }
  func.func @transform_0(%arg0: i32) -> (i32, i32, i32) {
    %c0_i32 = arith.constant 0 : i32
    %c0_i32_0 = arith.constant 0 : i32
    %c0_i32_1 = arith.constant 0 : i32
    return %arg0, %c0_i32, %c0_i32_0 : i32, i32, i32
  }
  func.func @transform_1(%arg0: i32) -> (i32, i32) {
    %c0_i32 = arith.constant 0 : i32
    %c0_i32_0 = arith.constant 0 : i32
    %c0_i32_1 = arith.constant 0 : i32
    return %c0_i32, %c0_i32_0 : i32, i32
  }
  func.func @transform_2(%arg0: i32) -> (i32, i32) {
    %c0_i32 = arith.constant 0 : i32
    %c0_i32_0 = arith.constant 0 : i32
    %c0_i32_1 = arith.constant 0 : i32
    return %c0_i32, %c0_i32_0 : i32, i32
  }
  func.func @transform_3(%arg0: i32) -> (i32, i32) {
    %c0_i32 = arith.constant 0 : i32
    %c0_i32_0 = arith.constant 0 : i32
    %c0_i32_1 = arith.constant 0 : i32
    return %c0_i32, %c0_i32_0 : i32, i32
  }
  func.func @transform_4(%arg0: i32) -> (i32, i32) {
    %c0_i32 = arith.constant 0 : i32
    %c0_i32_0 = arith.constant 0 : i32
    %c0_i32_1 = arith.constant 0 : i32
    return %c0_i32, %c0_i32_0 : i32, i32
  }
  func.func @transform_5(%arg0: i32) -> (i32, i32, i32) {
    %c0_i32 = arith.constant 0 : i32
    %c0_i32_0 = arith.constant 0 : i32
    %c0_i32_1 = arith.constant 0 : i32
    return %arg0, %c0_i32, %c0_i32_0 : i32, i32, i32
  }
}

module attributes {stable_mosaic.version = 11 : i64} {
  func.func @_res_block_kernel(%arg0: i32, %arg1: memref<1x112x8xbf16, #tpu.memory_space<vmem>>, %arg2: memref<72x8xbf16, #tpu.memory_space<vmem>>, %arg3: memref<1x8xf32, #tpu.memory_space<vmem>>, %arg4: memref<1x8xf32, #tpu.memory_space<vmem>>, %arg5: memref<1x8xf32, #tpu.memory_space<vmem>>, %arg6: memref<72x8xbf16, #tpu.memory_space<vmem>>, %arg7: memref<1x8xf32, #tpu.memory_space<vmem>>, %arg8: memref<1x8xf32, #tpu.memory_space<vmem>>, %arg9: memref<1x8xf32, #tpu.memory_space<vmem>>, %arg10: memref<1x112x8xbf16, #tpu.memory_space<vmem>>) attributes {dimension_semantics = [#tpu.dimension_semantics<parallel>], iteration_bounds = array<i64: 2>, scalar_prefetch = 0 : i64, scratch_operands = 0 : i64, tpu.core_type = #tpu.core_type<tc>, window_params = [{transform_indices = @transform_0, window_bounds = array<i64: 1, 112, 8>}, {pipeline_mode = #tpu.pipeline_mode<synchronous>, transform_indices = @transform_1, window_bounds = array<i64: 72, 8>}, {pipeline_mode = #tpu.pipeline_mode<synchronous>, transform_indices = @transform_2, window_bounds = array<i64: 1, 8>}, {pipeline_mode = #tpu.pipeline_mode<synchronous>, transform_indices = @transform_3, window_bounds = array<i64: 1, 8>}, {pipeline_mode = #tpu.pipeline_mode<synchronous>, transform_indices = @transform_4, window_bounds = array<i64: 1, 8>}, {pipeline_mode = #tpu.pipeline_mode<synchronous>, transform_indices = @transform_5, window_bounds = array<i64: 72, 8>}, {pipeline_mode = #tpu.pipeline_mode<synchronous>, transform_indices = @transform_6, window_bounds = array<i64: 1, 8>}, {pipeline_mode = #tpu.pipeline_mode<synchronous>, transform_indices = @transform_7, window_bounds = array<i64: 1, 8>}, {pipeline_mode = #tpu.pipeline_mode<synchronous>, transform_indices = @transform_8, window_bounds = array<i64: 1, 8>}, {transform_indices = @transform_9, window_bounds = array<i64: 1, 112, 8>}]} {
    %c0 = arith.constant 0 : index
    %c0_0 = arith.constant 0 : index
    %c0_1 = arith.constant 0 : index
    %0 = vector.load %arg1[%c0, %c0_0, %c0_1] : memref<1x112x8xbf16, #tpu.memory_space<vmem>>, vector<1x112x8xbf16>
    %1 = vector.shape_cast %0 : vector<1x112x8xbf16> to vector<112x8xbf16>
    %2 = arith.extf %1 : vector<112x8xbf16> to vector<112x8xf32>
    %3 = tpu.iota {dimensions = array<i32: 0>} : vector<80x1xi32>
    %c10_i32 = arith.constant 10 : i32
    %c0_i32 = arith.constant 0 : i32
    %4 = arith.cmpi eq, %c10_i32, %c0_i32 : i32
    %c1_i32 = arith.constant 1 : i32
    %5 = arith.select %4, %c1_i32, %c10_i32 : i32
    %6 = vector.broadcast %5 : i32 to vector<80x1xi32>
    %7 = arith.remsi %3, %6 : vector<80x1xi32>
    %c0_i32_2 = arith.constant 0 : i32
    %8 = vector.broadcast %c0_i32_2 : i32 to vector<80x1xi32>
    %9 = arith.cmpi ne, %7, %8 : vector<80x1xi32>
    %c0_i32_3 = arith.constant 0 : i32
    %10 = vector.broadcast %c0_i32_3 : i32 to vector<80x1xi32>
    %11 = arith.cmpi slt, %7, %10 : vector<80x1xi32>
    %c0_i32_4 = arith.constant 0 : i32
    %12 = arith.cmpi slt, %5, %c0_i32_4 : i32
    %13 = vector.broadcast %12 : i1 to vector<80x1xi1>
    %14 = vector.broadcast %13 : vector<80x1xi1> to vector<80x1xi1>
    %15 = arith.xori %11, %14 : vector<80x1xi1>
    %16 = arith.andi %15, %9 : vector<80x1xi1>
    %17 = vector.broadcast %5 : i32 to vector<80x1xi32>
    %18 = arith.addi %7, %17 : vector<80x1xi32>
    %19 = arith.select %16, %18, %7 : vector<80x1xi1>, vector<80x1xi32>
    %c8_i32 = arith.constant 8 : i32
    %20 = vector.broadcast %c8_i32 : i32 to vector<80x1xi32>
    %21 = arith.cmpi slt, %19, %20 : vector<80x1xi32>
    %22 = arith.extui %21 : vector<80x1xi1> to vector<80x1xi32>
    %23 = arith.sitofp %22 : vector<80x1xi32> to vector<80x1xf32>
    %24 = vector.extract_strided_slice %2 {offsets = [0, 0], sizes = [80, 8], strides = [1, 1]} : vector<112x8xf32> to vector<80x8xf32>
    %25 = vector.extract_strided_slice %2 {offsets = [1, 0], sizes = [80, 8], strides = [1, 1]} : vector<112x8xf32> to vector<80x8xf32>
    %26 = vector.extract_strided_slice %2 {offsets = [2, 0], sizes = [80, 8], strides = [1, 1]} : vector<112x8xf32> to vector<80x8xf32>
    %27 = vector.extract_strided_slice %2 {offsets = [10, 0], sizes = [80, 8], strides = [1, 1]} : vector<112x8xf32> to vector<80x8xf32>
    %28 = vector.extract_strided_slice %2 {offsets = [11, 0], sizes = [80, 8], strides = [1, 1]} : vector<112x8xf32> to vector<80x8xf32>
    %29 = vector.extract_strided_slice %2 {offsets = [12, 0], sizes = [80, 8], strides = [1, 1]} : vector<112x8xf32> to vector<80x8xf32>
    %30 = vector.extract_strided_slice %2 {offsets = [20, 0], sizes = [80, 8], strides = [1, 1]} : vector<112x8xf32> to vector<80x8xf32>
    %31 = vector.extract_strided_slice %2 {offsets = [21, 0], sizes = [80, 8], strides = [1, 1]} : vector<112x8xf32> to vector<80x8xf32>
    %32 = vector.extract_strided_slice %2 {offsets = [22, 0], sizes = [80, 8], strides = [1, 1]} : vector<112x8xf32> to vector<80x8xf32>
    %33 = tpu.concatenate %24, %25, %26, %27, %28, %29, %30, %31, %32 in 1 : vector<80x8xf32>, vector<80x8xf32>, vector<80x8xf32>, vector<80x8xf32>, vector<80x8xf32>, vector<80x8xf32>, vector<80x8xf32>, vector<80x8xf32>, vector<80x8xf32> -> vector<80x72xf32>
    %34 = arith.truncf %33 : vector<80x72xf32> to vector<80x72xbf16>
    %c0_5 = arith.constant 0 : index
    %c0_6 = arith.constant 0 : index
    %35 = vector.load %arg2[%c0_5, %c0_6] : memref<72x8xbf16, #tpu.memory_space<vmem>>, vector<72x8xbf16>
    %cst = arith.constant dense<0.000000e+00> : vector<80x8xf32>
    %36 = tpu.matmul %34, %35, %cst {dimension_numbers = #tpu.dot_dimension_numbers<[1], [0], [0], [1], [0, 0, 1, 1], [], []>} : vector<80x72xbf16>, vector<72x8xbf16>, vector<80x8xf32> -> vector<80x8xf32>
    %c0_7 = arith.constant 0 : index
    %c0_8 = arith.constant 0 : index
    %37 = vector.load %arg3[%c0_7, %c0_8] : memref<1x8xf32, #tpu.memory_space<vmem>>, vector<1x8xf32>
    %38 = vector.broadcast %37 : vector<1x8xf32> to vector<80x8xf32>
    %39 = arith.addf %36, %38 : vector<80x8xf32>
    %40 = vector.broadcast %23 : vector<80x1xf32> to vector<80x8xf32>
    %41 = arith.mulf %39, %40 : vector<80x8xf32>
    %cst_9 = arith.constant dense<0.000000e+00> : vector<8xf32>
    %42 = vector.multi_reduction <add>, %41, %cst_9 [0] : vector<80x8xf32> to vector<8xf32>
    %43 = vector.shape_cast %42 : vector<8xf32> to vector<1x8xf32>
    %cst_10 = arith.constant 1.562500e-02 : f32
    %44 = vector.broadcast %cst_10 : f32 to vector<1x8xf32>
    %45 = arith.mulf %43, %44 : vector<1x8xf32>
    %46 = arith.mulf %41, %41 : vector<80x8xf32>
    %cst_11 = arith.constant dense<0.000000e+00> : vector<8xf32>
    %47 = vector.multi_reduction <add>, %46, %cst_11 [0] : vector<80x8xf32> to vector<8xf32>
    %48 = vector.shape_cast %47 : vector<8xf32> to vector<1x8xf32>
    %cst_12 = arith.constant 1.562500e-02 : f32
    %49 = vector.broadcast %cst_12 : f32 to vector<1x8xf32>
    %50 = arith.mulf %48, %49 : vector<1x8xf32>
    %51 = arith.mulf %45, %45 : vector<1x8xf32>
    %52 = arith.subf %50, %51 : vector<1x8xf32>
    %cst_13 = arith.constant 0.000000e+00 : f32
    %53 = vector.broadcast %cst_13 : f32 to vector<1x8xf32>
    %54 = arith.maximumf %52, %53 : vector<1x8xf32>
    %55 = vector.broadcast %45 : vector<1x8xf32> to vector<80x8xf32>
    %56 = arith.subf %41, %55 : vector<80x8xf32>
    %cst_14 = arith.constant 9.99999974E-6 : f32
    %57 = vector.broadcast %cst_14 : f32 to vector<1x8xf32>
    %58 = arith.addf %54, %57 : vector<1x8xf32>
    %59 = math.rsqrt %58 : vector<1x8xf32>
    %60 = vector.broadcast %59 : vector<1x8xf32> to vector<80x8xf32>
    %61 = arith.mulf %56, %60 : vector<80x8xf32>
    %c0_15 = arith.constant 0 : index
    %c0_16 = arith.constant 0 : index
    %62 = vector.load %arg4[%c0_15, %c0_16] : memref<1x8xf32, #tpu.memory_space<vmem>>, vector<1x8xf32>
    %63 = vector.broadcast %62 : vector<1x8xf32> to vector<80x8xf32>
    %64 = arith.mulf %61, %63 : vector<80x8xf32>
    %c0_17 = arith.constant 0 : index
    %c0_18 = arith.constant 0 : index
    %65 = vector.load %arg5[%c0_17, %c0_18] : memref<1x8xf32, #tpu.memory_space<vmem>>, vector<1x8xf32>
    %66 = vector.broadcast %65 : vector<1x8xf32> to vector<80x8xf32>
    %67 = arith.addf %64, %66 : vector<80x8xf32>
    %cst_19 = arith.constant 0.000000e+00 : f32
    %68 = vector.broadcast %cst_19 : f32 to vector<80x8xf32>
    %69 = arith.maximumf %67, %68 : vector<80x8xf32>
    %70 = vector.broadcast %23 : vector<80x1xf32> to vector<80x8xf32>
    %71 = arith.mulf %69, %70 : vector<80x8xf32>
    %cst_20 = arith.constant 0.000000e+00 : f32
    %72 = vector.broadcast %cst_20 : f32 to vector<11x8xf32>
    %cst_21 = arith.constant 0.000000e+00 : f32
    %73 = vector.broadcast %cst_21 : f32 to vector<21x8xf32>
    %74 = tpu.concatenate %72, %71, %73 in 0 : vector<11x8xf32>, vector<80x8xf32>, vector<21x8xf32> -> vector<112x8xf32>
    %75 = vector.extract_strided_slice %74 {offsets = [0, 0], sizes = [80, 8], strides = [1, 1]} : vector<112x8xf32> to vector<80x8xf32>
    %76 = vector.extract_strided_slice %74 {offsets = [1, 0], sizes = [80, 8], strides = [1, 1]} : vector<112x8xf32> to vector<80x8xf32>
    %77 = vector.extract_strided_slice %74 {offsets = [2, 0], sizes = [80, 8], strides = [1, 1]} : vector<112x8xf32> to vector<80x8xf32>
    %78 = vector.extract_strided_slice %74 {offsets = [10, 0], sizes = [80, 8], strides = [1, 1]} : vector<112x8xf32> to vector<80x8xf32>
    %79 = vector.extract_strided_slice %74 {offsets = [11, 0], sizes = [80, 8], strides = [1, 1]} : vector<112x8xf32> to vector<80x8xf32>
    %80 = vector.extract_strided_slice %74 {offsets = [12, 0], sizes = [80, 8], strides = [1, 1]} : vector<112x8xf32> to vector<80x8xf32>
    %81 = vector.extract_strided_slice %74 {offsets = [20, 0], sizes = [80, 8], strides = [1, 1]} : vector<112x8xf32> to vector<80x8xf32>
    %82 = vector.extract_strided_slice %74 {offsets = [21, 0], sizes = [80, 8], strides = [1, 1]} : vector<112x8xf32> to vector<80x8xf32>
    %83 = vector.extract_strided_slice %74 {offsets = [22, 0], sizes = [80, 8], strides = [1, 1]} : vector<112x8xf32> to vector<80x8xf32>
    %84 = tpu.concatenate %75, %76, %77, %78, %79, %80, %81, %82, %83 in 1 : vector<80x8xf32>, vector<80x8xf32>, vector<80x8xf32>, vector<80x8xf32>, vector<80x8xf32>, vector<80x8xf32>, vector<80x8xf32>, vector<80x8xf32>, vector<80x8xf32> -> vector<80x72xf32>
    %85 = arith.truncf %84 : vector<80x72xf32> to vector<80x72xbf16>
    %c0_22 = arith.constant 0 : index
    %c0_23 = arith.constant 0 : index
    %86 = vector.load %arg6[%c0_22, %c0_23] : memref<72x8xbf16, #tpu.memory_space<vmem>>, vector<72x8xbf16>
    %cst_24 = arith.constant dense<0.000000e+00> : vector<80x8xf32>
    %87 = tpu.matmul %85, %86, %cst_24 {dimension_numbers = #tpu.dot_dimension_numbers<[1], [0], [0], [1], [0, 0, 1, 1], [], []>} : vector<80x72xbf16>, vector<72x8xbf16>, vector<80x8xf32> -> vector<80x8xf32>
    %c0_25 = arith.constant 0 : index
    %c0_26 = arith.constant 0 : index
    %88 = vector.load %arg7[%c0_25, %c0_26] : memref<1x8xf32, #tpu.memory_space<vmem>>, vector<1x8xf32>
    %89 = vector.broadcast %88 : vector<1x8xf32> to vector<80x8xf32>
    %90 = arith.addf %87, %89 : vector<80x8xf32>
    %91 = vector.broadcast %23 : vector<80x1xf32> to vector<80x8xf32>
    %92 = arith.mulf %90, %91 : vector<80x8xf32>
    %cst_27 = arith.constant dense<0.000000e+00> : vector<8xf32>
    %93 = vector.multi_reduction <add>, %92, %cst_27 [0] : vector<80x8xf32> to vector<8xf32>
    %94 = vector.shape_cast %93 : vector<8xf32> to vector<1x8xf32>
    %cst_28 = arith.constant 1.562500e-02 : f32
    %95 = vector.broadcast %cst_28 : f32 to vector<1x8xf32>
    %96 = arith.mulf %94, %95 : vector<1x8xf32>
    %97 = arith.mulf %92, %92 : vector<80x8xf32>
    %cst_29 = arith.constant dense<0.000000e+00> : vector<8xf32>
    %98 = vector.multi_reduction <add>, %97, %cst_29 [0] : vector<80x8xf32> to vector<8xf32>
    %99 = vector.shape_cast %98 : vector<8xf32> to vector<1x8xf32>
    %cst_30 = arith.constant 1.562500e-02 : f32
    %100 = vector.broadcast %cst_30 : f32 to vector<1x8xf32>
    %101 = arith.mulf %99, %100 : vector<1x8xf32>
    %102 = arith.mulf %96, %96 : vector<1x8xf32>
    %103 = arith.subf %101, %102 : vector<1x8xf32>
    %cst_31 = arith.constant 0.000000e+00 : f32
    %104 = vector.broadcast %cst_31 : f32 to vector<1x8xf32>
    %105 = arith.maximumf %103, %104 : vector<1x8xf32>
    %106 = vector.broadcast %96 : vector<1x8xf32> to vector<80x8xf32>
    %107 = arith.subf %92, %106 : vector<80x8xf32>
    %cst_32 = arith.constant 9.99999974E-6 : f32
    %108 = vector.broadcast %cst_32 : f32 to vector<1x8xf32>
    %109 = arith.addf %105, %108 : vector<1x8xf32>
    %110 = math.rsqrt %109 : vector<1x8xf32>
    %111 = vector.broadcast %110 : vector<1x8xf32> to vector<80x8xf32>
    %112 = arith.mulf %107, %111 : vector<80x8xf32>
    %c0_33 = arith.constant 0 : index
    %c0_34 = arith.constant 0 : index
    %113 = vector.load %arg8[%c0_33, %c0_34] : memref<1x8xf32, #tpu.memory_space<vmem>>, vector<1x8xf32>
    %114 = vector.broadcast %113 : vector<1x8xf32> to vector<80x8xf32>
    %115 = arith.mulf %112, %114 : vector<80x8xf32>
    %c0_35 = arith.constant 0 : index
    %c0_36 = arith.constant 0 : index
    %116 = vector.load %arg9[%c0_35, %c0_36] : memref<1x8xf32, #tpu.memory_space<vmem>>, vector<1x8xf32>
    %117 = vector.broadcast %116 : vector<1x8xf32> to vector<80x8xf32>
    %118 = arith.addf %115, %117 : vector<80x8xf32>
    %119 = vector.extract_strided_slice %2 {offsets = [11, 0], sizes = [80, 8], strides = [1, 1]} : vector<112x8xf32> to vector<80x8xf32>
    %120 = arith.addf %118, %119 : vector<80x8xf32>
    %cst_37 = arith.constant 0.000000e+00 : f32
    %121 = vector.broadcast %cst_37 : f32 to vector<80x8xf32>
    %122 = arith.maximumf %120, %121 : vector<80x8xf32>
    %123 = vector.broadcast %23 : vector<80x1xf32> to vector<80x8xf32>
    %124 = arith.mulf %122, %123 : vector<80x8xf32>
    %cst_38 = arith.constant 0.000000e+00 : f32
    %125 = vector.broadcast %cst_38 : f32 to vector<11x8xf32>
    %cst_39 = arith.constant 0.000000e+00 : f32
    %126 = vector.broadcast %cst_39 : f32 to vector<21x8xf32>
    %127 = tpu.concatenate %125, %124, %126 in 0 : vector<11x8xf32>, vector<80x8xf32>, vector<21x8xf32> -> vector<112x8xf32>
    %128 = arith.truncf %127 : vector<112x8xf32> to vector<112x8xbf16>
    %c0_40 = arith.constant 0 : index
    %c0_41 = arith.constant 0 : index
    %c0_42 = arith.constant 0 : index
    %129 = vector.load %arg10[%c0_40, %c0_41, %c0_42] : memref<1x112x8xbf16, #tpu.memory_space<vmem>>, vector<1x112x8xbf16>
    %130 = vector.shape_cast %129 : vector<1x112x8xbf16> to vector<112x8xbf16>
    %131 = vector.shape_cast %128 : vector<112x8xbf16> to vector<1x112x8xbf16>
    tpu.vector_store %arg10[%c0_40, %c0_41, %c0_42], %131 {strides = array<i32>} : memref<1x112x8xbf16, #tpu.memory_space<vmem>>, vector<1x112x8xbf16>,
    return
  }
  func.func @transform_0(%arg0: i32) -> (i32, i32, i32) {
    %c0_i32 = arith.constant 0 : i32
    %c0_i32_0 = arith.constant 0 : i32
    %c0_i32_1 = arith.constant 0 : i32
    return %arg0, %c0_i32, %c0_i32_0 : i32, i32, i32
  }
  func.func @transform_1(%arg0: i32) -> (i32, i32) {
    %c0_i32 = arith.constant 0 : i32
    %c0_i32_0 = arith.constant 0 : i32
    %c0_i32_1 = arith.constant 0 : i32
    return %c0_i32, %c0_i32_0 : i32, i32
  }
  func.func @transform_2(%arg0: i32) -> (i32, i32) {
    %c0_i32 = arith.constant 0 : i32
    %c0_i32_0 = arith.constant 0 : i32
    %c0_i32_1 = arith.constant 0 : i32
    return %c0_i32, %c0_i32_0 : i32, i32
  }
  func.func @transform_3(%arg0: i32) -> (i32, i32) {
    %c0_i32 = arith.constant 0 : i32
    %c0_i32_0 = arith.constant 0 : i32
    %c0_i32_1 = arith.constant 0 : i32
    return %c0_i32, %c0_i32_0 : i32, i32
  }
  func.func @transform_4(%arg0: i32) -> (i32, i32) {
    %c0_i32 = arith.constant 0 : i32
    %c0_i32_0 = arith.constant 0 : i32
    %c0_i32_1 = arith.constant 0 : i32
    return %c0_i32, %c0_i32_0 : i32, i32
  }
  func.func @transform_5(%arg0: i32) -> (i32, i32) {
    %c0_i32 = arith.constant 0 : i32
    %c0_i32_0 = arith.constant 0 : i32
    %c0_i32_1 = arith.constant 0 : i32
    return %c0_i32, %c0_i32_0 : i32, i32
  }
  func.func @transform_6(%arg0: i32) -> (i32, i32) {
    %c0_i32 = arith.constant 0 : i32
    %c0_i32_0 = arith.constant 0 : i32
    %c0_i32_1 = arith.constant 0 : i32
    return %c0_i32, %c0_i32_0 : i32, i32
  }
  func.func @transform_7(%arg0: i32) -> (i32, i32) {
    %c0_i32 = arith.constant 0 : i32
    %c0_i32_0 = arith.constant 0 : i32
    %c0_i32_1 = arith.constant 0 : i32
    return %c0_i32, %c0_i32_0 : i32, i32
  }
  func.func @transform_8(%arg0: i32) -> (i32, i32) {
    %c0_i32 = arith.constant 0 : i32
    %c0_i32_0 = arith.constant 0 : i32
    %c0_i32_1 = arith.constant 0 : i32
    return %c0_i32, %c0_i32_0 : i32, i32
  }
  func.func @transform_9(%arg0: i32) -> (i32, i32, i32) {
    %c0_i32 = arith.constant 0 : i32
    %c0_i32_0 = arith.constant 0 : i32
    %c0_i32_1 = arith.constant 0 : i32
    return %arg0, %c0_i32, %c0_i32_0 : i32, i32, i32
  }
}

module attributes {stable_mosaic.version = 11 : i64} {
  func.func @_mlp_head_kernel(%arg0: memref<2x896xbf16, #tpu.memory_space<vmem>>, %arg1: memref<896x32xbf16, #tpu.memory_space<vmem>>, %arg2: memref<1x32xf32, #tpu.memory_space<vmem>>, %arg3: memref<32x32xbf16, #tpu.memory_space<vmem>>, %arg4: memref<1x32xf32, #tpu.memory_space<vmem>>, %arg5: memref<32x16xbf16, #tpu.memory_space<vmem>>, %arg6: memref<1x16xf32, #tpu.memory_space<vmem>>, %arg7: memref<16x16xbf16, #tpu.memory_space<vmem>>, %arg8: memref<1x16xf32, #tpu.memory_space<vmem>>, %arg9: memref<2x16xf32, #tpu.memory_space<vmem>>) attributes {dimension_semantics = [], scalar_prefetch = 0 : i64, scratch_operands = 0 : i64, tpu.core_type = #tpu.core_type<tc>} {
    %c0 = arith.constant 0 : index
    %c0_0 = arith.constant 0 : index
    %0 = vector.load %arg0[%c0, %c0_0] : memref<2x896xbf16, #tpu.memory_space<vmem>>, vector<2x896xbf16>
    %c0_1 = arith.constant 0 : index
    %c0_2 = arith.constant 0 : index
    %1 = vector.load %arg1[%c0_1, %c0_2] : memref<896x32xbf16, #tpu.memory_space<vmem>>, vector<896x32xbf16>
    %cst = arith.constant dense<0.000000e+00> : vector<2x32xf32>
    %2 = tpu.matmul %0, %1, %cst {dimension_numbers = #tpu.dot_dimension_numbers<[1], [0], [0], [1], [0, 0, 1, 1], [], []>} : vector<2x896xbf16>, vector<896x32xbf16>, vector<2x32xf32> -> vector<2x32xf32>
    %c0_3 = arith.constant 0 : index
    %c0_4 = arith.constant 0 : index
    %3 = vector.load %arg2[%c0_3, %c0_4] : memref<1x32xf32, #tpu.memory_space<vmem>>, vector<1x32xf32>
    %4 = vector.broadcast %3 : vector<1x32xf32> to vector<2x32xf32>
    %5 = arith.addf %2, %4 : vector<2x32xf32>
    %cst_5 = arith.constant 0.000000e+00 : f32
    %6 = vector.broadcast %cst_5 : f32 to vector<2x32xf32>
    %7 = arith.maximumf %5, %6 : vector<2x32xf32>
    %8 = arith.truncf %7 : vector<2x32xf32> to vector<2x32xbf16>
    %c0_6 = arith.constant 0 : index
    %c0_7 = arith.constant 0 : index
    %9 = vector.load %arg3[%c0_6, %c0_7] : memref<32x32xbf16, #tpu.memory_space<vmem>>, vector<32x32xbf16>
    %cst_8 = arith.constant dense<0.000000e+00> : vector<2x32xf32>
    %10 = tpu.matmul %8, %9, %cst_8 {dimension_numbers = #tpu.dot_dimension_numbers<[1], [0], [0], [1], [0, 0, 1, 1], [], []>} : vector<2x32xbf16>, vector<32x32xbf16>, vector<2x32xf32> -> vector<2x32xf32>
    %c0_9 = arith.constant 0 : index
    %c0_10 = arith.constant 0 : index
    %11 = vector.load %arg4[%c0_9, %c0_10] : memref<1x32xf32, #tpu.memory_space<vmem>>, vector<1x32xf32>
    %12 = vector.broadcast %11 : vector<1x32xf32> to vector<2x32xf32>
    %13 = arith.addf %10, %12 : vector<2x32xf32>
    %cst_11 = arith.constant 0.000000e+00 : f32
    %14 = vector.broadcast %cst_11 : f32 to vector<2x32xf32>
    %15 = arith.maximumf %13, %14 : vector<2x32xf32>
    %16 = arith.truncf %15 : vector<2x32xf32> to vector<2x32xbf16>
    %c0_12 = arith.constant 0 : index
    %c0_13 = arith.constant 0 : index
    %17 = vector.load %arg5[%c0_12, %c0_13] : memref<32x16xbf16, #tpu.memory_space<vmem>>, vector<32x16xbf16>
    %cst_14 = arith.constant dense<0.000000e+00> : vector<2x16xf32>
    %18 = tpu.matmul %16, %17, %cst_14 {dimension_numbers = #tpu.dot_dimension_numbers<[1], [0], [0], [1], [0, 0, 1, 1], [], []>} : vector<2x32xbf16>, vector<32x16xbf16>, vector<2x16xf32> -> vector<2x16xf32>
    %c0_15 = arith.constant 0 : index
    %c0_16 = arith.constant 0 : index
    %19 = vector.load %arg6[%c0_15, %c0_16] : memref<1x16xf32, #tpu.memory_space<vmem>>, vector<1x16xf32>
    %20 = vector.broadcast %19 : vector<1x16xf32> to vector<2x16xf32>
    %21 = arith.addf %18, %20 : vector<2x16xf32>
    %22 = math.tanh %21 : vector<2x16xf32>
    %23 = arith.truncf %22 : vector<2x16xf32> to vector<2x16xbf16>
    %c0_17 = arith.constant 0 : index
    %c0_18 = arith.constant 0 : index
    %24 = vector.load %arg7[%c0_17, %c0_18] : memref<16x16xbf16, #tpu.memory_space<vmem>>, vector<16x16xbf16>
    %cst_19 = arith.constant dense<0.000000e+00> : vector<2x16xf32>
    %25 = tpu.matmul %23, %24, %cst_19 {dimension_numbers = #tpu.dot_dimension_numbers<[1], [0], [0], [1], [0, 0, 1, 1], [], []>} : vector<2x16xbf16>, vector<16x16xbf16>, vector<2x16xf32> -> vector<2x16xf32>
    %c0_20 = arith.constant 0 : index
    %c0_21 = arith.constant 0 : index
    %26 = vector.load %arg8[%c0_20, %c0_21] : memref<1x16xf32, #tpu.memory_space<vmem>>, vector<1x16xf32>
    %27 = vector.broadcast %26 : vector<1x16xf32> to vector<2x16xf32>
    %28 = arith.addf %25, %27 : vector<2x16xf32>
    %c0_22 = arith.constant 0 : index
    %c0_23 = arith.constant 0 : index
    %29 = vector.load %arg9[%c0_22, %c0_23] : memref<2x16xf32, #tpu.memory_space<vmem>>, vector<2x16xf32>
    tpu.vector_store %arg9[%c0_22, %c0_23], %28 {strides = array<i32>} : memref<2x16xf32, #tpu.memory_space<vmem>>, vector<2x16xf32>,
    return
  }
}

</mosaic_0001>

<llo_original>
// kernel: _lambda_.5
$region0: #{_lambda_.5}
  #allocation0 [shape = 'u32[]', space=smem, size = 0x4, offset = 0x4, fixed_abs, tag = 'smem constant byte address 0x4 - core index']
  #allocation1 [shape = 'u32[72,128]{1,0:T(1,128)}', space=vmem, size = 0x9000, scoped, tag = 'internal scratch']
  %s0 = inlined_call_operand.vmem [shape: bf16[2,112,16], index: 0, kind: input, shape index: {}]
  %s1 = inlined_call_operand.vmem [shape: bf16[64,8], index: 1, kind: input, shape index: {}]
  %s2 = inlined_call_operand.vmem [shape: f32[1,8], index: 2, kind: input, shape index: {}]
  %s3 = inlined_call_operand.vmem [shape: f32[1,8], index: 3, kind: input, shape index: {}]
  %s4 = inlined_call_operand.vmem [shape: f32[1,8], index: 4, kind: input, shape index: {}]
  %s5 = inlined_call_operand.vmem [shape: bf16[2,112,8], index: 5, kind: output, shape index: {}]
  %s6 = sld [smem:[#allocation0]]
  $region53: #{_lambda_.5} parent=0
    _
  %s8 = ssub.s32 1, %s6
  %s9 = scalar_select 0, %s8, %s6
  loop: start=0, step=1, limit=4
  $region2: #{_lambda_.5} parent=0 // loop_pre_header
    _
  $region3: #{_lambda_.5} parent=0 // loop_header
    %s11 = sphi 0, %s15
    %p12 = scmp.ge.s32.totalorder %s11, 4
    %s21 = sphi 0, %s23
    %s24 = sphi 0, %s21
    %s25 = sphi 0, %s24
    %s41 = sphi 0, %s25
    %s45 = sphi 0, %s45
    %s47 = sphi 0, %s45
    %s48 = sphi 0, %s47
    %s62 = sphi 0, %s48
    %s66 = sphi 0, %s66
    %s68 = sphi 0, %s66
    %s69 = sphi 0, %s68
    %s83 = sphi 0, %s69
    %s87 = sphi 0, %s87
    %s89 = sphi 0, %s87
    %s90 = sphi 0, %s89
    %s104 = sphi 0, %s90
    %s108 = sphi 0, %s108
    %s110 = sphi 0, %s108
    %s111 = sphi 0, %s110
    %s125 = sphi 0, %s111
    %s131 = sphi 0, %s133
    %s134 = sphi 0, %s131
    %s135 = sphi 0, %s134
    %s151 = sphi 0, %s135
  $region4: #{_lambda_.5} parent=0 // loop_header_branch
    %14 = sbr.rel (%p12) target = $region8
  $region5: #{_lambda_.5} parent=0 // loop_body
    %s16 = ssub.s32 %s11, 1
    %s17 = ssub.s32 %s11, 2
    %s18 = sadd.s32 %s11, 1
    %s19 = ssub.s32 %s11, %s18
    %p20 = scmp.eq.s32.totalorder %s19, 0
    %s22 = sadd.s32 %s21, 1
    %s23 = scalar_select %p20, %s21, %s22
    %p26 = pneg %p20
    %p27 = scmp.eq.s32.totalorder %s11, 1
    %p28 = por %p26, %p27
    %p29 = scmp.ne.s32.totalorder %s21, %s24
    %p30 = scmp.eq.s32.totalorder %s11, 0
    %p31 = por %p29, %p30
    %p32 = scmp.ne.s32.totalorder %s21, %s24
    %p33 = scmp.eq.s32.totalorder %s16, 1
    %p34 = por %p32, %p33
    %p35 = scmp.ne.s32.totalorder %s24, %s25
    %p36 = scmp.eq.s32.totalorder %s16, 0
    %p37 = por %p35, %p36
    %p38 = scmp.ne.s32.totalorder %s24, %s25
    %p39 = scmp.eq.s32.totalorder %s17, 1
    %p40 = por %p38, %p39
    %p42 = scmp.ne.s32.totalorder %s25, %s41
    %p43 = scmp.eq.s32.totalorder %s17, 0
    %p44 = por %p42, %p43
    %s46 = sadd.s32 %s45, 1
    %p49 = scmp.eq.s32.totalorder %s11, 1
    %p50 = scmp.ne.s32.totalorder %s45, %s47
    %p51 = scmp.eq.s32.totalorder %s11, 0
    %p52 = por %p50, %p51
    %p53 = scmp.ne.s32.totalorder %s45, %s47
    %p54 = scmp.eq.s32.totalorder %s16, 1
    %p55 = por %p53, %p54
    %p56 = scmp.ne.s32.totalorder %s47, %s48
    %p57 = scmp.eq.s32.totalorder %s16, 0
    %p58 = por %p56, %p57
    %p59 = scmp.ne.s32.totalorder %s47, %s48
    %p60 = scmp.eq.s32.totalorder %s17, 1
    %p61 = por %p59, %p60
    %p63 = scmp.ne.s32.totalorder %s48, %s62
    %p64 = scmp.eq.s32.totalorder %s17, 0
    %p65 = por %p63, %p64
    %s67 = sadd.s32 %s66, 1
    %p70 = scmp.eq.s32.totalorder %s11, 1
    %p71 = scmp.ne.s32.totalorder %s66, %s68
    %p72 = scmp.eq.s32.totalorder %s11, 0
    %p73 = por %p71, %p72
    %p74 = scmp.ne.s32.totalorder %s66, %s68
    %p75 = scmp.eq.s32.totalorder %s16, 1
    %p76 = por %p74, %p75
    %p77 = scmp.ne.s32.totalorder %s68, %s69
    %p78 = scmp.eq.s32.totalorder %s16, 0
    %p79 = por %p77, %p78
    %p80 = scmp.ne.s32.totalorder %s68, %s69
    %p81 = scmp.eq.s32.totalorder %s17, 1
    %p82 = por %p80, %p81
    %p84 = scmp.ne.s32.totalorder %s69, %s83
    %p85 = scmp.eq.s32.totalorder %s17, 0
    %p86 = por %p84, %p85
    %s88 = sadd.s32 %s87, 1
    %p91 = scmp.eq.s32.totalorder %s11, 1
    %p92 = scmp.ne.s32.totalorder %s87, %s89
    %p93 = scmp.eq.s32.totalorder %s11, 0
    %p94 = por %p92, %p93
    %p95 = scmp.ne.s32.totalorder %s87, %s89
    %p96 = scmp.eq.s32.totalorder %s16, 1
    %p97 = por %p95, %p96
    %p98 = scmp.ne.s32.totalorder %s89, %s90
    %p99 = scmp.eq.s32.totalorder %s16, 0
    %p100 = por %p98, %p99
    %p101 = scmp.ne.s32.totalorder %s89, %s90
    %p102 = scmp.eq.s32.totalorder %s17, 1
    %p103 = por %p101, %p102
    %p105 = scmp.ne.s32.totalorder %s90, %s104
    %p106 = scmp.eq.s32.totalorder %s17, 0
    %p107 = por %p105, %p106
    %s109 = sadd.s32 %s108, 1
    %p112 = scmp.eq.s32.totalorder %s11, 1
    %p113 = scmp.ne.s32.totalorder %s108, %s110
    %p114 = scmp.eq.s32.totalorder %s11, 0
    %p115 = por %p113, %p114
    %p116 = scmp.ne.s32.totalorder %s108, %s110
    %p117 = scmp.eq.s32.totalorder %s16, 1
    %p118 = por %p116, %p117
    %p119 = scmp.ne.s32.totalorder %s110, %s111
    %p120 = scmp.eq.s32.totalorder %s16, 0
    %p121 = por %p119, %p120
    %p122 = scmp.ne.s32.totalorder %s110, %s111
    %p123 = scmp.eq.s32.totalorder %s17, 1
    %p124 = por %p122, %p123
    %p126 = scmp.ne.s32.totalorder %s111, %s125
    %p127 = scmp.eq.s32.totalorder %s17, 0
    %p128 = por %p126, %p127
    %s129 = ssub.s32 %s11, %s18
    %p130 = scmp.eq.s32.totalorder %s129, 0
    %s132 = sadd.s32 %s131, 1
    %s133 = scalar_select %p130, %s131, %s132
    %p136 = pneg %p130
    %p137 = scmp.eq.s32.totalorder %s11, 1
    %p138 = por %p136, %p137
    %p139 = scmp.ne.s32.totalorder %s131, %s134
    %p140 = scmp.eq.s32.totalorder %s11, 0
    %p141 = por %p139, %p140
    %p142 = scmp.ne.s32.totalorder %s131, %s134
    %p143 = scmp.eq.s32.totalorder %s16, 1
    %p144 = por %p142, %p143
    %p145 = scmp.ne.s32.totalorder %s134, %s135
    %p146 = scmp.eq.s32.totalorder %s16, 0
    %p147 = por %p145, %p146
    %p148 = scmp.ne.s32.totalorder %s134, %s135
    %p149 = scmp.eq.s32.totalorder %s17, 1
    %p150 = por %p148, %p149
    %p152 = scmp.ne.s32.totalorder %s135, %s151
    %p153 = scmp.eq.s32.totalorder %s17, 0
    %p154 = por %p152, %p153
    %p155 = scmp.le.s32.totalorder 1, %s11
    %p156 = scmp.lt.s32.totalorder %s11, 3
    %p157 = pnand %p155, %p156
    %p158 = pneg %p157
    // Predicated region
    $region9: #{_lambda_.5} parent=5 // pred_check
      _
    $region10: #{_lambda_.5} parent=5 // pred_check_branch
      %160 = sbr.rel (%p157) target = $region12
    $region11: #{_lambda_.5} parent=5 // pred_region
      %s161 = ssub.s32 %s11, 1
      // Predicated region
      $region13: #{_lambda_.5} parent=11 // pred_check
        %p162 = pneg %p58
      $region14: #{_lambda_.5} parent=11 // pred_check_branch
        %164 = sbr.rel (%p162) target = $region16
      $region15: #{_lambda_.5} parent=11 // pred_region
        _
      $region16: #{_lambda_.5} parent=11 // pred_fallthru
        _
      // Predicated region
      $region17: #{_lambda_.5} parent=11 // pred_check
        %p165 = pneg %p79
      $region18: #{_lambda_.5} parent=11 // pred_check_branch
        %167 = sbr.rel (%p165) target = $region20
      $region19: #{_lambda_.5} parent=11 // pred_region
        _
      $region20: #{_lambda_.5} parent=11 // pred_fallthru
        _
      // Predicated region
      $region21: #{_lambda_.5} parent=11 // pred_check
        %p168 = pneg %p100
      $region22: #{_lambda_.5} parent=11 // pred_check_branch
        %170 = sbr.rel (%p168) target = $region24
      $region23: #{_lambda_.5} parent=11 // pred_region
        _
      $region24: #{_lambda_.5} parent=11 // pred_fallthru
        _
      // Predicated region
      $region25: #{_lambda_.5} parent=11 // pred_check
        %p171 = pneg %p121
      $region26: #{_lambda_.5} parent=11 // pred_check_branch
        %173 = sbr.rel (%p171) target = $region28
      $region27: #{_lambda_.5} parent=11 // pred_region
        _
      $region28: #{_lambda_.5} parent=11 // pred_fallthru
        _
    $region12: #{_lambda_.5} parent=5 // pred_fallthru
      _
    %p174 = scmp.lt.s32.totalorder %s11, 2
    // Predicated region
    $region29: #{_lambda_.5} parent=5 // pred_check
      %p175 = pneg %p174
    $region30: #{_lambda_.5} parent=5 // pred_check_branch
      %177 = sbr.rel (%p175) target = $region32
    $region31: #{_lambda_.5} parent=5 // pred_region
      // Predicated region
      $region33: #{_lambda_.5} parent=31 // pred_check
        %p178 = pneg %p31
      $region34: #{_lambda_.5} parent=31 // pred_check_branch
        %180 = sbr.rel (%p178) target = $region36
      $region35: #{_lambda_.5} parent=31 // pred_region
        %p181 = scmp.lt.s32.totalorder %s11, 1
        %s182 = scalar_select %p181, %s11, 1
        %s183 = smul.addr %s182, 14
        %s184 = smul.addr %s183, 4
        %s185 = scalar_lea.vmem %s0, %s184
      $region36: #{_lambda_.5} parent=31 // pred_fallthru
        _
    $region32: #{_lambda_.5} parent=5 // pred_fallthru
      _
    %p186 = scmp.le.s32.totalorder 1, %s11
    %p187 = scmp.lt.s32.totalorder %s11, 3
    %p188 = pnand %p186, %p187
    %p189 = pneg %p188
    // Predicated region
    $region37: #{_lambda_.5} parent=5 // pred_check
      _
    $region38: #{_lambda_.5} parent=5 // pred_check_branch
      %191 = sbr.rel (%p188) target = $region40
    $region39: #{_lambda_.5} parent=5 // pred_region
      %s192 = ssub.s32 %s11, 1
      %p193 = scmp.lt.s32.totalorder %s16, 1
      %s194 = scalar_select %p193, %s16, 1
      %s195 = smul.addr %s194, 14
      %s196 = smul.addr %s195, 4
      %s197 = scalar_lea.vmem %s0, %s196
      %p198 = pneg %p37
      %p199 = pneg %p34
      %p200 = pneg %p58
      %p201 = pneg %p55
      %p202 = pneg %p79
      %p203 = pneg %p76
      %p204 = pneg %p100
      %p205 = pneg %p97
      %p206 = pneg %p121
      %p207 = pneg %p118
      %p208 = pneg %p147
      %p209 = pneg %p144
      %p210 = scmp.lt.s32.totalorder %s16, 1
      %s211 = scalar_select %p210, %s16, 1
      %s212 = smul.addr %s211, 14
      %s213 = smul.addr %s212, 4
      %s214 = scalar_lea.vmem %s5, %s213
      %p215 = scmp.lt.s32.totalorder %s16, 1
      %s216 = scalar_select %p215, %s16, 1
      %s217 = smul.addr %s216, 14
      %s218 = smul.addr %s217, 4
      %s219 = scalar_lea.vmem %s0, %s218
      %p220 = scmp.lt.s32.totalorder %s16, 1
      %s221 = scalar_select %p220, %s16, 1
      %s222 = smul.addr %s221, 14
      %s223 = smul.addr %s222, 4
      %s224 = scalar_lea.vmem %s5, %s223
      %v226 = vld [vmem:[%s219] sm:$0xf]
      %v227 = vld [vmem:[%s219 + $0x4] sm:$0xf]
      %v228 = vld [vmem:[%s219 + $0x8] sm:$0xf]
      %v229 = vld [vmem:[%s219 + $0xc] sm:$0xf]
      %v230 = vld [vmem:[%s219 + $0x10] sm:$0xf]
      %v231 = vld [vmem:[%s219 + $0x14] sm:$0xf]
      %v232 = vld [vmem:[%s219 + $0x18] sm:$0xf]
      %v233 = vld [vmem:[%s219 + $0x1c] sm:$0xf]
      %v234 = vld [vmem:[%s219 + $0x20] sm:$0xf]
      %v235 = vld [vmem:[%s219 + $0x24] sm:$0xf]
      %v236 = vld [vmem:[%s219 + $0x28] sm:$0xf]
      %v237 = vld [vmem:[%s219 + $0x2c] sm:$0xf]
      %v238 = vunpack.c.l.bf16 %v226
      %v239 = vunpack.c.l.bf16 %v227
      %v240 = vunpack.c.l.bf16 %v228
      %v241 = vunpack.c.l.bf16 %v229
      %v242 = vunpack.c.l.bf16 %v230
      %v243 = vunpack.c.l.bf16 %v231
      %v244 = vunpack.c.l.bf16 %v232
      %v245 = vunpack.c.l.bf16 %v233
      %v246 = vunpack.c.l.bf16 %v234
      %v247 = vunpack.c.l.bf16 %v235
      %v248 = vunpack.c.l.bf16 %v236
      %v249 = vunpack.c.l.bf16 %v237
      %v250 = vlaneseq
      %v251 = vshrl.u32 %v250, 7
      %v252 = vadd.s32 %v251, 8
      %v253 = vadd.s32 %v251, 16
      %v254 = vadd.s32 %v251, 24
      %v255 = vadd.s32 %v251, 32
      %v256 = vadd.s32 %v251, 40
      %v257 = vadd.s32 %v251, 48
      %v258 = vadd.s32 %v251, 56
      %v259 = vadd.s32 %v251, 64
      %v260 = vadd.s32 %v251, 72
      %vm261 = vcmp.lt.s32.totalorder %v251, 0
      %v262 = vsub.s32 0, %v251
      %v263 = vsel %vm261, %v262, %v251
      %v264 = vand.u32 %v263, 65535
      %v265 = vshrl.u32 %v263, 16
      %v267 = vmul.u32 %v264, 52429
      %v268 = vmul.u32 %v264, 52428
      %v269 = vmul.u32 %v265, 52429
      %v270 = vmul.u32 %v265, 52428
      %v271 = vshll.u32 %v268, 16
      %v272 = vshrl.u32 %v268, 16
      %v273 = vshll.u32 %v269, 16
      %v274 = vshrl.u32 %v269, 16
      %vm275 = vc.u32 %v267, %v271
      %v276 = vsel %vm275, 1, 0
      %v277 = vadd.s32 %v267, %v271
      %v278 = vadd.s32 %v270, %v276
      %vm279 = vc.u32 %v277, %v273
      %v280 = vsel %vm279, 1, 0
      %v281 = vadd.s32 %v277, %v273
      %v282 = vadd.s32 %v278, %v280
      %v283 = vadd.s32 %v282, %v272
      %v284 = vadd.s32 %v283, %v274
      %v285 = vshrl.u32 %v284, 3
      %v286 = vmul.u32 %v285, 10
      %v287 = vsub.s32 %v263, %v286
      %v288 = vsub.s32 0, %v287
      %v289 = vsel %vm261, %v288, %v287
      %vm290 = vcmp.lt.s32.totalorder %v252, 0
      %v291 = vsub.s32 0, %v252
      %v292 = vsel %vm290, %v291, %v252
      %v293 = vand.u32 %v292, 65535
      %v294 = vshrl.u32 %v292, 16
      %v296 = vmul.u32 %v293, 52429
      %v297 = vmul.u32 %v293, 52428
      %v298 = vmul.u32 %v294, 52429
      %v299 = vmul.u32 %v294, 52428
      %v300 = vshll.u32 %v297, 16
      %v301 = vshrl.u32 %v297, 16
      %v302 = vshll.u32 %v298, 16
      %v303 = vshrl.u32 %v298, 16
      %vm304 = vc.u32 %v296, %v300
      %v305 = vsel %vm304, 1, 0
      %v306 = vadd.s32 %v296, %v300
      %v307 = vadd.s32 %v299, %v305
      %vm308 = vc.u32 %v306, %v302
      %v309 = vsel %vm308, 1, 0
      %v310 = vadd.s32 %v306, %v302
      %v311 = vadd.s32 %v307, %v309
      %v312 = vadd.s32 %v311, %v301
      %v313 = vadd.s32 %v312, %v303
      %v314 = vshrl.u32 %v313, 3
      %v315 = vmul.u32 %v314, 10
      %v316 = vsub.s32 %v292, %v315
      %v317 = vsub.s32 0, %v316
      %v318 = vsel %vm290, %v317, %v316
      %vm319 = vcmp.lt.s32.totalorder %v253, 0
      %v320 = vsub.s32 0, %v253
      %v321 = vsel %vm319, %v320, %v253
      %v322 = vand.u32 %v321, 65535
      %v323 = vshrl.u32 %v321, 16
      %v325 = vmul.u32 %v322, 52429
      %v326 = vmul.u32 %v322, 52428
      %v327 = vmul.u32 %v323, 52429
      %v328 = vmul.u32 %v323, 52428
      %v329 = vshll.u32 %v326, 16
      %v330 = vshrl.u32 %v326, 16
      %v331 = vshll.u32 %v327, 16
      %v332 = vshrl.u32 %v327, 16
      %vm333 = vc.u32 %v325, %v329
      %v334 = vsel %vm333, 1, 0
      %v335 = vadd.s32 %v325, %v329
      %v336 = vadd.s32 %v328, %v334
      %vm337 = vc.u32 %v335, %v331
      %v338 = vsel %vm337, 1, 0
      %v339 = vadd.s32 %v335, %v331
      %v340 = vadd.s32 %v336, %v338
      %v341 = vadd.s32 %v340, %v330
      %v342 = vadd.s32 %v341, %v332
      %v343 = vshrl.u32 %v342, 3
      %v344 = vmul.u32 %v343, 10
      %v345 = vsub.s32 %v321, %v344
      %v346 = vsub.s32 0, %v345
      %v347 = vsel %vm319, %v346, %v345
      %vm348 = vcmp.lt.s32.totalorder %v254, 0
      %v349 = vsub.s32 0, %v254
      %v350 = vsel %vm348, %v349, %v254
      %v351 = vand.u32 %v350, 65535
      %v352 = vshrl.u32 %v350, 16
      %v354 = vmul.u32 %v351, 52429
      %v355 = vmul.u32 %v351, 52428
      %v356 = vmul.u32 %v352, 52429
      %v357 = vmul.u32 %v352, 52428
      %v358 = vshll.u32 %v355, 16
      %v359 = vshrl.u32 %v355, 16
      %v360 = vshll.u32 %v356, 16
      %v361 = vshrl.u32 %v356, 16
      %vm362 = vc.u32 %v354, %v358
      %v363 = vsel %vm362, 1, 0
      %v364 = vadd.s32 %v354, %v358
      %v365 = vadd.s32 %v357, %v363
      %vm366 = vc.u32 %v364, %v360
      %v367 = vsel %vm366, 1, 0
      %v368 = vadd.s32 %v364, %v360
      %v369 = vadd.s32 %v365, %v367
      %v370 = vadd.s32 %v369, %v359
      %v371 = vadd.s32 %v370, %v361
      %v372 = vshrl.u32 %v371, 3
      %v373 = vmul.u32 %v372, 10
      %v374 = vsub.s32 %v350, %v373
      %v375 = vsub.s32 0, %v374
      %v376 = vsel %vm348, %v375, %v374
      %vm377 = vcmp.lt.s32.totalorder %v255, 0
      %v378 = vsub.s32 0, %v255
      %v379 = vsel %vm377, %v378, %v255
      %v380 = vand.u32 %v379, 65535
      %v381 = vshrl.u32 %v379, 16
      %v383 = vmul.u32 %v380, 52429
      %v384 = vmul.u32 %v380, 52428
      %v385 = vmul.u32 %v381, 52429
      %v386 = vmul.u32 %v381, 52428
      %v387 = vshll.u32 %v384, 16
      %v388 = vshrl.u32 %v384, 16
      %v389 = vshll.u32 %v385, 16
      %v390 = vshrl.u32 %v385, 16
      %vm391 = vc.u32 %v383, %v387
      %v392 = vsel %vm391, 1, 0
      %v393 = vadd.s32 %v383, %v387
      %v394 = vadd.s32 %v386, %v392
      %vm395 = vc.u32 %v393, %v389
      %v396 = vsel %vm395, 1, 0
      %v397 = vadd.s32 %v393, %v389
      %v398 = vadd.s32 %v394, %v396
      %v399 = vadd.s32 %v398, %v388
      %v400 = vadd.s32 %v399, %v390
      %v401 = vshrl.u32 %v400, 3
      %v402 = vmul.u32 %v401, 10
      %v403 = vsub.s32 %v379, %v402
      %v404 = vsub.s32 0, %v403
      %v405 = vsel %vm377, %v404, %v403
      %vm406 = vcmp.lt.s32.totalorder %v256, 0
      %v407 = vsub.s32 0, %v256
      %v408 = vsel %vm406, %v407, %v256
      %v409 = vand.u32 %v408, 65535
      %v410 = vshrl.u32 %v408, 16
      %v412 = vmul.u32 %v409, 52429
      %v413 = vmul.u32 %v409, 52428
      %v414 = vmul.u32 %v410, 52429
      %v415 = vmul.u32 %v410, 52428
      %v416 = vshll.u32 %v413, 16
      %v417 = vshrl.u32 %v413, 16
      %v418 = vshll.u32 %v414, 16
      %v419 = vshrl.u32 %v414, 16
      %vm420 = vc.u32 %v412, %v416
      %v421 = vsel %vm420, 1, 0
      %v422 = vadd.s32 %v412, %v416
      %v423 = vadd.s32 %v415, %v421
      %vm424 = vc.u32 %v422, %v418
      %v425 = vsel %vm424, 1, 0
      %v426 = vadd.s32 %v422, %v418
      %v427 = vadd.s32 %v423, %v425
      %v428 = vadd.s32 %v427, %v417
      %v429 = vadd.s32 %v428, %v419
      %v430 = vshrl.u32 %v429, 3
      %v431 = vmul.u32 %v430, 10
      %v432 = vsub.s32 %v408, %v431
      %v433 = vsub.s32 0, %v432
      %v434 = vsel %vm406, %v433, %v432
      %vm435 = vcmp.lt.s32.totalorder %v257, 0
      %v436 = vsub.s32 0, %v257
      %v437 = vsel %vm435, %v436, %v257
      %v438 = vand.u32 %v437, 65535
      %v439 = vshrl.u32 %v437, 16
      %v441 = vmul.u32 %v438, 52429
      %v442 = vmul.u32 %v438, 52428
      %v443 = vmul.u32 %v439, 52429
      %v444 = vmul.u32 %v439, 52428
      %v445 = vshll.u32 %v442, 16
      %v446 = vshrl.u32 %v442, 16
      %v447 = vshll.u32 %v443, 16
      %v448 = vshrl.u32 %v443, 16
      %vm449 = vc.u32 %v441, %v445
      %v450 = vsel %vm449, 1, 0
      %v451 = vadd.s32 %v441, %v445
      %v452 = vadd.s32 %v444, %v450
      %vm453 = vc.u32 %v451, %v447
      %v454 = vsel %vm453, 1, 0
      %v455 = vadd.s32 %v451, %v447
      %v456 = vadd.s32 %v452, %v454
      %v457 = vadd.s32 %v456, %v446
      %v458 = vadd.s32 %v457, %v448
      %v459 = vshrl.u32 %v458, 3
      %v460 = vmul.u32 %v459, 10
      %v461 = vsub.s32 %v437, %v460
      %v462 = vsub.s32 0, %v461
      %v463 = vsel %vm435, %v462, %v461
      %vm464 = vcmp.lt.s32.totalorder %v258, 0
      %v465 = vsub.s32 0, %v258
      %v466 = vsel %vm464, %v465, %v258
      %v467 = vand.u32 %v466, 65535
      %v468 = vshrl.u32 %v466, 16
      %v470 = vmul.u32 %v467, 52429
      %v471 = vmul.u32 %v467, 52428
      %v472 = vmul.u32 %v468, 52429
      %v473 = vmul.u32 %v468, 52428
      %v474 = vshll.u32 %v471, 16
      %v475 = vshrl.u32 %v471, 16
      %v476 = vshll.u32 %v472, 16
      %v477 = vshrl.u32 %v472, 16
      %vm478 = vc.u32 %v470, %v474
      %v479 = vsel %vm478, 1, 0
      %v480 = vadd.s32 %v470, %v474
      %v481 = vadd.s32 %v473, %v479
      %vm482 = vc.u32 %v480, %v476
      %v483 = vsel %vm482, 1, 0
      %v484 = vadd.s32 %v480, %v476
      %v485 = vadd.s32 %v481, %v483
      %v486 = vadd.s32 %v485, %v475
      %v487 = vadd.s32 %v486, %v477
      %v488 = vshrl.u32 %v487, 3
      %v489 = vmul.u32 %v488, 10
      %v490 = vsub.s32 %v466, %v489
      %v491 = vsub.s32 0, %v490
      %v492 = vsel %vm464, %v491, %v490
      %vm493 = vcmp.lt.s32.totalorder %v259, 0
      %v494 = vsub.s32 0, %v259
      %v495 = vsel %vm493, %v494, %v259
      %v496 = vand.u32 %v495, 65535
      %v497 = vshrl.u32 %v495, 16
      %v499 = vmul.u32 %v496, 52429
      %v500 = vmul.u32 %v496, 52428
      %v501 = vmul.u32 %v497, 52429
      %v502 = vmul.u32 %v497, 52428
      %v503 = vshll.u32 %v500, 16
      %v504 = vshrl.u32 %v500, 16
      %v505 = vshll.u32 %v501, 16
      %v506 = vshrl.u32 %v501, 16
      %vm507 = vc.u32 %v499, %v503
      %v508 = vsel %vm507, 1, 0
      %v509 = vadd.s32 %v499, %v503
      %v510 = vadd.s32 %v502, %v508
      %vm511 = vc.u32 %v509, %v505
      %v512 = vsel %vm511, 1, 0
      %v513 = vadd.s32 %v509, %v505
      %v514 = vadd.s32 %v510, %v512
      %v515 = vadd.s32 %v514, %v504
      %v516 = vadd.s32 %v515, %v506
      %v517 = vshrl.u32 %v516, 3
      %v518 = vmul.u32 %v517, 10
      %v519 = vsub.s32 %v495, %v518
      %v520 = vsub.s32 0, %v519
      %v521 = vsel %vm493, %v520, %v519
      %vm522 = vcmp.lt.s32.totalorder %v260, 0
      %v523 = vsub.s32 0, %v260
      %v524 = vsel %vm522, %v523, %v260
      %v525 = vand.u32 %v524, 65535
      %v526 = vshrl.u32 %v524, 16
      %v528 = vmul.u32 %v525, 52429
      %v529 = vmul.u32 %v525, 52428
      %v530 = vmul.u32 %v526, 52429
      %v531 = vmul.u32 %v526, 52428
      %v532 = vshll.u32 %v529, 16
      %v533 = vshrl.u32 %v529, 16
      %v534 = vshll.u32 %v530, 16
      %v535 = vshrl.u32 %v530, 16
      %vm536 = vc.u32 %v528, %v532
      %v537 = vsel %vm536, 1, 0
      %v538 = vadd.s32 %v528, %v532
      %v539 = vadd.s32 %v531, %v537
      %vm540 = vc.u32 %v538, %v534
      %v541 = vsel %vm540, 1, 0
      %v542 = vadd.s32 %v538, %v534
      %v543 = vadd.s32 %v539, %v541
      %v544 = vadd.s32 %v543, %v533
      %v545 = vadd.s32 %v544, %v535
      %v546 = vshrl.u32 %v545, 3
      %v547 = vmul.u32 %v546, 10
      %v548 = vsub.s32 %v524, %v547
      %v549 = vsub.s32 0, %v548
      %v550 = vsel %vm522, %v549, %v548
      %vm551 = vcmp.ne.s32.totalorder %v289, 0
      %vm552 = vcmp.ne.s32.totalorder %v318, 0
      %vm553 = vcmp.ne.s32.totalorder %v347, 0
      %vm554 = vcmp.ne.s32.totalorder %v376, 0
      %vm555 = vcmp.ne.s32.totalorder %v405, 0
      %vm556 = vcmp.ne.s32.totalorder %v434, 0
      %vm557 = vcmp.ne.s32.totalorder %v463, 0
      %vm558 = vcmp.ne.s32.totalorder %v492, 0
      %vm559 = vcmp.ne.s32.totalorder %v521, 0
      %vm560 = vcmp.ne.s32.totalorder %v550, 0
      %vm561 = vcmp.lt.s32.totalorder %v289, 0
      %vm562 = vcmp.lt.s32.totalorder %v318, 0
      %vm563 = vcmp.lt.s32.totalorder %v347, 0
      %vm564 = vcmp.lt.s32.totalorder %v376, 0
      %vm565 = vcmp.lt.s32.totalorder %v405, 0
      %vm566 = vcmp.lt.s32.totalorder %v434, 0
      %vm567 = vcmp.lt.s32.totalorder %v463, 0
      %vm568 = vcmp.lt.s32.totalorder %v492, 0
      %vm569 = vcmp.lt.s32.totalorder %v521, 0
      %vm570 = vcmp.lt.s32.totalorder %v550, 0
      %vm571 = vmand %vm561, %vm551
      %vm572 = vmand %vm562, %vm552
      %vm573 = vmand %vm563, %vm553
      %vm574 = vmand %vm564, %vm554
      %vm575 = vmand %vm565, %vm555
      %vm576 = vmand %vm566, %vm556
      %vm577 = vmand %vm567, %vm557
      %vm578 = vmand %vm568, %vm558
      %vm579 = vmand %vm569, %vm559
      %vm580 = vmand %vm570, %vm560
      %v581 = vadd.s32 %v289, 10
      %v582 = vadd.s32 %v318, 10
      %v583 = vadd.s32 %v347, 10
      %v584 = vadd.s32 %v376, 10
      %v585 = vadd.s32 %v405, 10
      %v586 = vadd.s32 %v434, 10
      %v587 = vadd.s32 %v463, 10
      %v588 = vadd.s32 %v492, 10
      %v589 = vadd.s32 %v521, 10
      %v590 = vadd.s32 %v550, 10
      %v591 = vsel %vm571, %v581, %v289
      %v592 = vsel %vm572, %v582, %v318
      %v593 = vsel %vm573, %v583, %v347
      %v594 = vsel %vm574, %v584, %v376
      %v595 = vsel %vm575, %v585, %v405
      %v596 = vsel %vm576, %v586, %v434
      %v597 = vsel %vm577, %v587, %v463
      %v598 = vsel %vm578, %v588, %v492
      %v599 = vsel %vm579, %v589, %v521
      %v600 = vsel %vm580, %v590, %v550
      %vm601 = vcmp.lt.s32.totalorder %v591, 8
      %vm602 = vcmp.lt.s32.totalorder %v592, 8
      %vm603 = vcmp.lt.s32.totalorder %v593, 8
      %vm604 = vcmp.lt.s32.totalorder %v594, 8
      %vm605 = vcmp.lt.s32.totalorder %v595, 8
      %vm606 = vcmp.lt.s32.totalorder %v596, 8
      %vm607 = vcmp.lt.s32.totalorder %v597, 8
      %vm608 = vcmp.lt.s32.totalorder %v598, 8
      %vm609 = vcmp.lt.s32.totalorder %v599, 8
      %vm610 = vcmp.lt.s32.totalorder %v600, 8
      %v611 = vsel %vm601, 1, 0
      %v612 = vsel %vm602, 1, 0
      %v613 = vsel %vm603, 1, 0
      %v614 = vsel %vm604, 1, 0
      %v615 = vsel %vm605, 1, 0
      %v616 = vsel %vm606, 1, 0
      %v617 = vsel %vm607, 1, 0
      %v618 = vsel %vm608, 1, 0
      %v619 = vsel %vm609, 1, 0
      %v620 = vsel %vm610, 1, 0
      %v621 = vcvt.s32.f32 %v611
      %v622 = vcvt.s32.f32 %v612
      %v623 = vcvt.s32.f32 %v613
      %v624 = vcvt.s32.f32 %v614
      %v625 = vcvt.s32.f32 %v615
      %v626 = vcvt.s32.f32 %v616
      %v627 = vcvt.s32.f32 %v617
      %v628 = vcvt.s32.f32 %v618
      %v629 = vcvt.s32.f32 %v619
      %v630 = vcvt.s32.f32 %v620
      %vm642 = vcmask 1046528
      %v643 = vrot.slane %v238, 1
      %v644 = vrot.slane %v239, 1
      %v645 = vsel %vm642, %v643, %v644
      %v646 = vrot.slane %v240, 1
      %v647 = vsel %vm642, %v644, %v646
      %v648 = vrot.slane %v241, 1
      %v649 = vsel %vm642, %v646, %v648
      %v650 = vrot.slane %v242, 1
      %v651 = vsel %vm642, %v648, %v650
      %v652 = vrot.slane %v243, 1
      %v653 = vsel %vm642, %v650, %v652
      %v654 = vrot.slane %v244, 1
      %v655 = vsel %vm642, %v652, %v654
      %v656 = vrot.slane %v245, 1
      %v657 = vsel %vm642, %v654, %v656
      %v658 = vrot.slane %v246, 1
      %v659 = vsel %vm642, %v656, %v658
      %v660 = vrot.slane %v247, 1
      %v661 = vsel %vm642, %v658, %v660
      %v662 = vrot.slane %v248, 1
      %v663 = vsel %vm642, %v660, %v662
      %664 = vrot.lane.b32.xlu0 %v645, 16
      %v665 = vpop.permute.xlu0 %664
      %666 = vrot.lane.b32.xlu0 %v647, 16
      %v667 = vpop.permute.xlu0 %666
      %668 = vrot.lane.b32.xlu0 %v649, 16
      %v669 = vpop.permute.xlu0 %668
      %670 = vrot.lane.b32.xlu0 %v651, 16
      %v671 = vpop.permute.xlu0 %670
      %672 = vrot.lane.b32.xlu0 %v653, 16
      %v673 = vpop.permute.xlu0 %672
      %674 = vrot.lane.b32.xlu0 %v655, 16
      %v675 = vpop.permute.xlu0 %674
      %676 = vrot.lane.b32.xlu0 %v657, 16
      %v677 = vpop.permute.xlu0 %676
      %678 = vrot.lane.b32.xlu0 %v659, 16
      %v679 = vpop.permute.xlu0 %678
      %680 = vrot.lane.b32.xlu0 %v661, 16
      %v681 = vpop.permute.xlu0 %680
      %682 = vrot.lane.b32.xlu0 %v663, 16
      %v683 = vpop.permute.xlu0 %682
      %vm695 = vcmask 1045504
      %v696 = vrot.slane %v239, 2
      %v697 = vrot.slane %v240, 2
      %v698 = vsel %vm695, %v696, %v697
      %v699 = vrot.slane %v241, 2
      %v700 = vsel %vm695, %v697, %v699
      %v701 = vrot.slane %v242, 2
      %v702 = vsel %vm695, %v699, %v701
      %v703 = vrot.slane %v243, 2
      %v704 = vsel %vm695, %v701, %v703
      %v705 = vrot.slane %v244, 2
      %v706 = vsel %vm695, %v703, %v705
      %v707 = vrot.slane %v245, 2
      %v708 = vsel %vm695, %v705, %v707
      %v709 = vrot.slane %v246, 2
      %v710 = vsel %vm695, %v707, %v709
      %v711 = vrot.slane %v247, 2
      %v712 = vsel %vm695, %v709, %v711
      %v713 = vrot.slane %v248, 2
      %v714 = vsel %vm695, %v711, %v713
      %v715 = vrot.slane %v249, 2
      %v716 = vsel %vm695, %v713, %v715
      %717 = vrot.lane.b32.xlu0 %v698, 32
      %v718 = vpop.permute.xlu0 %717
      %719 = vrot.lane.b32.xlu0 %v700, 32
      %v720 = vpop.permute.xlu0 %719
      %721 = vrot.lane.b32.xlu0 %v702, 32
      %v722 = vpop.permute.xlu0 %721
      %723 = vrot.lane.b32.xlu0 %v704, 32
      %v724 = vpop.permute.xlu0 %723
      %725 = vrot.lane.b32.xlu0 %v706, 32
      %v726 = vpop.permute.xlu0 %725
      %727 = vrot.lane.b32.xlu0 %v708, 32
      %v728 = vpop.permute.xlu0 %727
      %729 = vrot.lane.b32.xlu0 %v710, 32
      %v730 = vpop.permute.xlu0 %729
      %731 = vrot.lane.b32.xlu0 %v712, 32
      %v732 = vpop.permute.xlu0 %731
      %733 = vrot.lane.b32.xlu0 %v714, 32
      %v734 = vpop.permute.xlu0 %733
      %735 = vrot.lane.b32.xlu0 %v716, 32
      %v736 = vpop.permute.xlu0 %735
      %vm747 = vcmask 1044480
      %v748 = vrot.slane %v239, 3
      %v749 = vrot.slane %v240, 3
      %v750 = vsel %vm747, %v748, %v749
      %v751 = vrot.slane %v241, 3
      %v752 = vsel %vm747, %v749, %v751
      %v753 = vrot.slane %v242, 3
      %v754 = vsel %vm747, %v751, %v753
      %v755 = vrot.slane %v243, 3
      %v756 = vsel %vm747, %v753, %v755
      %v757 = vrot.slane %v244, 3
      %v758 = vsel %vm747, %v755, %v757
      %v759 = vrot.slane %v245, 3
      %v760 = vsel %vm747, %v757, %v759
      %v761 = vrot.slane %v246, 3
      %v762 = vsel %vm747, %v759, %v761
      %v763 = vrot.slane %v247, 3
      %v764 = vsel %vm747, %v761, %v763
      %v765 = vrot.slane %v248, 3
      %v766 = vsel %vm747, %v763, %v765
      %v767 = vrot.slane %v249, 3
      %v768 = vsel %vm747, %v765, %v767
      %769 = vrot.lane.b32.xlu0 %v750, 48
      %v770 = vpop.permute.xlu0 %769
      %771 = vrot.lane.b32.xlu0 %v752, 48
      %v772 = vpop.permute.xlu0 %771
      %773 = vrot.lane.b32.xlu0 %v754, 48
      %v774 = vpop.permute.xlu0 %773
      %775 = vrot.lane.b32.xlu0 %v756, 48
      %v776 = vpop.permute.xlu0 %775
      %777 = vrot.lane.b32.xlu0 %v758, 48
      %v778 = vpop.permute.xlu0 %777
      %779 = vrot.lane.b32.xlu0 %v760, 48
      %v780 = vpop.permute.xlu0 %779
      %781 = vrot.lane.b32.xlu0 %v762, 48
      %v782 = vpop.permute.xlu0 %781
      %783 = vrot.lane.b32.xlu0 %v764, 48
      %v784 = vpop.permute.xlu0 %783
      %785 = vrot.lane.b32.xlu0 %v766, 48
      %v786 = vpop.permute.xlu0 %785
      %787 = vrot.lane.b32.xlu0 %v768, 48
      %v788 = vpop.permute.xlu0 %787
      %vm799 = vcmask 130048
      %v800 = vsel %vm799, %v238, %v665
      %v801 = vsel %vm799, %v239, %v667
      %v802 = vsel %vm799, %v240, %v669
      %v803 = vsel %vm799, %v241, %v671
      %v804 = vsel %vm799, %v242, %v673
      %v805 = vsel %vm799, %v243, %v675
      %v806 = vsel %vm799, %v244, %v677
      %v807 = vsel %vm799, %v245, %v679
      %v808 = vsel %vm799, %v246, %v681
      %v809 = vsel %vm799, %v247, %v683
      %vm810 = vcmask 261120
      %v811 = vsel %vm810, %v800, %v718
      %v812 = vsel %vm810, %v801, %v720
      %v813 = vsel %vm810, %v802, %v722
      %v814 = vsel %vm810, %v803, %v724
      %v815 = vsel %vm810, %v804, %v726
      %v816 = vsel %vm810, %v805, %v728
      %v817 = vsel %vm810, %v806, %v730
      %v818 = vsel %vm810, %v807, %v732
      %v819 = vsel %vm810, %v808, %v734
      %v820 = vsel %vm810, %v809, %v736
      %vm821 = vcmask 392192
      %v822 = vsel %vm821, %v811, %v770
      %v823 = vsel %vm821, %v812, %v772
      %v824 = vsel %vm821, %v813, %v774
      %v825 = vsel %vm821, %v814, %v776
      %v826 = vsel %vm821, %v815, %v778
      %v827 = vsel %vm821, %v816, %v780
      %v828 = vsel %vm821, %v817, %v782
      %v829 = vsel %vm821, %v818, %v784
      %v830 = vsel %vm821, %v819, %v786
      %v831 = vsel %vm821, %v820, %v788
      %v832 = vpack.c.bf16 %v823, %v822
      %v833 = vpack.c.bf16 %v825, %v824
      %v834 = vpack.c.bf16 %v827, %v826
      %v835 = vpack.c.bf16 %v829, %v828
      %v836 = vpack.c.bf16 %v831, %v830
      %v837 = vld [vmem:[%s1] sm:$0xf]
      %v838 = vld [vmem:[%s1 + $0x4] sm:$0xf]
      %v839 = vld [vmem:[%s1 + $0x8] sm:$0xf]
      %v840 = vld [vmem:[%s1 + $0xc] sm:$0xf]
      %v841 = vld [vmem:[%s1 + $0x10] sm:$0xf]
      %v842 = vld [vmem:[%s1 + $0x14] sm:$0xf]
      %v843 = vld [vmem:[%s1 + $0x18] sm:$0xf]
      %v844 = vld [vmem:[%s1 + $0x1c] sm:$0xf]
      %v845 = vld [vmem:[%s2] sm:$0x1]
      %v847 = vperm.slane %v845, 0
      %v857 = vunpack.c.l.b16 %v837
      %v858 = vunpack.c.l.b16 %v838
      %v859 = vunpack.c.l.b16 %v839
      %v860 = vunpack.c.l.b16 %v840
      %v861 = vunpack.c.l.b16 %v841
      %v862 = vunpack.c.l.b16 %v842
      %v863 = vunpack.c.l.b16 %v843
      %v864 = vunpack.c.l.b16 %v844
      %v865 = vpack.c.b16 %v858, %v857
      %v866 = vpack.c.b16 %v860, %v859
      %v867 = vpack.c.b16 %v862, %v861
      %v868 = vpack.c.b16 %v864, %v863
      %vm873 = vcmask 523264
      %v875 = vsel %vm873, %v832, 0
      %v878 = vsel %vm873, %v833, 0
      %v881 = vsel %vm873, %v834, 0
      %v884 = vsel %vm873, %v835, 0
      %v887 = vsel %vm873, %v836, 0
      %889 = vmatpush.bf16.msra.mxu0 0
      %890 = vmatpush.bf16.msra.mxu0 0
      %891 = vmatpush.bf16.msra.mxu0 0
      %892 = vmatpush.bf16.msra.mxu0 0
      %893 = vmatpush.bf16.msra.mxu0 %v868
      %894 = vmatpush.bf16.msra.mxu0 %v867
      %895 = vmatpush.bf16.msra.mxu0 %v866
      %896 = vmatpush.bf16.msra.mxu0 %v865
      %897 = vmatmul.bf16.gmra.mxu0 %v875
      %v898 = vpop.f32.mrf.mxu0
      %v899 = vadd.f32 %v847, %v898
      %v900 = vpop.f32.mrf.mxu0
      %v901 = vadd.f32 %v847, %v900
      %902 = vmatmul.bf16.gmra.mxu0 %v878
      %v903 = vpop.f32.mrf.mxu0
      %v904 = vadd.f32 %v847, %v903
      %v905 = vpop.f32.mrf.mxu0
      %v906 = vadd.f32 %v847, %v905
      %907 = vmatmul.bf16.gmra.mxu0 %v881
      %v908 = vpop.f32.mrf.mxu0
      %v909 = vadd.f32 %v847, %v908
      %v910 = vpop.f32.mrf.mxu0
      %v911 = vadd.f32 %v847, %v910
      %912 = vmatmul.bf16.gmra.mxu0 %v884
      %v913 = vpop.f32.mrf.mxu0
      %v914 = vadd.f32 %v847, %v913
      %v915 = vpop.f32.mrf.mxu0
      %v916 = vadd.f32 %v847, %v915
      %917 = vmatmul.bf16.gmra.mxu0 %v887
      %v918 = vpop.f32.mrf.mxu0
      %v919 = vadd.f32 %v847, %v918
      %v920 = vpop.f32.mrf.mxu0
      %v921 = vadd.f32 %v847, %v920
      %922 = vdwg.mxu0
      %v923 = vmul.f32 %v899, %v621
      %v924 = vmul.f32 %v901, %v622
      %v925 = vmul.f32 %v904, %v623
      %v926 = vmul.f32 %v906, %v624
      %v927 = vmul.f32 %v909, %v625
      %v928 = vmul.f32 %v911, %v626
      %v929 = vmul.f32 %v914, %v627
      %v930 = vmul.f32 %v916, %v628
      %v931 = vmul.f32 %v919, %v629
      %v932 = vmul.f32 %v921, %v630
      %vm933 = vcmask 64512
      %v934 = vsel %vm933, %v923, 0.0
      %v935 = vsel %vm933, %v924, 0.0
      %v936 = vadd.f32 %v934, %v935
      %v937 = vsel %vm933, %v925, 0.0
      %v938 = vadd.f32 %v936, %v937
      %v939 = vsel %vm933, %v926, 0.0
      %v940 = vadd.f32 %v938, %v939
      %v941 = vsel %vm933, %v927, 0.0
      %v942 = vadd.f32 %v940, %v941
      %v943 = vsel %vm933, %v928, 0.0
      %v944 = vadd.f32 %v942, %v943
      %v945 = vsel %vm933, %v929, 0.0
      %v946 = vadd.f32 %v944, %v945
      %v947 = vsel %vm933, %v930, 0.0
      %v948 = vadd.f32 %v946, %v947
      %v949 = vsel %vm933, %v931, 0.0
      %v950 = vadd.f32 %v948, %v949
      %v951 = vsel %vm933, %v932, 0.0
      %v952 = vadd.f32 %v950, %v951
      %v953 = vrot.slane %v952, 4
      %v954 = vadd.f32 %v952, %v953
      %v955 = vrot.slane %v954, 2
      %v956 = vadd.f32 %v954, %v955
      %v957 = vrot.slane %v956, 1
      %v958 = vadd.f32 %v956, %v957
      %v959 = vmul.f32 %v958, 0.015625
      %v960 = vmul.f32 %v923, %v923
      %v961 = vmul.f32 %v924, %v924
      %v962 = vmul.f32 %v925, %v925
      %v963 = vmul.f32 %v926, %v926
      %v964 = vmul.f32 %v927, %v927
      %v965 = vmul.f32 %v928, %v928
      %v966 = vmul.f32 %v929, %v929
      %v967 = vmul.f32 %v930, %v930
      %v968 = vmul.f32 %v931, %v931
      %v969 = vmul.f32 %v932, %v932
      %v970 = vsel %vm933, %v960, 0.0
      %v971 = vsel %vm933, %v961, 0.0
      %v972 = vadd.f32 %v970, %v971
      %v973 = vsel %vm933, %v962, 0.0
      %v974 = vadd.f32 %v972, %v973
      %v975 = vsel %vm933, %v963, 0.0
      %v976 = vadd.f32 %v974, %v975
      %v977 = vsel %vm933, %v964, 0.0
      %v978 = vadd.f32 %v976, %v977
      %v979 = vsel %vm933, %v965, 0.0
      %v980 = vadd.f32 %v978, %v979
      %v981 = vsel %vm933, %v966, 0.0
      %v982 = vadd.f32 %v980, %v981
      %v983 = vsel %vm933, %v967, 0.0
      %v984 = vadd.f32 %v982, %v983
      %v985 = vsel %vm933, %v968, 0.0
      %v986 = vadd.f32 %v984, %v985
      %v987 = vsel %vm933, %v969, 0.0
      %v988 = vadd.f32 %v986, %v987
      %v989 = vrot.slane %v988, 4
      %v990 = vadd.f32 %v988, %v989
      %v991 = vrot.slane %v990, 2
      %v992 = vadd.f32 %v990, %v991
      %v993 = vrot.slane %v992, 1
      %v994 = vadd.f32 %v992, %v993
      %v995 = vmul.f32 %v994, 0.015625
      %v996 = vmul.f32 %v959, %v959
      %v997 = vsub.f32 %v995, %v996
      %v998 = vmax.f32 %v997, 0.0
      %v999 = vsub.f32 %v923, %v959
      %v1000 = vsub.f32 %v924, %v959
      %v1001 = vsub.f32 %v925, %v959
      %v1002 = vsub.f32 %v926, %v959
      %v1003 = vsub.f32 %v927, %v959
      %v1004 = vsub.f32 %v928, %v959
      %v1005 = vsub.f32 %v929, %v959
      %v1006 = vsub.f32 %v930, %v959
      %v1007 = vsub.f32 %v931, %v959
      %v1008 = vsub.f32 %v932, %v959
      %v1009 = vadd.f32 %v998, 1e-05
      %v1010 = vrsqrt.pop %v1009
      %v1011 = vmul.f32 %v1010, %v1009
      %v1012 = vmul.f32 %v1011, %v1010
      %v1013 = vmul.f32 0.5, %v1012
      %v1014 = vsub.f32 1.5, %v1013
      %v1015 = vmul.f32 %v1010, %v1014
      %vm1016 = vweird.f32 %v1009
      %vm1017 = vweird.f32 %v1010
      %vm1018 = vmor %vm1016, %vm1017
      %v1019 = vsel %vm1018, %v1010, %v1015
      %v1020 = vmul.f32 %v999, %v1019
      %v1021 = vmul.f32 %v1000, %v1019
      %v1022 = vmul.f32 %v1001, %v1019
      %v1023 = vmul.f32 %v1002, %v1019
      %v1024 = vmul.f32 %v1003, %v1019
      %v1025 = vmul.f32 %v1004, %v1019
      %v1026 = vmul.f32 %v1005, %v1019
      %v1027 = vmul.f32 %v1006, %v1019
      %v1028 = vmul.f32 %v1007, %v1019
      %v1029 = vmul.f32 %v1008, %v1019
      %v1030 = vld [vmem:[%s3] sm:$0x1]
      %v1032 = vperm.slane %v1030, 0
      %v1034 = vmul.f32 %v1020, %v1032
      %v1035 = vmul.f32 %v1021, %v1032
      %v1036 = vmul.f32 %v1022, %v1032
      %v1037 = vmul.f32 %v1023, %v1032
      %v1038 = vmul.f32 %v1024, %v1032
      %v1039 = vmul.f32 %v1025, %v1032
      %v1040 = vmul.f32 %v1026, %v1032
      %v1041 = vmul.f32 %v1027, %v1032
      %v1042 = vmul.f32 %v1028, %v1032
      %v1043 = vmul.f32 %v1029, %v1032
      %v1044 = vld [vmem:[%s4] sm:$0x1]
      %v1046 = vperm.slane %v1044, 0
      %v1048 = vadd.f32 %v1034, %v1046
      %v1049 = vadd.f32 %v1035, %v1046
      %v1050 = vadd.f32 %v1036, %v1046
      %v1051 = vadd.f32 %v1037, %v1046
      %v1052 = vadd.f32 %v1038, %v1046
      %v1053 = vadd.f32 %v1039, %v1046
      %v1054 = vadd.f32 %v1040, %v1046
      %v1055 = vadd.f32 %v1041, %v1046
      %v1056 = vadd.f32 %v1042, %v1046
      %v1057 = vadd.f32 %v1043, %v1046
      %v1058 = vmax.f32 %v1048, 0.0
      %v1059 = vmax.f32 %v1049, 0.0
      %v1060 = vmax.f32 %v1050, 0.0
      %v1061 = vmax.f32 %v1051, 0.0
      %v1062 = vmax.f32 %v1052, 0.0
      %v1063 = vmax.f32 %v1053, 0.0
      %v1064 = vmax.f32 %v1054, 0.0
      %v1065 = vmax.f32 %v1055, 0.0
      %v1066 = vmax.f32 %v1056, 0.0
      %v1067 = vmax.f32 %v1057, 0.0
      %v1068 = vmul.f32 %v1058, %v621
      %v1069 = vmul.f32 %v1059, %v622
      %v1070 = vmul.f32 %v1060, %v623
      %v1071 = vmul.f32 %v1061, %v624
      %v1072 = vmul.f32 %v1062, %v625
      %v1073 = vmul.f32 %v1063, %v626
      %v1074 = vmul.f32 %v1064, %v627
      %v1075 = vmul.f32 %v1065, %v628
      %v1076 = vmul.f32 %v1066, %v629
      %v1077 = vmul.f32 %v1067, %v630
      %vm1088 = vcmask 1042432
      %v1089 = vrot.slane %v1068, 5
      %v1090 = vrot.slane %v1069, 5
      %v1091 = vsel %vm1088, %v1089, %v1090
      %v1092 = vrot.slane %v1070, 5
      %v1093 = vsel %vm1088, %v1090, %v1092
      %v1094 = vrot.slane %v1071, 5
      %v1095 = vsel %vm1088, %v1092, %v1094
      %v1096 = vrot.slane %v1072, 5
      %v1097 = vsel %vm1088, %v1094, %v1096
      %v1098 = vrot.slane %v1073, 5
      %v1099 = vsel %vm1088, %v1096, %v1098
      %v1100 = vrot.slane %v1074, 5
      %v1101 = vsel %vm1088, %v1098, %v1100
      %v1102 = vrot.slane %v1075, 5
      %v1103 = vsel %vm1088, %v1100, %v1102
      %v1104 = vrot.slane %v1076, 5
      %v1105 = vsel %vm1088, %v1102, %v1104
      %v1106 = vrot.slane %v1077, 5
      %v1107 = vsel %vm1088, %v1104, %v1106
      %v1119 = vsel %vm1088, 0.0, %v1089
      %v1120 = vsel %vm1088, %v1106, 0.0
      %v1121 = vpack.c.bf16 0.0, 0.0
      %v1122 = vpack.c.bf16 %v1119, %v1119
      %v1123 = vpack.c.bf16 %v1091, %v1091
      %v1124 = vpack.c.bf16 %v1093, %v1093
      %v1125 = vpack.c.bf16 %v1095, %v1095
      %v1126 = vpack.c.bf16 %v1097, %v1097
      %v1127 = vpack.c.bf16 %v1099, %v1099
      %v1128 = vpack.c.bf16 %v1101, %v1101
      %v1129 = vpack.c.bf16 %v1103, %v1103
      %v1130 = vpack.c.bf16 %v1105, %v1105
      %v1131 = vpack.c.bf16 %v1107, %v1107
      %v1132 = vpack.c.bf16 %v1120, %v1120
      %vm1133 = vcmask 60416
      %1134 = vst.msk [vmem:[%s224] sm:$0xf] %vm1133, %v1121
      %1135 = vst.msk [vmem:[%s224 + $0x4] sm:$0xf] %vm1133, %v1122
      %1136 = vst.msk [vmem:[%s224 + $0x8] sm:$0xf] %vm1133, %v1123
      %1137 = vst.msk [vmem:[%s224 + $0xc] sm:$0xf] %vm1133, %v1124
      %1138 = vst.msk [vmem:[%s224 + $0x10] sm:$0xf] %vm1133, %v1125
      %1139 = vst.msk [vmem:[%s224 + $0x14] sm:$0xf] %vm1133, %v1126
      %1140 = vst.msk [vmem:[%s224 + $0x18] sm:$0xf] %vm1133, %v1127
      %1141 = vst.msk [vmem:[%s224 + $0x1c] sm:$0xf] %vm1133, %v1128
      %1142 = vst.msk [vmem:[%s224 + $0x20] sm:$0xf] %vm1133, %v1129
      %1143 = vst.msk [vmem:[%s224 + $0x24] sm:$0xf] %vm1133, %v1130
      %1144 = vst.msk [vmem:[%s224 + $0x28] sm:$0xf] %vm1133, %v1131
      %1145 = vst.msk [vmem:[%s224 + $0x2c] sm:$0xf] %vm1133, %v1132
      %1146 = vst.msk [vmem:[%s224 + $0x30] sm:$0xf] %vm1133, %v1121
      %1147 = vst.msk [vmem:[%s224 + $0x34] sm:$0xf] %vm1133, %v1121
      %p1148 = scmp.lt.s32.totalorder %s16, 1
      %s1149 = scalar_select %p1148, %s16, 1
      %s1150 = smul.addr %s1149, 14
      %s1151 = smul.addr %s1150, 4
      %s1152 = scalar_lea.vmem %s5, %s1151
      // Predicated region
      $region41: #{_lambda_.5} parent=39 // pred_check
        %p1153 = pneg %p144
      $region42: #{_lambda_.5} parent=39 // pred_check_branch
        %1155 = sbr.rel (%p1153) target = $region44
      $region43: #{_lambda_.5} parent=39 // pred_region
        _
      $region44: #{_lambda_.5} parent=39 // pred_fallthru
        _
    $region40: #{_lambda_.5} parent=5 // pred_fallthru
      _
    %p1156 = scmp.le.s32.totalorder 2, %s11
    // Predicated region
    $region45: #{_lambda_.5} parent=5 // pred_check
      %p1157 = pneg %p1156
    $region46: #{_lambda_.5} parent=5 // pred_check_branch
      %1159 = sbr.rel (%p1157) target = $region48
    $region47: #{_lambda_.5} parent=5 // pred_region
      %s1160 = ssub.s32 %s11, 2
      // Predicated region
      $region49: #{_lambda_.5} parent=47 // pred_check
        %p1161 = pneg %p150
      $region50: #{_lambda_.5} parent=47 // pred_check_branch
        %1163 = sbr.rel (%p1161) target = $region52
      $region51: #{_lambda_.5} parent=47 // pred_region
        %p1164 = scmp.lt.s32.totalorder %s17, 1
        %s1165 = scalar_select %p1164, %s17, 1
        %s1166 = smul.addr %s1165, 14
        %s1167 = smul.addr %s1166, 4
        %s1168 = scalar_lea.vmem %s5, %s1167
      $region52: #{_lambda_.5} parent=47 // pred_fallthru
        _
    $region48: #{_lambda_.5} parent=5 // pred_fallthru
      _
  $region6: #{_lambda_.5} parent=0 // loop_footer
    %s15 = sadd.s32 1, %s11
  $region7: #{_lambda_.5} parent=0 // loop_footer_branch
    %10 = sbr.rel target = $region3
  $region8: #{_lambda_.5} parent=0 // loop_exit
    _

// kernel: _lambda_.6
$region0: #{_lambda_.6}
  #allocation0 [shape = 'u32[]', space=smem, size = 0x4, offset = 0x4, fixed_abs, tag = 'smem constant byte address 0x4 - core index']
  #allocation1 [shape = 'u32[72,128]{1,0:T(1,128)}', space=vmem, size = 0x9000, scoped, tag = 'internal scratch']
  %s0 = inlined_call_operand.vmem [shape: bf16[2,112,8], index: 0, kind: input, shape index: {}]
  %s1 = inlined_call_operand.vmem [shape: bf16[72,8], index: 1, kind: input, shape index: {}]
  %s2 = inlined_call_operand.vmem [shape: f32[1,8], index: 2, kind: input, shape index: {}]
  %s3 = inlined_call_operand.vmem [shape: f32[1,8], index: 3, kind: input, shape index: {}]
  %s4 = inlined_call_operand.vmem [shape: f32[1,8], index: 4, kind: input, shape index: {}]
  %s5 = inlined_call_operand.vmem [shape: bf16[72,8], index: 5, kind: input, shape index: {}]
  %s6 = inlined_call_operand.vmem [shape: f32[1,8], index: 6, kind: input, shape index: {}]
  %s7 = inlined_call_operand.vmem [shape: f32[1,8], index: 7, kind: input, shape index: {}]
  %s8 = inlined_call_operand.vmem [shape: f32[1,8], index: 8, kind: input, shape index: {}]
  %s9 = inlined_call_operand.vmem [shape: bf16[2,112,8], index: 9, kind: output, shape index: {}]
  %s10 = sld [smem:[#allocation0]]
  $region69: #{_lambda_.6} parent=0
    _
  %s12 = ssub.s32 1, %s10
  %s13 = scalar_select 0, %s12, %s10
  loop: start=0, step=1, limit=4
  $region2: #{_lambda_.6} parent=0 // loop_pre_header
    _
  $region3: #{_lambda_.6} parent=0 // loop_header
    %s15 = sphi 0, %s19
    %p16 = scmp.ge.s32.totalorder %s15, 4
    %s25 = sphi 0, %s27
    %s28 = sphi 0, %s25
    %s29 = sphi 0, %s28
    %s45 = sphi 0, %s29
    %s49 = sphi 0, %s49
    %s51 = sphi 0, %s49
    %s52 = sphi 0, %s51
    %s66 = sphi 0, %s52
    %s70 = sphi 0, %s70
    %s72 = sphi 0, %s70
    %s73 = sphi 0, %s72
    %s87 = sphi 0, %s73
    %s91 = sphi 0, %s91
    %s93 = sphi 0, %s91
    %s94 = sphi 0, %s93
    %s108 = sphi 0, %s94
    %s112 = sphi 0, %s112
    %s114 = sphi 0, %s112
    %s115 = sphi 0, %s114
    %s129 = sphi 0, %s115
    %s133 = sphi 0, %s133
    %s135 = sphi 0, %s133
    %s136 = sphi 0, %s135
    %s150 = sphi 0, %s136
    %s154 = sphi 0, %s154
    %s156 = sphi 0, %s154
    %s157 = sphi 0, %s156
    %s171 = sphi 0, %s157
    %s175 = sphi 0, %s175
    %s177 = sphi 0, %s175
    %s178 = sphi 0, %s177
    %s192 = sphi 0, %s178
    %s196 = sphi 0, %s196
    %s198 = sphi 0, %s196
    %s199 = sphi 0, %s198
    %s213 = sphi 0, %s199
    %s219 = sphi 0, %s221
    %s222 = sphi 0, %s219
    %s223 = sphi 0, %s222
    %s239 = sphi 0, %s223
  $region4: #{_lambda_.6} parent=0 // loop_header_branch
    %18 = sbr.rel (%p16) target = $region8
  $region5: #{_lambda_.6} parent=0 // loop_body
    %s20 = ssub.s32 %s15, 1
    %s21 = ssub.s32 %s15, 2
    %s22 = sadd.s32 %s15, 1
    %s23 = ssub.s32 %s15, %s22
    %p24 = scmp.eq.s32.totalorder %s23, 0
    %s26 = sadd.s32 %s25, 1
    %s27 = scalar_select %p24, %s25, %s26
    %p30 = pneg %p24
    %p31 = scmp.eq.s32.totalorder %s15, 1
    %p32 = por %p30, %p31
    %p33 = scmp.ne.s32.totalorder %s25, %s28
    %p34 = scmp.eq.s32.totalorder %s15, 0
    %p35 = por %p33, %p34
    %p36 = scmp.ne.s32.totalorder %s25, %s28
    %p37 = scmp.eq.s32.totalorder %s20, 1
    %p38 = por %p36, %p37
    %p39 = scmp.ne.s32.totalorder %s28, %s29
    %p40 = scmp.eq.s32.totalorder %s20, 0
    %p41 = por %p39, %p40
    %p42 = scmp.ne.s32.totalorder %s28, %s29
    %p43 = scmp.eq.s32.totalorder %s21, 1
    %p44 = por %p42, %p43
    %p46 = scmp.ne.s32.totalorder %s29, %s45
    %p47 = scmp.eq.s32.totalorder %s21, 0
    %p48 = por %p46, %p47
    %s50 = sadd.s32 %s49, 1
    %p53 = scmp.eq.s32.totalorder %s15, 1
    %p54 = scmp.ne.s32.totalorder %s49, %s51
    %p55 = scmp.eq.s32.totalorder %s15, 0
    %p56 = por %p54, %p55
    %p57 = scmp.ne.s32.totalorder %s49, %s51
    %p58 = scmp.eq.s32.totalorder %s20, 1
    %p59 = por %p57, %p58
    %p60 = scmp.ne.s32.totalorder %s51, %s52
    %p61 = scmp.eq.s32.totalorder %s20, 0
    %p62 = por %p60, %p61
    %p63 = scmp.ne.s32.totalorder %s51, %s52
    %p64 = scmp.eq.s32.totalorder %s21, 1
    %p65 = por %p63, %p64
    %p67 = scmp.ne.s32.totalorder %s52, %s66
    %p68 = scmp.eq.s32.totalorder %s21, 0
    %p69 = por %p67, %p68
    %s71 = sadd.s32 %s70, 1
    %p74 = scmp.eq.s32.totalorder %s15, 1
    %p75 = scmp.ne.s32.totalorder %s70, %s72
    %p76 = scmp.eq.s32.totalorder %s15, 0
    %p77 = por %p75, %p76
    %p78 = scmp.ne.s32.totalorder %s70, %s72
    %p79 = scmp.eq.s32.totalorder %s20, 1
    %p80 = por %p78, %p79
    %p81 = scmp.ne.s32.totalorder %s72, %s73
    %p82 = scmp.eq.s32.totalorder %s20, 0
    %p83 = por %p81, %p82
    %p84 = scmp.ne.s32.totalorder %s72, %s73
    %p85 = scmp.eq.s32.totalorder %s21, 1
    %p86 = por %p84, %p85
    %p88 = scmp.ne.s32.totalorder %s73, %s87
    %p89 = scmp.eq.s32.totalorder %s21, 0
    %p90 = por %p88, %p89
    %s92 = sadd.s32 %s91, 1
    %p95 = scmp.eq.s32.totalorder %s15, 1
    %p96 = scmp.ne.s32.totalorder %s91, %s93
    %p97 = scmp.eq.s32.totalorder %s15, 0
    %p98 = por %p96, %p97
    %p99 = scmp.ne.s32.totalorder %s91, %s93
    %p100 = scmp.eq.s32.totalorder %s20, 1
    %p101 = por %p99, %p100
    %p102 = scmp.ne.s32.totalorder %s93, %s94
    %p103 = scmp.eq.s32.totalorder %s20, 0
    %p104 = por %p102, %p103
    %p105 = scmp.ne.s32.totalorder %s93, %s94
    %p106 = scmp.eq.s32.totalorder %s21, 1
    %p107 = por %p105, %p106
    %p109 = scmp.ne.s32.totalorder %s94, %s108
    %p110 = scmp.eq.s32.totalorder %s21, 0
    %p111 = por %p109, %p110
    %s113 = sadd.s32 %s112, 1
    %p116 = scmp.eq.s32.totalorder %s15, 1
    %p117 = scmp.ne.s32.totalorder %s112, %s114
    %p118 = scmp.eq.s32.totalorder %s15, 0
    %p119 = por %p117, %p118
    %p120 = scmp.ne.s32.totalorder %s112, %s114
    %p121 = scmp.eq.s32.totalorder %s20, 1
    %p122 = por %p120, %p121
    %p123 = scmp.ne.s32.totalorder %s114, %s115
    %p124 = scmp.eq.s32.totalorder %s20, 0
    %p125 = por %p123, %p124
    %p126 = scmp.ne.s32.totalorder %s114, %s115
    %p127 = scmp.eq.s32.totalorder %s21, 1
    %p128 = por %p126, %p127
    %p130 = scmp.ne.s32.totalorder %s115, %s129
    %p131 = scmp.eq.s32.totalorder %s21, 0
    %p132 = por %p130, %p131
    %s134 = sadd.s32 %s133, 1
    %p137 = scmp.eq.s32.totalorder %s15, 1
    %p138 = scmp.ne.s32.totalorder %s133, %s135
    %p139 = scmp.eq.s32.totalorder %s15, 0
    %p140 = por %p138, %p139
    %p141 = scmp.ne.s32.totalorder %s133, %s135
    %p142 = scmp.eq.s32.totalorder %s20, 1
    %p143 = por %p141, %p142
    %p144 = scmp.ne.s32.totalorder %s135, %s136
    %p145 = scmp.eq.s32.totalorder %s20, 0
    %p146 = por %p144, %p145
    %p147 = scmp.ne.s32.totalorder %s135, %s136
    %p148 = scmp.eq.s32.totalorder %s21, 1
    %p149 = por %p147, %p148
    %p151 = scmp.ne.s32.totalorder %s136, %s150
    %p152 = scmp.eq.s32.totalorder %s21, 0
    %p153 = por %p151, %p152
    %s155 = sadd.s32 %s154, 1
    %p158 = scmp.eq.s32.totalorder %s15, 1
    %p159 = scmp.ne.s32.totalorder %s154, %s156
    %p160 = scmp.eq.s32.totalorder %s15, 0
    %p161 = por %p159, %p160
    %p162 = scmp.ne.s32.totalorder %s154, %s156
    %p163 = scmp.eq.s32.totalorder %s20, 1
    %p164 = por %p162, %p163
    %p165 = scmp.ne.s32.totalorder %s156, %s157
    %p166 = scmp.eq.s32.totalorder %s20, 0
    %p167 = por %p165, %p166
    %p168 = scmp.ne.s32.totalorder %s156, %s157
    %p169 = scmp.eq.s32.totalorder %s21, 1
    %p170 = por %p168, %p169
    %p172 = scmp.ne.s32.totalorder %s157, %s171
    %p173 = scmp.eq.s32.totalorder %s21, 0
    %p174 = por %p172, %p173
    %s176 = sadd.s32 %s175, 1
    %p179 = scmp.eq.s32.totalorder %s15, 1
    %p180 = scmp.ne.s32.totalorder %s175, %s177
    %p181 = scmp.eq.s32.totalorder %s15, 0
    %p182 = por %p180, %p181
    %p183 = scmp.ne.s32.totalorder %s175, %s177
    %p184 = scmp.eq.s32.totalorder %s20, 1
    %p185 = por %p183, %p184
    %p186 = scmp.ne.s32.totalorder %s177, %s178
    %p187 = scmp.eq.s32.totalorder %s20, 0
    %p188 = por %p186, %p187
    %p189 = scmp.ne.s32.totalorder %s177, %s178
    %p190 = scmp.eq.s32.totalorder %s21, 1
    %p191 = por %p189, %p190
    %p193 = scmp.ne.s32.totalorder %s178, %s192
    %p194 = scmp.eq.s32.totalorder %s21, 0
    %p195 = por %p193, %p194
    %s197 = sadd.s32 %s196, 1
    %p200 = scmp.eq.s32.totalorder %s15, 1
    %p201 = scmp.ne.s32.totalorder %s196, %s198
    %p202 = scmp.eq.s32.totalorder %s15, 0
    %p203 = por %p201, %p202
    %p204 = scmp.ne.s32.totalorder %s196, %s198
    %p205 = scmp.eq.s32.totalorder %s20, 1
    %p206 = por %p204, %p205
    %p207 = scmp.ne.s32.totalorder %s198, %s199
    %p208 = scmp.eq.s32.totalorder %s20, 0
    %p209 = por %p207, %p208
    %p210 = scmp.ne.s32.totalorder %s198, %s199
    %p211 = scmp.eq.s32.totalorder %s21, 1
    %p212 = por %p210, %p211
    %p214 = scmp.ne.s32.totalorder %s199, %s213
    %p215 = scmp.eq.s32.totalorder %s21, 0
    %p216 = por %p214, %p215
    %s217 = ssub.s32 %s15, %s22
    %p218 = scmp.eq.s32.totalorder %s217, 0
    %s220 = sadd.s32 %s219, 1
    %s221 = scalar_select %p218, %s219, %s220
    %p224 = pneg %p218
    %p225 = scmp.eq.s32.totalorder %s15, 1
    %p226 = por %p224, %p225
    %p227 = scmp.ne.s32.totalorder %s219, %s222
    %p228 = scmp.eq.s32.totalorder %s15, 0
    %p229 = por %p227, %p228
    %p230 = scmp.ne.s32.totalorder %s219, %s222
    %p231 = scmp.eq.s32.totalorder %s20, 1
    %p232 = por %p230, %p231
    %p233 = scmp.ne.s32.totalorder %s222, %s223
    %p234 = scmp.eq.s32.totalorder %s20, 0
    %p235 = por %p233, %p234
    %p236 = scmp.ne.s32.totalorder %s222, %s223
    %p237 = scmp.eq.s32.totalorder %s21, 1
    %p238 = por %p236, %p237
    %p240 = scmp.ne.s32.totalorder %s223, %s239
    %p241 = scmp.eq.s32.totalorder %s21, 0
    %p242 = por %p240, %p241
    %p243 = scmp.le.s32.totalorder 1, %s15
    %p244 = scmp.lt.s32.totalorder %s15, 3
    %p245 = pnand %p243, %p244
    %p246 = pneg %p245
    // Predicated region
    $region9: #{_lambda_.6} parent=5 // pred_check
      _
    $region10: #{_lambda_.6} parent=5 // pred_check_branch
      %248 = sbr.rel (%p245) target = $region12
    $region11: #{_lambda_.6} parent=5 // pred_region
      %s249 = ssub.s32 %s15, 1
      // Predicated region
      $region13: #{_lambda_.6} parent=11 // pred_check
        %p250 = pneg %p62
      $region14: #{_lambda_.6} parent=11 // pred_check_branch
        %252 = sbr.rel (%p250) target = $region16
      $region15: #{_lambda_.6} parent=11 // pred_region
        _
      $region16: #{_lambda_.6} parent=11 // pred_fallthru
        _
      // Predicated region
      $region17: #{_lambda_.6} parent=11 // pred_check
        %p253 = pneg %p83
      $region18: #{_lambda_.6} parent=11 // pred_check_branch
        %255 = sbr.rel (%p253) target = $region20
      $region19: #{_lambda_.6} parent=11 // pred_region
        _
      $region20: #{_lambda_.6} parent=11 // pred_fallthru
        _
      // Predicated region
      $region21: #{_lambda_.6} parent=11 // pred_check
        %p256 = pneg %p104
      $region22: #{_lambda_.6} parent=11 // pred_check_branch
        %258 = sbr.rel (%p256) target = $region24
      $region23: #{_lambda_.6} parent=11 // pred_region
        _
      $region24: #{_lambda_.6} parent=11 // pred_fallthru
        _
      // Predicated region
      $region25: #{_lambda_.6} parent=11 // pred_check
        %p259 = pneg %p125
      $region26: #{_lambda_.6} parent=11 // pred_check_branch
        %261 = sbr.rel (%p259) target = $region28
      $region27: #{_lambda_.6} parent=11 // pred_region
        _
      $region28: #{_lambda_.6} parent=11 // pred_fallthru
        _
      // Predicated region
      $region29: #{_lambda_.6} parent=11 // pred_check
        %p262 = pneg %p146
      $region30: #{_lambda_.6} parent=11 // pred_check_branch
        %264 = sbr.rel (%p262) target = $region32
      $region31: #{_lambda_.6} parent=11 // pred_region
        _
      $region32: #{_lambda_.6} parent=11 // pred_fallthru
        _
      // Predicated region
      $region33: #{_lambda_.6} parent=11 // pred_check
        %p265 = pneg %p167
      $region34: #{_lambda_.6} parent=11 // pred_check_branch
        %267 = sbr.rel (%p265) target = $region36
      $region35: #{_lambda_.6} parent=11 // pred_region
        _
      $region36: #{_lambda_.6} parent=11 // pred_fallthru
        _
      // Predicated region
      $region37: #{_lambda_.6} parent=11 // pred_check
        %p268 = pneg %p188
      $region38: #{_lambda_.6} parent=11 // pred_check_branch
        %270 = sbr.rel (%p268) target = $region40
      $region39: #{_lambda_.6} parent=11 // pred_region
        _
      $region40: #{_lambda_.6} parent=11 // pred_fallthru
        _
      // Predicated region
      $region41: #{_lambda_.6} parent=11 // pred_check
        %p271 = pneg %p209
      $region42: #{_lambda_.6} parent=11 // pred_check_branch
        %273 = sbr.rel (%p271) target = $region44
      $region43: #{_lambda_.6} parent=11 // pred_region
        _
      $region44: #{_lambda_.6} parent=11 // pred_fallthru
        _
    $region12: #{_lambda_.6} parent=5 // pred_fallthru
      _
    %p274 = scmp.lt.s32.totalorder %s15, 2
    // Predicated region
    $region45: #{_lambda_.6} parent=5 // pred_check
      %p275 = pneg %p274
    $region46: #{_lambda_.6} parent=5 // pred_check_branch
      %277 = sbr.rel (%p275) target = $region48
    $region47: #{_lambda_.6} parent=5 // pred_region
      // Predicated region
      $region49: #{_lambda_.6} parent=47 // pred_check
        %p278 = pneg %p35
      $region50: #{_lambda_.6} parent=47 // pred_check_branch
        %280 = sbr.rel (%p278) target = $region52
      $region51: #{_lambda_.6} parent=47 // pred_region
        %p281 = scmp.lt.s32.totalorder %s15, 1
        %s282 = scalar_select %p281, %s15, 1
        %s283 = smul.addr %s282, 14
        %s284 = smul.addr %s283, 4
        %s285 = scalar_lea.vmem %s0, %s284
      $region52: #{_lambda_.6} parent=47 // pred_fallthru
        _
    $region48: #{_lambda_.6} parent=5 // pred_fallthru
      _
    %p286 = scmp.le.s32.totalorder 1, %s15
    %p287 = scmp.lt.s32.totalorder %s15, 3
    %p288 = pnand %p286, %p287
    %p289 = pneg %p288
    // Predicated region
    $region53: #{_lambda_.6} parent=5 // pred_check
      _
    $region54: #{_lambda_.6} parent=5 // pred_check_branch
      %291 = sbr.rel (%p288) target = $region56
    $region55: #{_lambda_.6} parent=5 // pred_region
      %s292 = ssub.s32 %s15, 1
      %p293 = scmp.lt.s32.totalorder %s20, 1
      %s294 = scalar_select %p293, %s20, 1
      %s295 = smul.addr %s294, 14
      %s296 = smul.addr %s295, 4
      %s297 = scalar_lea.vmem %s0, %s296
      %p298 = pneg %p41
      %p299 = pneg %p38
      %p300 = pneg %p62
      %p301 = pneg %p59
      %p302 = pneg %p83
      %p303 = pneg %p80
      %p304 = pneg %p104
      %p305 = pneg %p101
      %p306 = pneg %p125
      %p307 = pneg %p122
      %p308 = pneg %p146
      %p309 = pneg %p143
      %p310 = pneg %p167
      %p311 = pneg %p164
      %p312 = pneg %p188
      %p313 = pneg %p185
      %p314 = pneg %p209
      %p315 = pneg %p206
      %p316 = pneg %p235
      %p317 = pneg %p232
      %p318 = scmp.lt.s32.totalorder %s20, 1
      %s319 = scalar_select %p318, %s20, 1
      %s320 = smul.addr %s319, 14
      %s321 = smul.addr %s320, 4
      %s322 = scalar_lea.vmem %s9, %s321
      %p323 = scmp.lt.s32.totalorder %s20, 1
      %s324 = scalar_select %p323, %s20, 1
      %s325 = smul.addr %s324, 14
      %s326 = smul.addr %s325, 4
      %s327 = scalar_lea.vmem %s0, %s326
      %p328 = scmp.lt.s32.totalorder %s20, 1
      %s329 = scalar_select %p328, %s20, 1
      %s330 = smul.addr %s329, 14
      %s331 = smul.addr %s330, 4
      %s332 = scalar_lea.vmem %s9, %s331
      %v334 = vld [vmem:[%s327] sm:$0xf]
      %v335 = vld [vmem:[%s327 + $0x4] sm:$0xf]
      %v336 = vld [vmem:[%s327 + $0x8] sm:$0xf]
      %v337 = vld [vmem:[%s327 + $0xc] sm:$0xf]
      %v338 = vld [vmem:[%s327 + $0x10] sm:$0xf]
      %v339 = vld [vmem:[%s327 + $0x14] sm:$0xf]
      %v340 = vld [vmem:[%s327 + $0x18] sm:$0xf]
      %v341 = vld [vmem:[%s327 + $0x1c] sm:$0xf]
      %v342 = vld [vmem:[%s327 + $0x20] sm:$0xf]
      %v343 = vld [vmem:[%s327 + $0x24] sm:$0xf]
      %v344 = vld [vmem:[%s327 + $0x28] sm:$0xf]
      %v345 = vld [vmem:[%s327 + $0x2c] sm:$0xf]
      %v346 = vld [vmem:[%s327 + $0x30] sm:$0xf]
      %v347 = vunpack.c.l.bf16 %v334
      %v348 = vunpack.c.l.bf16 %v335
      %v349 = vunpack.c.l.bf16 %v336
      %v350 = vunpack.c.l.bf16 %v337
      %v351 = vunpack.c.l.bf16 %v338
      %v352 = vunpack.c.l.bf16 %v339
      %v353 = vunpack.c.l.bf16 %v340
      %v354 = vunpack.c.l.bf16 %v341
      %v355 = vunpack.c.l.bf16 %v342
      %v356 = vunpack.c.l.bf16 %v343
      %v357 = vunpack.c.l.bf16 %v344
      %v358 = vunpack.c.l.bf16 %v345
      %v359 = vunpack.c.l.bf16 %v346
      %v360 = vlaneseq
      %v361 = vshrl.u32 %v360, 7
      %v362 = vadd.s32 %v361, 8
      %v363 = vadd.s32 %v361, 16
      %v364 = vadd.s32 %v361, 24
      %v365 = vadd.s32 %v361, 32
      %v366 = vadd.s32 %v361, 40
      %v367 = vadd.s32 %v361, 48
      %v368 = vadd.s32 %v361, 56
      %v369 = vadd.s32 %v361, 64
      %v370 = vadd.s32 %v361, 72
      %vm371 = vcmp.lt.s32.totalorder %v361, 0
      %v372 = vsub.s32 0, %v361
      %v373 = vsel %vm371, %v372, %v361
      %v374 = vand.u32 %v373, 65535
      %v375 = vshrl.u32 %v373, 16
      %v377 = vmul.u32 %v374, 52429
      %v378 = vmul.u32 %v374, 52428
      %v379 = vmul.u32 %v375, 52429
      %v380 = vmul.u32 %v375, 52428
      %v381 = vshll.u32 %v378, 16
      %v382 = vshrl.u32 %v378, 16
      %v383 = vshll.u32 %v379, 16
      %v384 = vshrl.u32 %v379, 16
      %vm385 = vc.u32 %v377, %v381
      %v386 = vsel %vm385, 1, 0
      %v387 = vadd.s32 %v377, %v381
      %v388 = vadd.s32 %v380, %v386
      %vm389 = vc.u32 %v387, %v383
      %v390 = vsel %vm389, 1, 0
      %v391 = vadd.s32 %v387, %v383
      %v392 = vadd.s32 %v388, %v390
      %v393 = vadd.s32 %v392, %v382
      %v394 = vadd.s32 %v393, %v384
      %v395 = vshrl.u32 %v394, 3
      %v396 = vmul.u32 %v395, 10
      %v397 = vsub.s32 %v373, %v396
      %v398 = vsub.s32 0, %v397
      %v399 = vsel %vm371, %v398, %v397
      %vm400 = vcmp.lt.s32.totalorder %v362, 0
      %v401 = vsub.s32 0, %v362
      %v402 = vsel %vm400, %v401, %v362
      %v403 = vand.u32 %v402, 65535
      %v404 = vshrl.u32 %v402, 16
      %v406 = vmul.u32 %v403, 52429
      %v407 = vmul.u32 %v403, 52428
      %v408 = vmul.u32 %v404, 52429
      %v409 = vmul.u32 %v404, 52428
      %v410 = vshll.u32 %v407, 16
      %v411 = vshrl.u32 %v407, 16
      %v412 = vshll.u32 %v408, 16
      %v413 = vshrl.u32 %v408, 16
      %vm414 = vc.u32 %v406, %v410
      %v415 = vsel %vm414, 1, 0
      %v416 = vadd.s32 %v406, %v410
      %v417 = vadd.s32 %v409, %v415
      %vm418 = vc.u32 %v416, %v412
      %v419 = vsel %vm418, 1, 0
      %v420 = vadd.s32 %v416, %v412
      %v421 = vadd.s32 %v417, %v419
      %v422 = vadd.s32 %v421, %v411
      %v423 = vadd.s32 %v422, %v413
      %v424 = vshrl.u32 %v423, 3
      %v425 = vmul.u32 %v424, 10
      %v426 = vsub.s32 %v402, %v425
      %v427 = vsub.s32 0, %v426
      %v428 = vsel %vm400, %v427, %v426
      %vm429 = vcmp.lt.s32.totalorder %v363, 0
      %v430 = vsub.s32 0, %v363
      %v431 = vsel %vm429, %v430, %v363
      %v432 = vand.u32 %v431, 65535
      %v433 = vshrl.u32 %v431, 16
      %v435 = vmul.u32 %v432, 52429
      %v436 = vmul.u32 %v432, 52428
      %v437 = vmul.u32 %v433, 52429
      %v438 = vmul.u32 %v433, 52428
      %v439 = vshll.u32 %v436, 16
      %v440 = vshrl.u32 %v436, 16
      %v441 = vshll.u32 %v437, 16
      %v442 = vshrl.u32 %v437, 16
      %vm443 = vc.u32 %v435, %v439
      %v444 = vsel %vm443, 1, 0
      %v445 = vadd.s32 %v435, %v439
      %v446 = vadd.s32 %v438, %v444
      %vm447 = vc.u32 %v445, %v441
      %v448 = vsel %vm447, 1, 0
      %v449 = vadd.s32 %v445, %v441
      %v450 = vadd.s32 %v446, %v448
      %v451 = vadd.s32 %v450, %v440
      %v452 = vadd.s32 %v451, %v442
      %v453 = vshrl.u32 %v452, 3
      %v454 = vmul.u32 %v453, 10
      %v455 = vsub.s32 %v431, %v454
      %v456 = vsub.s32 0, %v455
      %v457 = vsel %vm429, %v456, %v455
      %vm458 = vcmp.lt.s32.totalorder %v364, 0
      %v459 = vsub.s32 0, %v364
      %v460 = vsel %vm458, %v459, %v364
      %v461 = vand.u32 %v460, 65535
      %v462 = vshrl.u32 %v460, 16
      %v464 = vmul.u32 %v461, 52429
      %v465 = vmul.u32 %v461, 52428
      %v466 = vmul.u32 %v462, 52429
      %v467 = vmul.u32 %v462, 52428
      %v468 = vshll.u32 %v465, 16
      %v469 = vshrl.u32 %v465, 16
      %v470 = vshll.u32 %v466, 16
      %v471 = vshrl.u32 %v466, 16
      %vm472 = vc.u32 %v464, %v468
      %v473 = vsel %vm472, 1, 0
      %v474 = vadd.s32 %v464, %v468
      %v475 = vadd.s32 %v467, %v473
      %vm476 = vc.u32 %v474, %v470
      %v477 = vsel %vm476, 1, 0
      %v478 = vadd.s32 %v474, %v470
      %v479 = vadd.s32 %v475, %v477
      %v480 = vadd.s32 %v479, %v469
      %v481 = vadd.s32 %v480, %v471
      %v482 = vshrl.u32 %v481, 3
      %v483 = vmul.u32 %v482, 10
      %v484 = vsub.s32 %v460, %v483
      %v485 = vsub.s32 0, %v484
      %v486 = vsel %vm458, %v485, %v484
      %vm487 = vcmp.lt.s32.totalorder %v365, 0
      %v488 = vsub.s32 0, %v365
      %v489 = vsel %vm487, %v488, %v365
      %v490 = vand.u32 %v489, 65535
      %v491 = vshrl.u32 %v489, 16
      %v493 = vmul.u32 %v490, 52429
      %v494 = vmul.u32 %v490, 52428
      %v495 = vmul.u32 %v491, 52429
      %v496 = vmul.u32 %v491, 52428
      %v497 = vshll.u32 %v494, 16
      %v498 = vshrl.u32 %v494, 16
      %v499 = vshll.u32 %v495, 16
      %v500 = vshrl.u32 %v495, 16
      %vm501 = vc.u32 %v493, %v497
      %v502 = vsel %vm501, 1, 0
      %v503 = vadd.s32 %v493, %v497
      %v504 = vadd.s32 %v496, %v502
      %vm505 = vc.u32 %v503, %v499
      %v506 = vsel %vm505, 1, 0
      %v507 = vadd.s32 %v503, %v499
      %v508 = vadd.s32 %v504, %v506
      %v509 = vadd.s32 %v508, %v498
      %v510 = vadd.s32 %v509, %v500
      %v511 = vshrl.u32 %v510, 3
      %v512 = vmul.u32 %v511, 10
      %v513 = vsub.s32 %v489, %v512
      %v514 = vsub.s32 0, %v513
      %v515 = vsel %vm487, %v514, %v513
      %vm516 = vcmp.lt.s32.totalorder %v366, 0
      %v517 = vsub.s32 0, %v366
      %v518 = vsel %vm516, %v517, %v366
      %v519 = vand.u32 %v518, 65535
      %v520 = vshrl.u32 %v518, 16
      %v522 = vmul.u32 %v519, 52429
      %v523 = vmul.u32 %v519, 52428
      %v524 = vmul.u32 %v520, 52429
      %v525 = vmul.u32 %v520, 52428
      %v526 = vshll.u32 %v523, 16
      %v527 = vshrl.u32 %v523, 16
      %v528 = vshll.u32 %v524, 16
      %v529 = vshrl.u32 %v524, 16
      %vm530 = vc.u32 %v522, %v526
      %v531 = vsel %vm530, 1, 0
      %v532 = vadd.s32 %v522, %v526
      %v533 = vadd.s32 %v525, %v531
      %vm534 = vc.u32 %v532, %v528
      %v535 = vsel %vm534, 1, 0
      %v536 = vadd.s32 %v532, %v528
      %v537 = vadd.s32 %v533, %v535
      %v538 = vadd.s32 %v537, %v527
      %v539 = vadd.s32 %v538, %v529
      %v540 = vshrl.u32 %v539, 3
      %v541 = vmul.u32 %v540, 10
      %v542 = vsub.s32 %v518, %v541
      %v543 = vsub.s32 0, %v542
      %v544 = vsel %vm516, %v543, %v542
      %vm545 = vcmp.lt.s32.totalorder %v367, 0
      %v546 = vsub.s32 0, %v367
      %v547 = vsel %vm545, %v546, %v367
      %v548 = vand.u32 %v547, 65535
      %v549 = vshrl.u32 %v547, 16
      %v551 = vmul.u32 %v548, 52429
      %v552 = vmul.u32 %v548, 52428
      %v553 = vmul.u32 %v549, 52429
      %v554 = vmul.u32 %v549, 52428
      %v555 = vshll.u32 %v552, 16
      %v556 = vshrl.u32 %v552, 16
      %v557 = vshll.u32 %v553, 16
      %v558 = vshrl.u32 %v553, 16
      %vm559 = vc.u32 %v551, %v555
      %v560 = vsel %vm559, 1, 0
      %v561 = vadd.s32 %v551, %v555
      %v562 = vadd.s32 %v554, %v560
      %vm563 = vc.u32 %v561, %v557
      %v564 = vsel %vm563, 1, 0
      %v565 = vadd.s32 %v561, %v557
      %v566 = vadd.s32 %v562, %v564
      %v567 = vadd.s32 %v566, %v556
      %v568 = vadd.s32 %v567, %v558
      %v569 = vshrl.u32 %v568, 3
      %v570 = vmul.u32 %v569, 10
      %v571 = vsub.s32 %v547, %v570
      %v572 = vsub.s32 0, %v571
      %v573 = vsel %vm545, %v572, %v571
      %vm574 = vcmp.lt.s32.totalorder %v368, 0
      %v575 = vsub.s32 0, %v368
      %v576 = vsel %vm574, %v575, %v368
      %v577 = vand.u32 %v576, 65535
      %v578 = vshrl.u32 %v576, 16
      %v580 = vmul.u32 %v577, 52429
      %v581 = vmul.u32 %v577, 52428
      %v582 = vmul.u32 %v578, 52429
      %v583 = vmul.u32 %v578, 52428
      %v584 = vshll.u32 %v581, 16
      %v585 = vshrl.u32 %v581, 16
      %v586 = vshll.u32 %v582, 16
      %v587 = vshrl.u32 %v582, 16
      %vm588 = vc.u32 %v580, %v584
      %v589 = vsel %vm588, 1, 0
      %v590 = vadd.s32 %v580, %v584
      %v591 = vadd.s32 %v583, %v589
      %vm592 = vc.u32 %v590, %v586
      %v593 = vsel %vm592, 1, 0
      %v594 = vadd.s32 %v590, %v586
      %v595 = vadd.s32 %v591, %v593
      %v596 = vadd.s32 %v595, %v585
      %v597 = vadd.s32 %v596, %v587
      %v598 = vshrl.u32 %v597, 3
      %v599 = vmul.u32 %v598, 10
      %v600 = vsub.s32 %v576, %v599
      %v601 = vsub.s32 0, %v600
      %v602 = vsel %vm574, %v601, %v600
      %vm603 = vcmp.lt.s32.totalorder %v369, 0
      %v604 = vsub.s32 0, %v369
      %v605 = vsel %vm603, %v604, %v369
      %v606 = vand.u32 %v605, 65535
      %v607 = vshrl.u32 %v605, 16
      %v609 = vmul.u32 %v606, 52429
      %v610 = vmul.u32 %v606, 52428
      %v611 = vmul.u32 %v607, 52429
      %v612 = vmul.u32 %v607, 52428
      %v613 = vshll.u32 %v610, 16
      %v614 = vshrl.u32 %v610, 16
      %v615 = vshll.u32 %v611, 16
      %v616 = vshrl.u32 %v611, 16
      %vm617 = vc.u32 %v609, %v613
      %v618 = vsel %vm617, 1, 0
      %v619 = vadd.s32 %v609, %v613
      %v620 = vadd.s32 %v612, %v618
      %vm621 = vc.u32 %v619, %v615
      %v622 = vsel %vm621, 1, 0
      %v623 = vadd.s32 %v619, %v615
      %v624 = vadd.s32 %v620, %v622
      %v625 = vadd.s32 %v624, %v614
      %v626 = vadd.s32 %v625, %v616
      %v627 = vshrl.u32 %v626, 3
      %v628 = vmul.u32 %v627, 10
      %v629 = vsub.s32 %v605, %v628
      %v630 = vsub.s32 0, %v629
      %v631 = vsel %vm603, %v630, %v629
      %vm632 = vcmp.lt.s32.totalorder %v370, 0
      %v633 = vsub.s32 0, %v370
      %v634 = vsel %vm632, %v633, %v370
      %v635 = vand.u32 %v634, 65535
      %v636 = vshrl.u32 %v634, 16
      %v638 = vmul.u32 %v635, 52429
      %v639 = vmul.u32 %v635, 52428
      %v640 = vmul.u32 %v636, 52429
      %v641 = vmul.u32 %v636, 52428
      %v642 = vshll.u32 %v639, 16
      %v643 = vshrl.u32 %v639, 16
      %v644 = vshll.u32 %v640, 16
      %v645 = vshrl.u32 %v640, 16
      %vm646 = vc.u32 %v638, %v642
      %v647 = vsel %vm646, 1, 0
      %v648 = vadd.s32 %v638, %v642
      %v649 = vadd.s32 %v641, %v647
      %vm650 = vc.u32 %v648, %v644
      %v651 = vsel %vm650, 1, 0
      %v652 = vadd.s32 %v648, %v644
      %v653 = vadd.s32 %v649, %v651
      %v654 = vadd.s32 %v653, %v643
      %v655 = vadd.s32 %v654, %v645
      %v656 = vshrl.u32 %v655, 3
      %v657 = vmul.u32 %v656, 10
      %v658 = vsub.s32 %v634, %v657
      %v659 = vsub.s32 0, %v658
      %v660 = vsel %vm632, %v659, %v658
      %vm661 = vcmp.ne.s32.totalorder %v399, 0
      %vm662 = vcmp.ne.s32.totalorder %v428, 0
      %vm663 = vcmp.ne.s32.totalorder %v457, 0
      %vm664 = vcmp.ne.s32.totalorder %v486, 0
      %vm665 = vcmp.ne.s32.totalorder %v515, 0
      %vm666 = vcmp.ne.s32.totalorder %v544, 0
      %vm667 = vcmp.ne.s32.totalorder %v573, 0
      %vm668 = vcmp.ne.s32.totalorder %v602, 0
      %vm669 = vcmp.ne.s32.totalorder %v631, 0
      %vm670 = vcmp.ne.s32.totalorder %v660, 0
      %vm671 = vcmp.lt.s32.totalorder %v399, 0
      %vm672 = vcmp.lt.s32.totalorder %v428, 0
      %vm673 = vcmp.lt.s32.totalorder %v457, 0
      %vm674 = vcmp.lt.s32.totalorder %v486, 0
      %vm675 = vcmp.lt.s32.totalorder %v515, 0
      %vm676 = vcmp.lt.s32.totalorder %v544, 0
      %vm677 = vcmp.lt.s32.totalorder %v573, 0
      %vm678 = vcmp.lt.s32.totalorder %v602, 0
      %vm679 = vcmp.lt.s32.totalorder %v631, 0
      %vm680 = vcmp.lt.s32.totalorder %v660, 0
      %vm681 = vmand %vm671, %vm661
      %vm682 = vmand %vm672, %vm662
      %vm683 = vmand %vm673, %vm663
      %vm684 = vmand %vm674, %vm664
      %vm685 = vmand %vm675, %vm665
      %vm686 = vmand %vm676, %vm666
      %vm687 = vmand %vm677, %vm667
      %vm688 = vmand %vm678, %vm668
      %vm689 = vmand %vm679, %vm669
      %vm690 = vmand %vm680, %vm670
      %v691 = vadd.s32 %v399, 10
      %v692 = vadd.s32 %v428, 10
      %v693 = vadd.s32 %v457, 10
      %v694 = vadd.s32 %v486, 10
      %v695 = vadd.s32 %v515, 10
      %v696 = vadd.s32 %v544, 10
      %v697 = vadd.s32 %v573, 10
      %v698 = vadd.s32 %v602, 10
      %v699 = vadd.s32 %v631, 10
      %v700 = vadd.s32 %v660, 10
      %v701 = vsel %vm681, %v691, %v399
      %v702 = vsel %vm682, %v692, %v428
      %v703 = vsel %vm683, %v693, %v457
      %v704 = vsel %vm684, %v694, %v486
      %v705 = vsel %vm685, %v695, %v515
      %v706 = vsel %vm686, %v696, %v544
      %v707 = vsel %vm687, %v697, %v573
      %v708 = vsel %vm688, %v698, %v602
      %v709 = vsel %vm689, %v699, %v631
      %v710 = vsel %vm690, %v700, %v660
      %vm711 = vcmp.lt.s32.totalorder %v701, 8
      %vm712 = vcmp.lt.s32.totalorder %v702, 8
      %vm713 = vcmp.lt.s32.totalorder %v703, 8
      %vm714 = vcmp.lt.s32.totalorder %v704, 8
      %vm715 = vcmp.lt.s32.totalorder %v705, 8
      %vm716 = vcmp.lt.s32.totalorder %v706, 8
      %vm717 = vcmp.lt.s32.totalorder %v707, 8
      %vm718 = vcmp.lt.s32.totalorder %v708, 8
      %vm719 = vcmp.lt.s32.totalorder %v709, 8
      %vm720 = vcmp.lt.s32.totalorder %v710, 8
      %v721 = vsel %vm711, 1, 0
      %v722 = vsel %vm712, 1, 0
      %v723 = vsel %vm713, 1, 0
      %v724 = vsel %vm714, 1, 0
      %v725 = vsel %vm715, 1, 0
      %v726 = vsel %vm716, 1, 0
      %v727 = vsel %vm717, 1, 0
      %v728 = vsel %vm718, 1, 0
      %v729 = vsel %vm719, 1, 0
      %v730 = vsel %vm720, 1, 0
      %v731 = vcvt.s32.f32 %v721
      %v732 = vcvt.s32.f32 %v722
      %v733 = vcvt.s32.f32 %v723
      %v734 = vcvt.s32.f32 %v724
      %v735 = vcvt.s32.f32 %v725
      %v736 = vcvt.s32.f32 %v726
      %v737 = vcvt.s32.f32 %v727
      %v738 = vcvt.s32.f32 %v728
      %v739 = vcvt.s32.f32 %v729
      %v740 = vcvt.s32.f32 %v730
      %vm752 = vcmask 1046528
      %v753 = vrot.slane %v347, 1
      %v754 = vrot.slane %v348, 1
      %v755 = vsel %vm752, %v753, %v754
      %v756 = vrot.slane %v349, 1
      %v757 = vsel %vm752, %v754, %v756
      %v758 = vrot.slane %v350, 1
      %v759 = vsel %vm752, %v756, %v758
      %v760 = vrot.slane %v351, 1
      %v761 = vsel %vm752, %v758, %v760
      %v762 = vrot.slane %v352, 1
      %v763 = vsel %vm752, %v760, %v762
      %v764 = vrot.slane %v353, 1
      %v765 = vsel %vm752, %v762, %v764
      %v766 = vrot.slane %v354, 1
      %v767 = vsel %vm752, %v764, %v766
      %v768 = vrot.slane %v355, 1
      %v769 = vsel %vm752, %v766, %v768
      %v770 = vrot.slane %v356, 1
      %v771 = vsel %vm752, %v768, %v770
      %v772 = vrot.slane %v357, 1
      %v773 = vsel %vm752, %v770, %v772
      %774 = vrot.lane.b32.xlu0 %v755, 8
      %v775 = vpop.permute.xlu0 %774
      %776 = vrot.lane.b32.xlu0 %v757, 8
      %v777 = vpop.permute.xlu0 %776
      %778 = vrot.lane.b32.xlu0 %v759, 8
      %v779 = vpop.permute.xlu0 %778
      %780 = vrot.lane.b32.xlu0 %v761, 8
      %v781 = vpop.permute.xlu0 %780
      %782 = vrot.lane.b32.xlu0 %v763, 8
      %v783 = vpop.permute.xlu0 %782
      %784 = vrot.lane.b32.xlu0 %v765, 8
      %v785 = vpop.permute.xlu0 %784
      %786 = vrot.lane.b32.xlu0 %v767, 8
      %v787 = vpop.permute.xlu0 %786
      %788 = vrot.lane.b32.xlu0 %v769, 8
      %v789 = vpop.permute.xlu0 %788
      %790 = vrot.lane.b32.xlu0 %v771, 8
      %v791 = vpop.permute.xlu0 %790
      %792 = vrot.lane.b32.xlu0 %v773, 8
      %v793 = vpop.permute.xlu0 %792
      %vm804 = vcmask 1045504
      %v805 = vrot.slane %v347, 2
      %v806 = vrot.slane %v348, 2
      %v807 = vsel %vm804, %v805, %v806
      %v808 = vrot.slane %v349, 2
      %v809 = vsel %vm804, %v806, %v808
      %v810 = vrot.slane %v350, 2
      %v811 = vsel %vm804, %v808, %v810
      %v812 = vrot.slane %v351, 2
      %v813 = vsel %vm804, %v810, %v812
      %v814 = vrot.slane %v352, 2
      %v815 = vsel %vm804, %v812, %v814
      %v816 = vrot.slane %v353, 2
      %v817 = vsel %vm804, %v814, %v816
      %v818 = vrot.slane %v354, 2
      %v819 = vsel %vm804, %v816, %v818
      %v820 = vrot.slane %v355, 2
      %v821 = vsel %vm804, %v818, %v820
      %v822 = vrot.slane %v356, 2
      %v823 = vsel %vm804, %v820, %v822
      %v824 = vrot.slane %v357, 2
      %v825 = vsel %vm804, %v822, %v824
      %826 = vrot.lane.b32.xlu0 %v807, 16
      %v827 = vpop.permute.xlu0 %826
      %828 = vrot.lane.b32.xlu0 %v809, 16
      %v829 = vpop.permute.xlu0 %828
      %830 = vrot.lane.b32.xlu0 %v811, 16
      %v831 = vpop.permute.xlu0 %830
      %832 = vrot.lane.b32.xlu0 %v813, 16
      %v833 = vpop.permute.xlu0 %832
      %834 = vrot.lane.b32.xlu0 %v815, 16
      %v835 = vpop.permute.xlu0 %834
      %836 = vrot.lane.b32.xlu0 %v817, 16
      %v837 = vpop.permute.xlu0 %836
      %838 = vrot.lane.b32.xlu0 %v819, 16
      %v839 = vpop.permute.xlu0 %838
      %840 = vrot.lane.b32.xlu0 %v821, 16
      %v841 = vpop.permute.xlu0 %840
      %842 = vrot.lane.b32.xlu0 %v823, 16
      %v843 = vpop.permute.xlu0 %842
      %844 = vrot.lane.b32.xlu0 %v825, 16
      %v845 = vpop.permute.xlu0 %844
      %v857 = vrot.slane %v358, 2
      %v858 = vsel %vm804, %v824, %v857
      %859 = vrot.lane.b32.xlu0 %v809, 24
      %v860 = vpop.permute.xlu0 %859
      %861 = vrot.lane.b32.xlu0 %v811, 24
      %v862 = vpop.permute.xlu0 %861
      %863 = vrot.lane.b32.xlu0 %v813, 24
      %v864 = vpop.permute.xlu0 %863
      %865 = vrot.lane.b32.xlu0 %v815, 24
      %v866 = vpop.permute.xlu0 %865
      %867 = vrot.lane.b32.xlu0 %v817, 24
      %v868 = vpop.permute.xlu0 %867
      %869 = vrot.lane.b32.xlu0 %v819, 24
      %v870 = vpop.permute.xlu0 %869
      %871 = vrot.lane.b32.xlu0 %v821, 24
      %v872 = vpop.permute.xlu0 %871
      %873 = vrot.lane.b32.xlu0 %v823, 24
      %v874 = vpop.permute.xlu0 %873
      %875 = vrot.lane.b32.xlu0 %v825, 24
      %v876 = vpop.permute.xlu0 %875
      %877 = vrot.lane.b32.xlu0 %v858, 24
      %v878 = vpop.permute.xlu0 %877
      %vm889 = vcmask 1044480
      %v890 = vrot.slane %v348, 3
      %v891 = vrot.slane %v349, 3
      %v892 = vsel %vm889, %v890, %v891
      %v893 = vrot.slane %v350, 3
      %v894 = vsel %vm889, %v891, %v893
      %v895 = vrot.slane %v351, 3
      %v896 = vsel %vm889, %v893, %v895
      %v897 = vrot.slane %v352, 3
      %v898 = vsel %vm889, %v895, %v897
      %v899 = vrot.slane %v353, 3
      %v900 = vsel %vm889, %v897, %v899
      %v901 = vrot.slane %v354, 3
      %v902 = vsel %vm889, %v899, %v901
      %v903 = vrot.slane %v355, 3
      %v904 = vsel %vm889, %v901, %v903
      %v905 = vrot.slane %v356, 3
      %v906 = vsel %vm889, %v903, %v905
      %v907 = vrot.slane %v357, 3
      %v908 = vsel %vm889, %v905, %v907
      %v909 = vrot.slane %v358, 3
      %v910 = vsel %vm889, %v907, %v909
      %911 = vrot.lane.b32.xlu0 %v892, 32
      %v912 = vpop.permute.xlu0 %911
      %913 = vrot.lane.b32.xlu0 %v894, 32
      %v914 = vpop.permute.xlu0 %913
      %915 = vrot.lane.b32.xlu0 %v896, 32
      %v916 = vpop.permute.xlu0 %915
      %917 = vrot.lane.b32.xlu0 %v898, 32
      %v918 = vpop.permute.xlu0 %917
      %919 = vrot.lane.b32.xlu0 %v900, 32
      %v920 = vpop.permute.xlu0 %919
      %921 = vrot.lane.b32.xlu0 %v902, 32
      %v922 = vpop.permute.xlu0 %921
      %923 = vrot.lane.b32.xlu0 %v904, 32
      %v924 = vpop.permute.xlu0 %923
      %925 = vrot.lane.b32.xlu0 %v906, 32
      %v926 = vpop.permute.xlu0 %925
      %927 = vrot.lane.b32.xlu0 %v908, 32
      %v928 = vpop.permute.xlu0 %927
      %929 = vrot.lane.b32.xlu0 %v910, 32
      %v930 = vpop.permute.xlu0 %929
      %vm941 = vcmask 1043456
      %v942 = vrot.slane %v348, 4
      %v943 = vrot.slane %v349, 4
      %v944 = vsel %vm941, %v942, %v943
      %v945 = vrot.slane %v350, 4
      %v946 = vsel %vm941, %v943, %v945
      %v947 = vrot.slane %v351, 4
      %v948 = vsel %vm941, %v945, %v947
      %v949 = vrot.slane %v352, 4
      %v950 = vsel %vm941, %v947, %v949
      %v951 = vrot.slane %v353, 4
      %v952 = vsel %vm941, %v949, %v951
      %v953 = vrot.slane %v354, 4
      %v954 = vsel %vm941, %v951, %v953
      %v955 = vrot.slane %v355, 4
      %v956 = vsel %vm941, %v953, %v955
      %v957 = vrot.slane %v356, 4
      %v958 = vsel %vm941, %v955, %v957
      %v959 = vrot.slane %v357, 4
      %v960 = vsel %vm941, %v957, %v959
      %v961 = vrot.slane %v358, 4
      %v962 = vsel %vm941, %v959, %v961
      %963 = vrot.lane.b32.xlu0 %v944, 40
      %v964 = vpop.permute.xlu0 %963
      %965 = vrot.lane.b32.xlu0 %v946, 40
      %v966 = vpop.permute.xlu0 %965
      %967 = vrot.lane.b32.xlu0 %v948, 40
      %v968 = vpop.permute.xlu0 %967
      %969 = vrot.lane.b32.xlu0 %v950, 40
      %v970 = vpop.permute.xlu0 %969
      %971 = vrot.lane.b32.xlu0 %v952, 40
      %v972 = vpop.permute.xlu0 %971
      %973 = vrot.lane.b32.xlu0 %v954, 40
      %v974 = vpop.permute.xlu0 %973
      %975 = vrot.lane.b32.xlu0 %v956, 40
      %v976 = vpop.permute.xlu0 %975
      %977 = vrot.lane.b32.xlu0 %v958, 40
      %v978 = vpop.permute.xlu0 %977
      %979 = vrot.lane.b32.xlu0 %v960, 40
      %v980 = vpop.permute.xlu0 %979
      %981 = vrot.lane.b32.xlu0 %v962, 40
      %v982 = vpop.permute.xlu0 %981
      %v994 = vrot.slane %v359, 4
      %v995 = vsel %vm941, %v961, %v994
      %996 = vrot.lane.b32.xlu0 %v946, 48
      %v997 = vpop.permute.xlu0 %996
      %998 = vrot.lane.b32.xlu0 %v948, 48
      %v999 = vpop.permute.xlu0 %998
      %1000 = vrot.lane.b32.xlu0 %v950, 48
      %v1001 = vpop.permute.xlu0 %1000
      %1002 = vrot.lane.b32.xlu0 %v952, 48
      %v1003 = vpop.permute.xlu0 %1002
      %1004 = vrot.lane.b32.xlu0 %v954, 48
      %v1005 = vpop.permute.xlu0 %1004
      %1006 = vrot.lane.b32.xlu0 %v956, 48
      %v1007 = vpop.permute.xlu0 %1006
      %1008 = vrot.lane.b32.xlu0 %v958, 48
      %v1009 = vpop.permute.xlu0 %1008
      %1010 = vrot.lane.b32.xlu0 %v960, 48
      %v1011 = vpop.permute.xlu0 %1010
      %1012 = vrot.lane.b32.xlu0 %v962, 48
      %v1013 = vpop.permute.xlu0 %1012
      %1014 = vrot.lane.b32.xlu0 %v995, 48
      %v1015 = vpop.permute.xlu0 %1014
      %vm1026 = vcmask 1042432
      %v1027 = vrot.slane %v349, 5
      %v1028 = vrot.slane %v350, 5
      %v1029 = vsel %vm1026, %v1027, %v1028
      %v1030 = vrot.slane %v351, 5
      %v1031 = vsel %vm1026, %v1028, %v1030
      %v1032 = vrot.slane %v352, 5
      %v1033 = vsel %vm1026, %v1030, %v1032
      %v1034 = vrot.slane %v353, 5
      %v1035 = vsel %vm1026, %v1032, %v1034
      %v1036 = vrot.slane %v354, 5
      %v1037 = vsel %vm1026, %v1034, %v1036
      %v1038 = vrot.slane %v355, 5
      %v1039 = vsel %vm1026, %v1036, %v1038
      %v1040 = vrot.slane %v356, 5
      %v1041 = vsel %vm1026, %v1038, %v1040
      %v1042 = vrot.slane %v357, 5
      %v1043 = vsel %vm1026, %v1040, %v1042
      %v1044 = vrot.slane %v358, 5
      %v1045 = vsel %vm1026, %v1042, %v1044
      %v1046 = vrot.slane %v359, 5
      %v1047 = vsel %vm1026, %v1044, %v1046
      %1048 = vrot.lane.b32.xlu0 %v1029, 56
      %v1049 = vpop.permute.xlu0 %1048
      %1050 = vrot.lane.b32.xlu0 %v1031, 56
      %v1051 = vpop.permute.xlu0 %1050
      %1052 = vrot.lane.b32.xlu0 %v1033, 56
      %v1053 = vpop.permute.xlu0 %1052
      %1054 = vrot.lane.b32.xlu0 %v1035, 56
      %v1055 = vpop.permute.xlu0 %1054
      %1056 = vrot.lane.b32.xlu0 %v1037, 56
      %v1057 = vpop.permute.xlu0 %1056
      %1058 = vrot.lane.b32.xlu0 %v1039, 56
      %v1059 = vpop.permute.xlu0 %1058
      %1060 = vrot.lane.b32.xlu0 %v1041, 56
      %v1061 = vpop.permute.xlu0 %1060
      %1062 = vrot.lane.b32.xlu0 %v1043, 56
      %v1063 = vpop.permute.xlu0 %1062
      %1064 = vrot.lane.b32.xlu0 %v1045, 56
      %v1065 = vpop.permute.xlu0 %1064
      %1066 = vrot.lane.b32.xlu0 %v1047, 56
      %v1067 = vpop.permute.xlu0 %1066
      %vm1078 = vcmask 1041408
      %v1079 = vrot.slane %v349, 6
      %v1080 = vrot.slane %v350, 6
      %v1081 = vsel %vm1078, %v1079, %v1080
      %v1082 = vrot.slane %v351, 6
      %v1083 = vsel %vm1078, %v1080, %v1082
      %v1084 = vrot.slane %v352, 6
      %v1085 = vsel %vm1078, %v1082, %v1084
      %v1086 = vrot.slane %v353, 6
      %v1087 = vsel %vm1078, %v1084, %v1086
      %v1088 = vrot.slane %v354, 6
      %v1089 = vsel %vm1078, %v1086, %v1088
      %v1090 = vrot.slane %v355, 6
      %v1091 = vsel %vm1078, %v1088, %v1090
      %v1092 = vrot.slane %v356, 6
      %v1093 = vsel %vm1078, %v1090, %v1092
      %v1094 = vrot.slane %v357, 6
      %v1095 = vsel %vm1078, %v1092, %v1094
      %v1096 = vrot.slane %v358, 6
      %v1097 = vsel %vm1078, %v1094, %v1096
      %v1098 = vrot.slane %v359, 6
      %v1099 = vsel %vm1078, %v1096, %v1098
      %1100 = vrot.lane.b32.xlu0 %v1081, 64
      %v1101 = vpop.permute.xlu0 %1100
      %1102 = vrot.lane.b32.xlu0 %v1083, 64
      %v1103 = vpop.permute.xlu0 %1102
      %1104 = vrot.lane.b32.xlu0 %v1085, 64
      %v1105 = vpop.permute.xlu0 %1104
      %1106 = vrot.lane.b32.xlu0 %v1087, 64
      %v1107 = vpop.permute.xlu0 %1106
      %1108 = vrot.lane.b32.xlu0 %v1089, 64
      %v1109 = vpop.permute.xlu0 %1108
      %1110 = vrot.lane.b32.xlu0 %v1091, 64
      %v1111 = vpop.permute.xlu0 %1110
      %1112 = vrot.lane.b32.xlu0 %v1093, 64
      %v1113 = vpop.permute.xlu0 %1112
      %1114 = vrot.lane.b32.xlu0 %v1095, 64
      %v1115 = vpop.permute.xlu0 %1114
      %1116 = vrot.lane.b32.xlu0 %v1097, 64
      %v1117 = vpop.permute.xlu0 %1116
      %1118 = vrot.lane.b32.xlu0 %v1099, 64
      %v1119 = vpop.permute.xlu0 %1118
      %vm1130 = vcmask 64512
      %v1131 = vsel %vm1130, %v347, %v775
      %v1132 = vsel %vm1130, %v348, %v777
      %v1133 = vsel %vm1130, %v349, %v779
      %v1134 = vsel %vm1130, %v350, %v781
      %v1135 = vsel %vm1130, %v351, %v783
      %v1136 = vsel %vm1130, %v352, %v785
      %v1137 = vsel %vm1130, %v353, %v787
      %v1138 = vsel %vm1130, %v354, %v789
      %v1139 = vsel %vm1130, %v355, %v791
      %v1140 = vsel %vm1130, %v356, %v793
      %vm1141 = vcmask 130048
      %v1142 = vsel %vm1141, %v1131, %v827
      %v1143 = vsel %vm1141, %v1132, %v829
      %v1144 = vsel %vm1141, %v1133, %v831
      %v1145 = vsel %vm1141, %v1134, %v833
      %v1146 = vsel %vm1141, %v1135, %v835
      %v1147 = vsel %vm1141, %v1136, %v837
      %v1148 = vsel %vm1141, %v1137, %v839
      %v1149 = vsel %vm1141, %v1138, %v841
      %v1150 = vsel %vm1141, %v1139, %v843
      %v1151 = vsel %vm1141, %v1140, %v845
      %vm1152 = vcmask 195584
      %v1153 = vsel %vm1152, %v1142, %v860
      %v1154 = vsel %vm1152, %v1143, %v862
      %v1155 = vsel %vm1152, %v1144, %v864
      %v1156 = vsel %vm1152, %v1145, %v866
      %v1157 = vsel %vm1152, %v1146, %v868
      %v1158 = vsel %vm1152, %v1147, %v870
      %v1159 = vsel %vm1152, %v1148, %v872
      %v1160 = vsel %vm1152, %v1149, %v874
      %v1161 = vsel %vm1152, %v1150, %v876
      %v1162 = vsel %vm1152, %v1151, %v878
      %vm1163 = vcmask 261120
      %v1164 = vsel %vm1163, %v1153, %v912
      %v1165 = vsel %vm1163, %v1154, %v914
      %v1166 = vsel %vm1163, %v1155, %v916
      %v1167 = vsel %vm1163, %v1156, %v918
      %v1168 = vsel %vm1163, %v1157, %v920
      %v1169 = vsel %vm1163, %v1158, %v922
      %v1170 = vsel %vm1163, %v1159, %v924
      %v1171 = vsel %vm1163, %v1160, %v926
      %v1172 = vsel %vm1163, %v1161, %v928
      %v1173 = vsel %vm1163, %v1162, %v930
      %vm1174 = vcmask 326656
      %v1175 = vsel %vm1174, %v1164, %v964
      %v1176 = vsel %vm1174, %v1165, %v966
      %v1177 = vsel %vm1174, %v1166, %v968
      %v1178 = vsel %vm1174, %v1167, %v970
      %v1179 = vsel %vm1174, %v1168, %v972
      %v1180 = vsel %vm1174, %v1169, %v974
      %v1181 = vsel %vm1174, %v1170, %v976
      %v1182 = vsel %vm1174, %v1171, %v978
      %v1183 = vsel %vm1174, %v1172, %v980
      %v1184 = vsel %vm1174, %v1173, %v982
      %vm1185 = vcmask 392192
      %v1186 = vsel %vm1185, %v1175, %v997
      %v1187 = vsel %vm1185, %v1176, %v999
      %v1188 = vsel %vm1185, %v1177, %v1001
      %v1189 = vsel %vm1185, %v1178, %v1003
      %v1190 = vsel %vm1185, %v1179, %v1005
      %v1191 = vsel %vm1185, %v1180, %v1007
      %v1192 = vsel %vm1185, %v1181, %v1009
      %v1193 = vsel %vm1185, %v1182, %v1011
      %v1194 = vsel %vm1185, %v1183, %v1013
      %v1195 = vsel %vm1185, %v1184, %v1015
      %vm1196 = vcmask 457728
      %v1197 = vsel %vm1196, %v1186, %v1049
      %v1198 = vsel %vm1196, %v1187, %v1051
      %v1199 = vsel %vm1196, %v1188, %v1053
      %v1200 = vsel %vm1196, %v1189, %v1055
      %v1201 = vsel %vm1196, %v1190, %v1057
      %v1202 = vsel %vm1196, %v1191, %v1059
      %v1203 = vsel %vm1196, %v1192, %v1061
      %v1204 = vsel %vm1196, %v1193, %v1063
      %v1205 = vsel %vm1196, %v1194, %v1065
      %v1206 = vsel %vm1196, %v1195, %v1067
      %vm1207 = vcmask 523264
      %v1208 = vsel %vm1207, %v1197, %v1101
      %v1209 = vsel %vm1207, %v1198, %v1103
      %v1210 = vsel %vm1207, %v1199, %v1105
      %v1211 = vsel %vm1207, %v1200, %v1107
      %v1212 = vsel %vm1207, %v1201, %v1109
      %v1213 = vsel %vm1207, %v1202, %v1111
      %v1214 = vsel %vm1207, %v1203, %v1113
      %v1215 = vsel %vm1207, %v1204, %v1115
      %v1216 = vsel %vm1207, %v1205, %v1117
      %v1217 = vsel %vm1207, %v1206, %v1119
      %v1218 = vpack.c.bf16 %v1209, %v1208
      %v1219 = vpack.c.bf16 %v1211, %v1210
      %v1220 = vpack.c.bf16 %v1213, %v1212
      %v1221 = vpack.c.bf16 %v1215, %v1214
      %v1222 = vpack.c.bf16 %v1217, %v1216
      %v1223 = vld [vmem:[%s1] sm:$0xf]
      %v1224 = vld [vmem:[%s1 + $0x4] sm:$0xf]
      %v1225 = vld [vmem:[%s1 + $0x8] sm:$0xf]
      %v1226 = vld [vmem:[%s1 + $0xc] sm:$0xf]
      %v1227 = vld [vmem:[%s1 + $0x10] sm:$0xf]
      %v1228 = vld [vmem:[%s1 + $0x14] sm:$0xf]
      %v1229 = vld [vmem:[%s1 + $0x18] sm:$0xf]
      %v1230 = vld [vmem:[%s1 + $0x1c] sm:$0xf]
      %v1231 = vld [vmem:[%s1 + $0x20] sm:$0xf]
      %v1232 = vld [vmem:[%s2] sm:$0x1]
      %v1234 = vperm.slane %v1232, 0
      %v1245 = vunpack.c.l.b16 %v1223
      %v1246 = vunpack.c.l.b16 %v1224
      %v1247 = vunpack.c.l.b16 %v1225
      %v1248 = vunpack.c.l.b16 %v1226
      %v1249 = vunpack.c.l.b16 %v1227
      %v1250 = vunpack.c.l.b16 %v1228
      %v1251 = vunpack.c.l.b16 %v1229
      %v1252 = vunpack.c.l.b16 %v1230
      %v1253 = vunpack.c.l.b16 %v1231
      %v1254 = vpack.c.b16 %v1246, %v1245
      %v1255 = vpack.c.b16 %v1248, %v1247
      %v1256 = vpack.c.b16 %v1250, %v1249
      %v1257 = vpack.c.b16 %v1252, %v1251
      %v1258 = vpack.c.b16 %v1253, %v1253
      %vm1263 = vcmask 588800
      %v1265 = vsel %vm1263, %v1218, 0
      %v1268 = vsel %vm1263, %v1219, 0
      %v1271 = vsel %vm1263, %v1220, 0
      %v1274 = vsel %vm1263, %v1221, 0
      %v1277 = vsel %vm1263, %v1222, 0
      %v1280 = vsel %vm941, %v1258, 0
      %1282 = vmatpush.bf16.msra.mxu0 0
      %1283 = vmatpush.bf16.msra.mxu0 0
      %1284 = vmatpush.bf16.msra.mxu0 0
      %1285 = vmatpush.bf16.msra.mxu0 %v1280
      %1286 = vmatpush.bf16.msra.mxu0 %v1257
      %1287 = vmatpush.bf16.msra.mxu0 %v1256
      %1288 = vmatpush.bf16.msra.mxu0 %v1255
      %1289 = vmatpush.bf16.msra.mxu0 %v1254
      %1290 = vmatmul.bf16.gmra.mxu0 %v1265
      %v1291 = vpop.f32.mrf.mxu0
      %v1292 = vadd.f32 %v1234, %v1291
      %v1293 = vpop.f32.mrf.mxu0
      %v1294 = vadd.f32 %v1234, %v1293
      %1295 = vmatmul.bf16.gmra.mxu0 %v1268
      %v1296 = vpop.f32.mrf.mxu0
      %v1297 = vadd.f32 %v1234, %v1296
      %v1298 = vpop.f32.mrf.mxu0
      %v1299 = vadd.f32 %v1234, %v1298
      %1300 = vmatmul.bf16.gmra.mxu0 %v1271
      %v1301 = vpop.f32.mrf.mxu0
      %v1302 = vadd.f32 %v1234, %v1301
      %v1303 = vpop.f32.mrf.mxu0
      %v1304 = vadd.f32 %v1234, %v1303
      %1305 = vmatmul.bf16.gmra.mxu0 %v1274
      %v1306 = vpop.f32.mrf.mxu0
      %v1307 = vadd.f32 %v1234, %v1306
      %v1308 = vpop.f32.mrf.mxu0
      %v1309 = vadd.f32 %v1234, %v1308
      %1310 = vmatmul.bf16.gmra.mxu0 %v1277
      %v1311 = vpop.f32.mrf.mxu0
      %v1312 = vadd.f32 %v1234, %v1311
      %v1313 = vpop.f32.mrf.mxu0
      %v1314 = vadd.f32 %v1234, %v1313
      %1315 = vdwg.mxu0
      %v1316 = vmul.f32 %v1292, %v731
      %v1317 = vmul.f32 %v1294, %v732
      %v1318 = vmul.f32 %v1297, %v733
      %v1319 = vmul.f32 %v1299, %v734
      %v1320 = vmul.f32 %v1302, %v735
      %v1321 = vmul.f32 %v1304, %v736
      %v1322 = vmul.f32 %v1307, %v737
      %v1323 = vmul.f32 %v1309, %v738
      %v1324 = vmul.f32 %v1312, %v739
      %v1325 = vmul.f32 %v1314, %v740
      %v1326 = vsel %vm1130, %v1316, 0.0
      %v1327 = vsel %vm1130, %v1317, 0.0
      %v1328 = vadd.f32 %v1326, %v1327
      %v1329 = vsel %vm1130, %v1318, 0.0
      %v1330 = vadd.f32 %v1328, %v1329
      %v1331 = vsel %vm1130, %v1319, 0.0
      %v1332 = vadd.f32 %v1330, %v1331
      %v1333 = vsel %vm1130, %v1320, 0.0
      %v1334 = vadd.f32 %v1332, %v1333
      %v1335 = vsel %vm1130, %v1321, 0.0
      %v1336 = vadd.f32 %v1334, %v1335
      %v1337 = vsel %vm1130, %v1322, 0.0
      %v1338 = vadd.f32 %v1336, %v1337
      %v1339 = vsel %vm1130, %v1323, 0.0
      %v1340 = vadd.f32 %v1338, %v1339
      %v1341 = vsel %vm1130, %v1324, 0.0
      %v1342 = vadd.f32 %v1340, %v1341
      %v1343 = vsel %vm1130, %v1325, 0.0
      %v1344 = vadd.f32 %v1342, %v1343
      %v1345 = vrot.slane %v1344, 4
      %v1346 = vadd.f32 %v1344, %v1345
      %v1347 = vrot.slane %v1346, 2
      %v1348 = vadd.f32 %v1346, %v1347
      %v1349 = vrot.slane %v1348, 1
      %v1350 = vadd.f32 %v1348, %v1349
      %v1351 = vmul.f32 %v1350, 0.015625
      %v1352 = vmul.f32 %v1316, %v1316
      %v1353 = vmul.f32 %v1317, %v1317
      %v1354 = vmul.f32 %v1318, %v1318
      %v1355 = vmul.f32 %v1319, %v1319
      %v1356 = vmul.f32 %v1320, %v1320
      %v1357 = vmul.f32 %v1321, %v1321
      %v1358 = vmul.f32 %v1322, %v1322
      %v1359 = vmul.f32 %v1323, %v1323
      %v1360 = vmul.f32 %v1324, %v1324
      %v1361 = vmul.f32 %v1325, %v1325
      %v1362 = vsel %vm1130, %v1352, 0.0
      %v1363 = vsel %vm1130, %v1353, 0.0
      %v1364 = vadd.f32 %v1362, %v1363
      %v1365 = vsel %vm1130, %v1354, 0.0
      %v1366 = vadd.f32 %v1364, %v1365
      %v1367 = vsel %vm1130, %v1355, 0.0
      %v1368 = vadd.f32 %v1366, %v1367
      %v1369 = vsel %vm1130, %v1356, 0.0
      %v1370 = vadd.f32 %v1368, %v1369
      %v1371 = vsel %vm1130, %v1357, 0.0
      %v1372 = vadd.f32 %v1370, %v1371
      %v1373 = vsel %vm1130, %v1358, 0.0
      %v1374 = vadd.f32 %v1372, %v1373
      %v1375 = vsel %vm1130, %v1359, 0.0
      %v1376 = vadd.f32 %v1374, %v1375
      %v1377 = vsel %vm1130, %v1360, 0.0
      %v1378 = vadd.f32 %v1376, %v1377
      %v1379 = vsel %vm1130, %v1361, 0.0
      %v1380 = vadd.f32 %v1378, %v1379
      %v1381 = vrot.slane %v1380, 4
      %v1382 = vadd.f32 %v1380, %v1381
      %v1383 = vrot.slane %v1382, 2
      %v1384 = vadd.f32 %v1382, %v1383
      %v1385 = vrot.slane %v1384, 1
      %v1386 = vadd.f32 %v1384, %v1385
      %v1387 = vmul.f32 %v1386, 0.015625
      %v1388 = vmul.f32 %v1351, %v1351
      %v1389 = vsub.f32 %v1387, %v1388
      %v1390 = vmax.f32 %v1389, 0.0
      %v1391 = vsub.f32 %v1316, %v1351
      %v1392 = vsub.f32 %v1317, %v1351
      %v1393 = vsub.f32 %v1318, %v1351
      %v1394 = vsub.f32 %v1319, %v1351
      %v1395 = vsub.f32 %v1320, %v1351
      %v1396 = vsub.f32 %v1321, %v1351
      %v1397 = vsub.f32 %v1322, %v1351
      %v1398 = vsub.f32 %v1323, %v1351
      %v1399 = vsub.f32 %v1324, %v1351
      %v1400 = vsub.f32 %v1325, %v1351
      %v1401 = vadd.f32 %v1390, 1e-05
      %v1402 = vrsqrt.pop %v1401
      %v1403 = vmul.f32 %v1402, %v1401
      %v1404 = vmul.f32 %v1403, %v1402
      %v1405 = vmul.f32 0.5, %v1404
      %v1406 = vsub.f32 1.5, %v1405
      %v1407 = vmul.f32 %v1402, %v1406
      %vm1408 = vweird.f32 %v1401
      %vm1409 = vweird.f32 %v1402
      %vm1410 = vmor %vm1408, %vm1409
      %v1411 = vsel %vm1410, %v1402, %v1407
      %v1412 = vmul.f32 %v1391, %v1411
      %v1413 = vmul.f32 %v1392, %v1411
      %v1414 = vmul.f32 %v1393, %v1411
      %v1415 = vmul.f32 %v1394, %v1411
      %v1416 = vmul.f32 %v1395, %v1411
      %v1417 = vmul.f32 %v1396, %v1411
      %v1418 = vmul.f32 %v1397, %v1411
      %v1419 = vmul.f32 %v1398, %v1411
      %v1420 = vmul.f32 %v1399, %v1411
      %v1421 = vmul.f32 %v1400, %v1411
      %v1422 = vld [vmem:[%s3] sm:$0x1]
      %v1424 = vperm.slane %v1422, 0
      %v1426 = vmul.f32 %v1412, %v1424
      %v1427 = vmul.f32 %v1413, %v1424
      %v1428 = vmul.f32 %v1414, %v1424
      %v1429 = vmul.f32 %v1415, %v1424
      %v1430 = vmul.f32 %v1416, %v1424
      %v1431 = vmul.f32 %v1417, %v1424
      %v1432 = vmul.f32 %v1418, %v1424
      %v1433 = vmul.f32 %v1419, %v1424
      %v1434 = vmul.f32 %v1420, %v1424
      %v1435 = vmul.f32 %v1421, %v1424
      %v1436 = vld [vmem:[%s4] sm:$0x1]
      %v1438 = vperm.slane %v1436, 0
      %v1440 = vadd.f32 %v1426, %v1438
      %v1441 = vadd.f32 %v1427, %v1438
      %v1442 = vadd.f32 %v1428, %v1438
      %v1443 = vadd.f32 %v1429, %v1438
      %v1444 = vadd.f32 %v1430, %v1438
      %v1445 = vadd.f32 %v1431, %v1438
      %v1446 = vadd.f32 %v1432, %v1438
      %v1447 = vadd.f32 %v1433, %v1438
      %v1448 = vadd.f32 %v1434, %v1438
      %v1449 = vadd.f32 %v1435, %v1438
      %v1450 = vmax.f32 %v1440, 0.0
      %v1451 = vmax.f32 %v1441, 0.0
      %v1452 = vmax.f32 %v1442, 0.0
      %v1453 = vmax.f32 %v1443, 0.0
      %v1454 = vmax.f32 %v1444, 0.0
      %v1455 = vmax.f32 %v1445, 0.0
      %v1456 = vmax.f32 %v1446, 0.0
      %v1457 = vmax.f32 %v1447, 0.0
      %v1458 = vmax.f32 %v1448, 0.0
      %v1459 = vmax.f32 %v1449, 0.0
      %v1460 = vmul.f32 %v1450, %v731
      %v1461 = vmul.f32 %v1451, %v732
      %v1462 = vmul.f32 %v1452, %v733
      %v1463 = vmul.f32 %v1453, %v734
      %v1464 = vmul.f32 %v1454, %v735
      %v1465 = vmul.f32 %v1455, %v736
      %v1466 = vmul.f32 %v1456, %v737
      %v1467 = vmul.f32 %v1457, %v738
      %v1468 = vmul.f32 %v1458, %v739
      %v1469 = vmul.f32 %v1459, %v740
      %v1480 = vrot.slane %v1460, 5
      %v1481 = vrot.slane %v1461, 5
      %v1482 = vsel %vm1026, %v1480, %v1481
      %v1483 = vrot.slane %v1462, 5
      %v1484 = vsel %vm1026, %v1481, %v1483
      %v1485 = vrot.slane %v1463, 5
      %v1486 = vsel %vm1026, %v1483, %v1485
      %v1487 = vrot.slane %v1464, 5
      %v1488 = vsel %vm1026, %v1485, %v1487
      %v1489 = vrot.slane %v1465, 5
      %v1490 = vsel %vm1026, %v1487, %v1489
      %v1491 = vrot.slane %v1466, 5
      %v1492 = vsel %vm1026, %v1489, %v1491
      %v1493 = vrot.slane %v1467, 5
      %v1494 = vsel %vm1026, %v1491, %v1493
      %v1495 = vrot.slane %v1468, 5
      %v1496 = vsel %vm1026, %v1493, %v1495
      %v1497 = vrot.slane %v1469, 5
      %v1498 = vsel %vm1026, %v1495, %v1497
      %v1509 = vsel %vm1026, 0.0, %v1480
      %v1510 = vsel %vm1026, %v1497, 0.0
      %v1513 = vrot.slane 0.0, 1
      %v1514 = vrot.slane %v1509, 1
      %v1515 = vsel %vm752, %v1513, %v1514
      %v1516 = vrot.slane %v1482, 1
      %v1517 = vsel %vm752, %v1514, %v1516
      %v1518 = vrot.slane %v1484, 1
      %v1519 = vsel %vm752, %v1516, %v1518
      %v1520 = vrot.slane %v1486, 1
      %v1521 = vsel %vm752, %v1518, %v1520
      %v1522 = vrot.slane %v1488, 1
      %v1523 = vsel %vm752, %v1520, %v1522
      %v1524 = vrot.slane %v1490, 1
      %v1525 = vsel %vm752, %v1522, %v1524
      %v1526 = vrot.slane %v1492, 1
      %v1527 = vsel %vm752, %v1524, %v1526
      %v1528 = vrot.slane %v1494, 1
      %v1529 = vsel %vm752, %v1526, %v1528
      %v1530 = vrot.slane %v1496, 1
      %v1531 = vsel %vm752, %v1528, %v1530
      %v1532 = vrot.slane %v1498, 1
      %v1533 = vsel %vm752, %v1530, %v1532
      %1534 = vrot.lane.b32.xlu0 %v1515, 8
      %v1535 = vpop.permute.xlu0 %1534
      %1536 = vrot.lane.b32.xlu0 %v1517, 8
      %v1537 = vpop.permute.xlu0 %1536
      %1538 = vrot.lane.b32.xlu0 %v1519, 8
      %v1539 = vpop.permute.xlu0 %1538
      %1540 = vrot.lane.b32.xlu0 %v1521, 8
      %v1541 = vpop.permute.xlu0 %1540
      %1542 = vrot.lane.b32.xlu0 %v1523, 8
      %v1543 = vpop.permute.xlu0 %1542
      %1544 = vrot.lane.b32.xlu0 %v1525, 8
      %v1545 = vpop.permute.xlu0 %1544
      %1546 = vrot.lane.b32.xlu0 %v1527, 8
      %v1547 = vpop.permute.xlu0 %1546
      %1548 = vrot.lane.b32.xlu0 %v1529, 8
      %v1549 = vpop.permute.xlu0 %1548
      %1550 = vrot.lane.b32.xlu0 %v1531, 8
      %v1551 = vpop.permute.xlu0 %1550
      %1552 = vrot.lane.b32.xlu0 %v1533, 8
      %v1553 = vpop.permute.xlu0 %1552
      %v1564 = vrot.slane 0.0, 2
      %v1565 = vrot.slane %v1509, 2
      %v1566 = vsel %vm804, %v1564, %v1565
      %v1567 = vrot.slane %v1482, 2
      %v1568 = vsel %vm804, %v1565, %v1567
      %v1569 = vrot.slane %v1484, 2
      %v1570 = vsel %vm804, %v1567, %v1569
      %v1571 = vrot.slane %v1486, 2
      %v1572 = vsel %vm804, %v1569, %v1571
      %v1573 = vrot.slane %v1488, 2
      %v1574 = vsel %vm804, %v1571, %v1573
      %v1575 = vrot.slane %v1490, 2
      %v1576 = vsel %vm804, %v1573, %v1575
      %v1577 = vrot.slane %v1492, 2
      %v1578 = vsel %vm804, %v1575, %v1577
      %v1579 = vrot.slane %v1494, 2
      %v1580 = vsel %vm804, %v1577, %v1579
      %v1581 = vrot.slane %v1496, 2
      %v1582 = vsel %vm804, %v1579, %v1581
      %v1583 = vrot.slane %v1498, 2
      %v1584 = vsel %vm804, %v1581, %v1583
      %1585 = vrot.lane.b32.xlu0 %v1566, 16
      %v1586 = vpop.permute.xlu0 %1585
      %1587 = vrot.lane.b32.xlu0 %v1568, 16
      %v1588 = vpop.permute.xlu0 %1587
      %1589 = vrot.lane.b32.xlu0 %v1570, 16
      %v1590 = vpop.permute.xlu0 %1589
      %1591 = vrot.lane.b32.xlu0 %v1572, 16
      %v1592 = vpop.permute.xlu0 %1591
      %1593 = vrot.lane.b32.xlu0 %v1574, 16
      %v1594 = vpop.permute.xlu0 %1593
      %1595 = vrot.lane.b32.xlu0 %v1576, 16
      %v1596 = vpop.permute.xlu0 %1595
      %1597 = vrot.lane.b32.xlu0 %v1578, 16
      %v1598 = vpop.permute.xlu0 %1597
      %1599 = vrot.lane.b32.xlu0 %v1580, 16
      %v1600 = vpop.permute.xlu0 %1599
      %1601 = vrot.lane.b32.xlu0 %v1582, 16
      %v1602 = vpop.permute.xlu0 %1601
      %1603 = vrot.lane.b32.xlu0 %v1584, 16
      %v1604 = vpop.permute.xlu0 %1603
      %v1616 = vrot.slane %v1510, 2
      %v1617 = vsel %vm804, %v1583, %v1616
      %1618 = vrot.lane.b32.xlu0 %v1568, 24
      %v1619 = vpop.permute.xlu0 %1618
      %1620 = vrot.lane.b32.xlu0 %v1570, 24
      %v1621 = vpop.permute.xlu0 %1620
      %1622 = vrot.lane.b32.xlu0 %v1572, 24
      %v1623 = vpop.permute.xlu0 %1622
      %1624 = vrot.lane.b32.xlu0 %v1574, 24
      %v1625 = vpop.permute.xlu0 %1624
      %1626 = vrot.lane.b32.xlu0 %v1576, 24
      %v1627 = vpop.permute.xlu0 %1626
      %1628 = vrot.lane.b32.xlu0 %v1578, 24
      %v1629 = vpop.permute.xlu0 %1628
      %1630 = vrot.lane.b32.xlu0 %v1580, 24
      %v1631 = vpop.permute.xlu0 %1630
      %1632 = vrot.lane.b32.xlu0 %v1582, 24
      %v1633 = vpop.permute.xlu0 %1632
      %1634 = vrot.lane.b32.xlu0 %v1584, 24
      %v1635 = vpop.permute.xlu0 %1634
      %1636 = vrot.lane.b32.xlu0 %v1617, 24
      %v1637 = vpop.permute.xlu0 %1636
      %v1648 = vrot.slane %v1509, 3
      %v1649 = vrot.slane %v1482, 3
      %v1650 = vsel %vm889, %v1648, %v1649
      %v1651 = vrot.slane %v1484, 3
      %v1652 = vsel %vm889, %v1649, %v1651
      %v1653 = vrot.slane %v1486, 3
      %v1654 = vsel %vm889, %v1651, %v1653
      %v1655 = vrot.slane %v1488, 3
      %v1656 = vsel %vm889, %v1653, %v1655
      %v1657 = vrot.slane %v1490, 3
      %v1658 = vsel %vm889, %v1655, %v1657
      %v1659 = vrot.slane %v1492, 3
      %v1660 = vsel %vm889, %v1657, %v1659
      %v1661 = vrot.slane %v1494, 3
      %v1662 = vsel %vm889, %v1659, %v1661
      %v1663 = vrot.slane %v1496, 3
      %v1664 = vsel %vm889, %v1661, %v1663
      %v1665 = vrot.slane %v1498, 3
      %v1666 = vsel %vm889, %v1663, %v1665
      %v1667 = vrot.slane %v1510, 3
      %v1668 = vsel %vm889, %v1665, %v1667
      %1669 = vrot.lane.b32.xlu0 %v1650, 32
      %v1670 = vpop.permute.xlu0 %1669
      %1671 = vrot.lane.b32.xlu0 %v1652, 32
      %v1672 = vpop.permute.xlu0 %1671
      %1673 = vrot.lane.b32.xlu0 %v1654, 32
      %v1674 = vpop.permute.xlu0 %1673
      %1675 = vrot.lane.b32.xlu0 %v1656, 32
      %v1676 = vpop.permute.xlu0 %1675
      %1677 = vrot.lane.b32.xlu0 %v1658, 32
      %v1678 = vpop.permute.xlu0 %1677
      %1679 = vrot.lane.b32.xlu0 %v1660, 32
      %v1680 = vpop.permute.xlu0 %1679
      %1681 = vrot.lane.b32.xlu0 %v1662, 32
      %v1682 = vpop.permute.xlu0 %1681
      %1683 = vrot.lane.b32.xlu0 %v1664, 32
      %v1684 = vpop.permute.xlu0 %1683
      %1685 = vrot.lane.b32.xlu0 %v1666, 32
      %v1686 = vpop.permute.xlu0 %1685
      %1687 = vrot.lane.b32.xlu0 %v1668, 32
      %v1688 = vpop.permute.xlu0 %1687
      %v1699 = vrot.slane %v1509, 4
      %v1700 = vrot.slane %v1482, 4
      %v1701 = vsel %vm941, %v1699, %v1700
      %v1702 = vrot.slane %v1484, 4
      %v1703 = vsel %vm941, %v1700, %v1702
      %v1704 = vrot.slane %v1486, 4
      %v1705 = vsel %vm941, %v1702, %v1704
      %v1706 = vrot.slane %v1488, 4
      %v1707 = vsel %vm941, %v1704, %v1706
      %v1708 = vrot.slane %v1490, 4
      %v1709 = vsel %vm941, %v1706, %v1708
      %v1710 = vrot.slane %v1492, 4
      %v1711 = vsel %vm941, %v1708, %v1710
      %v1712 = vrot.slane %v1494, 4
      %v1713 = vsel %vm941, %v1710, %v1712
      %v1714 = vrot.slane %v1496, 4
      %v1715 = vsel %vm941, %v1712, %v1714
      %v1716 = vrot.slane %v1498, 4
      %v1717 = vsel %vm941, %v1714, %v1716
      %v1718 = vrot.slane %v1510, 4
      %v1719 = vsel %vm941, %v1716, %v1718
      %1720 = vrot.lane.b32.xlu0 %v1701, 40
      %v1721 = vpop.permute.xlu0 %1720
      %1722 = vrot.lane.b32.xlu0 %v1703, 40
      %v1723 = vpop.permute.xlu0 %1722
      %1724 = vrot.lane.b32.xlu0 %v1705, 40
      %v1725 = vpop.permute.xlu0 %1724
      %1726 = vrot.lane.b32.xlu0 %v1707, 40
      %v1727 = vpop.permute.xlu0 %1726
      %1728 = vrot.lane.b32.xlu0 %v1709, 40
      %v1729 = vpop.permute.xlu0 %1728
      %1730 = vrot.lane.b32.xlu0 %v1711, 40
      %v1731 = vpop.permute.xlu0 %1730
      %1732 = vrot.lane.b32.xlu0 %v1713, 40
      %v1733 = vpop.permute.xlu0 %1732
      %1734 = vrot.lane.b32.xlu0 %v1715, 40
      %v1735 = vpop.permute.xlu0 %1734
      %1736 = vrot.lane.b32.xlu0 %v1717, 40
      %v1737 = vpop.permute.xlu0 %1736
      %1738 = vrot.lane.b32.xlu0 %v1719, 40
      %v1739 = vpop.permute.xlu0 %1738
      %v1750 = vrot.slane 0.0, 4
      %v1751 = vsel %vm941, %v1718, %v1750
      %1752 = vrot.lane.b32.xlu0 %v1703, 48
      %v1753 = vpop.permute.xlu0 %1752
      %1754 = vrot.lane.b32.xlu0 %v1705, 48
      %v1755 = vpop.permute.xlu0 %1754
      %1756 = vrot.lane.b32.xlu0 %v1707, 48
      %v1757 = vpop.permute.xlu0 %1756
      %1758 = vrot.lane.b32.xlu0 %v1709, 48
      %v1759 = vpop.permute.xlu0 %1758
      %1760 = vrot.lane.b32.xlu0 %v1711, 48
      %v1761 = vpop.permute.xlu0 %1760
      %1762 = vrot.lane.b32.xlu0 %v1713, 48
      %v1763 = vpop.permute.xlu0 %1762
      %1764 = vrot.lane.b32.xlu0 %v1715, 48
      %v1765 = vpop.permute.xlu0 %1764
      %1766 = vrot.lane.b32.xlu0 %v1717, 48
      %v1767 = vpop.permute.xlu0 %1766
      %1768 = vrot.lane.b32.xlu0 %v1719, 48
      %v1769 = vpop.permute.xlu0 %1768
      %1770 = vrot.lane.b32.xlu0 %v1751, 48
      %v1771 = vpop.permute.xlu0 %1770
      %v1782 = vrot.slane %v1482, 5
      %v1783 = vrot.slane %v1484, 5
      %v1784 = vsel %vm1026, %v1782, %v1783
      %v1785 = vrot.slane %v1486, 5
      %v1786 = vsel %vm1026, %v1783, %v1785
      %v1787 = vrot.slane %v1488, 5
      %v1788 = vsel %vm1026, %v1785, %v1787
      %v1789 = vrot.slane %v1490, 5
      %v1790 = vsel %vm1026, %v1787, %v1789
      %v1791 = vrot.slane %v1492, 5
      %v1792 = vsel %vm1026, %v1789, %v1791
      %v1793 = vrot.slane %v1494, 5
      %v1794 = vsel %vm1026, %v1791, %v1793
      %v1795 = vrot.slane %v1496, 5
      %v1796 = vsel %vm1026, %v1793, %v1795
      %v1797 = vrot.slane %v1498, 5
      %v1798 = vsel %vm1026, %v1795, %v1797
      %v1799 = vrot.slane %v1510, 5
      %v1800 = vsel %vm1026, %v1797, %v1799
      %v1801 = vrot.slane 0.0, 5
      %v1802 = vsel %vm1026, %v1799, %v1801
      %1803 = vrot.lane.b32.xlu0 %v1784, 56
      %v1804 = vpop.permute.xlu0 %1803
      %1805 = vrot.lane.b32.xlu0 %v1786, 56
      %v1806 = vpop.permute.xlu0 %1805
      %1807 = vrot.lane.b32.xlu0 %v1788, 56
      %v1808 = vpop.permute.xlu0 %1807
      %1809 = vrot.lane.b32.xlu0 %v1790, 56
      %v1810 = vpop.permute.xlu0 %1809
      %1811 = vrot.lane.b32.xlu0 %v1792, 56
      %v1812 = vpop.permute.xlu0 %1811
      %1813 = vrot.lane.b32.xlu0 %v1794, 56
      %v1814 = vpop.permute.xlu0 %1813
      %1815 = vrot.lane.b32.xlu0 %v1796, 56
      %v1816 = vpop.permute.xlu0 %1815
      %1817 = vrot.lane.b32.xlu0 %v1798, 56
      %v1818 = vpop.permute.xlu0 %1817
      %1819 = vrot.lane.b32.xlu0 %v1800, 56
      %v1820 = vpop.permute.xlu0 %1819
      %1821 = vrot.lane.b32.xlu0 %v1802, 56
      %v1822 = vpop.permute.xlu0 %1821
      %v1833 = vrot.slane %v1482, 6
      %v1834 = vrot.slane %v1484, 6
      %v1835 = vsel %vm1078, %v1833, %v1834
      %v1836 = vrot.slane %v1486, 6
      %v1837 = vsel %vm1078, %v1834, %v1836
      %v1838 = vrot.slane %v1488, 6
      %v1839 = vsel %vm1078, %v1836, %v1838
      %v1840 = vrot.slane %v1490, 6
      %v1841 = vsel %vm1078, %v1838, %v1840
      %v1842 = vrot.slane %v1492, 6
      %v1843 = vsel %vm1078, %v1840, %v1842
      %v1844 = vrot.slane %v1494, 6
      %v1845 = vsel %vm1078, %v1842, %v1844
      %v1846 = vrot.slane %v1496, 6
      %v1847 = vsel %vm1078, %v1844, %v1846
      %v1848 = vrot.slane %v1498, 6
      %v1849 = vsel %vm1078, %v1846, %v1848
      %v1850 = vrot.slane %v1510, 6
      %v1851 = vsel %vm1078, %v1848, %v1850
      %v1852 = vrot.slane 0.0, 6
      %v1853 = vsel %vm1078, %v1850, %v1852
      %1854 = vrot.lane.b32.xlu0 %v1835, 64
      %v1855 = vpop.permute.xlu0 %1854
      %1856 = vrot.lane.b32.xlu0 %v1837, 64
      %v1857 = vpop.permute.xlu0 %1856
      %1858 = vrot.lane.b32.xlu0 %v1839, 64
      %v1859 = vpop.permute.xlu0 %1858
      %1860 = vrot.lane.b32.xlu0 %v1841, 64
      %v1861 = vpop.permute.xlu0 %1860
      %1862 = vrot.lane.b32.xlu0 %v1843, 64
      %v1863 = vpop.permute.xlu0 %1862
      %1864 = vrot.lane.b32.xlu0 %v1845, 64
      %v1865 = vpop.permute.xlu0 %1864
      %1866 = vrot.lane.b32.xlu0 %v1847, 64
      %v1867 = vpop.permute.xlu0 %1866
      %1868 = vrot.lane.b32.xlu0 %v1849, 64
      %v1869 = vpop.permute.xlu0 %1868
      %1870 = vrot.lane.b32.xlu0 %v1851, 64
      %v1871 = vpop.permute.xlu0 %1870
      %1872 = vrot.lane.b32.xlu0 %v1853, 64
      %v1873 = vpop.permute.xlu0 %1872
      %v1884 = vsel %vm1130, 0.0, %v1535
      %v1885 = vsel %vm1130, %v1509, %v1537
      %v1886 = vsel %vm1130, %v1482, %v1539
      %v1887 = vsel %vm1130, %v1484, %v1541
      %v1888 = vsel %vm1130, %v1486, %v1543
      %v1889 = vsel %vm1130, %v1488, %v1545
      %v1890 = vsel %vm1130, %v1490, %v1547
      %v1891 = vsel %vm1130, %v1492, %v1549
      %v1892 = vsel %vm1130, %v1494, %v1551
      %v1893 = vsel %vm1130, %v1496, %v1553
      %v1894 = vsel %vm1141, %v1884, %v1586
      %v1895 = vsel %vm1141, %v1885, %v1588
      %v1896 = vsel %vm1141, %v1886, %v1590
      %v1897 = vsel %vm1141, %v1887, %v1592
      %v1898 = vsel %vm1141, %v1888, %v1594
      %v1899 = vsel %vm1141, %v1889, %v1596
      %v1900 = vsel %vm1141, %v1890, %v1598
      %v1901 = vsel %vm1141, %v1891, %v1600
      %v1902 = vsel %vm1141, %v1892, %v1602
      %v1903 = vsel %vm1141, %v1893, %v1604
      %v1904 = vsel %vm1152, %v1894, %v1619
      %v1905 = vsel %vm1152, %v1895, %v1621
      %v1906 = vsel %vm1152, %v1896, %v1623
      %v1907 = vsel %vm1152, %v1897, %v1625
      %v1908 = vsel %vm1152, %v1898, %v1627
      %v1909 = vsel %vm1152, %v1899, %v1629
      %v1910 = vsel %vm1152, %v1900, %v1631
      %v1911 = vsel %vm1152, %v1901, %v1633
      %v1912 = vsel %vm1152, %v1902, %v1635
      %v1913 = vsel %vm1152, %v1903, %v1637
      %v1914 = vsel %vm1163, %v1904, %v1670
      %v1915 = vsel %vm1163, %v1905, %v1672
      %v1916 = vsel %vm1163, %v1906, %v1674
      %v1917 = vsel %vm1163, %v1907, %v1676
      %v1918 = vsel %vm1163, %v1908, %v1678
      %v1919 = vsel %vm1163, %v1909, %v1680
      %v1920 = vsel %vm1163, %v1910, %v1682
      %v1921 = vsel %vm1163, %v1911, %v1684
      %v1922 = vsel %vm1163, %v1912, %v1686
      %v1923 = vsel %vm1163, %v1913, %v1688
      %v1924 = vsel %vm1174, %v1914, %v1721
      %v1925 = vsel %vm1174, %v1915, %v1723
      %v1926 = vsel %vm1174, %v1916, %v1725
      %v1927 = vsel %vm1174, %v1917, %v1727
      %v1928 = vsel %vm1174, %v1918, %v1729
      %v1929 = vsel %vm1174, %v1919, %v1731
      %v1930 = vsel %vm1174, %v1920, %v1733
      %v1931 = vsel %vm1174, %v1921, %v1735
      %v1932 = vsel %vm1174, %v1922, %v1737
      %v1933 = vsel %vm1174, %v1923, %v1739
      %v1934 = vsel %vm1185, %v1924, %v1753
      %v1935 = vsel %vm1185, %v1925, %v1755
      %v1936 = vsel %vm1185, %v1926, %v1757
      %v1937 = vsel %vm1185, %v1927, %v1759
      %v1938 = vsel %vm1185, %v1928, %v1761
      %v1939 = vsel %vm1185, %v1929, %v1763
      %v1940 = vsel %vm1185, %v1930, %v1765
      %v1941 = vsel %vm1185, %v1931, %v1767
      %v1942 = vsel %vm1185, %v1932, %v1769
      %v1943 = vsel %vm1185, %v1933, %v1771
      %v1944 = vsel %vm1196, %v1934, %v1804
      %v1945 = vsel %vm1196, %v1935, %v1806
      %v1946 = vsel %vm1196, %v1936, %v1808
      %v1947 = vsel %vm1196, %v1937, %v1810
      %v1948 = vsel %vm1196, %v1938, %v1812
      %v1949 = vsel %vm1196, %v1939, %v1814
      %v1950 = vsel %vm1196, %v1940, %v1816
      %v1951 = vsel %vm1196, %v1941, %v1818
      %v1952 = vsel %vm1196, %v1942, %v1820
      %v1953 = vsel %vm1196, %v1943, %v1822
      %v1954 = vsel %vm1207, %v1944, %v1855
      %v1955 = vsel %vm1207, %v1945, %v1857
      %v1956 = vsel %vm1207, %v1946, %v1859
      %v1957 = vsel %vm1207, %v1947, %v1861
      %v1958 = vsel %vm1207, %v1948, %v1863
      %v1959 = vsel %vm1207, %v1949, %v1865
      %v1960 = vsel %vm1207, %v1950, %v1867
      %v1961 = vsel %vm1207, %v1951, %v1869
      %v1962 = vsel %vm1207, %v1952, %v1871
      %v1963 = vsel %vm1207, %v1953, %v1873
      %v1964 = vpack.c.bf16 %v1955, %v1954
      %v1965 = vpack.c.bf16 %v1957, %v1956
      %v1966 = vpack.c.bf16 %v1959, %v1958
      %v1967 = vpack.c.bf16 %v1961, %v1960
      %v1968 = vpack.c.bf16 %v1963, %v1962
      %v1969 = vld [vmem:[%s5] sm:$0xf]
      %v1970 = vld [vmem:[%s5 + $0x4] sm:$0xf]
      %v1971 = vld [vmem:[%s5 + $0x8] sm:$0xf]
      %v1972 = vld [vmem:[%s5 + $0xc] sm:$0xf]
      %v1973 = vld [vmem:[%s5 + $0x10] sm:$0xf]
      %v1974 = vld [vmem:[%s5 + $0x14] sm:$0xf]
      %v1975 = vld [vmem:[%s5 + $0x18] sm:$0xf]
      %v1976 = vld [vmem:[%s5 + $0x1c] sm:$0xf]
      %v1977 = vld [vmem:[%s5 + $0x20] sm:$0xf]
      %v1978 = vld [vmem:[%s6] sm:$0x1]
      %v1980 = vperm.slane %v1978, 0
      %v1991 = vunpack.c.l.b16 %v1969
      %v1992 = vunpack.c.l.b16 %v1970
      %v1993 = vunpack.c.l.b16 %v1971
      %v1994 = vunpack.c.l.b16 %v1972
      %v1995 = vunpack.c.l.b16 %v1973
      %v1996 = vunpack.c.l.b16 %v1974
      %v1997 = vunpack.c.l.b16 %v1975
      %v1998 = vunpack.c.l.b16 %v1976
      %v1999 = vunpack.c.l.b16 %v1977
      %v2000 = vpack.c.b16 %v1992, %v1991
      %v2001 = vpack.c.b16 %v1994, %v1993
      %v2002 = vpack.c.b16 %v1996, %v1995
      %v2003 = vpack.c.b16 %v1998, %v1997
      %v2004 = vpack.c.b16 %v1999, %v1999
      %v2010 = vsel %vm1263, %v1964, 0
      %v2013 = vsel %vm1263, %v1965, 0
      %v2016 = vsel %vm1263, %v1966, 0
      %v2019 = vsel %vm1263, %v1967, 0
      %v2022 = vsel %vm1263, %v1968, 0
      %v2025 = vsel %vm941, %v2004, 0
      %2027 = vmatpush.bf16.msra.mxu0 0
      %2028 = vmatpush.bf16.msra.mxu0 0
      %2029 = vmatpush.bf16.msra.mxu0 0
      %2030 = vmatpush.bf16.msra.mxu0 %v2025
      %2031 = vmatpush.bf16.msra.mxu0 %v2003
      %2032 = vmatpush.bf16.msra.mxu0 %v2002
      %2033 = vmatpush.bf16.msra.mxu0 %v2001
      %2034 = vmatpush.bf16.msra.mxu0 %v2000
      %2035 = vmatmul.bf16.gmra.mxu0 %v2010
      %v2036 = vpop.f32.mrf.mxu0
      %v2037 = vadd.f32 %v1980, %v2036
      %v2038 = vpop.f32.mrf.mxu0
      %v2039 = vadd.f32 %v1980, %v2038
      %2040 = vmatmul.bf16.gmra.mxu0 %v2013
      %v2041 = vpop.f32.mrf.mxu0
      %v2042 = vadd.f32 %v1980, %v2041
      %v2043 = vpop.f32.mrf.mxu0
      %v2044 = vadd.f32 %v1980, %v2043
      %2045 = vmatmul.bf16.gmra.mxu0 %v2016
      %v2046 = vpop.f32.mrf.mxu0
      %v2047 = vadd.f32 %v1980, %v2046
      %v2048 = vpop.f32.mrf.mxu0
      %v2049 = vadd.f32 %v1980, %v2048
      %2050 = vmatmul.bf16.gmra.mxu0 %v2019
      %v2051 = vpop.f32.mrf.mxu0
      %v2052 = vadd.f32 %v1980, %v2051
      %v2053 = vpop.f32.mrf.mxu0
      %v2054 = vadd.f32 %v1980, %v2053
      %2055 = vmatmul.bf16.gmra.mxu0 %v2022
      %v2056 = vpop.f32.mrf.mxu0
      %v2057 = vadd.f32 %v1980, %v2056
      %v2058 = vpop.f32.mrf.mxu0
      %v2059 = vadd.f32 %v1980, %v2058
      %2060 = vdwg.mxu0
      %v2061 = vmul.f32 %v2037, %v731
      %v2062 = vmul.f32 %v2039, %v732
      %v2063 = vmul.f32 %v2042, %v733
      %v2064 = vmul.f32 %v2044, %v734
      %v2065 = vmul.f32 %v2047, %v735
      %v2066 = vmul.f32 %v2049, %v736
      %v2067 = vmul.f32 %v2052, %v737
      %v2068 = vmul.f32 %v2054, %v738
      %v2069 = vmul.f32 %v2057, %v739
      %v2070 = vmul.f32 %v2059, %v740
      %v2071 = vsel %vm1130, %v2061, 0.0
      %v2072 = vsel %vm1130, %v2062, 0.0
      %v2073 = vadd.f32 %v2071, %v2072
      %v2074 = vsel %vm1130, %v2063, 0.0
      %v2075 = vadd.f32 %v2073, %v2074
      %v2076 = vsel %vm1130, %v2064, 0.0
      %v2077 = vadd.f32 %v2075, %v2076
      %v2078 = vsel %vm1130, %v2065, 0.0
      %v2079 = vadd.f32 %v2077, %v2078
      %v2080 = vsel %vm1130, %v2066, 0.0
      %v2081 = vadd.f32 %v2079, %v2080
      %v2082 = vsel %vm1130, %v2067, 0.0
      %v2083 = vadd.f32 %v2081, %v2082
      %v2084 = vsel %vm1130, %v2068, 0.0
      %v2085 = vadd.f32 %v2083, %v2084
      %v2086 = vsel %vm1130, %v2069, 0.0
      %v2087 = vadd.f32 %v2085, %v2086
      %v2088 = vsel %vm1130, %v2070, 0.0
      %v2089 = vadd.f32 %v2087, %v2088
      %v2090 = vrot.slane %v2089, 4
      %v2091 = vadd.f32 %v2089, %v2090
      %v2092 = vrot.slane %v2091, 2
      %v2093 = vadd.f32 %v2091, %v2092
      %v2094 = vrot.slane %v2093, 1
      %v2095 = vadd.f32 %v2093, %v2094
      %v2096 = vmul.f32 %v2095, 0.015625
      %v2097 = vmul.f32 %v2061, %v2061
      %v2098 = vmul.f32 %v2062, %v2062
      %v2099 = vmul.f32 %v2063, %v2063
      %v2100 = vmul.f32 %v2064, %v2064
      %v2101 = vmul.f32 %v2065, %v2065
      %v2102 = vmul.f32 %v2066, %v2066
      %v2103 = vmul.f32 %v2067, %v2067
      %v2104 = vmul.f32 %v2068, %v2068
      %v2105 = vmul.f32 %v2069, %v2069
      %v2106 = vmul.f32 %v2070, %v2070
      %v2107 = vsel %vm1130, %v2097, 0.0
      %v2108 = vsel %vm1130, %v2098, 0.0
      %v2109 = vadd.f32 %v2107, %v2108
      %v2110 = vsel %vm1130, %v2099, 0.0
      %v2111 = vadd.f32 %v2109, %v2110
      %v2112 = vsel %vm1130, %v2100, 0.0
      %v2113 = vadd.f32 %v2111, %v2112
      %v2114 = vsel %vm1130, %v2101, 0.0
      %v2115 = vadd.f32 %v2113, %v2114
      %v2116 = vsel %vm1130, %v2102, 0.0
      %v2117 = vadd.f32 %v2115, %v2116
      %v2118 = vsel %vm1130, %v2103, 0.0
      %v2119 = vadd.f32 %v2117, %v2118
      %v2120 = vsel %vm1130, %v2104, 0.0
      %v2121 = vadd.f32 %v2119, %v2120
      %v2122 = vsel %vm1130, %v2105, 0.0
      %v2123 = vadd.f32 %v2121, %v2122
      %v2124 = vsel %vm1130, %v2106, 0.0
      %v2125 = vadd.f32 %v2123, %v2124
      %v2126 = vrot.slane %v2125, 4
      %v2127 = vadd.f32 %v2125, %v2126
      %v2128 = vrot.slane %v2127, 2
      %v2129 = vadd.f32 %v2127, %v2128
      %v2130 = vrot.slane %v2129, 1
      %v2131 = vadd.f32 %v2129, %v2130
      %v2132 = vmul.f32 %v2131, 0.015625
      %v2133 = vmul.f32 %v2096, %v2096
      %v2134 = vsub.f32 %v2132, %v2133
      %v2135 = vmax.f32 %v2134, 0.0
      %v2136 = vsub.f32 %v2061, %v2096
      %v2137 = vsub.f32 %v2062, %v2096
      %v2138 = vsub.f32 %v2063, %v2096
      %v2139 = vsub.f32 %v2064, %v2096
      %v2140 = vsub.f32 %v2065, %v2096
      %v2141 = vsub.f32 %v2066, %v2096
      %v2142 = vsub.f32 %v2067, %v2096
      %v2143 = vsub.f32 %v2068, %v2096
      %v2144 = vsub.f32 %v2069, %v2096
      %v2145 = vsub.f32 %v2070, %v2096
      %v2146 = vadd.f32 %v2135, 1e-05
      %v2147 = vrsqrt.pop %v2146
      %v2148 = vmul.f32 %v2147, %v2146
      %v2149 = vmul.f32 %v2148, %v2147
      %v2150 = vmul.f32 0.5, %v2149
      %v2151 = vsub.f32 1.5, %v2150
      %v2152 = vmul.f32 %v2147, %v2151
      %vm2153 = vweird.f32 %v2146
      %vm2154 = vweird.f32 %v2147
      %vm2155 = vmor %vm2153, %vm2154
      %v2156 = vsel %vm2155, %v2147, %v2152
      %v2157 = vmul.f32 %v2136, %v2156
      %v2158 = vmul.f32 %v2137, %v2156
      %v2159 = vmul.f32 %v2138, %v2156
      %v2160 = vmul.f32 %v2139, %v2156
      %v2161 = vmul.f32 %v2140, %v2156
      %v2162 = vmul.f32 %v2141, %v2156
      %v2163 = vmul.f32 %v2142, %v2156
      %v2164 = vmul.f32 %v2143, %v2156
      %v2165 = vmul.f32 %v2144, %v2156
      %v2166 = vmul.f32 %v2145, %v2156
      %v2167 = vld [vmem:[%s7] sm:$0x1]
      %v2169 = vperm.slane %v2167, 0
      %v2171 = vmul.f32 %v2157, %v2169
      %v2172 = vmul.f32 %v2158, %v2169
      %v2173 = vmul.f32 %v2159, %v2169
      %v2174 = vmul.f32 %v2160, %v2169
      %v2175 = vmul.f32 %v2161, %v2169
      %v2176 = vmul.f32 %v2162, %v2169
      %v2177 = vmul.f32 %v2163, %v2169
      %v2178 = vmul.f32 %v2164, %v2169
      %v2179 = vmul.f32 %v2165, %v2169
      %v2180 = vmul.f32 %v2166, %v2169
      %v2181 = vld [vmem:[%s8] sm:$0x1]
      %v2183 = vperm.slane %v2181, 0
      %v2185 = vadd.f32 %v2171, %v2183
      %v2186 = vadd.f32 %v2172, %v2183
      %v2187 = vadd.f32 %v2173, %v2183
      %v2188 = vadd.f32 %v2174, %v2183
      %v2189 = vadd.f32 %v2175, %v2183
      %v2190 = vadd.f32 %v2176, %v2183
      %v2191 = vadd.f32 %v2177, %v2183
      %v2192 = vadd.f32 %v2178, %v2183
      %v2193 = vadd.f32 %v2179, %v2183
      %v2194 = vadd.f32 %v2180, %v2183
      %v2205 = vadd.f32 %v2185, %v892
      %v2206 = vadd.f32 %v2186, %v894
      %v2207 = vadd.f32 %v2187, %v896
      %v2208 = vadd.f32 %v2188, %v898
      %v2209 = vadd.f32 %v2189, %v900
      %v2210 = vadd.f32 %v2190, %v902
      %v2211 = vadd.f32 %v2191, %v904
      %v2212 = vadd.f32 %v2192, %v906
      %v2213 = vadd.f32 %v2193, %v908
      %v2214 = vadd.f32 %v2194, %v910
      %v2215 = vmax.f32 %v2205, 0.0
      %v2216 = vmax.f32 %v2206, 0.0
      %v2217 = vmax.f32 %v2207, 0.0
      %v2218 = vmax.f32 %v2208, 0.0
      %v2219 = vmax.f32 %v2209, 0.0
      %v2220 = vmax.f32 %v2210, 0.0
      %v2221 = vmax.f32 %v2211, 0.0
      %v2222 = vmax.f32 %v2212, 0.0
      %v2223 = vmax.f32 %v2213, 0.0
      %v2224 = vmax.f32 %v2214, 0.0
      %v2225 = vmul.f32 %v2215, %v731
      %v2226 = vmul.f32 %v2216, %v732
      %v2227 = vmul.f32 %v2217, %v733
      %v2228 = vmul.f32 %v2218, %v734
      %v2229 = vmul.f32 %v2219, %v735
      %v2230 = vmul.f32 %v2220, %v736
      %v2231 = vmul.f32 %v2221, %v737
      %v2232 = vmul.f32 %v2222, %v738
      %v2233 = vmul.f32 %v2223, %v739
      %v2234 = vmul.f32 %v2224, %v740
      %v2245 = vrot.slane %v2225, 5
      %v2246 = vrot.slane %v2226, 5
      %v2247 = vsel %vm1026, %v2245, %v2246
      %v2248 = vrot.slane %v2227, 5
      %v2249 = vsel %vm1026, %v2246, %v2248
      %v2250 = vrot.slane %v2228, 5
      %v2251 = vsel %vm1026, %v2248, %v2250
      %v2252 = vrot.slane %v2229, 5
      %v2253 = vsel %vm1026, %v2250, %v2252
      %v2254 = vrot.slane %v2230, 5
      %v2255 = vsel %vm1026, %v2252, %v2254
      %v2256 = vrot.slane %v2231, 5
      %v2257 = vsel %vm1026, %v2254, %v2256
      %v2258 = vrot.slane %v2232, 5
      %v2259 = vsel %vm1026, %v2256, %v2258
      %v2260 = vrot.slane %v2233, 5
      %v2261 = vsel %vm1026, %v2258, %v2260
      %v2262 = vrot.slane %v2234, 5
      %v2263 = vsel %vm1026, %v2260, %v2262
      %v2275 = vsel %vm1026, 0.0, %v2245
      %v2276 = vsel %vm1026, %v2262, 0.0
      %v2277 = vpack.c.bf16 0.0, 0.0
      %v2278 = vpack.c.bf16 %v2275, %v2275
      %v2279 = vpack.c.bf16 %v2247, %v2247
      %v2280 = vpack.c.bf16 %v2249, %v2249
      %v2281 = vpack.c.bf16 %v2251, %v2251
      %v2282 = vpack.c.bf16 %v2253, %v2253
      %v2283 = vpack.c.bf16 %v2255, %v2255
      %v2284 = vpack.c.bf16 %v2257, %v2257
      %v2285 = vpack.c.bf16 %v2259, %v2259
      %v2286 = vpack.c.bf16 %v2261, %v2261
      %v2287 = vpack.c.bf16 %v2263, %v2263
      %v2288 = vpack.c.bf16 %v2276, %v2276
      %vm2289 = vcmask 60416
      %2290 = vst.msk [vmem:[%s332] sm:$0xf] %vm2289, %v2277
      %2291 = vst.msk [vmem:[%s332 + $0x4] sm:$0xf] %vm2289, %v2278
      %2292 = vst.msk [vmem:[%s332 + $0x8] sm:$0xf] %vm2289, %v2279
      %2293 = vst.msk [vmem:[%s332 + $0xc] sm:$0xf] %vm2289, %v2280
      %2294 = vst.msk [vmem:[%s332 + $0x10] sm:$0xf] %vm2289, %v2281
      %2295 = vst.msk [vmem:[%s332 + $0x14] sm:$0xf] %vm2289, %v2282
      %2296 = vst.msk [vmem:[%s332 + $0x18] sm:$0xf] %vm2289, %v2283
      %2297 = vst.msk [vmem:[%s332 + $0x1c] sm:$0xf] %vm2289, %v2284
      %2298 = vst.msk [vmem:[%s332 + $0x20] sm:$0xf] %vm2289, %v2285
      %2299 = vst.msk [vmem:[%s332 + $0x24] sm:$0xf] %vm2289, %v2286
      %2300 = vst.msk [vmem:[%s332 + $0x28] sm:$0xf] %vm2289, %v2287
      %2301 = vst.msk [vmem:[%s332 + $0x2c] sm:$0xf] %vm2289, %v2288
      %2302 = vst.msk [vmem:[%s332 + $0x30] sm:$0xf] %vm2289, %v2277
      %2303 = vst.msk [vmem:[%s332 + $0x34] sm:$0xf] %vm2289, %v2277
      %p2304 = scmp.lt.s32.totalorder %s20, 1
      %s2305 = scalar_select %p2304, %s20, 1
      %s2306 = smul.addr %s2305, 14
      %s2307 = smul.addr %s2306, 4
      %s2308 = scalar_lea.vmem %s9, %s2307
      // Predicated region
      $region57: #{_lambda_.6} parent=55 // pred_check
        %p2309 = pneg %p232
      $region58: #{_lambda_.6} parent=55 // pred_check_branch
        %2311 = sbr.rel (%p2309) target = $region60
      $region59: #{_lambda_.6} parent=55 // pred_region
        _
      $region60: #{_lambda_.6} parent=55 // pred_fallthru
        _
    $region56: #{_lambda_.6} parent=5 // pred_fallthru
      _
    %p2312 = scmp.le.s32.totalorder 2, %s15
    // Predicated region
    $region61: #{_lambda_.6} parent=5 // pred_check
      %p2313 = pneg %p2312
    $region62: #{_lambda_.6} parent=5 // pred_check_branch
      %2315 = sbr.rel (%p2313) target = $region64
    $region63: #{_lambda_.6} parent=5 // pred_region
      %s2316 = ssub.s32 %s15, 2
      // Predicated region
      $region65: #{_lambda_.6} parent=63 // pred_check
        %p2317 = pneg %p238
      $region66: #{_lambda_.6} parent=63 // pred_check_branch
        %2319 = sbr.rel (%p2317) target = $region68
      $region67: #{_lambda_.6} parent=63 // pred_region
        %p2320 = scmp.lt.s32.totalorder %s21, 1
        %s2321 = scalar_select %p2320, %s21, 1
        %s2322 = smul.addr %s2321, 14
        %s2323 = smul.addr %s2322, 4
        %s2324 = scalar_lea.vmem %s9, %s2323
      $region68: #{_lambda_.6} parent=63 // pred_fallthru
        _
    $region64: #{_lambda_.6} parent=5 // pred_fallthru
      _
  $region6: #{_lambda_.6} parent=0 // loop_footer
    %s19 = sadd.s32 1, %s15
  $region7: #{_lambda_.6} parent=0 // loop_footer_branch
    %14 = sbr.rel target = $region3
  $region8: #{_lambda_.6} parent=0 // loop_exit
    _

// kernel: _lambda_.4
$region0: #{_lambda_.4}
  #allocation0 [shape = 'u32[]', space=smem, size = 0x4, offset = 0x4, fixed_abs, tag = 'smem constant byte address 0x4 - core index']
  #allocation1 [shape = 'u32[72,128]{1,0:T(1,128)}', space=vmem, size = 0x9000, scoped, tag = 'internal scratch']
  %s0 = inlined_call_operand.vmem [shape: bf16[2,336,3], index: 0, kind: input, shape index: {}]
  %s1 = inlined_call_operand.vmem [shape: bf16[27,4], index: 1, kind: input, shape index: {}]
  %s2 = inlined_call_operand.vmem [shape: f32[1,4], index: 2, kind: input, shape index: {}]
  %s3 = inlined_call_operand.vmem [shape: f32[1,4], index: 3, kind: input, shape index: {}]
  %s4 = inlined_call_operand.vmem [shape: f32[1,4], index: 4, kind: input, shape index: {}]
  %s5 = inlined_call_operand.vmem [shape: bf16[2,336,4], index: 5, kind: output, shape index: {}]
  %s6 = sld [smem:[#allocation0]]
  $region53: #{_lambda_.4} parent=0
    _
  %s8 = ssub.s32 1, %s6
  %s9 = scalar_select 0, %s8, %s6
  loop: start=0, step=1, limit=4
  $region2: #{_lambda_.4} parent=0 // loop_pre_header
    _
  $region3: #{_lambda_.4} parent=0 // loop_header
    %s11 = sphi 0, %s15
    %p12 = scmp.ge.s32.totalorder %s11, 4
    %s21 = sphi 0, %s23
    %s24 = sphi 0, %s21
    %s25 = sphi 0, %s24
    %s41 = sphi 0, %s25
    %s45 = sphi 0, %s45
    %s47 = sphi 0, %s45
    %s48 = sphi 0, %s47
    %s62 = sphi 0, %s48
    %s66 = sphi 0, %s66
    %s68 = sphi 0, %s66
    %s69 = sphi 0, %s68
    %s83 = sphi 0, %s69
    %s87 = sphi 0, %s87
    %s89 = sphi 0, %s87
    %s90 = sphi 0, %s89
    %s104 = sphi 0, %s90
    %s108 = sphi 0, %s108
    %s110 = sphi 0, %s108
    %s111 = sphi 0, %s110
    %s125 = sphi 0, %s111
    %s131 = sphi 0, %s133
    %s134 = sphi 0, %s131
    %s135 = sphi 0, %s134
    %s151 = sphi 0, %s135
  $region4: #{_lambda_.4} parent=0 // loop_header_branch
    %14 = sbr.rel (%p12) target = $region8
  $region5: #{_lambda_.4} parent=0 // loop_body
    %s16 = ssub.s32 %s11, 1
    %s17 = ssub.s32 %s11, 2
    %s18 = sadd.s32 %s11, 1
    %s19 = ssub.s32 %s11, %s18
    %p20 = scmp.eq.s32.totalorder %s19, 0
    %s22 = sadd.s32 %s21, 1
    %s23 = scalar_select %p20, %s21, %s22
    %p26 = pneg %p20
    %p27 = scmp.eq.s32.totalorder %s11, 1
    %p28 = por %p26, %p27
    %p29 = scmp.ne.s32.totalorder %s21, %s24
    %p30 = scmp.eq.s32.totalorder %s11, 0
    %p31 = por %p29, %p30
    %p32 = scmp.ne.s32.totalorder %s21, %s24
    %p33 = scmp.eq.s32.totalorder %s16, 1
    %p34 = por %p32, %p33
    %p35 = scmp.ne.s32.totalorder %s24, %s25
    %p36 = scmp.eq.s32.totalorder %s16, 0
    %p37 = por %p35, %p36
    %p38 = scmp.ne.s32.totalorder %s24, %s25
    %p39 = scmp.eq.s32.totalorder %s17, 1
    %p40 = por %p38, %p39
    %p42 = scmp.ne.s32.totalorder %s25, %s41
    %p43 = scmp.eq.s32.totalorder %s17, 0
    %p44 = por %p42, %p43
    %s46 = sadd.s32 %s45, 1
    %p49 = scmp.eq.s32.totalorder %s11, 1
    %p50 = scmp.ne.s32.totalorder %s45, %s47
    %p51 = scmp.eq.s32.totalorder %s11, 0
    %p52 = por %p50, %p51
    %p53 = scmp.ne.s32.totalorder %s45, %s47
    %p54 = scmp.eq.s32.totalorder %s16, 1
    %p55 = por %p53, %p54
    %p56 = scmp.ne.s32.totalorder %s47, %s48
    %p57 = scmp.eq.s32.totalorder %s16, 0
    %p58 = por %p56, %p57
    %p59 = scmp.ne.s32.totalorder %s47, %s48
    %p60 = scmp.eq.s32.totalorder %s17, 1
    %p61 = por %p59, %p60
    %p63 = scmp.ne.s32.totalorder %s48, %s62
    %p64 = scmp.eq.s32.totalorder %s17, 0
    %p65 = por %p63, %p64
    %s67 = sadd.s32 %s66, 1
    %p70 = scmp.eq.s32.totalorder %s11, 1
    %p71 = scmp.ne.s32.totalorder %s66, %s68
    %p72 = scmp.eq.s32.totalorder %s11, 0
    %p73 = por %p71, %p72
    %p74 = scmp.ne.s32.totalorder %s66, %s68
    %p75 = scmp.eq.s32.totalorder %s16, 1
    %p76 = por %p74, %p75
    %p77 = scmp.ne.s32.totalorder %s68, %s69
    %p78 = scmp.eq.s32.totalorder %s16, 0
    %p79 = por %p77, %p78
    %p80 = scmp.ne.s32.totalorder %s68, %s69
    %p81 = scmp.eq.s32.totalorder %s17, 1
    %p82 = por %p80, %p81
    %p84 = scmp.ne.s32.totalorder %s69, %s83
    %p85 = scmp.eq.s32.totalorder %s17, 0
    %p86 = por %p84, %p85
    %s88 = sadd.s32 %s87, 1
    %p91 = scmp.eq.s32.totalorder %s11, 1
    %p92 = scmp.ne.s32.totalorder %s87, %s89
    %p93 = scmp.eq.s32.totalorder %s11, 0
    %p94 = por %p92, %p93
    %p95 = scmp.ne.s32.totalorder %s87, %s89
    %p96 = scmp.eq.s32.totalorder %s16, 1
    %p97 = por %p95, %p96
    %p98 = scmp.ne.s32.totalorder %s89, %s90
    %p99 = scmp.eq.s32.totalorder %s16, 0
    %p100 = por %p98, %p99
    %p101 = scmp.ne.s32.totalorder %s89, %s90
    %p102 = scmp.eq.s32.totalorder %s17, 1
    %p103 = por %p101, %p102
    %p105 = scmp.ne.s32.totalorder %s90, %s104
    %p106 = scmp.eq.s32.totalorder %s17, 0
    %p107 = por %p105, %p106
    %s109 = sadd.s32 %s108, 1
    %p112 = scmp.eq.s32.totalorder %s11, 1
    %p113 = scmp.ne.s32.totalorder %s108, %s110
    %p114 = scmp.eq.s32.totalorder %s11, 0
    %p115 = por %p113, %p114
    %p116 = scmp.ne.s32.totalorder %s108, %s110
    %p117 = scmp.eq.s32.totalorder %s16, 1
    %p118 = por %p116, %p117
    %p119 = scmp.ne.s32.totalorder %s110, %s111
    %p120 = scmp.eq.s32.totalorder %s16, 0
    %p121 = por %p119, %p120
    %p122 = scmp.ne.s32.totalorder %s110, %s111
    %p123 = scmp.eq.s32.totalorder %s17, 1
    %p124 = por %p122, %p123
    %p126 = scmp.ne.s32.totalorder %s111, %s125
    %p127 = scmp.eq.s32.totalorder %s17, 0
    %p128 = por %p126, %p127
    %s129 = ssub.s32 %s11, %s18
    %p130 = scmp.eq.s32.totalorder %s129, 0
    %s132 = sadd.s32 %s131, 1
    %s133 = scalar_select %p130, %s131, %s132
    %p136 = pneg %p130
    %p137 = scmp.eq.s32.totalorder %s11, 1
    %p138 = por %p136, %p137
    %p139 = scmp.ne.s32.totalorder %s131, %s134
    %p140 = scmp.eq.s32.totalorder %s11, 0
    %p141 = por %p139, %p140
    %p142 = scmp.ne.s32.totalorder %s131, %s134
    %p143 = scmp.eq.s32.totalorder %s16, 1
    %p144 = por %p142, %p143
    %p145 = scmp.ne.s32.totalorder %s134, %s135
    %p146 = scmp.eq.s32.totalorder %s16, 0
    %p147 = por %p145, %p146
    %p148 = scmp.ne.s32.totalorder %s134, %s135
    %p149 = scmp.eq.s32.totalorder %s17, 1
    %p150 = por %p148, %p149
    %p152 = scmp.ne.s32.totalorder %s135, %s151
    %p153 = scmp.eq.s32.totalorder %s17, 0
    %p154 = por %p152, %p153
    %p155 = scmp.le.s32.totalorder 1, %s11
    %p156 = scmp.lt.s32.totalorder %s11, 3
    %p157 = pnand %p155, %p156
    %p158 = pneg %p157
    // Predicated region
    $region9: #{_lambda_.4} parent=5 // pred_check
      _
    $region10: #{_lambda_.4} parent=5 // pred_check_branch
      %160 = sbr.rel (%p157) target = $region12
    $region11: #{_lambda_.4} parent=5 // pred_region
      %s161 = ssub.s32 %s11, 1
      // Predicated region
      $region13: #{_lambda_.4} parent=11 // pred_check
        %p162 = pneg %p58
      $region14: #{_lambda_.4} parent=11 // pred_check_branch
        %164 = sbr.rel (%p162) target = $region16
      $region15: #{_lambda_.4} parent=11 // pred_region
        _
      $region16: #{_lambda_.4} parent=11 // pred_fallthru
        _
      // Predicated region
      $region17: #{_lambda_.4} parent=11 // pred_check
        %p165 = pneg %p79
      $region18: #{_lambda_.4} parent=11 // pred_check_branch
        %167 = sbr.rel (%p165) target = $region20
      $region19: #{_lambda_.4} parent=11 // pred_region
        _
      $region20: #{_lambda_.4} parent=11 // pred_fallthru
        _
      // Predicated region
      $region21: #{_lambda_.4} parent=11 // pred_check
        %p168 = pneg %p100
      $region22: #{_lambda_.4} parent=11 // pred_check_branch
        %170 = sbr.rel (%p168) target = $region24
      $region23: #{_lambda_.4} parent=11 // pred_region
        _
      $region24: #{_lambda_.4} parent=11 // pred_fallthru
        _
      // Predicated region
      $region25: #{_lambda_.4} parent=11 // pred_check
        %p171 = pneg %p121
      $region26: #{_lambda_.4} parent=11 // pred_check_branch
        %173 = sbr.rel (%p171) target = $region28
      $region27: #{_lambda_.4} parent=11 // pred_region
        _
      $region28: #{_lambda_.4} parent=11 // pred_fallthru
        _
    $region12: #{_lambda_.4} parent=5 // pred_fallthru
      _
    %p174 = scmp.lt.s32.totalorder %s11, 2
    // Predicated region
    $region29: #{_lambda_.4} parent=5 // pred_check
      %p175 = pneg %p174
    $region30: #{_lambda_.4} parent=5 // pred_check_branch
      %177 = sbr.rel (%p175) target = $region32
    $region31: #{_lambda_.4} parent=5 // pred_region
      // Predicated region
      $region33: #{_lambda_.4} parent=31 // pred_check
        %p178 = pneg %p31
      $region34: #{_lambda_.4} parent=31 // pred_check_branch
        %180 = sbr.rel (%p178) target = $region36
      $region35: #{_lambda_.4} parent=31 // pred_region
        %p181 = scmp.lt.s32.totalorder %s11, 1
        %s182 = scalar_select %p181, %s11, 1
        %s183 = smul.addr %s182, 42
        %s184 = smul.addr %s183, 4
        %s185 = scalar_lea.vmem %s0, %s184
      $region36: #{_lambda_.4} parent=31 // pred_fallthru
        _
    $region32: #{_lambda_.4} parent=5 // pred_fallthru
      _
    %p186 = scmp.le.s32.totalorder 1, %s11
    %p187 = scmp.lt.s32.totalorder %s11, 3
    %p188 = pnand %p186, %p187
    %p189 = pneg %p188
    // Predicated region
    $region37: #{_lambda_.4} parent=5 // pred_check
      _
    $region38: #{_lambda_.4} parent=5 // pred_check_branch
      %191 = sbr.rel (%p188) target = $region40
    $region39: #{_lambda_.4} parent=5 // pred_region
      %s192 = ssub.s32 %s11, 1
      %p193 = scmp.lt.s32.totalorder %s16, 1
      %s194 = scalar_select %p193, %s16, 1
      %s195 = smul.addr %s194, 42
      %s196 = smul.addr %s195, 4
      %s197 = scalar_lea.vmem %s0, %s196
      %p198 = pneg %p37
      %p199 = pneg %p34
      %p200 = pneg %p58
      %p201 = pneg %p55
      %p202 = pneg %p79
      %p203 = pneg %p76
      %p204 = pneg %p100
      %p205 = pneg %p97
      %p206 = pneg %p121
      %p207 = pneg %p118
      %p208 = pneg %p147
      %p209 = pneg %p144
      %p210 = scmp.lt.s32.totalorder %s16, 1
      %s211 = scalar_select %p210, %s16, 1
      %s212 = smul.addr %s211, 42
      %s213 = smul.addr %s212, 4
      %s214 = scalar_lea.vmem %s5, %s213
      %p215 = scmp.lt.s32.totalorder %s16, 1
      %s216 = scalar_select %p215, %s16, 1
      %s217 = smul.addr %s216, 42
      %s218 = smul.addr %s217, 4
      %s219 = scalar_lea.vmem %s0, %s218
      %p220 = scmp.lt.s32.totalorder %s16, 1
      %s221 = scalar_select %p220, %s16, 1
      %s222 = smul.addr %s221, 42
      %s223 = smul.addr %s222, 4
      %s224 = scalar_lea.vmem %s5, %s223
      %v226 = vld [vmem:[%s219] sm:$0xf]
      %v227 = vld [vmem:[%s219 + $0x4] sm:$0xf]
      %v228 = vld [vmem:[%s219 + $0x8] sm:$0xf]
      %v229 = vld [vmem:[%s219 + $0xc] sm:$0xf]
      %v230 = vld [vmem:[%s219 + $0x10] sm:$0xf]
      %v231 = vld [vmem:[%s219 + $0x14] sm:$0xf]
      %v232 = vld [vmem:[%s219 + $0x18] sm:$0xf]
      %v233 = vld [vmem:[%s219 + $0x1c] sm:$0xf]
      %v234 = vld [vmem:[%s219 + $0x20] sm:$0xf]
      %v235 = vld [vmem:[%s219 + $0x24] sm:$0xf]
      %v236 = vld [vmem:[%s219 + $0x28] sm:$0xf]
      %v237 = vld [vmem:[%s219 + $0x2c] sm:$0xf]
      %v238 = vld [vmem:[%s219 + $0x30] sm:$0xf]
      %v239 = vld [vmem:[%s219 + $0x34] sm:$0xf]
      %v240 = vld [vmem:[%s219 + $0x38] sm:$0xf]
      %v241 = vld [vmem:[%s219 + $0x3c] sm:$0xf]
      %v242 = vld [vmem:[%s219 + $0x40] sm:$0xf]
      %v243 = vld [vmem:[%s219 + $0x44] sm:$0xf]
      %v244 = vld [vmem:[%s219 + $0x48] sm:$0xf]
      %v245 = vld [vmem:[%s219 + $0x4c] sm:$0xf]
      %v246 = vld [vmem:[%s219 + $0x50] sm:$0xf]
      %v247 = vld [vmem:[%s219 + $0x54] sm:$0xf]
      %v248 = vld [vmem:[%s219 + $0x58] sm:$0xf]
      %v249 = vld [vmem:[%s219 + $0x5c] sm:$0xf]
      %v250 = vld [vmem:[%s219 + $0x60] sm:$0xf]
      %v251 = vld [vmem:[%s219 + $0x64] sm:$0xf]
      %v252 = vld [vmem:[%s219 + $0x68] sm:$0xf]
      %v253 = vld [vmem:[%s219 + $0x6c] sm:$0xf]
      %v254 = vld [vmem:[%s219 + $0x70] sm:$0xf]
      %v255 = vld [vmem:[%s219 + $0x74] sm:$0xf]
      %v256 = vld [vmem:[%s219 + $0x78] sm:$0xf]
      %v257 = vld [vmem:[%s219 + $0x7c] sm:$0xf]
      %v258 = vld [vmem:[%s219 + $0x80] sm:$0xf]
      %v259 = vld [vmem:[%s219 + $0x84] sm:$0xf]
      %v260 = vld [vmem:[%s219 + $0x88] sm:$0xf]
      %v261 = vld [vmem:[%s219 + $0x8c] sm:$0xf]
      %v262 = vld [vmem:[%s219 + $0x90] sm:$0xf]
      %v263 = vld [vmem:[%s219 + $0x94] sm:$0xf]
      %v264 = vld [vmem:[%s219 + $0x98] sm:$0xf]
      %v265 = vld [vmem:[%s219 + $0x9c] sm:$0xf]
      %v266 = vld [vmem:[%s219 + $0xa0] sm:$0xf]
      %v267 = vunpack.c.l.bf16 %v226
      %v268 = vunpack.c.l.bf16 %v227
      %v269 = vunpack.c.l.bf16 %v228
      %v270 = vunpack.c.l.bf16 %v229
      %v271 = vunpack.c.l.bf16 %v230
      %v272 = vunpack.c.l.bf16 %v231
      %v273 = vunpack.c.l.bf16 %v232
      %v274 = vunpack.c.l.bf16 %v233
      %v275 = vunpack.c.l.bf16 %v234
      %v276 = vunpack.c.l.bf16 %v235
      %v277 = vunpack.c.l.bf16 %v236
      %v278 = vunpack.c.l.bf16 %v237
      %v279 = vunpack.c.l.bf16 %v238
      %v280 = vunpack.c.l.bf16 %v239
      %v281 = vunpack.c.l.bf16 %v240
      %v282 = vunpack.c.l.bf16 %v241
      %v283 = vunpack.c.l.bf16 %v242
      %v284 = vunpack.c.l.bf16 %v243
      %v285 = vunpack.c.l.bf16 %v244
      %v286 = vunpack.c.l.bf16 %v245
      %v287 = vunpack.c.l.bf16 %v246
      %v288 = vunpack.c.l.bf16 %v247
      %v289 = vunpack.c.l.bf16 %v248
      %v290 = vunpack.c.l.bf16 %v249
      %v291 = vunpack.c.l.bf16 %v250
      %v292 = vunpack.c.l.bf16 %v251
      %v293 = vunpack.c.l.bf16 %v252
      %v294 = vunpack.c.l.bf16 %v253
      %v295 = vunpack.c.l.bf16 %v254
      %v296 = vunpack.c.l.bf16 %v255
      %v297 = vunpack.c.l.bf16 %v256
      %v298 = vunpack.c.l.bf16 %v257
      %v299 = vunpack.c.l.bf16 %v258
      %v300 = vunpack.c.l.bf16 %v259
      %v301 = vunpack.c.l.bf16 %v260
      %v302 = vunpack.c.l.bf16 %v261
      %v303 = vunpack.c.l.bf16 %v262
      %v304 = vunpack.c.l.bf16 %v263
      %v305 = vunpack.c.l.bf16 %v264
      %v306 = vunpack.c.l.bf16 %v265
      %v307 = vunpack.c.l.bf16 %v266
      %v308 = vlaneseq
      %v309 = vshrl.u32 %v308, 7
      %v310 = vadd.s32 %v309, 8
      %v311 = vadd.s32 %v309, 16
      %v312 = vadd.s32 %v309, 24
      %v313 = vadd.s32 %v309, 32
      %v314 = vadd.s32 %v309, 40
      %v315 = vadd.s32 %v309, 48
      %v316 = vadd.s32 %v309, 56
      %v317 = vadd.s32 %v309, 64
      %v318 = vadd.s32 %v309, 72
      %v319 = vadd.s32 %v309, 80
      %v320 = vadd.s32 %v309, 88
      %v321 = vadd.s32 %v309, 96
      %v322 = vadd.s32 %v309, 104
      %v323 = vadd.s32 %v309, 112
      %v324 = vadd.s32 %v309, 120
      %v325 = vadd.s32 %v309, 128
      %v326 = vadd.s32 %v309, 136
      %v327 = vadd.s32 %v309, 144
      %v328 = vadd.s32 %v309, 152
      %v329 = vadd.s32 %v309, 160
      %v330 = vadd.s32 %v309, 168
      %v331 = vadd.s32 %v309, 176
      %v332 = vadd.s32 %v309, 184
      %v333 = vadd.s32 %v309, 192
      %v334 = vadd.s32 %v309, 200
      %v335 = vadd.s32 %v309, 208
      %v336 = vadd.s32 %v309, 216
      %v337 = vadd.s32 %v309, 224
      %v338 = vadd.s32 %v309, 232
      %v339 = vadd.s32 %v309, 240
      %v340 = vadd.s32 %v309, 248
      %v341 = vadd.s32 %v309, 256
      %v342 = vadd.s32 %v309, 264
      %v343 = vadd.s32 %v309, 272
      %v344 = vadd.s32 %v309, 280
      %vm345 = vcmp.lt.s32.totalorder %v309, 0
      %v346 = vsub.s32 0, %v309
      %v347 = vsel %vm345, %v346, %v309
      %v348 = vand.u32 %v347, 65535
      %v349 = vshrl.u32 %v347, 16
      %v351 = vmul.u32 %v348, 14564
      %v352 = vmul.u32 %v348, 58254
      %v353 = vmul.u32 %v349, 14564
      %v354 = vmul.u32 %v349, 58254
      %v355 = vshll.u32 %v352, 16
      %v356 = vshrl.u32 %v352, 16
      %v357 = vshll.u32 %v353, 16
      %v358 = vshrl.u32 %v353, 16
      %vm359 = vc.u32 %v351, %v355
      %v360 = vsel %vm359, 1, 0
      %v361 = vadd.s32 %v351, %v355
      %v362 = vadd.s32 %v354, %v360
      %vm363 = vc.u32 %v361, %v357
      %v364 = vsel %vm363, 1, 0
      %v365 = vadd.s32 %v361, %v357
      %v366 = vadd.s32 %v362, %v364
      %v367 = vadd.s32 %v366, %v356
      %v368 = vadd.s32 %v367, %v358
      %v369 = vshrl.u32 %v368, 4
      %v370 = vmul.u32 %v369, 18
      %v371 = vsub.s32 %v347, %v370
      %v372 = vsub.s32 0, %v371
      %v373 = vsel %vm345, %v372, %v371
      %vm374 = vcmp.lt.s32.totalorder %v310, 0
      %v375 = vsub.s32 0, %v310
      %v376 = vsel %vm374, %v375, %v310
      %v377 = vand.u32 %v376, 65535
      %v378 = vshrl.u32 %v376, 16
      %v380 = vmul.u32 %v377, 14564
      %v381 = vmul.u32 %v377, 58254
      %v382 = vmul.u32 %v378, 14564
      %v383 = vmul.u32 %v378, 58254
      %v384 = vshll.u32 %v381, 16
      %v385 = vshrl.u32 %v381, 16
      %v386 = vshll.u32 %v382, 16
      %v387 = vshrl.u32 %v382, 16
      %vm388 = vc.u32 %v380, %v384
      %v389 = vsel %vm388, 1, 0
      %v390 = vadd.s32 %v380, %v384
      %v391 = vadd.s32 %v383, %v389
      %vm392 = vc.u32 %v390, %v386
      %v393 = vsel %vm392, 1, 0
      %v394 = vadd.s32 %v390, %v386
      %v395 = vadd.s32 %v391, %v393
      %v396 = vadd.s32 %v395, %v385
      %v397 = vadd.s32 %v396, %v387
      %v398 = vshrl.u32 %v397, 4
      %v399 = vmul.u32 %v398, 18
      %v400 = vsub.s32 %v376, %v399
      %v401 = vsub.s32 0, %v400
      %v402 = vsel %vm374, %v401, %v400
      %vm403 = vcmp.lt.s32.totalorder %v311, 0
      %v404 = vsub.s32 0, %v311
      %v405 = vsel %vm403, %v404, %v311
      %v406 = vand.u32 %v405, 65535
      %v407 = vshrl.u32 %v405, 16
      %v409 = vmul.u32 %v406, 14564
      %v410 = vmul.u32 %v406, 58254
      %v411 = vmul.u32 %v407, 14564
      %v412 = vmul.u32 %v407, 58254
      %v413 = vshll.u32 %v410, 16
      %v414 = vshrl.u32 %v410, 16
      %v415 = vshll.u32 %v411, 16
      %v416 = vshrl.u32 %v411, 16
      %vm417 = vc.u32 %v409, %v413
      %v418 = vsel %vm417, 1, 0
      %v419 = vadd.s32 %v409, %v413
      %v420 = vadd.s32 %v412, %v418
      %vm421 = vc.u32 %v419, %v415
      %v422 = vsel %vm421, 1, 0
      %v423 = vadd.s32 %v419, %v415
      %v424 = vadd.s32 %v420, %v422
      %v425 = vadd.s32 %v424, %v414
      %v426 = vadd.s32 %v425, %v416
      %v427 = vshrl.u32 %v426, 4
      %v428 = vmul.u32 %v427, 18
      %v429 = vsub.s32 %v405, %v428
      %v430 = vsub.s32 0, %v429
      %v431 = vsel %vm403, %v430, %v429
      %vm432 = vcmp.lt.s32.totalorder %v312, 0
      %v433 = vsub.s32 0, %v312
      %v434 = vsel %vm432, %v433, %v312
      %v435 = vand.u32 %v434, 65535
      %v436 = vshrl.u32 %v434, 16
      %v438 = vmul.u32 %v435, 14564
      %v439 = vmul.u32 %v435, 58254
      %v440 = vmul.u32 %v436, 14564
      %v441 = vmul.u32 %v436, 58254
      %v442 = vshll.u32 %v439, 16
      %v443 = vshrl.u32 %v439, 16
      %v444 = vshll.u32 %v440, 16
      %v445 = vshrl.u32 %v440, 16
      %vm446 = vc.u32 %v438, %v442
      %v447 = vsel %vm446, 1, 0
      %v448 = vadd.s32 %v438, %v442
      %v449 = vadd.s32 %v441, %v447
      %vm450 = vc.u32 %v448, %v444
      %v451 = vsel %vm450, 1, 0
      %v452 = vadd.s32 %v448, %v444
      %v453 = vadd.s32 %v449, %v451
      %v454 = vadd.s32 %v453, %v443
      %v455 = vadd.s32 %v454, %v445
      %v456 = vshrl.u32 %v455, 4
      %v457 = vmul.u32 %v456, 18
      %v458 = vsub.s32 %v434, %v457
      %v459 = vsub.s32 0, %v458
      %v460 = vsel %vm432, %v459, %v458
      %vm461 = vcmp.lt.s32.totalorder %v313, 0
      %v462 = vsub.s32 0, %v313
      %v463 = vsel %vm461, %v462, %v313
      %v464 = vand.u32 %v463, 65535
      %v465 = vshrl.u32 %v463, 16
      %v467 = vmul.u32 %v464, 14564
      %v468 = vmul.u32 %v464, 58254
      %v469 = vmul.u32 %v465, 14564
      %v470 = vmul.u32 %v465, 58254
      %v471 = vshll.u32 %v468, 16
      %v472 = vshrl.u32 %v468, 16
      %v473 = vshll.u32 %v469, 16
      %v474 = vshrl.u32 %v469, 16
      %vm475 = vc.u32 %v467, %v471
      %v476 = vsel %vm475, 1, 0
      %v477 = vadd.s32 %v467, %v471
      %v478 = vadd.s32 %v470, %v476
      %vm479 = vc.u32 %v477, %v473
      %v480 = vsel %vm479, 1, 0
      %v481 = vadd.s32 %v477, %v473
      %v482 = vadd.s32 %v478, %v480
      %v483 = vadd.s32 %v482, %v472
      %v484 = vadd.s32 %v483, %v474
      %v485 = vshrl.u32 %v484, 4
      %v486 = vmul.u32 %v485, 18
      %v487 = vsub.s32 %v463, %v486
      %v488 = vsub.s32 0, %v487
      %v489 = vsel %vm461, %v488, %v487
      %vm490 = vcmp.lt.s32.totalorder %v314, 0
      %v491 = vsub.s32 0, %v314
      %v492 = vsel %vm490, %v491, %v314
      %v493 = vand.u32 %v492, 65535
      %v494 = vshrl.u32 %v492, 16
      %v496 = vmul.u32 %v493, 14564
      %v497 = vmul.u32 %v493, 58254
      %v498 = vmul.u32 %v494, 14564
      %v499 = vmul.u32 %v494, 58254
      %v500 = vshll.u32 %v497, 16
      %v501 = vshrl.u32 %v497, 16
      %v502 = vshll.u32 %v498, 16
      %v503 = vshrl.u32 %v498, 16
      %vm504 = vc.u32 %v496, %v500
      %v505 = vsel %vm504, 1, 0
      %v506 = vadd.s32 %v496, %v500
      %v507 = vadd.s32 %v499, %v505
      %vm508 = vc.u32 %v506, %v502
      %v509 = vsel %vm508, 1, 0
      %v510 = vadd.s32 %v506, %v502
      %v511 = vadd.s32 %v507, %v509
      %v512 = vadd.s32 %v511, %v501
      %v513 = vadd.s32 %v512, %v503
      %v514 = vshrl.u32 %v513, 4
      %v515 = vmul.u32 %v514, 18
      %v516 = vsub.s32 %v492, %v515
      %v517 = vsub.s32 0, %v516
      %v518 = vsel %vm490, %v517, %v516
      %vm519 = vcmp.lt.s32.totalorder %v315, 0
      %v520 = vsub.s32 0, %v315
      %v521 = vsel %vm519, %v520, %v315
      %v522 = vand.u32 %v521, 65535
      %v523 = vshrl.u32 %v521, 16
      %v525 = vmul.u32 %v522, 14564
      %v526 = vmul.u32 %v522, 58254
      %v527 = vmul.u32 %v523, 14564
      %v528 = vmul.u32 %v523, 58254
      %v529 = vshll.u32 %v526, 16
      %v530 = vshrl.u32 %v526, 16
      %v531 = vshll.u32 %v527, 16
      %v532 = vshrl.u32 %v527, 16
      %vm533 = vc.u32 %v525, %v529
      %v534 = vsel %vm533, 1, 0
      %v535 = vadd.s32 %v525, %v529
      %v536 = vadd.s32 %v528, %v534
      %vm537 = vc.u32 %v535, %v531
      %v538 = vsel %vm537, 1, 0
      %v539 = vadd.s32 %v535, %v531
      %v540 = vadd.s32 %v536, %v538
      %v541 = vadd.s32 %v540, %v530
      %v542 = vadd.s32 %v541, %v532
      %v543 = vshrl.u32 %v542, 4
      %v544 = vmul.u32 %v543, 18
      %v545 = vsub.s32 %v521, %v544
      %v546 = vsub.s32 0, %v545
      %v547 = vsel %vm519, %v546, %v545
      %vm548 = vcmp.lt.s32.totalorder %v316, 0
      %v549 = vsub.s32 0, %v316
      %v550 = vsel %vm548, %v549, %v316
      %v551 = vand.u32 %v550, 65535
      %v552 = vshrl.u32 %v550, 16
      %v554 = vmul.u32 %v551, 14564
      %v555 = vmul.u32 %v551, 58254
      %v556 = vmul.u32 %v552, 14564
      %v557 = vmul.u32 %v552, 58254
      %v558 = vshll.u32 %v555, 16
      %v559 = vshrl.u32 %v555, 16
      %v560 = vshll.u32 %v556, 16
      %v561 = vshrl.u32 %v556, 16
      %vm562 = vc.u32 %v554, %v558
      %v563 = vsel %vm562, 1, 0
      %v564 = vadd.s32 %v554, %v558
      %v565 = vadd.s32 %v557, %v563
      %vm566 = vc.u32 %v564, %v560
      %v567 = vsel %vm566, 1, 0
      %v568 = vadd.s32 %v564, %v560
      %v569 = vadd.s32 %v565, %v567
      %v570 = vadd.s32 %v569, %v559
      %v571 = vadd.s32 %v570, %v561
      %v572 = vshrl.u32 %v571, 4
      %v573 = vmul.u32 %v572, 18
      %v574 = vsub.s32 %v550, %v573
      %v575 = vsub.s32 0, %v574
      %v576 = vsel %vm548, %v575, %v574
      %vm577 = vcmp.lt.s32.totalorder %v317, 0
      %v578 = vsub.s32 0, %v317
      %v579 = vsel %vm577, %v578, %v317
      %v580 = vand.u32 %v579, 65535
      %v581 = vshrl.u32 %v579, 16
      %v583 = vmul.u32 %v580, 14564
      %v584 = vmul.u32 %v580, 58254
      %v585 = vmul.u32 %v581, 14564
      %v586 = vmul.u32 %v581, 58254
      %v587 = vshll.u32 %v584, 16
      %v588 = vshrl.u32 %v584, 16
      %v589 = vshll.u32 %v585, 16
      %v590 = vshrl.u32 %v585, 16
      %vm591 = vc.u32 %v583, %v587
      %v592 = vsel %vm591, 1, 0
      %v593 = vadd.s32 %v583, %v587
      %v594 = vadd.s32 %v586, %v592
      %vm595 = vc.u32 %v593, %v589
      %v596 = vsel %vm595, 1, 0
      %v597 = vadd.s32 %v593, %v589
      %v598 = vadd.s32 %v594, %v596
      %v599 = vadd.s32 %v598, %v588
      %v600 = vadd.s32 %v599, %v590
      %v601 = vshrl.u32 %v600, 4
      %v602 = vmul.u32 %v601, 18
      %v603 = vsub.s32 %v579, %v602
      %v604 = vsub.s32 0, %v603
      %v605 = vsel %vm577, %v604, %v603
      %vm606 = vcmp.lt.s32.totalorder %v318, 0
      %v607 = vsub.s32 0, %v318
      %v608 = vsel %vm606, %v607, %v318
      %v609 = vand.u32 %v608, 65535
      %v610 = vshrl.u32 %v608, 16
      %v612 = vmul.u32 %v609, 14564
      %v613 = vmul.u32 %v609, 58254
      %v614 = vmul.u32 %v610, 14564
      %v615 = vmul.u32 %v610, 58254
      %v616 = vshll.u32 %v613, 16
      %v617 = vshrl.u32 %v613, 16
      %v618 = vshll.u32 %v614, 16
      %v619 = vshrl.u32 %v614, 16
      %vm620 = vc.u32 %v612, %v616
      %v621 = vsel %vm620, 1, 0
      %v622 = vadd.s32 %v612, %v616
      %v623 = vadd.s32 %v615, %v621
      %vm624 = vc.u32 %v622, %v618
      %v625 = vsel %vm624, 1, 0
      %v626 = vadd.s32 %v622, %v618
      %v627 = vadd.s32 %v623, %v625
      %v628 = vadd.s32 %v627, %v617
      %v629 = vadd.s32 %v628, %v619
      %v630 = vshrl.u32 %v629, 4
      %v631 = vmul.u32 %v630, 18
      %v632 = vsub.s32 %v608, %v631
      %v633 = vsub.s32 0, %v632
      %v634 = vsel %vm606, %v633, %v632
      %vm635 = vcmp.lt.s32.totalorder %v319, 0
      %v636 = vsub.s32 0, %v319
      %v637 = vsel %vm635, %v636, %v319
      %v638 = vand.u32 %v637, 65535
      %v639 = vshrl.u32 %v637, 16
      %v641 = vmul.u32 %v638, 14564
      %v642 = vmul.u32 %v638, 58254
      %v643 = vmul.u32 %v639, 14564
      %v644 = vmul.u32 %v639, 58254
      %v645 = vshll.u32 %v642, 16
      %v646 = vshrl.u32 %v642, 16
      %v647 = vshll.u32 %v643, 16
      %v648 = vshrl.u32 %v643, 16
      %vm649 = vc.u32 %v641, %v645
      %v650 = vsel %vm649, 1, 0
      %v651 = vadd.s32 %v641, %v645
      %v652 = vadd.s32 %v644, %v650
      %vm653 = vc.u32 %v651, %v647
      %v654 = vsel %vm653, 1, 0
      %v655 = vadd.s32 %v651, %v647
      %v656 = vadd.s32 %v652, %v654
      %v657 = vadd.s32 %v656, %v646
      %v658 = vadd.s32 %v657, %v648
      %v659 = vshrl.u32 %v658, 4
      %v660 = vmul.u32 %v659, 18
      %v661 = vsub.s32 %v637, %v660
      %v662 = vsub.s32 0, %v661
      %v663 = vsel %vm635, %v662, %v661
      %vm664 = vcmp.lt.s32.totalorder %v320, 0
      %v665 = vsub.s32 0, %v320
      %v666 = vsel %vm664, %v665, %v320
      %v667 = vand.u32 %v666, 65535
      %v668 = vshrl.u32 %v666, 16
      %v670 = vmul.u32 %v667, 14564
      %v671 = vmul.u32 %v667, 58254
      %v672 = vmul.u32 %v668, 14564
      %v673 = vmul.u32 %v668, 58254
      %v674 = vshll.u32 %v671, 16
      %v675 = vshrl.u32 %v671, 16
      %v676 = vshll.u32 %v672, 16
      %v677 = vshrl.u32 %v672, 16
      %vm678 = vc.u32 %v670, %v674
      %v679 = vsel %vm678, 1, 0
      %v680 = vadd.s32 %v670, %v674
      %v681 = vadd.s32 %v673, %v679
      %vm682 = vc.u32 %v680, %v676
      %v683 = vsel %vm682, 1, 0
      %v684 = vadd.s32 %v680, %v676
      %v685 = vadd.s32 %v681, %v683
      %v686 = vadd.s32 %v685, %v675
      %v687 = vadd.s32 %v686, %v677
      %v688 = vshrl.u32 %v687, 4
      %v689 = vmul.u32 %v688, 18
      %v690 = vsub.s32 %v666, %v689
      %v691 = vsub.s32 0, %v690
      %v692 = vsel %vm664, %v691, %v690
      %vm693 = vcmp.lt.s32.totalorder %v321, 0
      %v694 = vsub.s32 0, %v321
      %v695 = vsel %vm693, %v694, %v321
      %v696 = vand.u32 %v695, 65535
      %v697 = vshrl.u32 %v695, 16
      %v699 = vmul.u32 %v696, 14564
      %v700 = vmul.u32 %v696, 58254
      %v701 = vmul.u32 %v697, 14564
      %v702 = vmul.u32 %v697, 58254
      %v703 = vshll.u32 %v700, 16
      %v704 = vshrl.u32 %v700, 16
      %v705 = vshll.u32 %v701, 16
      %v706 = vshrl.u32 %v701, 16
      %vm707 = vc.u32 %v699, %v703
      %v708 = vsel %vm707, 1, 0
      %v709 = vadd.s32 %v699, %v703
      %v710 = vadd.s32 %v702, %v708
      %vm711 = vc.u32 %v709, %v705
      %v712 = vsel %vm711, 1, 0
      %v713 = vadd.s32 %v709, %v705
      %v714 = vadd.s32 %v710, %v712
      %v715 = vadd.s32 %v714, %v704
      %v716 = vadd.s32 %v715, %v706
      %v717 = vshrl.u32 %v716, 4
      %v718 = vmul.u32 %v717, 18
      %v719 = vsub.s32 %v695, %v718
      %v720 = vsub.s32 0, %v719
      %v721 = vsel %vm693, %v720, %v719
      %vm722 = vcmp.lt.s32.totalorder %v322, 0
      %v723 = vsub.s32 0, %v322
      %v724 = vsel %vm722, %v723, %v322
      %v725 = vand.u32 %v724, 65535
      %v726 = vshrl.u32 %v724, 16
      %v728 = vmul.u32 %v725, 14564
      %v729 = vmul.u32 %v725, 58254
      %v730 = vmul.u32 %v726, 14564
      %v731 = vmul.u32 %v726, 58254
      %v732 = vshll.u32 %v729, 16
      %v733 = vshrl.u32 %v729, 16
      %v734 = vshll.u32 %v730, 16
      %v735 = vshrl.u32 %v730, 16
      %vm736 = vc.u32 %v728, %v732
      %v737 = vsel %vm736, 1, 0
      %v738 = vadd.s32 %v728, %v732
      %v739 = vadd.s32 %v731, %v737
      %vm740 = vc.u32 %v738, %v734
      %v741 = vsel %vm740, 1, 0
      %v742 = vadd.s32 %v738, %v734
      %v743 = vadd.s32 %v739, %v741
      %v744 = vadd.s32 %v743, %v733
      %v745 = vadd.s32 %v744, %v735
      %v746 = vshrl.u32 %v745, 4
      %v747 = vmul.u32 %v746, 18
      %v748 = vsub.s32 %v724, %v747
      %v749 = vsub.s32 0, %v748
      %v750 = vsel %vm722, %v749, %v748
      %vm751 = vcmp.lt.s32.totalorder %v323, 0
      %v752 = vsub.s32 0, %v323
      %v753 = vsel %vm751, %v752, %v323
      %v754 = vand.u32 %v753, 65535
      %v755 = vshrl.u32 %v753, 16
      %v757 = vmul.u32 %v754, 14564
      %v758 = vmul.u32 %v754, 58254
      %v759 = vmul.u32 %v755, 14564
      %v760 = vmul.u32 %v755, 58254
      %v761 = vshll.u32 %v758, 16
      %v762 = vshrl.u32 %v758, 16
      %v763 = vshll.u32 %v759, 16
      %v764 = vshrl.u32 %v759, 16
      %vm765 = vc.u32 %v757, %v761
      %v766 = vsel %vm765, 1, 0
      %v767 = vadd.s32 %v757, %v761
      %v768 = vadd.s32 %v760, %v766
      %vm769 = vc.u32 %v767, %v763
      %v770 = vsel %vm769, 1, 0
      %v771 = vadd.s32 %v767, %v763
      %v772 = vadd.s32 %v768, %v770
      %v773 = vadd.s32 %v772, %v762
      %v774 = vadd.s32 %v773, %v764
      %v775 = vshrl.u32 %v774, 4
      %v776 = vmul.u32 %v775, 18
      %v777 = vsub.s32 %v753, %v776
      %v778 = vsub.s32 0, %v777
      %v779 = vsel %vm751, %v778, %v777
      %vm780 = vcmp.lt.s32.totalorder %v324, 0
      %v781 = vsub.s32 0, %v324
      %v782 = vsel %vm780, %v781, %v324
      %v783 = vand.u32 %v782, 65535
      %v784 = vshrl.u32 %v782, 16
      %v786 = vmul.u32 %v783, 14564
      %v787 = vmul.u32 %v783, 58254
      %v788 = vmul.u32 %v784, 14564
      %v789 = vmul.u32 %v784, 58254
      %v790 = vshll.u32 %v787, 16
      %v791 = vshrl.u32 %v787, 16
      %v792 = vshll.u32 %v788, 16
      %v793 = vshrl.u32 %v788, 16
      %vm794 = vc.u32 %v786, %v790
      %v795 = vsel %vm794, 1, 0
      %v796 = vadd.s32 %v786, %v790
      %v797 = vadd.s32 %v789, %v795
      %vm798 = vc.u32 %v796, %v792
      %v799 = vsel %vm798, 1, 0
      %v800 = vadd.s32 %v796, %v792
      %v801 = vadd.s32 %v797, %v799
      %v802 = vadd.s32 %v801, %v791
      %v803 = vadd.s32 %v802, %v793
      %v804 = vshrl.u32 %v803, 4
      %v805 = vmul.u32 %v804, 18
      %v806 = vsub.s32 %v782, %v805
      %v807 = vsub.s32 0, %v806
      %v808 = vsel %vm780, %v807, %v806
      %vm809 = vcmp.lt.s32.totalorder %v325, 0
      %v810 = vsub.s32 0, %v325
      %v811 = vsel %vm809, %v810, %v325
      %v812 = vand.u32 %v811, 65535
      %v813 = vshrl.u32 %v811, 16
      %v815 = vmul.u32 %v812, 14564
      %v816 = vmul.u32 %v812, 58254
      %v817 = vmul.u32 %v813, 14564
      %v818 = vmul.u32 %v813, 58254
      %v819 = vshll.u32 %v816, 16
      %v820 = vshrl.u32 %v816, 16
      %v821 = vshll.u32 %v817, 16
      %v822 = vshrl.u32 %v817, 16
      %vm823 = vc.u32 %v815, %v819
      %v824 = vsel %vm823, 1, 0
      %v825 = vadd.s32 %v815, %v819
      %v826 = vadd.s32 %v818, %v824
      %vm827 = vc.u32 %v825, %v821
      %v828 = vsel %vm827, 1, 0
      %v829 = vadd.s32 %v825, %v821
      %v830 = vadd.s32 %v826, %v828
      %v831 = vadd.s32 %v830, %v820
      %v832 = vadd.s32 %v831, %v822
      %v833 = vshrl.u32 %v832, 4
      %v834 = vmul.u32 %v833, 18
      %v835 = vsub.s32 %v811, %v834
      %v836 = vsub.s32 0, %v835
      %v837 = vsel %vm809, %v836, %v835
      %vm838 = vcmp.lt.s32.totalorder %v326, 0
      %v839 = vsub.s32 0, %v326
      %v840 = vsel %vm838, %v839, %v326
      %v841 = vand.u32 %v840, 65535
      %v842 = vshrl.u32 %v840, 16
      %v844 = vmul.u32 %v841, 14564
      %v845 = vmul.u32 %v841, 58254
      %v846 = vmul.u32 %v842, 14564
      %v847 = vmul.u32 %v842, 58254
      %v848 = vshll.u32 %v845, 16
      %v849 = vshrl.u32 %v845, 16
      %v850 = vshll.u32 %v846, 16
      %v851 = vshrl.u32 %v846, 16
      %vm852 = vc.u32 %v844, %v848
      %v853 = vsel %vm852, 1, 0
      %v854 = vadd.s32 %v844, %v848
      %v855 = vadd.s32 %v847, %v853
      %vm856 = vc.u32 %v854, %v850
      %v857 = vsel %vm856, 1, 0
      %v858 = vadd.s32 %v854, %v850
      %v859 = vadd.s32 %v855, %v857
      %v860 = vadd.s32 %v859, %v849
      %v861 = vadd.s32 %v860, %v851
      %v862 = vshrl.u32 %v861, 4
      %v863 = vmul.u32 %v862, 18
      %v864 = vsub.s32 %v840, %v863
      %v865 = vsub.s32 0, %v864
      %v866 = vsel %vm838, %v865, %v864
      %vm867 = vcmp.lt.s32.totalorder %v327, 0
      %v868 = vsub.s32 0, %v327
      %v869 = vsel %vm867, %v868, %v327
      %v870 = vand.u32 %v869, 65535
      %v871 = vshrl.u32 %v869, 16
      %v873 = vmul.u32 %v870, 14564
      %v874 = vmul.u32 %v870, 58254
      %v875 = vmul.u32 %v871, 14564
      %v876 = vmul.u32 %v871, 58254
      %v877 = vshll.u32 %v874, 16
      %v878 = vshrl.u32 %v874, 16
      %v879 = vshll.u32 %v875, 16
      %v880 = vshrl.u32 %v875, 16
      %vm881 = vc.u32 %v873, %v877
      %v882 = vsel %vm881, 1, 0
      %v883 = vadd.s32 %v873, %v877
      %v884 = vadd.s32 %v876, %v882
      %vm885 = vc.u32 %v883, %v879
      %v886 = vsel %vm885, 1, 0
      %v887 = vadd.s32 %v883, %v879
      %v888 = vadd.s32 %v884, %v886
      %v889 = vadd.s32 %v888, %v878
      %v890 = vadd.s32 %v889, %v880
      %v891 = vshrl.u32 %v890, 4
      %v892 = vmul.u32 %v891, 18
      %v893 = vsub.s32 %v869, %v892
      %v894 = vsub.s32 0, %v893
      %v895 = vsel %vm867, %v894, %v893
      %vm896 = vcmp.lt.s32.totalorder %v328, 0
      %v897 = vsub.s32 0, %v328
      %v898 = vsel %vm896, %v897, %v328
      %v899 = vand.u32 %v898, 65535
      %v900 = vshrl.u32 %v898, 16
      %v902 = vmul.u32 %v899, 14564
      %v903 = vmul.u32 %v899, 58254
      %v904 = vmul.u32 %v900, 14564
      %v905 = vmul.u32 %v900, 58254
      %v906 = vshll.u32 %v903, 16
      %v907 = vshrl.u32 %v903, 16
      %v908 = vshll.u32 %v904, 16
      %v909 = vshrl.u32 %v904, 16
      %vm910 = vc.u32 %v902, %v906
      %v911 = vsel %vm910, 1, 0
      %v912 = vadd.s32 %v902, %v906
      %v913 = vadd.s32 %v905, %v911
      %vm914 = vc.u32 %v912, %v908
      %v915 = vsel %vm914, 1, 0
      %v916 = vadd.s32 %v912, %v908
      %v917 = vadd.s32 %v913, %v915
      %v918 = vadd.s32 %v917, %v907
      %v919 = vadd.s32 %v918, %v909
      %v920 = vshrl.u32 %v919, 4
      %v921 = vmul.u32 %v920, 18
      %v922 = vsub.s32 %v898, %v921
      %v923 = vsub.s32 0, %v922
      %v924 = vsel %vm896, %v923, %v922
      %vm925 = vcmp.lt.s32.totalorder %v329, 0
      %v926 = vsub.s32 0, %v329
      %v927 = vsel %vm925, %v926, %v329
      %v928 = vand.u32 %v927, 65535
      %v929 = vshrl.u32 %v927, 16
      %v931 = vmul.u32 %v928, 14564
      %v932 = vmul.u32 %v928, 58254
      %v933 = vmul.u32 %v929, 14564
      %v934 = vmul.u32 %v929, 58254
      %v935 = vshll.u32 %v932, 16
      %v936 = vshrl.u32 %v932, 16
      %v937 = vshll.u32 %v933, 16
      %v938 = vshrl.u32 %v933, 16
      %vm939 = vc.u32 %v931, %v935
      %v940 = vsel %vm939, 1, 0
      %v941 = vadd.s32 %v931, %v935
      %v942 = vadd.s32 %v934, %v940
      %vm943 = vc.u32 %v941, %v937
      %v944 = vsel %vm943, 1, 0
      %v945 = vadd.s32 %v941, %v937
      %v946 = vadd.s32 %v942, %v944
      %v947 = vadd.s32 %v946, %v936
      %v948 = vadd.s32 %v947, %v938
      %v949 = vshrl.u32 %v948, 4
      %v950 = vmul.u32 %v949, 18
      %v951 = vsub.s32 %v927, %v950
      %v952 = vsub.s32 0, %v951
      %v953 = vsel %vm925, %v952, %v951
      %vm954 = vcmp.lt.s32.totalorder %v330, 0
      %v955 = vsub.s32 0, %v330
      %v956 = vsel %vm954, %v955, %v330
      %v957 = vand.u32 %v956, 65535
      %v958 = vshrl.u32 %v956, 16
      %v960 = vmul.u32 %v957, 14564
      %v961 = vmul.u32 %v957, 58254
      %v962 = vmul.u32 %v958, 14564
      %v963 = vmul.u32 %v958, 58254
      %v964 = vshll.u32 %v961, 16
      %v965 = vshrl.u32 %v961, 16
      %v966 = vshll.u32 %v962, 16
      %v967 = vshrl.u32 %v962, 16
      %vm968 = vc.u32 %v960, %v964
      %v969 = vsel %vm968, 1, 0
      %v970 = vadd.s32 %v960, %v964
      %v971 = vadd.s32 %v963, %v969
      %vm972 = vc.u32 %v970, %v966
      %v973 = vsel %vm972, 1, 0
      %v974 = vadd.s32 %v970, %v966
      %v975 = vadd.s32 %v971, %v973
      %v976 = vadd.s32 %v975, %v965
      %v977 = vadd.s32 %v976, %v967
      %v978 = vshrl.u32 %v977, 4
      %v979 = vmul.u32 %v978, 18
      %v980 = vsub.s32 %v956, %v979
      %v981 = vsub.s32 0, %v980
      %v982 = vsel %vm954, %v981, %v980
      %vm983 = vcmp.lt.s32.totalorder %v331, 0
      %v984 = vsub.s32 0, %v331
      %v985 = vsel %vm983, %v984, %v331
      %v986 = vand.u32 %v985, 65535
      %v987 = vshrl.u32 %v985, 16
      %v989 = vmul.u32 %v986, 14564
      %v990 = vmul.u32 %v986, 58254
      %v991 = vmul.u32 %v987, 14564
      %v992 = vmul.u32 %v987, 58254
      %v993 = vshll.u32 %v990, 16
      %v994 = vshrl.u32 %v990, 16
      %v995 = vshll.u32 %v991, 16
      %v996 = vshrl.u32 %v991, 16
      %vm997 = vc.u32 %v989, %v993
      %v998 = vsel %vm997, 1, 0
      %v999 = vadd.s32 %v989, %v993
      %v1000 = vadd.s32 %v992, %v998
      %vm1001 = vc.u32 %v999, %v995
      %v1002 = vsel %vm1001, 1, 0
      %v1003 = vadd.s32 %v999, %v995
      %v1004 = vadd.s32 %v1000, %v1002
      %v1005 = vadd.s32 %v1004, %v994
      %v1006 = vadd.s32 %v1005, %v996
      %v1007 = vshrl.u32 %v1006, 4
      %v1008 = vmul.u32 %v1007, 18
      %v1009 = vsub.s32 %v985, %v1008
      %v1010 = vsub.s32 0, %v1009
      %v1011 = vsel %vm983, %v1010, %v1009
      %vm1012 = vcmp.lt.s32.totalorder %v332, 0
      %v1013 = vsub.s32 0, %v332
      %v1014 = vsel %vm1012, %v1013, %v332
      %v1015 = vand.u32 %v1014, 65535
      %v1016 = vshrl.u32 %v1014, 16
      %v1018 = vmul.u32 %v1015, 14564
      %v1019 = vmul.u32 %v1015, 58254
      %v1020 = vmul.u32 %v1016, 14564
      %v1021 = vmul.u32 %v1016, 58254
      %v1022 = vshll.u32 %v1019, 16
      %v1023 = vshrl.u32 %v1019, 16
      %v1024 = vshll.u32 %v1020, 16
      %v1025 = vshrl.u32 %v1020, 16
      %vm1026 = vc.u32 %v1018, %v1022
      %v1027 = vsel %vm1026, 1, 0
      %v1028 = vadd.s32 %v1018, %v1022
      %v1029 = vadd.s32 %v1021, %v1027
      %vm1030 = vc.u32 %v1028, %v1024
      %v1031 = vsel %vm1030, 1, 0
      %v1032 = vadd.s32 %v1028, %v1024
      %v1033 = vadd.s32 %v1029, %v1031
      %v1034 = vadd.s32 %v1033, %v1023
      %v1035 = vadd.s32 %v1034, %v1025
      %v1036 = vshrl.u32 %v1035, 4
      %v1037 = vmul.u32 %v1036, 18
      %v1038 = vsub.s32 %v1014, %v1037
      %v1039 = vsub.s32 0, %v1038
      %v1040 = vsel %vm1012, %v1039, %v1038
      %vm1041 = vcmp.lt.s32.totalorder %v333, 0
      %v1042 = vsub.s32 0, %v333
      %v1043 = vsel %vm1041, %v1042, %v333
      %v1044 = vand.u32 %v1043, 65535
      %v1045 = vshrl.u32 %v1043, 16
      %v1047 = vmul.u32 %v1044, 14564
      %v1048 = vmul.u32 %v1044, 58254
      %v1049 = vmul.u32 %v1045, 14564
      %v1050 = vmul.u32 %v1045, 58254
      %v1051 = vshll.u32 %v1048, 16
      %v1052 = vshrl.u32 %v1048, 16
      %v1053 = vshll.u32 %v1049, 16
      %v1054 = vshrl.u32 %v1049, 16
      %vm1055 = vc.u32 %v1047, %v1051
      %v1056 = vsel %vm1055, 1, 0
      %v1057 = vadd.s32 %v1047, %v1051
      %v1058 = vadd.s32 %v1050, %v1056
      %vm1059 = vc.u32 %v1057, %v1053
      %v1060 = vsel %vm1059, 1, 0
      %v1061 = vadd.s32 %v1057, %v1053
      %v1062 = vadd.s32 %v1058, %v1060
      %v1063 = vadd.s32 %v1062, %v1052
      %v1064 = vadd.s32 %v1063, %v1054
      %v1065 = vshrl.u32 %v1064, 4
      %v1066 = vmul.u32 %v1065, 18
      %v1067 = vsub.s32 %v1043, %v1066
      %v1068 = vsub.s32 0, %v1067
      %v1069 = vsel %vm1041, %v1068, %v1067
      %vm1070 = vcmp.lt.s32.totalorder %v334, 0
      %v1071 = vsub.s32 0, %v334
      %v1072 = vsel %vm1070, %v1071, %v334
      %v1073 = vand.u32 %v1072, 65535
      %v1074 = vshrl.u32 %v1072, 16
      %v1076 = vmul.u32 %v1073, 14564
      %v1077 = vmul.u32 %v1073, 58254
      %v1078 = vmul.u32 %v1074, 14564
      %v1079 = vmul.u32 %v1074, 58254
      %v1080 = vshll.u32 %v1077, 16
      %v1081 = vshrl.u32 %v1077, 16
      %v1082 = vshll.u32 %v1078, 16
      %v1083 = vshrl.u32 %v1078, 16
      %vm1084 = vc.u32 %v1076, %v1080
      %v1085 = vsel %vm1084, 1, 0
      %v1086 = vadd.s32 %v1076, %v1080
      %v1087 = vadd.s32 %v1079, %v1085
      %vm1088 = vc.u32 %v1086, %v1082
      %v1089 = vsel %vm1088, 1, 0
      %v1090 = vadd.s32 %v1086, %v1082
      %v1091 = vadd.s32 %v1087, %v1089
      %v1092 = vadd.s32 %v1091, %v1081
      %v1093 = vadd.s32 %v1092, %v1083
      %v1094 = vshrl.u32 %v1093, 4
      %v1095 = vmul.u32 %v1094, 18
      %v1096 = vsub.s32 %v1072, %v1095
      %v1097 = vsub.s32 0, %v1096
      %v1098 = vsel %vm1070, %v1097, %v1096
      %vm1099 = vcmp.lt.s32.totalorder %v335, 0
      %v1100 = vsub.s32 0, %v335
      %v1101 = vsel %vm1099, %v1100, %v335
      %v1102 = vand.u32 %v1101, 65535
      %v1103 = vshrl.u32 %v1101, 16
      %v1105 = vmul.u32 %v1102, 14564
      %v1106 = vmul.u32 %v1102, 58254
      %v1107 = vmul.u32 %v1103, 14564
      %v1108 = vmul.u32 %v1103, 58254
      %v1109 = vshll.u32 %v1106, 16
      %v1110 = vshrl.u32 %v1106, 16
      %v1111 = vshll.u32 %v1107, 16
      %v1112 = vshrl.u32 %v1107, 16
      %vm1113 = vc.u32 %v1105, %v1109
      %v1114 = vsel %vm1113, 1, 0
      %v1115 = vadd.s32 %v1105, %v1109
      %v1116 = vadd.s32 %v1108, %v1114
      %vm1117 = vc.u32 %v1115, %v1111
      %v1118 = vsel %vm1117, 1, 0
      %v1119 = vadd.s32 %v1115, %v1111
      %v1120 = vadd.s32 %v1116, %v1118
      %v1121 = vadd.s32 %v1120, %v1110
      %v1122 = vadd.s32 %v1121, %v1112
      %v1123 = vshrl.u32 %v1122, 4
      %v1124 = vmul.u32 %v1123, 18
      %v1125 = vsub.s32 %v1101, %v1124
      %v1126 = vsub.s32 0, %v1125
      %v1127 = vsel %vm1099, %v1126, %v1125
      %vm1128 = vcmp.lt.s32.totalorder %v336, 0
      %v1129 = vsub.s32 0, %v336
      %v1130 = vsel %vm1128, %v1129, %v336
      %v1131 = vand.u32 %v1130, 65535
      %v1132 = vshrl.u32 %v1130, 16
      %v1134 = vmul.u32 %v1131, 14564
      %v1135 = vmul.u32 %v1131, 58254
      %v1136 = vmul.u32 %v1132, 14564
      %v1137 = vmul.u32 %v1132, 58254
      %v1138 = vshll.u32 %v1135, 16
      %v1139 = vshrl.u32 %v1135, 16
      %v1140 = vshll.u32 %v1136, 16
      %v1141 = vshrl.u32 %v1136, 16
      %vm1142 = vc.u32 %v1134, %v1138
      %v1143 = vsel %vm1142, 1, 0
      %v1144 = vadd.s32 %v1134, %v1138
      %v1145 = vadd.s32 %v1137, %v1143
      %vm1146 = vc.u32 %v1144, %v1140
      %v1147 = vsel %vm1146, 1, 0
      %v1148 = vadd.s32 %v1144, %v1140
      %v1149 = vadd.s32 %v1145, %v1147
      %v1150 = vadd.s32 %v1149, %v1139
      %v1151 = vadd.s32 %v1150, %v1141
      %v1152 = vshrl.u32 %v1151, 4
      %v1153 = vmul.u32 %v1152, 18
      %v1154 = vsub.s32 %v1130, %v1153
      %v1155 = vsub.s32 0, %v1154
      %v1156 = vsel %vm1128, %v1155, %v1154
      %vm1157 = vcmp.lt.s32.totalorder %v337, 0
      %v1158 = vsub.s32 0, %v337
      %v1159 = vsel %vm1157, %v1158, %v337
      %v1160 = vand.u32 %v1159, 65535
      %v1161 = vshrl.u32 %v1159, 16
      %v1163 = vmul.u32 %v1160, 14564
      %v1164 = vmul.u32 %v1160, 58254
      %v1165 = vmul.u32 %v1161, 14564
      %v1166 = vmul.u32 %v1161, 58254
      %v1167 = vshll.u32 %v1164, 16
      %v1168 = vshrl.u32 %v1164, 16
      %v1169 = vshll.u32 %v1165, 16
      %v1170 = vshrl.u32 %v1165, 16
      %vm1171 = vc.u32 %v1163, %v1167
      %v1172 = vsel %vm1171, 1, 0
      %v1173 = vadd.s32 %v1163, %v1167
      %v1174 = vadd.s32 %v1166, %v1172
      %vm1175 = vc.u32 %v1173, %v1169
      %v1176 = vsel %vm1175, 1, 0
      %v1177 = vadd.s32 %v1173, %v1169
      %v1178 = vadd.s32 %v1174, %v1176
      %v1179 = vadd.s32 %v1178, %v1168
      %v1180 = vadd.s32 %v1179, %v1170
      %v1181 = vshrl.u32 %v1180, 4
      %v1182 = vmul.u32 %v1181, 18
      %v1183 = vsub.s32 %v1159, %v1182
      %v1184 = vsub.s32 0, %v1183
      %v1185 = vsel %vm1157, %v1184, %v1183
      %vm1186 = vcmp.lt.s32.totalorder %v338, 0
      %v1187 = vsub.s32 0, %v338
      %v1188 = vsel %vm1186, %v1187, %v338
      %v1189 = vand.u32 %v1188, 65535
      %v1190 = vshrl.u32 %v1188, 16
      %v1192 = vmul.u32 %v1189, 14564
      %v1193 = vmul.u32 %v1189, 58254
      %v1194 = vmul.u32 %v1190, 14564
      %v1195 = vmul.u32 %v1190, 58254
      %v1196 = vshll.u32 %v1193, 16
      %v1197 = vshrl.u32 %v1193, 16
      %v1198 = vshll.u32 %v1194, 16
      %v1199 = vshrl.u32 %v1194, 16
      %vm1200 = vc.u32 %v1192, %v1196
      %v1201 = vsel %vm1200, 1, 0
      %v1202 = vadd.s32 %v1192, %v1196
      %v1203 = vadd.s32 %v1195, %v1201
      %vm1204 = vc.u32 %v1202, %v1198
      %v1205 = vsel %vm1204, 1, 0
      %v1206 = vadd.s32 %v1202, %v1198
      %v1207 = vadd.s32 %v1203, %v1205
      %v1208 = vadd.s32 %v1207, %v1197
      %v1209 = vadd.s32 %v1208, %v1199
      %v1210 = vshrl.u32 %v1209, 4
      %v1211 = vmul.u32 %v1210, 18
      %v1212 = vsub.s32 %v1188, %v1211
      %v1213 = vsub.s32 0, %v1212
      %v1214 = vsel %vm1186, %v1213, %v1212
      %vm1215 = vcmp.lt.s32.totalorder %v339, 0
      %v1216 = vsub.s32 0, %v339
      %v1217 = vsel %vm1215, %v1216, %v339
      %v1218 = vand.u32 %v1217, 65535
      %v1219 = vshrl.u32 %v1217, 16
      %v1221 = vmul.u32 %v1218, 14564
      %v1222 = vmul.u32 %v1218, 58254
      %v1223 = vmul.u32 %v1219, 14564
      %v1224 = vmul.u32 %v1219, 58254
      %v1225 = vshll.u32 %v1222, 16
      %v1226 = vshrl.u32 %v1222, 16
      %v1227 = vshll.u32 %v1223, 16
      %v1228 = vshrl.u32 %v1223, 16
      %vm1229 = vc.u32 %v1221, %v1225
      %v1230 = vsel %vm1229, 1, 0
      %v1231 = vadd.s32 %v1221, %v1225
      %v1232 = vadd.s32 %v1224, %v1230
      %vm1233 = vc.u32 %v1231, %v1227
      %v1234 = vsel %vm1233, 1, 0
      %v1235 = vadd.s32 %v1231, %v1227
      %v1236 = vadd.s32 %v1232, %v1234
      %v1237 = vadd.s32 %v1236, %v1226
      %v1238 = vadd.s32 %v1237, %v1228
      %v1239 = vshrl.u32 %v1238, 4
      %v1240 = vmul.u32 %v1239, 18
      %v1241 = vsub.s32 %v1217, %v1240
      %v1242 = vsub.s32 0, %v1241
      %v1243 = vsel %vm1215, %v1242, %v1241
      %vm1244 = vcmp.lt.s32.totalorder %v340, 0
      %v1245 = vsub.s32 0, %v340
      %v1246 = vsel %vm1244, %v1245, %v340
      %v1247 = vand.u32 %v1246, 65535
      %v1248 = vshrl.u32 %v1246, 16
      %v1250 = vmul.u32 %v1247, 14564
      %v1251 = vmul.u32 %v1247, 58254
      %v1252 = vmul.u32 %v1248, 14564
      %v1253 = vmul.u32 %v1248, 58254
      %v1254 = vshll.u32 %v1251, 16
      %v1255 = vshrl.u32 %v1251, 16
      %v1256 = vshll.u32 %v1252, 16
      %v1257 = vshrl.u32 %v1252, 16
      %vm1258 = vc.u32 %v1250, %v1254
      %v1259 = vsel %vm1258, 1, 0
      %v1260 = vadd.s32 %v1250, %v1254
      %v1261 = vadd.s32 %v1253, %v1259
      %vm1262 = vc.u32 %v1260, %v1256
      %v1263 = vsel %vm1262, 1, 0
      %v1264 = vadd.s32 %v1260, %v1256
      %v1265 = vadd.s32 %v1261, %v1263
      %v1266 = vadd.s32 %v1265, %v1255
      %v1267 = vadd.s32 %v1266, %v1257
      %v1268 = vshrl.u32 %v1267, 4
      %v1269 = vmul.u32 %v1268, 18
      %v1270 = vsub.s32 %v1246, %v1269
      %v1271 = vsub.s32 0, %v1270
      %v1272 = vsel %vm1244, %v1271, %v1270
      %vm1273 = vcmp.lt.s32.totalorder %v341, 0
      %v1274 = vsub.s32 0, %v341
      %v1275 = vsel %vm1273, %v1274, %v341
      %v1276 = vand.u32 %v1275, 65535
      %v1277 = vshrl.u32 %v1275, 16
      %v1279 = vmul.u32 %v1276, 14564
      %v1280 = vmul.u32 %v1276, 58254
      %v1281 = vmul.u32 %v1277, 14564
      %v1282 = vmul.u32 %v1277, 58254
      %v1283 = vshll.u32 %v1280, 16
      %v1284 = vshrl.u32 %v1280, 16
      %v1285 = vshll.u32 %v1281, 16
      %v1286 = vshrl.u32 %v1281, 16
      %vm1287 = vc.u32 %v1279, %v1283
      %v1288 = vsel %vm1287, 1, 0
      %v1289 = vadd.s32 %v1279, %v1283
      %v1290 = vadd.s32 %v1282, %v1288
      %vm1291 = vc.u32 %v1289, %v1285
      %v1292 = vsel %vm1291, 1, 0
      %v1293 = vadd.s32 %v1289, %v1285
      %v1294 = vadd.s32 %v1290, %v1292
      %v1295 = vadd.s32 %v1294, %v1284
      %v1296 = vadd.s32 %v1295, %v1286
      %v1297 = vshrl.u32 %v1296, 4
      %v1298 = vmul.u32 %v1297, 18
      %v1299 = vsub.s32 %v1275, %v1298
      %v1300 = vsub.s32 0, %v1299
      %v1301 = vsel %vm1273, %v1300, %v1299
      %vm1302 = vcmp.lt.s32.totalorder %v342, 0
      %v1303 = vsub.s32 0, %v342
      %v1304 = vsel %vm1302, %v1303, %v342
      %v1305 = vand.u32 %v1304, 65535
      %v1306 = vshrl.u32 %v1304, 16
      %v1308 = vmul.u32 %v1305, 14564
      %v1309 = vmul.u32 %v1305, 58254
      %v1310 = vmul.u32 %v1306, 14564
      %v1311 = vmul.u32 %v1306, 58254
      %v1312 = vshll.u32 %v1309, 16
      %v1313 = vshrl.u32 %v1309, 16
      %v1314 = vshll.u32 %v1310, 16
      %v1315 = vshrl.u32 %v1310, 16
      %vm1316 = vc.u32 %v1308, %v1312
      %v1317 = vsel %vm1316, 1, 0
      %v1318 = vadd.s32 %v1308, %v1312
      %v1319 = vadd.s32 %v1311, %v1317
      %vm1320 = vc.u32 %v1318, %v1314
      %v1321 = vsel %vm1320, 1, 0
      %v1322 = vadd.s32 %v1318, %v1314
      %v1323 = vadd.s32 %v1319, %v1321
      %v1324 = vadd.s32 %v1323, %v1313
      %v1325 = vadd.s32 %v1324, %v1315
      %v1326 = vshrl.u32 %v1325, 4
      %v1327 = vmul.u32 %v1326, 18
      %v1328 = vsub.s32 %v1304, %v1327
      %v1329 = vsub.s32 0, %v1328
      %v1330 = vsel %vm1302, %v1329, %v1328
      %vm1331 = vcmp.lt.s32.totalorder %v343, 0
      %v1332 = vsub.s32 0, %v343
      %v1333 = vsel %vm1331, %v1332, %v343
      %v1334 = vand.u32 %v1333, 65535
      %v1335 = vshrl.u32 %v1333, 16
      %v1337 = vmul.u32 %v1334, 14564
      %v1338 = vmul.u32 %v1334, 58254
      %v1339 = vmul.u32 %v1335, 14564
      %v1340 = vmul.u32 %v1335, 58254
      %v1341 = vshll.u32 %v1338, 16
      %v1342 = vshrl.u32 %v1338, 16
      %v1343 = vshll.u32 %v1339, 16
      %v1344 = vshrl.u32 %v1339, 16
      %vm1345 = vc.u32 %v1337, %v1341
      %v1346 = vsel %vm1345, 1, 0
      %v1347 = vadd.s32 %v1337, %v1341
      %v1348 = vadd.s32 %v1340, %v1346
      %vm1349 = vc.u32 %v1347, %v1343
      %v1350 = vsel %vm1349, 1, 0
      %v1351 = vadd.s32 %v1347, %v1343
      %v1352 = vadd.s32 %v1348, %v1350
      %v1353 = vadd.s32 %v1352, %v1342
      %v1354 = vadd.s32 %v1353, %v1344
      %v1355 = vshrl.u32 %v1354, 4
      %v1356 = vmul.u32 %v1355, 18
      %v1357 = vsub.s32 %v1333, %v1356
      %v1358 = vsub.s32 0, %v1357
      %v1359 = vsel %vm1331, %v1358, %v1357
      %vm1360 = vcmp.lt.s32.totalorder %v344, 0
      %v1361 = vsub.s32 0, %v344
      %v1362 = vsel %vm1360, %v1361, %v344
      %v1363 = vand.u32 %v1362, 65535
      %v1364 = vshrl.u32 %v1362, 16
      %v1366 = vmul.u32 %v1363, 14564
      %v1367 = vmul.u32 %v1363, 58254
      %v1368 = vmul.u32 %v1364, 14564
      %v1369 = vmul.u32 %v1364, 58254
      %v1370 = vshll.u32 %v1367, 16
      %v1371 = vshrl.u32 %v1367, 16
      %v1372 = vshll.u32 %v1368, 16
      %v1373 = vshrl.u32 %v1368, 16
      %vm1374 = vc.u32 %v1366, %v1370
      %v1375 = vsel %vm1374, 1, 0
      %v1376 = vadd.s32 %v1366, %v1370
      %v1377 = vadd.s32 %v1369, %v1375
      %vm1378 = vc.u32 %v1376, %v1372
      %v1379 = vsel %vm1378, 1, 0
      %v1380 = vadd.s32 %v1376, %v1372
      %v1381 = vadd.s32 %v1377, %v1379
      %v1382 = vadd.s32 %v1381, %v1371
      %v1383 = vadd.s32 %v1382, %v1373
      %v1384 = vshrl.u32 %v1383, 4
      %v1385 = vmul.u32 %v1384, 18
      %v1386 = vsub.s32 %v1362, %v1385
      %v1387 = vsub.s32 0, %v1386
      %v1388 = vsel %vm1360, %v1387, %v1386
      %vm1389 = vcmp.ne.s32.totalorder %v373, 0
      %vm1390 = vcmp.ne.s32.totalorder %v402, 0
      %vm1391 = vcmp.ne.s32.totalorder %v431, 0
      %vm1392 = vcmp.ne.s32.totalorder %v460, 0
      %vm1393 = vcmp.ne.s32.totalorder %v489, 0
      %vm1394 = vcmp.ne.s32.totalorder %v518, 0
      %vm1395 = vcmp.ne.s32.totalorder %v547, 0
      %vm1396 = vcmp.ne.s32.totalorder %v576, 0
      %vm1397 = vcmp.ne.s32.totalorder %v605, 0
      %vm1398 = vcmp.ne.s32.totalorder %v634, 0
      %vm1399 = vcmp.ne.s32.totalorder %v663, 0
      %vm1400 = vcmp.ne.s32.totalorder %v692, 0
      %vm1401 = vcmp.ne.s32.totalorder %v721, 0
      %vm1402 = vcmp.ne.s32.totalorder %v750, 0
      %vm1403 = vcmp.ne.s32.totalorder %v779, 0
      %vm1404 = vcmp.ne.s32.totalorder %v808, 0
      %vm1405 = vcmp.ne.s32.totalorder %v837, 0
      %vm1406 = vcmp.ne.s32.totalorder %v866, 0
      %vm1407 = vcmp.ne.s32.totalorder %v895, 0
      %vm1408 = vcmp.ne.s32.totalorder %v924, 0
      %vm1409 = vcmp.ne.s32.totalorder %v953, 0
      %vm1410 = vcmp.ne.s32.totalorder %v982, 0
      %vm1411 = vcmp.ne.s32.totalorder %v1011, 0
      %vm1412 = vcmp.ne.s32.totalorder %v1040, 0
      %vm1413 = vcmp.ne.s32.totalorder %v1069, 0
      %vm1414 = vcmp.ne.s32.totalorder %v1098, 0
      %vm1415 = vcmp.ne.s32.totalorder %v1127, 0
      %vm1416 = vcmp.ne.s32.totalorder %v1156, 0
      %vm1417 = vcmp.ne.s32.totalorder %v1185, 0
      %vm1418 = vcmp.ne.s32.totalorder %v1214, 0
      %vm1419 = vcmp.ne.s32.totalorder %v1243, 0
      %vm1420 = vcmp.ne.s32.totalorder %v1272, 0
      %vm1421 = vcmp.ne.s32.totalorder %v1301, 0
      %vm1422 = vcmp.ne.s32.totalorder %v1330, 0
      %vm1423 = vcmp.ne.s32.totalorder %v1359, 0
      %vm1424 = vcmp.ne.s32.totalorder %v1388, 0
      %vm1425 = vcmp.lt.s32.totalorder %v373, 0
      %vm1426 = vcmp.lt.s32.totalorder %v402, 0
      %vm1427 = vcmp.lt.s32.totalorder %v431, 0
      %vm1428 = vcmp.lt.s32.totalorder %v460, 0
      %vm1429 = vcmp.lt.s32.totalorder %v489, 0
      %vm1430 = vcmp.lt.s32.totalorder %v518, 0
      %vm1431 = vcmp.lt.s32.totalorder %v547, 0
      %vm1432 = vcmp.lt.s32.totalorder %v576, 0
      %vm1433 = vcmp.lt.s32.totalorder %v605, 0
      %vm1434 = vcmp.lt.s32.totalorder %v634, 0
      %vm1435 = vcmp.lt.s32.totalorder %v663, 0
      %vm1436 = vcmp.lt.s32.totalorder %v692, 0
      %vm1437 = vcmp.lt.s32.totalorder %v721, 0
      %vm1438 = vcmp.lt.s32.totalorder %v750, 0
      %vm1439 = vcmp.lt.s32.totalorder %v779, 0
      %vm1440 = vcmp.lt.s32.totalorder %v808, 0
      %vm1441 = vcmp.lt.s32.totalorder %v837, 0
      %vm1442 = vcmp.lt.s32.totalorder %v866, 0
      %vm1443 = vcmp.lt.s32.totalorder %v895, 0
      %vm1444 = vcmp.lt.s32.totalorder %v924, 0
      %vm1445 = vcmp.lt.s32.totalorder %v953, 0
      %vm1446 = vcmp.lt.s32.totalorder %v982, 0
      %vm1447 = vcmp.lt.s32.totalorder %v1011, 0
      %vm1448 = vcmp.lt.s32.totalorder %v1040, 0
      %vm1449 = vcmp.lt.s32.totalorder %v1069, 0
      %vm1450 = vcmp.lt.s32.totalorder %v1098, 0
      %vm1451 = vcmp.lt.s32.totalorder %v1127, 0
      %vm1452 = vcmp.lt.s32.totalorder %v1156, 0
      %vm1453 = vcmp.lt.s32.totalorder %v1185, 0
      %vm1454 = vcmp.lt.s32.totalorder %v1214, 0
      %vm1455 = vcmp.lt.s32.totalorder %v1243, 0
      %vm1456 = vcmp.lt.s32.totalorder %v1272, 0
      %vm1457 = vcmp.lt.s32.totalorder %v1301, 0
      %vm1458 = vcmp.lt.s32.totalorder %v1330, 0
      %vm1459 = vcmp.lt.s32.totalorder %v1359, 0
      %vm1460 = vcmp.lt.s32.totalorder %v1388, 0
      %vm1461 = vmand %vm1425, %vm1389
      %vm1462 = vmand %vm1426, %vm1390
      %vm1463 = vmand %vm1427, %vm1391
      %vm1464 = vmand %vm1428, %vm1392
      %vm1465 = vmand %vm1429, %vm1393
      %vm1466 = vmand %vm1430, %vm1394
      %vm1467 = vmand %vm1431, %vm1395
      %vm1468 = vmand %vm1432, %vm1396
      %vm1469 = vmand %vm1433, %vm1397
      %vm1470 = vmand %vm1434, %vm1398
      %vm1471 = vmand %vm1435, %vm1399
      %vm1472 = vmand %vm1436, %vm1400
      %vm1473 = vmand %vm1437, %vm1401
      %vm1474 = vmand %vm1438, %vm1402
      %vm1475 = vmand %vm1439, %vm1403
      %vm1476 = vmand %vm1440, %vm1404
      %vm1477 = vmand %vm1441, %vm1405
      %vm1478 = vmand %vm1442, %vm1406
      %vm1479 = vmand %vm1443, %vm1407
      %vm1480 = vmand %vm1444, %vm1408
      %vm1481 = vmand %vm1445, %vm1409
      %vm1482 = vmand %vm1446, %vm1410
      %vm1483 = vmand %vm1447, %vm1411
      %vm1484 = vmand %vm1448, %vm1412
      %vm1485 = vmand %vm1449, %vm1413
      %vm1486 = vmand %vm1450, %vm1414
      %vm1487 = vmand %vm1451, %vm1415
      %vm1488 = vmand %vm1452, %vm1416
      %vm1489 = vmand %vm1453, %vm1417
      %vm1490 = vmand %vm1454, %vm1418
      %vm1491 = vmand %vm1455, %vm1419
      %vm1492 = vmand %vm1456, %vm1420
      %vm1493 = vmand %vm1457, %vm1421
      %vm1494 = vmand %vm1458, %vm1422
      %vm1495 = vmand %vm1459, %vm1423
      %vm1496 = vmand %vm1460, %vm1424
      %v1497 = vadd.s32 %v373, 18
      %v1498 = vadd.s32 %v402, 18
      %v1499 = vadd.s32 %v431, 18
      %v1500 = vadd.s32 %v460, 18
      %v1501 = vadd.s32 %v489, 18
      %v1502 = vadd.s32 %v518, 18
      %v1503 = vadd.s32 %v547, 18
      %v1504 = vadd.s32 %v576, 18
      %v1505 = vadd.s32 %v605, 18
      %v1506 = vadd.s32 %v634, 18
      %v1507 = vadd.s32 %v663, 18
      %v1508 = vadd.s32 %v692, 18
      %v1509 = vadd.s32 %v721, 18
      %v1510 = vadd.s32 %v750, 18
      %v1511 = vadd.s32 %v779, 18
      %v1512 = vadd.s32 %v808, 18
      %v1513 = vadd.s32 %v837, 18
      %v1514 = vadd.s32 %v866, 18
      %v1515 = vadd.s32 %v895, 18
      %v1516 = vadd.s32 %v924, 18
      %v1517 = vadd.s32 %v953, 18
      %v1518 = vadd.s32 %v982, 18
      %v1519 = vadd.s32 %v1011, 18
      %v1520 = vadd.s32 %v1040, 18
      %v1521 = vadd.s32 %v1069, 18
      %v1522 = vadd.s32 %v1098, 18
      %v1523 = vadd.s32 %v1127, 18
      %v1524 = vadd.s32 %v1156, 18
      %v1525 = vadd.s32 %v1185, 18
      %v1526 = vadd.s32 %v1214, 18
      %v1527 = vadd.s32 %v1243, 18
      %v1528 = vadd.s32 %v1272, 18
      %v1529 = vadd.s32 %v1301, 18
      %v1530 = vadd.s32 %v1330, 18
      %v1531 = vadd.s32 %v1359, 18
      %v1532 = vadd.s32 %v1388, 18
      %v1533 = vsel %vm1461, %v1497, %v373
      %v1534 = vsel %vm1462, %v1498, %v402
      %v1535 = vsel %vm1463, %v1499, %v431
      %v1536 = vsel %vm1464, %v1500, %v460
      %v1537 = vsel %vm1465, %v1501, %v489
      %v1538 = vsel %vm1466, %v1502, %v518
      %v1539 = vsel %vm1467, %v1503, %v547
      %v1540 = vsel %vm1468, %v1504, %v576
      %v1541 = vsel %vm1469, %v1505, %v605
      %v1542 = vsel %vm1470, %v1506, %v634
      %v1543 = vsel %vm1471, %v1507, %v663
      %v1544 = vsel %vm1472, %v1508, %v692
      %v1545 = vsel %vm1473, %v1509, %v721
      %v1546 = vsel %vm1474, %v1510, %v750
      %v1547 = vsel %vm1475, %v1511, %v779
      %v1548 = vsel %vm1476, %v1512, %v808
      %v1549 = vsel %vm1477, %v1513, %v837
      %v1550 = vsel %vm1478, %v1514, %v866
      %v1551 = vsel %vm1479, %v1515, %v895
      %v1552 = vsel %vm1480, %v1516, %v924
      %v1553 = vsel %vm1481, %v1517, %v953
      %v1554 = vsel %vm1482, %v1518, %v982
      %v1555 = vsel %vm1483, %v1519, %v1011
      %v1556 = vsel %vm1484, %v1520, %v1040
      %v1557 = vsel %vm1485, %v1521, %v1069
      %v1558 = vsel %vm1486, %v1522, %v1098
      %v1559 = vsel %vm1487, %v1523, %v1127
      %v1560 = vsel %vm1488, %v1524, %v1156
      %v1561 = vsel %vm1489, %v1525, %v1185
      %v1562 = vsel %vm1490, %v1526, %v1214
      %v1563 = vsel %vm1491, %v1527, %v1243
      %v1564 = vsel %vm1492, %v1528, %v1272
      %v1565 = vsel %vm1493, %v1529, %v1301
      %v1566 = vsel %vm1494, %v1530, %v1330
      %v1567 = vsel %vm1495, %v1531, %v1359
      %v1568 = vsel %vm1496, %v1532, %v1388
      %vm1569 = vcmp.lt.s32.totalorder %v1533, 16
      %vm1570 = vcmp.lt.s32.totalorder %v1534, 16
      %vm1571 = vcmp.lt.s32.totalorder %v1535, 16
      %vm1572 = vcmp.lt.s32.totalorder %v1536, 16
      %vm1573 = vcmp.lt.s32.totalorder %v1537, 16
      %vm1574 = vcmp.lt.s32.totalorder %v1538, 16
      %vm1575 = vcmp.lt.s32.totalorder %v1539, 16
      %vm1576 = vcmp.lt.s32.totalorder %v1540, 16
      %vm1577 = vcmp.lt.s32.totalorder %v1541, 16
      %vm1578 = vcmp.lt.s32.totalorder %v1542, 16
      %vm1579 = vcmp.lt.s32.totalorder %v1543, 16
      %vm1580 = vcmp.lt.s32.totalorder %v1544, 16
      %vm1581 = vcmp.lt.s32.totalorder %v1545, 16
      %vm1582 = vcmp.lt.s32.totalorder %v1546, 16
      %vm1583 = vcmp.lt.s32.totalorder %v1547, 16
      %vm1584 = vcmp.lt.s32.totalorder %v1548, 16
      %vm1585 = vcmp.lt.s32.totalorder %v1549, 16
      %vm1586 = vcmp.lt.s32.totalorder %v1550, 16
      %vm1587 = vcmp.lt.s32.totalorder %v1551, 16
      %vm1588 = vcmp.lt.s32.totalorder %v1552, 16
      %vm1589 = vcmp.lt.s32.totalorder %v1553, 16
      %vm1590 = vcmp.lt.s32.totalorder %v1554, 16
      %vm1591 = vcmp.lt.s32.totalorder %v1555, 16
      %vm1592 = vcmp.lt.s32.totalorder %v1556, 16
      %vm1593 = vcmp.lt.s32.totalorder %v1557, 16
      %vm1594 = vcmp.lt.s32.totalorder %v1558, 16
      %vm1595 = vcmp.lt.s32.totalorder %v1559, 16
      %vm1596 = vcmp.lt.s32.totalorder %v1560, 16
      %vm1597 = vcmp.lt.s32.totalorder %v1561, 16
      %vm1598 = vcmp.lt.s32.totalorder %v1562, 16
      %vm1599 = vcmp.lt.s32.totalorder %v1563, 16
      %vm1600 = vcmp.lt.s32.totalorder %v1564, 16
      %vm1601 = vcmp.lt.s32.totalorder %v1565, 16
      %vm1602 = vcmp.lt.s32.totalorder %v1566, 16
      %vm1603 = vcmp.lt.s32.totalorder %v1567, 16
      %vm1604 = vcmp.lt.s32.totalorder %v1568, 16
      %v1605 = vsel %vm1569, 1, 0
      %v1606 = vsel %vm1570, 1, 0
      %v1607 = vsel %vm1571, 1, 0
      %v1608 = vsel %vm1572, 1, 0
      %v1609 = vsel %vm1573, 1, 0
      %v1610 = vsel %vm1574, 1, 0
      %v1611 = vsel %vm1575, 1, 0
      %v1612 = vsel %vm1576, 1, 0
      %v1613 = vsel %vm1577, 1, 0
      %v1614 = vsel %vm1578, 1, 0
      %v1615 = vsel %vm1579, 1, 0
      %v1616 = vsel %vm1580, 1, 0
      %v1617 = vsel %vm1581, 1, 0
      %v1618 = vsel %vm1582, 1, 0
      %v1619 = vsel %vm1583, 1, 0
      %v1620 = vsel %vm1584, 1, 0
      %v1621 = vsel %vm1585, 1, 0
      %v1622 = vsel %vm1586, 1, 0
      %v1623 = vsel %vm1587, 1, 0
      %v1624 = vsel %vm1588, 1, 0
      %v1625 = vsel %vm1589, 1, 0
      %v1626 = vsel %vm1590, 1, 0
      %v1627 = vsel %vm1591, 1, 0
      %v1628 = vsel %vm1592, 1, 0
      %v1629 = vsel %vm1593, 1, 0
      %v1630 = vsel %vm1594, 1, 0
      %v1631 = vsel %vm1595, 1, 0
      %v1632 = vsel %vm1596, 1, 0
      %v1633 = vsel %vm1597, 1, 0
      %v1634 = vsel %vm1598, 1, 0
      %v1635 = vsel %vm1599, 1, 0
      %v1636 = vsel %vm1600, 1, 0
      %v1637 = vsel %vm1601, 1, 0
      %v1638 = vsel %vm1602, 1, 0
      %v1639 = vsel %vm1603, 1, 0
      %v1640 = vsel %vm1604, 1, 0
      %v1641 = vcvt.s32.f32 %v1605
      %v1642 = vcvt.s32.f32 %v1606
      %v1643 = vcvt.s32.f32 %v1607
      %v1644 = vcvt.s32.f32 %v1608
      %v1645 = vcvt.s32.f32 %v1609
      %v1646 = vcvt.s32.f32 %v1610
      %v1647 = vcvt.s32.f32 %v1611
      %v1648 = vcvt.s32.f32 %v1612
      %v1649 = vcvt.s32.f32 %v1613
      %v1650 = vcvt.s32.f32 %v1614
      %v1651 = vcvt.s32.f32 %v1615
      %v1652 = vcvt.s32.f32 %v1616
      %v1653 = vcvt.s32.f32 %v1617
      %v1654 = vcvt.s32.f32 %v1618
      %v1655 = vcvt.s32.f32 %v1619
      %v1656 = vcvt.s32.f32 %v1620
      %v1657 = vcvt.s32.f32 %v1621
      %v1658 = vcvt.s32.f32 %v1622
      %v1659 = vcvt.s32.f32 %v1623
      %v1660 = vcvt.s32.f32 %v1624
      %v1661 = vcvt.s32.f32 %v1625
      %v1662 = vcvt.s32.f32 %v1626
      %v1663 = vcvt.s32.f32 %v1627
      %v1664 = vcvt.s32.f32 %v1628
      %v1665 = vcvt.s32.f32 %v1629
      %v1666 = vcvt.s32.f32 %v1630
      %v1667 = vcvt.s32.f32 %v1631
      %v1668 = vcvt.s32.f32 %v1632
      %v1669 = vcvt.s32.f32 %v1633
      %v1670 = vcvt.s32.f32 %v1634
      %v1671 = vcvt.s32.f32 %v1635
      %v1672 = vcvt.s32.f32 %v1636
      %v1673 = vcvt.s32.f32 %v1637
      %v1674 = vcvt.s32.f32 %v1638
      %v1675 = vcvt.s32.f32 %v1639
      %v1676 = vcvt.s32.f32 %v1640
      %vm1714 = vcmask 1046528
      %v1715 = vrot.slane %v267, 1
      %v1716 = vrot.slane %v268, 1
      %v1717 = vsel %vm1714, %v1715, %v1716
      %v1718 = vrot.slane %v269, 1
      %v1719 = vsel %vm1714, %v1716, %v1718
      %v1720 = vrot.slane %v270, 1
      %v1721 = vsel %vm1714, %v1718, %v1720
      %v1722 = vrot.slane %v271, 1
      %v1723 = vsel %vm1714, %v1720, %v1722
      %v1724 = vrot.slane %v272, 1
      %v1725 = vsel %vm1714, %v1722, %v1724
      %v1726 = vrot.slane %v273, 1
      %v1727 = vsel %vm1714, %v1724, %v1726
      %v1728 = vrot.slane %v274, 1
      %v1729 = vsel %vm1714, %v1726, %v1728
      %v1730 = vrot.slane %v275, 1
      %v1731 = vsel %vm1714, %v1728, %v1730
      %v1732 = vrot.slane %v276, 1
      %v1733 = vsel %vm1714, %v1730, %v1732
      %v1734 = vrot.slane %v277, 1
      %v1735 = vsel %vm1714, %v1732, %v1734
      %v1736 = vrot.slane %v278, 1
      %v1737 = vsel %vm1714, %v1734, %v1736
      %v1738 = vrot.slane %v279, 1
      %v1739 = vsel %vm1714, %v1736, %v1738
      %v1740 = vrot.slane %v280, 1
      %v1741 = vsel %vm1714, %v1738, %v1740
      %v1742 = vrot.slane %v281, 1
      %v1743 = vsel %vm1714, %v1740, %v1742
      %v1744 = vrot.slane %v282, 1
      %v1745 = vsel %vm1714, %v1742, %v1744
      %v1746 = vrot.slane %v283, 1
      %v1747 = vsel %vm1714, %v1744, %v1746
      %v1748 = vrot.slane %v284, 1
      %v1749 = vsel %vm1714, %v1746, %v1748
      %v1750 = vrot.slane %v285, 1
      %v1751 = vsel %vm1714, %v1748, %v1750
      %v1752 = vrot.slane %v286, 1
      %v1753 = vsel %vm1714, %v1750, %v1752
      %v1754 = vrot.slane %v287, 1
      %v1755 = vsel %vm1714, %v1752, %v1754
      %v1756 = vrot.slane %v288, 1
      %v1757 = vsel %vm1714, %v1754, %v1756
      %v1758 = vrot.slane %v289, 1
      %v1759 = vsel %vm1714, %v1756, %v1758
      %v1760 = vrot.slane %v290, 1
      %v1761 = vsel %vm1714, %v1758, %v1760
      %v1762 = vrot.slane %v291, 1
      %v1763 = vsel %vm1714, %v1760, %v1762
      %v1764 = vrot.slane %v292, 1
      %v1765 = vsel %vm1714, %v1762, %v1764
      %v1766 = vrot.slane %v293, 1
      %v1767 = vsel %vm1714, %v1764, %v1766
      %v1768 = vrot.slane %v294, 1
      %v1769 = vsel %vm1714, %v1766, %v1768
      %v1770 = vrot.slane %v295, 1
      %v1771 = vsel %vm1714, %v1768, %v1770
      %v1772 = vrot.slane %v296, 1
      %v1773 = vsel %vm1714, %v1770, %v1772
      %v1774 = vrot.slane %v297, 1
      %v1775 = vsel %vm1714, %v1772, %v1774
      %v1776 = vrot.slane %v298, 1
      %v1777 = vsel %vm1714, %v1774, %v1776
      %v1778 = vrot.slane %v299, 1
      %v1779 = vsel %vm1714, %v1776, %v1778
      %v1780 = vrot.slane %v300, 1
      %v1781 = vsel %vm1714, %v1778, %v1780
      %v1782 = vrot.slane %v301, 1
      %v1783 = vsel %vm1714, %v1780, %v1782
      %v1784 = vrot.slane %v302, 1
      %v1785 = vsel %vm1714, %v1782, %v1784
      %v1786 = vrot.slane %v303, 1
      %v1787 = vsel %vm1714, %v1784, %v1786
      %1788 = vrot.lane.b32.xlu0 %v1717, 3
      %v1789 = vpop.permute.xlu0 %1788
      %1790 = vrot.lane.b32.xlu0 %v1719, 3
      %v1791 = vpop.permute.xlu0 %1790
      %1792 = vrot.lane.b32.xlu0 %v1721, 3
      %v1793 = vpop.permute.xlu0 %1792
      %1794 = vrot.lane.b32.xlu0 %v1723, 3
      %v1795 = vpop.permute.xlu0 %1794
      %1796 = vrot.lane.b32.xlu0 %v1725, 3
      %v1797 = vpop.permute.xlu0 %1796
      %1798 = vrot.lane.b32.xlu0 %v1727, 3
      %v1799 = vpop.permute.xlu0 %1798
      %1800 = vrot.lane.b32.xlu0 %v1729, 3
      %v1801 = vpop.permute.xlu0 %1800
      %1802 = vrot.lane.b32.xlu0 %v1731, 3
      %v1803 = vpop.permute.xlu0 %1802
      %1804 = vrot.lane.b32.xlu0 %v1733, 3
      %v1805 = vpop.permute.xlu0 %1804
      %1806 = vrot.lane.b32.xlu0 %v1735, 3
      %v1807 = vpop.permute.xlu0 %1806
      %1808 = vrot.lane.b32.xlu0 %v1737, 3
      %v1809 = vpop.permute.xlu0 %1808
      %1810 = vrot.lane.b32.xlu0 %v1739, 3
      %v1811 = vpop.permute.xlu0 %1810
      %1812 = vrot.lane.b32.xlu0 %v1741, 3
      %v1813 = vpop.permute.xlu0 %1812
      %1814 = vrot.lane.b32.xlu0 %v1743, 3
      %v1815 = vpop.permute.xlu0 %1814
      %1816 = vrot.lane.b32.xlu0 %v1745, 3
      %v1817 = vpop.permute.xlu0 %1816
      %1818 = vrot.lane.b32.xlu0 %v1747, 3
      %v1819 = vpop.permute.xlu0 %1818
      %1820 = vrot.lane.b32.xlu0 %v1749, 3
      %v1821 = vpop.permute.xlu0 %1820
      %1822 = vrot.lane.b32.xlu0 %v1751, 3
      %v1823 = vpop.permute.xlu0 %1822
      %1824 = vrot.lane.b32.xlu0 %v1753, 3
      %v1825 = vpop.permute.xlu0 %1824
      %1826 = vrot.lane.b32.xlu0 %v1755, 3
      %v1827 = vpop.permute.xlu0 %1826
      %1828 = vrot.lane.b32.xlu0 %v1757, 3
      %v1829 = vpop.permute.xlu0 %1828
      %1830 = vrot.lane.b32.xlu0 %v1759, 3
      %v1831 = vpop.permute.xlu0 %1830
      %1832 = vrot.lane.b32.xlu0 %v1761, 3
      %v1833 = vpop.permute.xlu0 %1832
      %1834 = vrot.lane.b32.xlu0 %v1763, 3
      %v1835 = vpop.permute.xlu0 %1834
      %1836 = vrot.lane.b32.xlu0 %v1765, 3
      %v1837 = vpop.permute.xlu0 %1836
      %1838 = vrot.lane.b32.xlu0 %v1767, 3
      %v1839 = vpop.permute.xlu0 %1838
      %1840 = vrot.lane.b32.xlu0 %v1769, 3
      %v1841 = vpop.permute.xlu0 %1840
      %1842 = vrot.lane.b32.xlu0 %v1771, 3
      %v1843 = vpop.permute.xlu0 %1842
      %1844 = vrot.lane.b32.xlu0 %v1773, 3
      %v1845 = vpop.permute.xlu0 %1844
      %1846 = vrot.lane.b32.xlu0 %v1775, 3
      %v1847 = vpop.permute.xlu0 %1846
      %1848 = vrot.lane.b32.xlu0 %v1777, 3
      %v1849 = vpop.permute.xlu0 %1848
      %1850 = vrot.lane.b32.xlu0 %v1779, 3
      %v1851 = vpop.permute.xlu0 %1850
      %1852 = vrot.lane.b32.xlu0 %v1781, 3
      %v1853 = vpop.permute.xlu0 %1852
      %1854 = vrot.lane.b32.xlu0 %v1783, 3
      %v1855 = vpop.permute.xlu0 %1854
      %1856 = vrot.lane.b32.xlu0 %v1785, 3
      %v1857 = vpop.permute.xlu0 %1856
      %1858 = vrot.lane.b32.xlu0 %v1787, 3
      %v1859 = vpop.permute.xlu0 %1858
      %vm1896 = vcmask 1045504
      %v1897 = vrot.slane %v267, 2
      %v1898 = vrot.slane %v268, 2
      %v1899 = vsel %vm1896, %v1897, %v1898
      %v1900 = vrot.slane %v269, 2
      %v1901 = vsel %vm1896, %v1898, %v1900
      %v1902 = vrot.slane %v270, 2
      %v1903 = vsel %vm1896, %v1900, %v1902
      %v1904 = vrot.slane %v271, 2
      %v1905 = vsel %vm1896, %v1902, %v1904
      %v1906 = vrot.slane %v272, 2
      %v1907 = vsel %vm1896, %v1904, %v1906
      %v1908 = vrot.slane %v273, 2
      %v1909 = vsel %vm1896, %v1906, %v1908
      %v1910 = vrot.slane %v274, 2
      %v1911 = vsel %vm1896, %v1908, %v1910
      %v1912 = vrot.slane %v275, 2
      %v1913 = vsel %vm1896, %v1910, %v1912
      %v1914 = vrot.slane %v276, 2
      %v1915 = vsel %vm1896, %v1912, %v1914
      %v1916 = vrot.slane %v277, 2
      %v1917 = vsel %vm1896, %v1914, %v1916
      %v1918 = vrot.slane %v278, 2
      %v1919 = vsel %vm1896, %v1916, %v1918
      %v1920 = vrot.slane %v279, 2
      %v1921 = vsel %vm1896, %v1918, %v1920
      %v1922 = vrot.slane %v280, 2
      %v1923 = vsel %vm1896, %v1920, %v1922
      %v1924 = vrot.slane %v281, 2
      %v1925 = vsel %vm1896, %v1922, %v1924
      %v1926 = vrot.slane %v282, 2
      %v1927 = vsel %vm1896, %v1924, %v1926
      %v1928 = vrot.slane %v283, 2
      %v1929 = vsel %vm1896, %v1926, %v1928
      %v1930 = vrot.slane %v284, 2
      %v1931 = vsel %vm1896, %v1928, %v1930
      %v1932 = vrot.slane %v285, 2
      %v1933 = vsel %vm1896, %v1930, %v1932
      %v1934 = vrot.slane %v286, 2
      %v1935 = vsel %vm1896, %v1932, %v1934
      %v1936 = vrot.slane %v287, 2
      %v1937 = vsel %vm1896, %v1934, %v1936
      %v1938 = vrot.slane %v288, 2
      %v1939 = vsel %vm1896, %v1936, %v1938
      %v1940 = vrot.slane %v289, 2
      %v1941 = vsel %vm1896, %v1938, %v1940
      %v1942 = vrot.slane %v290, 2
      %v1943 = vsel %vm1896, %v1940, %v1942
      %v1944 = vrot.slane %v291, 2
      %v1945 = vsel %vm1896, %v1942, %v1944
      %v1946 = vrot.slane %v292, 2
      %v1947 = vsel %vm1896, %v1944, %v1946
      %v1948 = vrot.slane %v293, 2
      %v1949 = vsel %vm1896, %v1946, %v1948
      %v1950 = vrot.slane %v294, 2
      %v1951 = vsel %vm1896, %v1948, %v1950
      %v1952 = vrot.slane %v295, 2
      %v1953 = vsel %vm1896, %v1950, %v1952
      %v1954 = vrot.slane %v296, 2
      %v1955 = vsel %vm1896, %v1952, %v1954
      %v1956 = vrot.slane %v297, 2
      %v1957 = vsel %vm1896, %v1954, %v1956
      %v1958 = vrot.slane %v298, 2
      %v1959 = vsel %vm1896, %v1956, %v1958
      %v1960 = vrot.slane %v299, 2
      %v1961 = vsel %vm1896, %v1958, %v1960
      %v1962 = vrot.slane %v300, 2
      %v1963 = vsel %vm1896, %v1960, %v1962
      %v1964 = vrot.slane %v301, 2
      %v1965 = vsel %vm1896, %v1962, %v1964
      %v1966 = vrot.slane %v302, 2
      %v1967 = vsel %vm1896, %v1964, %v1966
      %v1968 = vrot.slane %v303, 2
      %v1969 = vsel %vm1896, %v1966, %v1968
      %1970 = vrot.lane.b32.xlu0 %v1899, 6
      %v1971 = vpop.permute.xlu0 %1970
      %1972 = vrot.lane.b32.xlu0 %v1901, 6
      %v1973 = vpop.permute.xlu0 %1972
      %1974 = vrot.lane.b32.xlu0 %v1903, 6
      %v1975 = vpop.permute.xlu0 %1974
      %1976 = vrot.lane.b32.xlu0 %v1905, 6
      %v1977 = vpop.permute.xlu0 %1976
      %1978 = vrot.lane.b32.xlu0 %v1907, 6
      %v1979 = vpop.permute.xlu0 %1978
      %1980 = vrot.lane.b32.xlu0 %v1909, 6
      %v1981 = vpop.permute.xlu0 %1980
      %1982 = vrot.lane.b32.xlu0 %v1911, 6
      %v1983 = vpop.permute.xlu0 %1982
      %1984 = vrot.lane.b32.xlu0 %v1913, 6
      %v1985 = vpop.permute.xlu0 %1984
      %1986 = vrot.lane.b32.xlu0 %v1915, 6
      %v1987 = vpop.permute.xlu0 %1986
      %1988 = vrot.lane.b32.xlu0 %v1917, 6
      %v1989 = vpop.permute.xlu0 %1988
      %1990 = vrot.lane.b32.xlu0 %v1919, 6
      %v1991 = vpop.permute.xlu0 %1990
      %1992 = vrot.lane.b32.xlu0 %v1921, 6
      %v1993 = vpop.permute.xlu0 %1992
      %1994 = vrot.lane.b32.xlu0 %v1923, 6
      %v1995 = vpop.permute.xlu0 %1994
      %1996 = vrot.lane.b32.xlu0 %v1925, 6
      %v1997 = vpop.permute.xlu0 %1996
      %1998 = vrot.lane.b32.xlu0 %v1927, 6
      %v1999 = vpop.permute.xlu0 %1998
      %2000 = vrot.lane.b32.xlu0 %v1929, 6
      %v2001 = vpop.permute.xlu0 %2000
      %2002 = vrot.lane.b32.xlu0 %v1931, 6
      %v2003 = vpop.permute.xlu0 %2002
      %2004 = vrot.lane.b32.xlu0 %v1933, 6
      %v2005 = vpop.permute.xlu0 %2004
      %2006 = vrot.lane.b32.xlu0 %v1935, 6
      %v2007 = vpop.permute.xlu0 %2006
      %2008 = vrot.lane.b32.xlu0 %v1937, 6
      %v2009 = vpop.permute.xlu0 %2008
      %2010 = vrot.lane.b32.xlu0 %v1939, 6
      %v2011 = vpop.permute.xlu0 %2010
      %2012 = vrot.lane.b32.xlu0 %v1941, 6
      %v2013 = vpop.permute.xlu0 %2012
      %2014 = vrot.lane.b32.xlu0 %v1943, 6
      %v2015 = vpop.permute.xlu0 %2014
      %2016 = vrot.lane.b32.xlu0 %v1945, 6
      %v2017 = vpop.permute.xlu0 %2016
      %2018 = vrot.lane.b32.xlu0 %v1947, 6
      %v2019 = vpop.permute.xlu0 %2018
      %2020 = vrot.lane.b32.xlu0 %v1949, 6
      %v2021 = vpop.permute.xlu0 %2020
      %2022 = vrot.lane.b32.xlu0 %v1951, 6
      %v2023 = vpop.permute.xlu0 %2022
      %2024 = vrot.lane.b32.xlu0 %v1953, 6
      %v2025 = vpop.permute.xlu0 %2024
      %2026 = vrot.lane.b32.xlu0 %v1955, 6
      %v2027 = vpop.permute.xlu0 %2026
      %2028 = vrot.lane.b32.xlu0 %v1957, 6
      %v2029 = vpop.permute.xlu0 %2028
      %2030 = vrot.lane.b32.xlu0 %v1959, 6
      %v2031 = vpop.permute.xlu0 %2030
      %2032 = vrot.lane.b32.xlu0 %v1961, 6
      %v2033 = vpop.permute.xlu0 %2032
      %2034 = vrot.lane.b32.xlu0 %v1963, 6
      %v2035 = vpop.permute.xlu0 %2034
      %2036 = vrot.lane.b32.xlu0 %v1965, 6
      %v2037 = vpop.permute.xlu0 %2036
      %2038 = vrot.lane.b32.xlu0 %v1967, 6
      %v2039 = vpop.permute.xlu0 %2038
      %2040 = vrot.lane.b32.xlu0 %v1969, 6
      %v2041 = vpop.permute.xlu0 %2040
      %v2080 = vrot.slane %v304, 2
      %v2081 = vsel %vm1896, %v1968, %v2080
      %v2082 = vrot.slane %v305, 2
      %v2083 = vsel %vm1896, %v2080, %v2082
      %2084 = vrot.lane.b32.xlu0 %v1903, 9
      %v2085 = vpop.permute.xlu0 %2084
      %2086 = vrot.lane.b32.xlu0 %v1905, 9
      %v2087 = vpop.permute.xlu0 %2086
      %2088 = vrot.lane.b32.xlu0 %v1907, 9
      %v2089 = vpop.permute.xlu0 %2088
      %2090 = vrot.lane.b32.xlu0 %v1909, 9
      %v2091 = vpop.permute.xlu0 %2090
      %2092 = vrot.lane.b32.xlu0 %v1911, 9
      %v2093 = vpop.permute.xlu0 %2092
      %2094 = vrot.lane.b32.xlu0 %v1913, 9
      %v2095 = vpop.permute.xlu0 %2094
      %2096 = vrot.lane.b32.xlu0 %v1915, 9
      %v2097 = vpop.permute.xlu0 %2096
      %2098 = vrot.lane.b32.xlu0 %v1917, 9
      %v2099 = vpop.permute.xlu0 %2098
      %2100 = vrot.lane.b32.xlu0 %v1919, 9
      %v2101 = vpop.permute.xlu0 %2100
      %2102 = vrot.lane.b32.xlu0 %v1921, 9
      %v2103 = vpop.permute.xlu0 %2102
      %2104 = vrot.lane.b32.xlu0 %v1923, 9
      %v2105 = vpop.permute.xlu0 %2104
      %2106 = vrot.lane.b32.xlu0 %v1925, 9
      %v2107 = vpop.permute.xlu0 %2106
      %2108 = vrot.lane.b32.xlu0 %v1927, 9
      %v2109 = vpop.permute.xlu0 %2108
      %2110 = vrot.lane.b32.xlu0 %v1929, 9
      %v2111 = vpop.permute.xlu0 %2110
      %2112 = vrot.lane.b32.xlu0 %v1931, 9
      %v2113 = vpop.permute.xlu0 %2112
      %2114 = vrot.lane.b32.xlu0 %v1933, 9
      %v2115 = vpop.permute.xlu0 %2114
      %2116 = vrot.lane.b32.xlu0 %v1935, 9
      %v2117 = vpop.permute.xlu0 %2116
      %2118 = vrot.lane.b32.xlu0 %v1937, 9
      %v2119 = vpop.permute.xlu0 %2118
      %2120 = vrot.lane.b32.xlu0 %v1939, 9
      %v2121 = vpop.permute.xlu0 %2120
      %2122 = vrot.lane.b32.xlu0 %v1941, 9
      %v2123 = vpop.permute.xlu0 %2122
      %2124 = vrot.lane.b32.xlu0 %v1943, 9
      %v2125 = vpop.permute.xlu0 %2124
      %2126 = vrot.lane.b32.xlu0 %v1945, 9
      %v2127 = vpop.permute.xlu0 %2126
      %2128 = vrot.lane.b32.xlu0 %v1947, 9
      %v2129 = vpop.permute.xlu0 %2128
      %2130 = vrot.lane.b32.xlu0 %v1949, 9
      %v2131 = vpop.permute.xlu0 %2130
      %2132 = vrot.lane.b32.xlu0 %v1951, 9
      %v2133 = vpop.permute.xlu0 %2132
      %2134 = vrot.lane.b32.xlu0 %v1953, 9
      %v2135 = vpop.permute.xlu0 %2134
      %2136 = vrot.lane.b32.xlu0 %v1955, 9
      %v2137 = vpop.permute.xlu0 %2136
      %2138 = vrot.lane.b32.xlu0 %v1957, 9
      %v2139 = vpop.permute.xlu0 %2138
      %2140 = vrot.lane.b32.xlu0 %v1959, 9
      %v2141 = vpop.permute.xlu0 %2140
      %2142 = vrot.lane.b32.xlu0 %v1961, 9
      %v2143 = vpop.permute.xlu0 %2142
      %2144 = vrot.lane.b32.xlu0 %v1963, 9
      %v2145 = vpop.permute.xlu0 %2144
      %2146 = vrot.lane.b32.xlu0 %v1965, 9
      %v2147 = vpop.permute.xlu0 %2146
      %2148 = vrot.lane.b32.xlu0 %v1967, 9
      %v2149 = vpop.permute.xlu0 %2148
      %2150 = vrot.lane.b32.xlu0 %v1969, 9
      %v2151 = vpop.permute.xlu0 %2150
      %2152 = vrot.lane.b32.xlu0 %v2081, 9
      %v2153 = vpop.permute.xlu0 %2152
      %2154 = vrot.lane.b32.xlu0 %v2083, 9
      %v2155 = vpop.permute.xlu0 %2154
      %vm2192 = vcmask 1044480
      %v2193 = vrot.slane %v269, 3
      %v2194 = vrot.slane %v270, 3
      %v2195 = vsel %vm2192, %v2193, %v2194
      %v2196 = vrot.slane %v271, 3
      %v2197 = vsel %vm2192, %v2194, %v2196
      %v2198 = vrot.slane %v272, 3
      %v2199 = vsel %vm2192, %v2196, %v2198
      %v2200 = vrot.slane %v273, 3
      %v2201 = vsel %vm2192, %v2198, %v2200
      %v2202 = vrot.slane %v274, 3
      %v2203 = vsel %vm2192, %v2200, %v2202
      %v2204 = vrot.slane %v275, 3
      %v2205 = vsel %vm2192, %v2202, %v2204
      %v2206 = vrot.slane %v276, 3
      %v2207 = vsel %vm2192, %v2204, %v2206
      %v2208 = vrot.slane %v277, 3
      %v2209 = vsel %vm2192, %v2206, %v2208
      %v2210 = vrot.slane %v278, 3
      %v2211 = vsel %vm2192, %v2208, %v2210
      %v2212 = vrot.slane %v279, 3
      %v2213 = vsel %vm2192, %v2210, %v2212
      %v2214 = vrot.slane %v280, 3
      %v2215 = vsel %vm2192, %v2212, %v2214
      %v2216 = vrot.slane %v281, 3
      %v2217 = vsel %vm2192, %v2214, %v2216
      %v2218 = vrot.slane %v282, 3
      %v2219 = vsel %vm2192, %v2216, %v2218
      %v2220 = vrot.slane %v283, 3
      %v2221 = vsel %vm2192, %v2218, %v2220
      %v2222 = vrot.slane %v284, 3
      %v2223 = vsel %vm2192, %v2220, %v2222
      %v2224 = vrot.slane %v285, 3
      %v2225 = vsel %vm2192, %v2222, %v2224
      %v2226 = vrot.slane %v286, 3
      %v2227 = vsel %vm2192, %v2224, %v2226
      %v2228 = vrot.slane %v287, 3
      %v2229 = vsel %vm2192, %v2226, %v2228
      %v2230 = vrot.slane %v288, 3
      %v2231 = vsel %vm2192, %v2228, %v2230
      %v2232 = vrot.slane %v289, 3
      %v2233 = vsel %vm2192, %v2230, %v2232
      %v2234 = vrot.slane %v290, 3
      %v2235 = vsel %vm2192, %v2232, %v2234
      %v2236 = vrot.slane %v291, 3
      %v2237 = vsel %vm2192, %v2234, %v2236
      %v2238 = vrot.slane %v292, 3
      %v2239 = vsel %vm2192, %v2236, %v2238
      %v2240 = vrot.slane %v293, 3
      %v2241 = vsel %vm2192, %v2238, %v2240
      %v2242 = vrot.slane %v294, 3
      %v2243 = vsel %vm2192, %v2240, %v2242
      %v2244 = vrot.slane %v295, 3
      %v2245 = vsel %vm2192, %v2242, %v2244
      %v2246 = vrot.slane %v296, 3
      %v2247 = vsel %vm2192, %v2244, %v2246
      %v2248 = vrot.slane %v297, 3
      %v2249 = vsel %vm2192, %v2246, %v2248
      %v2250 = vrot.slane %v298, 3
      %v2251 = vsel %vm2192, %v2248, %v2250
      %v2252 = vrot.slane %v299, 3
      %v2253 = vsel %vm2192, %v2250, %v2252
      %v2254 = vrot.slane %v300, 3
      %v2255 = vsel %vm2192, %v2252, %v2254
      %v2256 = vrot.slane %v301, 3
      %v2257 = vsel %vm2192, %v2254, %v2256
      %v2258 = vrot.slane %v302, 3
      %v2259 = vsel %vm2192, %v2256, %v2258
      %v2260 = vrot.slane %v303, 3
      %v2261 = vsel %vm2192, %v2258, %v2260
      %v2262 = vrot.slane %v304, 3
      %v2263 = vsel %vm2192, %v2260, %v2262
      %v2264 = vrot.slane %v305, 3
      %v2265 = vsel %vm2192, %v2262, %v2264
      %2266 = vrot.lane.b32.xlu0 %v2195, 12
      %v2267 = vpop.permute.xlu0 %2266
      %2268 = vrot.lane.b32.xlu0 %v2197, 12
      %v2269 = vpop.permute.xlu0 %2268
      %2270 = vrot.lane.b32.xlu0 %v2199, 12
      %v2271 = vpop.permute.xlu0 %2270
      %2272 = vrot.lane.b32.xlu0 %v2201, 12
      %v2273 = vpop.permute.xlu0 %2272
      %2274 = vrot.lane.b32.xlu0 %v2203, 12
      %v2275 = vpop.permute.xlu0 %2274
      %2276 = vrot.lane.b32.xlu0 %v2205, 12
      %v2277 = vpop.permute.xlu0 %2276
      %2278 = vrot.lane.b32.xlu0 %v2207, 12
      %v2279 = vpop.permute.xlu0 %2278
      %2280 = vrot.lane.b32.xlu0 %v2209, 12
      %v2281 = vpop.permute.xlu0 %2280
      %2282 = vrot.lane.b32.xlu0 %v2211, 12
      %v2283 = vpop.permute.xlu0 %2282
      %2284 = vrot.lane.b32.xlu0 %v2213, 12
      %v2285 = vpop.permute.xlu0 %2284
      %2286 = vrot.lane.b32.xlu0 %v2215, 12
      %v2287 = vpop.permute.xlu0 %2286
      %2288 = vrot.lane.b32.xlu0 %v2217, 12
      %v2289 = vpop.permute.xlu0 %2288
      %2290 = vrot.lane.b32.xlu0 %v2219, 12
      %v2291 = vpop.permute.xlu0 %2290
      %2292 = vrot.lane.b32.xlu0 %v2221, 12
      %v2293 = vpop.permute.xlu0 %2292
      %2294 = vrot.lane.b32.xlu0 %v2223, 12
      %v2295 = vpop.permute.xlu0 %2294
      %2296 = vrot.lane.b32.xlu0 %v2225, 12
      %v2297 = vpop.permute.xlu0 %2296
      %2298 = vrot.lane.b32.xlu0 %v2227, 12
      %v2299 = vpop.permute.xlu0 %2298
      %2300 = vrot.lane.b32.xlu0 %v2229, 12
      %v2301 = vpop.permute.xlu0 %2300
      %2302 = vrot.lane.b32.xlu0 %v2231, 12
      %v2303 = vpop.permute.xlu0 %2302
      %2304 = vrot.lane.b32.xlu0 %v2233, 12
      %v2305 = vpop.permute.xlu0 %2304
      %2306 = vrot.lane.b32.xlu0 %v2235, 12
      %v2307 = vpop.permute.xlu0 %2306
      %2308 = vrot.lane.b32.xlu0 %v2237, 12
      %v2309 = vpop.permute.xlu0 %2308
      %2310 = vrot.lane.b32.xlu0 %v2239, 12
      %v2311 = vpop.permute.xlu0 %2310
      %2312 = vrot.lane.b32.xlu0 %v2241, 12
      %v2313 = vpop.permute.xlu0 %2312
      %2314 = vrot.lane.b32.xlu0 %v2243, 12
      %v2315 = vpop.permute.xlu0 %2314
      %2316 = vrot.lane.b32.xlu0 %v2245, 12
      %v2317 = vpop.permute.xlu0 %2316
      %2318 = vrot.lane.b32.xlu0 %v2247, 12
      %v2319 = vpop.permute.xlu0 %2318
      %2320 = vrot.lane.b32.xlu0 %v2249, 12
      %v2321 = vpop.permute.xlu0 %2320
      %2322 = vrot.lane.b32.xlu0 %v2251, 12
      %v2323 = vpop.permute.xlu0 %2322
      %2324 = vrot.lane.b32.xlu0 %v2253, 12
      %v2325 = vpop.permute.xlu0 %2324
      %2326 = vrot.lane.b32.xlu0 %v2255, 12
      %v2327 = vpop.permute.xlu0 %2326
      %2328 = vrot.lane.b32.xlu0 %v2257, 12
      %v2329 = vpop.permute.xlu0 %2328
      %2330 = vrot.lane.b32.xlu0 %v2259, 12
      %v2331 = vpop.permute.xlu0 %2330
      %2332 = vrot.lane.b32.xlu0 %v2261, 12
      %v2333 = vpop.permute.xlu0 %2332
      %2334 = vrot.lane.b32.xlu0 %v2263, 12
      %v2335 = vpop.permute.xlu0 %2334
      %2336 = vrot.lane.b32.xlu0 %v2265, 12
      %v2337 = vpop.permute.xlu0 %2336
      %vm2374 = vcmask 1043456
      %v2375 = vrot.slane %v269, 4
      %v2376 = vrot.slane %v270, 4
      %v2377 = vsel %vm2374, %v2375, %v2376
      %v2378 = vrot.slane %v271, 4
      %v2379 = vsel %vm2374, %v2376, %v2378
      %v2380 = vrot.slane %v272, 4
      %v2381 = vsel %vm2374, %v2378, %v2380
      %v2382 = vrot.slane %v273, 4
      %v2383 = vsel %vm2374, %v2380, %v2382
      %v2384 = vrot.slane %v274, 4
      %v2385 = vsel %vm2374, %v2382, %v2384
      %v2386 = vrot.slane %v275, 4
      %v2387 = vsel %vm2374, %v2384, %v2386
      %v2388 = vrot.slane %v276, 4
      %v2389 = vsel %vm2374, %v2386, %v2388
      %v2390 = vrot.slane %v277, 4
      %v2391 = vsel %vm2374, %v2388, %v2390
      %v2392 = vrot.slane %v278, 4
      %v2393 = vsel %vm2374, %v2390, %v2392
      %v2394 = vrot.slane %v279, 4
      %v2395 = vsel %vm2374, %v2392, %v2394
      %v2396 = vrot.slane %v280, 4
      %v2397 = vsel %vm2374, %v2394, %v2396
      %v2398 = vrot.slane %v281, 4
      %v2399 = vsel %vm2374, %v2396, %v2398
      %v2400 = vrot.slane %v282, 4
      %v2401 = vsel %vm2374, %v2398, %v2400
      %v2402 = vrot.slane %v283, 4
      %v2403 = vsel %vm2374, %v2400, %v2402
      %v2404 = vrot.slane %v284, 4
      %v2405 = vsel %vm2374, %v2402, %v2404
      %v2406 = vrot.slane %v285, 4
      %v2407 = vsel %vm2374, %v2404, %v2406
      %v2408 = vrot.slane %v286, 4
      %v2409 = vsel %vm2374, %v2406, %v2408
      %v2410 = vrot.slane %v287, 4
      %v2411 = vsel %vm2374, %v2408, %v2410
      %v2412 = vrot.slane %v288, 4
      %v2413 = vsel %vm2374, %v2410, %v2412
      %v2414 = vrot.slane %v289, 4
      %v2415 = vsel %vm2374, %v2412, %v2414
      %v2416 = vrot.slane %v290, 4
      %v2417 = vsel %vm2374, %v2414, %v2416
      %v2418 = vrot.slane %v291, 4
      %v2419 = vsel %vm2374, %v2416, %v2418
      %v2420 = vrot.slane %v292, 4
      %v2421 = vsel %vm2374, %v2418, %v2420
      %v2422 = vrot.slane %v293, 4
      %v2423 = vsel %vm2374, %v2420, %v2422
      %v2424 = vrot.slane %v294, 4
      %v2425 = vsel %vm2374, %v2422, %v2424
      %v2426 = vrot.slane %v295, 4
      %v2427 = vsel %vm2374, %v2424, %v2426
      %v2428 = vrot.slane %v296, 4
      %v2429 = vsel %vm2374, %v2426, %v2428
      %v2430 = vrot.slane %v297, 4
      %v2431 = vsel %vm2374, %v2428, %v2430
      %v2432 = vrot.slane %v298, 4
      %v2433 = vsel %vm2374, %v2430, %v2432
      %v2434 = vrot.slane %v299, 4
      %v2435 = vsel %vm2374, %v2432, %v2434
      %v2436 = vrot.slane %v300, 4
      %v2437 = vsel %vm2374, %v2434, %v2436
      %v2438 = vrot.slane %v301, 4
      %v2439 = vsel %vm2374, %v2436, %v2438
      %v2440 = vrot.slane %v302, 4
      %v2441 = vsel %vm2374, %v2438, %v2440
      %v2442 = vrot.slane %v303, 4
      %v2443 = vsel %vm2374, %v2440, %v2442
      %v2444 = vrot.slane %v304, 4
      %v2445 = vsel %vm2374, %v2442, %v2444
      %v2446 = vrot.slane %v305, 4
      %v2447 = vsel %vm2374, %v2444, %v2446
      %2448 = vrot.lane.b32.xlu0 %v2377, 15
      %v2449 = vpop.permute.xlu0 %2448
      %2450 = vrot.lane.b32.xlu0 %v2379, 15
      %v2451 = vpop.permute.xlu0 %2450
      %2452 = vrot.lane.b32.xlu0 %v2381, 15
      %v2453 = vpop.permute.xlu0 %2452
      %2454 = vrot.lane.b32.xlu0 %v2383, 15
      %v2455 = vpop.permute.xlu0 %2454
      %2456 = vrot.lane.b32.xlu0 %v2385, 15
      %v2457 = vpop.permute.xlu0 %2456
      %2458 = vrot.lane.b32.xlu0 %v2387, 15
      %v2459 = vpop.permute.xlu0 %2458
      %2460 = vrot.lane.b32.xlu0 %v2389, 15
      %v2461 = vpop.permute.xlu0 %2460
      %2462 = vrot.lane.b32.xlu0 %v2391, 15
      %v2463 = vpop.permute.xlu0 %2462
      %2464 = vrot.lane.b32.xlu0 %v2393, 15
      %v2465 = vpop.permute.xlu0 %2464
      %2466 = vrot.lane.b32.xlu0 %v2395, 15
      %v2467 = vpop.permute.xlu0 %2466
      %2468 = vrot.lane.b32.xlu0 %v2397, 15
      %v2469 = vpop.permute.xlu0 %2468
      %2470 = vrot.lane.b32.xlu0 %v2399, 15
      %v2471 = vpop.permute.xlu0 %2470
      %2472 = vrot.lane.b32.xlu0 %v2401, 15
      %v2473 = vpop.permute.xlu0 %2472
      %2474 = vrot.lane.b32.xlu0 %v2403, 15
      %v2475 = vpop.permute.xlu0 %2474
      %2476 = vrot.lane.b32.xlu0 %v2405, 15
      %v2477 = vpop.permute.xlu0 %2476
      %2478 = vrot.lane.b32.xlu0 %v2407, 15
      %v2479 = vpop.permute.xlu0 %2478
      %2480 = vrot.lane.b32.xlu0 %v2409, 15
      %v2481 = vpop.permute.xlu0 %2480
      %2482 = vrot.lane.b32.xlu0 %v2411, 15
      %v2483 = vpop.permute.xlu0 %2482
      %2484 = vrot.lane.b32.xlu0 %v2413, 15
      %v2485 = vpop.permute.xlu0 %2484
      %2486 = vrot.lane.b32.xlu0 %v2415, 15
      %v2487 = vpop.permute.xlu0 %2486
      %2488 = vrot.lane.b32.xlu0 %v2417, 15
      %v2489 = vpop.permute.xlu0 %2488
      %2490 = vrot.lane.b32.xlu0 %v2419, 15
      %v2491 = vpop.permute.xlu0 %2490
      %2492 = vrot.lane.b32.xlu0 %v2421, 15
      %v2493 = vpop.permute.xlu0 %2492
      %2494 = vrot.lane.b32.xlu0 %v2423, 15
      %v2495 = vpop.permute.xlu0 %2494
      %2496 = vrot.lane.b32.xlu0 %v2425, 15
      %v2497 = vpop.permute.xlu0 %2496
      %2498 = vrot.lane.b32.xlu0 %v2427, 15
      %v2499 = vpop.permute.xlu0 %2498
      %2500 = vrot.lane.b32.xlu0 %v2429, 15
      %v2501 = vpop.permute.xlu0 %2500
      %2502 = vrot.lane.b32.xlu0 %v2431, 15
      %v2503 = vpop.permute.xlu0 %2502
      %2504 = vrot.lane.b32.xlu0 %v2433, 15
      %v2505 = vpop.permute.xlu0 %2504
      %2506 = vrot.lane.b32.xlu0 %v2435, 15
      %v2507 = vpop.permute.xlu0 %2506
      %2508 = vrot.lane.b32.xlu0 %v2437, 15
      %v2509 = vpop.permute.xlu0 %2508
      %2510 = vrot.lane.b32.xlu0 %v2439, 15
      %v2511 = vpop.permute.xlu0 %2510
      %2512 = vrot.lane.b32.xlu0 %v2441, 15
      %v2513 = vpop.permute.xlu0 %2512
      %2514 = vrot.lane.b32.xlu0 %v2443, 15
      %v2515 = vpop.permute.xlu0 %2514
      %2516 = vrot.lane.b32.xlu0 %v2445, 15
      %v2517 = vpop.permute.xlu0 %2516
      %2518 = vrot.lane.b32.xlu0 %v2447, 15
      %v2519 = vpop.permute.xlu0 %2518
      %v2558 = vrot.slane %v306, 4
      %v2559 = vsel %vm2374, %v2446, %v2558
      %v2560 = vrot.slane %v307, 4
      %v2561 = vsel %vm2374, %v2558, %v2560
      %2562 = vrot.lane.b32.xlu0 %v2381, 18
      %v2563 = vpop.permute.xlu0 %2562
      %2564 = vrot.lane.b32.xlu0 %v2383, 18
      %v2565 = vpop.permute.xlu0 %2564
      %2566 = vrot.lane.b32.xlu0 %v2385, 18
      %v2567 = vpop.permute.xlu0 %2566
      %2568 = vrot.lane.b32.xlu0 %v2387, 18
      %v2569 = vpop.permute.xlu0 %2568
      %2570 = vrot.lane.b32.xlu0 %v2389, 18
      %v2571 = vpop.permute.xlu0 %2570
      %2572 = vrot.lane.b32.xlu0 %v2391, 18
      %v2573 = vpop.permute.xlu0 %2572
      %2574 = vrot.lane.b32.xlu0 %v2393, 18
      %v2575 = vpop.permute.xlu0 %2574
      %2576 = vrot.lane.b32.xlu0 %v2395, 18
      %v2577 = vpop.permute.xlu0 %2576
      %2578 = vrot.lane.b32.xlu0 %v2397, 18
      %v2579 = vpop.permute.xlu0 %2578
      %2580 = vrot.lane.b32.xlu0 %v2399, 18
      %v2581 = vpop.permute.xlu0 %2580
      %2582 = vrot.lane.b32.xlu0 %v2401, 18
      %v2583 = vpop.permute.xlu0 %2582
      %2584 = vrot.lane.b32.xlu0 %v2403, 18
      %v2585 = vpop.permute.xlu0 %2584
      %2586 = vrot.lane.b32.xlu0 %v2405, 18
      %v2587 = vpop.permute.xlu0 %2586
      %2588 = vrot.lane.b32.xlu0 %v2407, 18
      %v2589 = vpop.permute.xlu0 %2588
      %2590 = vrot.lane.b32.xlu0 %v2409, 18
      %v2591 = vpop.permute.xlu0 %2590
      %2592 = vrot.lane.b32.xlu0 %v2411, 18
      %v2593 = vpop.permute.xlu0 %2592
      %2594 = vrot.lane.b32.xlu0 %v2413, 18
      %v2595 = vpop.permute.xlu0 %2594
      %2596 = vrot.lane.b32.xlu0 %v2415, 18
      %v2597 = vpop.permute.xlu0 %2596
      %2598 = vrot.lane.b32.xlu0 %v2417, 18
      %v2599 = vpop.permute.xlu0 %2598
      %2600 = vrot.lane.b32.xlu0 %v2419, 18
      %v2601 = vpop.permute.xlu0 %2600
      %2602 = vrot.lane.b32.xlu0 %v2421, 18
      %v2603 = vpop.permute.xlu0 %2602
      %2604 = vrot.lane.b32.xlu0 %v2423, 18
      %v2605 = vpop.permute.xlu0 %2604
      %2606 = vrot.lane.b32.xlu0 %v2425, 18
      %v2607 = vpop.permute.xlu0 %2606
      %2608 = vrot.lane.b32.xlu0 %v2427, 18
      %v2609 = vpop.permute.xlu0 %2608
      %2610 = vrot.lane.b32.xlu0 %v2429, 18
      %v2611 = vpop.permute.xlu0 %2610
      %2612 = vrot.lane.b32.xlu0 %v2431, 18
      %v2613 = vpop.permute.xlu0 %2612
      %2614 = vrot.lane.b32.xlu0 %v2433, 18
      %v2615 = vpop.permute.xlu0 %2614
      %2616 = vrot.lane.b32.xlu0 %v2435, 18
      %v2617 = vpop.permute.xlu0 %2616
      %2618 = vrot.lane.b32.xlu0 %v2437, 18
      %v2619 = vpop.permute.xlu0 %2618
      %2620 = vrot.lane.b32.xlu0 %v2439, 18
      %v2621 = vpop.permute.xlu0 %2620
      %2622 = vrot.lane.b32.xlu0 %v2441, 18
      %v2623 = vpop.permute.xlu0 %2622
      %2624 = vrot.lane.b32.xlu0 %v2443, 18
      %v2625 = vpop.permute.xlu0 %2624
      %2626 = vrot.lane.b32.xlu0 %v2445, 18
      %v2627 = vpop.permute.xlu0 %2626
      %2628 = vrot.lane.b32.xlu0 %v2447, 18
      %v2629 = vpop.permute.xlu0 %2628
      %2630 = vrot.lane.b32.xlu0 %v2559, 18
      %v2631 = vpop.permute.xlu0 %2630
      %2632 = vrot.lane.b32.xlu0 %v2561, 18
      %v2633 = vpop.permute.xlu0 %2632
      %vm2670 = vcmask 1042432
      %v2671 = vrot.slane %v271, 5
      %v2672 = vrot.slane %v272, 5
      %v2673 = vsel %vm2670, %v2671, %v2672
      %v2674 = vrot.slane %v273, 5
      %v2675 = vsel %vm2670, %v2672, %v2674
      %v2676 = vrot.slane %v274, 5
      %v2677 = vsel %vm2670, %v2674, %v2676
      %v2678 = vrot.slane %v275, 5
      %v2679 = vsel %vm2670, %v2676, %v2678
      %v2680 = vrot.slane %v276, 5
      %v2681 = vsel %vm2670, %v2678, %v2680
      %v2682 = vrot.slane %v277, 5
      %v2683 = vsel %vm2670, %v2680, %v2682
      %v2684 = vrot.slane %v278, 5
      %v2685 = vsel %vm2670, %v2682, %v2684
      %v2686 = vrot.slane %v279, 5
      %v2687 = vsel %vm2670, %v2684, %v2686
      %v2688 = vrot.slane %v280, 5
      %v2689 = vsel %vm2670, %v2686, %v2688
      %v2690 = vrot.slane %v281, 5
      %v2691 = vsel %vm2670, %v2688, %v2690
      %v2692 = vrot.slane %v282, 5
      %v2693 = vsel %vm2670, %v2690, %v2692
      %v2694 = vrot.slane %v283, 5
      %v2695 = vsel %vm2670, %v2692, %v2694
      %v2696 = vrot.slane %v284, 5
      %v2697 = vsel %vm2670, %v2694, %v2696
      %v2698 = vrot.slane %v285, 5
      %v2699 = vsel %vm2670, %v2696, %v2698
      %v2700 = vrot.slane %v286, 5
      %v2701 = vsel %vm2670, %v2698, %v2700
      %v2702 = vrot.slane %v287, 5
      %v2703 = vsel %vm2670, %v2700, %v2702
      %v2704 = vrot.slane %v288, 5
      %v2705 = vsel %vm2670, %v2702, %v2704
      %v2706 = vrot.slane %v289, 5
      %v2707 = vsel %vm2670, %v2704, %v2706
      %v2708 = vrot.slane %v290, 5
      %v2709 = vsel %vm2670, %v2706, %v2708
      %v2710 = vrot.slane %v291, 5
      %v2711 = vsel %vm2670, %v2708, %v2710
      %v2712 = vrot.slane %v292, 5
      %v2713 = vsel %vm2670, %v2710, %v2712
      %v2714 = vrot.slane %v293, 5
      %v2715 = vsel %vm2670, %v2712, %v2714
      %v2716 = vrot.slane %v294, 5
      %v2717 = vsel %vm2670, %v2714, %v2716
      %v2718 = vrot.slane %v295, 5
      %v2719 = vsel %vm2670, %v2716, %v2718
      %v2720 = vrot.slane %v296, 5
      %v2721 = vsel %vm2670, %v2718, %v2720
      %v2722 = vrot.slane %v297, 5
      %v2723 = vsel %vm2670, %v2720, %v2722
      %v2724 = vrot.slane %v298, 5
      %v2725 = vsel %vm2670, %v2722, %v2724
      %v2726 = vrot.slane %v299, 5
      %v2727 = vsel %vm2670, %v2724, %v2726
      %v2728 = vrot.slane %v300, 5
      %v2729 = vsel %vm2670, %v2726, %v2728
      %v2730 = vrot.slane %v301, 5
      %v2731 = vsel %vm2670, %v2728, %v2730
      %v2732 = vrot.slane %v302, 5
      %v2733 = vsel %vm2670, %v2730, %v2732
      %v2734 = vrot.slane %v303, 5
      %v2735 = vsel %vm2670, %v2732, %v2734
      %v2736 = vrot.slane %v304, 5
      %v2737 = vsel %vm2670, %v2734, %v2736
      %v2738 = vrot.slane %v305, 5
      %v2739 = vsel %vm2670, %v2736, %v2738
      %v2740 = vrot.slane %v306, 5
      %v2741 = vsel %vm2670, %v2738, %v2740
      %v2742 = vrot.slane %v307, 5
      %v2743 = vsel %vm2670, %v2740, %v2742
      %2744 = vrot.lane.b32.xlu0 %v2673, 21
      %v2745 = vpop.permute.xlu0 %2744
      %2746 = vrot.lane.b32.xlu0 %v2675, 21
      %v2747 = vpop.permute.xlu0 %2746
      %2748 = vrot.lane.b32.xlu0 %v2677, 21
      %v2749 = vpop.permute.xlu0 %2748
      %2750 = vrot.lane.b32.xlu0 %v2679, 21
      %v2751 = vpop.permute.xlu0 %2750
      %2752 = vrot.lane.b32.xlu0 %v2681, 21
      %v2753 = vpop.permute.xlu0 %2752
      %2754 = vrot.lane.b32.xlu0 %v2683, 21
      %v2755 = vpop.permute.xlu0 %2754
      %2756 = vrot.lane.b32.xlu0 %v2685, 21
      %v2757 = vpop.permute.xlu0 %2756
      %2758 = vrot.lane.b32.xlu0 %v2687, 21
      %v2759 = vpop.permute.xlu0 %2758
      %2760 = vrot.lane.b32.xlu0 %v2689, 21
      %v2761 = vpop.permute.xlu0 %2760
      %2762 = vrot.lane.b32.xlu0 %v2691, 21
      %v2763 = vpop.permute.xlu0 %2762
      %2764 = vrot.lane.b32.xlu0 %v2693, 21
      %v2765 = vpop.permute.xlu0 %2764
      %2766 = vrot.lane.b32.xlu0 %v2695, 21
      %v2767 = vpop.permute.xlu0 %2766
      %2768 = vrot.lane.b32.xlu0 %v2697, 21
      %v2769 = vpop.permute.xlu0 %2768
      %2770 = vrot.lane.b32.xlu0 %v2699, 21
      %v2771 = vpop.permute.xlu0 %2770
      %2772 = vrot.lane.b32.xlu0 %v2701, 21
      %v2773 = vpop.permute.xlu0 %2772
      %2774 = vrot.lane.b32.xlu0 %v2703, 21
      %v2775 = vpop.permute.xlu0 %2774
      %2776 = vrot.lane.b32.xlu0 %v2705, 21
      %v2777 = vpop.permute.xlu0 %2776
      %2778 = vrot.lane.b32.xlu0 %v2707, 21
      %v2779 = vpop.permute.xlu0 %2778
      %2780 = vrot.lane.b32.xlu0 %v2709, 21
      %v2781 = vpop.permute.xlu0 %2780
      %2782 = vrot.lane.b32.xlu0 %v2711, 21
      %v2783 = vpop.permute.xlu0 %2782
      %2784 = vrot.lane.b32.xlu0 %v2713, 21
      %v2785 = vpop.permute.xlu0 %2784
      %2786 = vrot.lane.b32.xlu0 %v2715, 21
      %v2787 = vpop.permute.xlu0 %2786
      %2788 = vrot.lane.b32.xlu0 %v2717, 21
      %v2789 = vpop.permute.xlu0 %2788
      %2790 = vrot.lane.b32.xlu0 %v2719, 21
      %v2791 = vpop.permute.xlu0 %2790
      %2792 = vrot.lane.b32.xlu0 %v2721, 21
      %v2793 = vpop.permute.xlu0 %2792
      %2794 = vrot.lane.b32.xlu0 %v2723, 21
      %v2795 = vpop.permute.xlu0 %2794
      %2796 = vrot.lane.b32.xlu0 %v2725, 21
      %v2797 = vpop.permute.xlu0 %2796
      %2798 = vrot.lane.b32.xlu0 %v2727, 21
      %v2799 = vpop.permute.xlu0 %2798
      %2800 = vrot.lane.b32.xlu0 %v2729, 21
      %v2801 = vpop.permute.xlu0 %2800
      %2802 = vrot.lane.b32.xlu0 %v2731, 21
      %v2803 = vpop.permute.xlu0 %2802
      %2804 = vrot.lane.b32.xlu0 %v2733, 21
      %v2805 = vpop.permute.xlu0 %2804
      %2806 = vrot.lane.b32.xlu0 %v2735, 21
      %v2807 = vpop.permute.xlu0 %2806
      %2808 = vrot.lane.b32.xlu0 %v2737, 21
      %v2809 = vpop.permute.xlu0 %2808
      %2810 = vrot.lane.b32.xlu0 %v2739, 21
      %v2811 = vpop.permute.xlu0 %2810
      %2812 = vrot.lane.b32.xlu0 %v2741, 21
      %v2813 = vpop.permute.xlu0 %2812
      %2814 = vrot.lane.b32.xlu0 %v2743, 21
      %v2815 = vpop.permute.xlu0 %2814
      %vm2852 = vcmask 1041408
      %v2853 = vrot.slane %v271, 6
      %v2854 = vrot.slane %v272, 6
      %v2855 = vsel %vm2852, %v2853, %v2854
      %v2856 = vrot.slane %v273, 6
      %v2857 = vsel %vm2852, %v2854, %v2856
      %v2858 = vrot.slane %v274, 6
      %v2859 = vsel %vm2852, %v2856, %v2858
      %v2860 = vrot.slane %v275, 6
      %v2861 = vsel %vm2852, %v2858, %v2860
      %v2862 = vrot.slane %v276, 6
      %v2863 = vsel %vm2852, %v2860, %v2862
      %v2864 = vrot.slane %v277, 6
      %v2865 = vsel %vm2852, %v2862, %v2864
      %v2866 = vrot.slane %v278, 6
      %v2867 = vsel %vm2852, %v2864, %v2866
      %v2868 = vrot.slane %v279, 6
      %v2869 = vsel %vm2852, %v2866, %v2868
      %v2870 = vrot.slane %v280, 6
      %v2871 = vsel %vm2852, %v2868, %v2870
      %v2872 = vrot.slane %v281, 6
      %v2873 = vsel %vm2852, %v2870, %v2872
      %v2874 = vrot.slane %v282, 6
      %v2875 = vsel %vm2852, %v2872, %v2874
      %v2876 = vrot.slane %v283, 6
      %v2877 = vsel %vm2852, %v2874, %v2876
      %v2878 = vrot.slane %v284, 6
      %v2879 = vsel %vm2852, %v2876, %v2878
      %v2880 = vrot.slane %v285, 6
      %v2881 = vsel %vm2852, %v2878, %v2880
      %v2882 = vrot.slane %v286, 6
      %v2883 = vsel %vm2852, %v2880, %v2882
      %v2884 = vrot.slane %v287, 6
      %v2885 = vsel %vm2852, %v2882, %v2884
      %v2886 = vrot.slane %v288, 6
      %v2887 = vsel %vm2852, %v2884, %v2886
      %v2888 = vrot.slane %v289, 6
      %v2889 = vsel %vm2852, %v2886, %v2888
      %v2890 = vrot.slane %v290, 6
      %v2891 = vsel %vm2852, %v2888, %v2890
      %v2892 = vrot.slane %v291, 6
      %v2893 = vsel %vm2852, %v2890, %v2892
      %v2894 = vrot.slane %v292, 6
      %v2895 = vsel %vm2852, %v2892, %v2894
      %v2896 = vrot.slane %v293, 6
      %v2897 = vsel %vm2852, %v2894, %v2896
      %v2898 = vrot.slane %v294, 6
      %v2899 = vsel %vm2852, %v2896, %v2898
      %v2900 = vrot.slane %v295, 6
      %v2901 = vsel %vm2852, %v2898, %v2900
      %v2902 = vrot.slane %v296, 6
      %v2903 = vsel %vm2852, %v2900, %v2902
      %v2904 = vrot.slane %v297, 6
      %v2905 = vsel %vm2852, %v2902, %v2904
      %v2906 = vrot.slane %v298, 6
      %v2907 = vsel %vm2852, %v2904, %v2906
      %v2908 = vrot.slane %v299, 6
      %v2909 = vsel %vm2852, %v2906, %v2908
      %v2910 = vrot.slane %v300, 6
      %v2911 = vsel %vm2852, %v2908, %v2910
      %v2912 = vrot.slane %v301, 6
      %v2913 = vsel %vm2852, %v2910, %v2912
      %v2914 = vrot.slane %v302, 6
      %v2915 = vsel %vm2852, %v2912, %v2914
      %v2916 = vrot.slane %v303, 6
      %v2917 = vsel %vm2852, %v2914, %v2916
      %v2918 = vrot.slane %v304, 6
      %v2919 = vsel %vm2852, %v2916, %v2918
      %v2920 = vrot.slane %v305, 6
      %v2921 = vsel %vm2852, %v2918, %v2920
      %v2922 = vrot.slane %v306, 6
      %v2923 = vsel %vm2852, %v2920, %v2922
      %v2924 = vrot.slane %v307, 6
      %v2925 = vsel %vm2852, %v2922, %v2924
      %2926 = vrot.lane.b32.xlu0 %v2855, 24
      %v2927 = vpop.permute.xlu0 %2926
      %2928 = vrot.lane.b32.xlu0 %v2857, 24
      %v2929 = vpop.permute.xlu0 %2928
      %2930 = vrot.lane.b32.xlu0 %v2859, 24
      %v2931 = vpop.permute.xlu0 %2930
      %2932 = vrot.lane.b32.xlu0 %v2861, 24
      %v2933 = vpop.permute.xlu0 %2932
      %2934 = vrot.lane.b32.xlu0 %v2863, 24
      %v2935 = vpop.permute.xlu0 %2934
      %2936 = vrot.lane.b32.xlu0 %v2865, 24
      %v2937 = vpop.permute.xlu0 %2936
      %2938 = vrot.lane.b32.xlu0 %v2867, 24
      %v2939 = vpop.permute.xlu0 %2938
      %2940 = vrot.lane.b32.xlu0 %v2869, 24
      %v2941 = vpop.permute.xlu0 %2940
      %2942 = vrot.lane.b32.xlu0 %v2871, 24
      %v2943 = vpop.permute.xlu0 %2942
      %2944 = vrot.lane.b32.xlu0 %v2873, 24
      %v2945 = vpop.permute.xlu0 %2944
      %2946 = vrot.lane.b32.xlu0 %v2875, 24
      %v2947 = vpop.permute.xlu0 %2946
      %2948 = vrot.lane.b32.xlu0 %v2877, 24
      %v2949 = vpop.permute.xlu0 %2948
      %2950 = vrot.lane.b32.xlu0 %v2879, 24
      %v2951 = vpop.permute.xlu0 %2950
      %2952 = vrot.lane.b32.xlu0 %v2881, 24
      %v2953 = vpop.permute.xlu0 %2952
      %2954 = vrot.lane.b32.xlu0 %v2883, 24
      %v2955 = vpop.permute.xlu0 %2954
      %2956 = vrot.lane.b32.xlu0 %v2885, 24
      %v2957 = vpop.permute.xlu0 %2956
      %2958 = vrot.lane.b32.xlu0 %v2887, 24
      %v2959 = vpop.permute.xlu0 %2958
      %2960 = vrot.lane.b32.xlu0 %v2889, 24
      %v2961 = vpop.permute.xlu0 %2960
      %2962 = vrot.lane.b32.xlu0 %v2891, 24
      %v2963 = vpop.permute.xlu0 %2962
      %2964 = vrot.lane.b32.xlu0 %v2893, 24
      %v2965 = vpop.permute.xlu0 %2964
      %2966 = vrot.lane.b32.xlu0 %v2895, 24
      %v2967 = vpop.permute.xlu0 %2966
      %2968 = vrot.lane.b32.xlu0 %v2897, 24
      %v2969 = vpop.permute.xlu0 %2968
      %2970 = vrot.lane.b32.xlu0 %v2899, 24
      %v2971 = vpop.permute.xlu0 %2970
      %2972 = vrot.lane.b32.xlu0 %v2901, 24
      %v2973 = vpop.permute.xlu0 %2972
      %2974 = vrot.lane.b32.xlu0 %v2903, 24
      %v2975 = vpop.permute.xlu0 %2974
      %2976 = vrot.lane.b32.xlu0 %v2905, 24
      %v2977 = vpop.permute.xlu0 %2976
      %2978 = vrot.lane.b32.xlu0 %v2907, 24
      %v2979 = vpop.permute.xlu0 %2978
      %2980 = vrot.lane.b32.xlu0 %v2909, 24
      %v2981 = vpop.permute.xlu0 %2980
      %2982 = vrot.lane.b32.xlu0 %v2911, 24
      %v2983 = vpop.permute.xlu0 %2982
      %2984 = vrot.lane.b32.xlu0 %v2913, 24
      %v2985 = vpop.permute.xlu0 %2984
      %2986 = vrot.lane.b32.xlu0 %v2915, 24
      %v2987 = vpop.permute.xlu0 %2986
      %2988 = vrot.lane.b32.xlu0 %v2917, 24
      %v2989 = vpop.permute.xlu0 %2988
      %2990 = vrot.lane.b32.xlu0 %v2919, 24
      %v2991 = vpop.permute.xlu0 %2990
      %2992 = vrot.lane.b32.xlu0 %v2921, 24
      %v2993 = vpop.permute.xlu0 %2992
      %2994 = vrot.lane.b32.xlu0 %v2923, 24
      %v2995 = vpop.permute.xlu0 %2994
      %2996 = vrot.lane.b32.xlu0 %v2925, 24
      %v2997 = vpop.permute.xlu0 %2996
      %vm3034 = vcmask 23552
      %v3035 = vsel %vm3034, %v267, %v1789
      %v3036 = vsel %vm3034, %v268, %v1791
      %v3037 = vsel %vm3034, %v269, %v1793
      %v3038 = vsel %vm3034, %v270, %v1795
      %v3039 = vsel %vm3034, %v271, %v1797
      %v3040 = vsel %vm3034, %v272, %v1799
      %v3041 = vsel %vm3034, %v273, %v1801
      %v3042 = vsel %vm3034, %v274, %v1803
      %v3043 = vsel %vm3034, %v275, %v1805
      %v3044 = vsel %vm3034, %v276, %v1807
      %v3045 = vsel %vm3034, %v277, %v1809
      %v3046 = vsel %vm3034, %v278, %v1811
      %v3047 = vsel %vm3034, %v279, %v1813
      %v3048 = vsel %vm3034, %v280, %v1815
      %v3049 = vsel %vm3034, %v281, %v1817
      %v3050 = vsel %vm3034, %v282, %v1819
      %v3051 = vsel %vm3034, %v283, %v1821
      %v3052 = vsel %vm3034, %v284, %v1823
      %v3053 = vsel %vm3034, %v285, %v1825
      %v3054 = vsel %vm3034, %v286, %v1827
      %v3055 = vsel %vm3034, %v287, %v1829
      %v3056 = vsel %vm3034, %v288, %v1831
      %v3057 = vsel %vm3034, %v289, %v1833
      %v3058 = vsel %vm3034, %v290, %v1835
      %v3059 = vsel %vm3034, %v291, %v1837
      %v3060 = vsel %vm3034, %v292, %v1839
      %v3061 = vsel %vm3034, %v293, %v1841
      %v3062 = vsel %vm3034, %v294, %v1843
      %v3063 = vsel %vm3034, %v295, %v1845
      %v3064 = vsel %vm3034, %v296, %v1847
      %v3065 = vsel %vm3034, %v297, %v1849
      %v3066 = vsel %vm3034, %v298, %v1851
      %v3067 = vsel %vm3034, %v299, %v1853
      %v3068 = vsel %vm3034, %v300, %v1855
      %v3069 = vsel %vm3034, %v301, %v1857
      %v3070 = vsel %vm3034, %v302, %v1859
      %vm3071 = vcmask 48128
      %v3072 = vsel %vm3071, %v3035, %v1971
      %v3073 = vsel %vm3071, %v3036, %v1973
      %v3074 = vsel %vm3071, %v3037, %v1975
      %v3075 = vsel %vm3071, %v3038, %v1977
      %v3076 = vsel %vm3071, %v3039, %v1979
      %v3077 = vsel %vm3071, %v3040, %v1981
      %v3078 = vsel %vm3071, %v3041, %v1983
      %v3079 = vsel %vm3071, %v3042, %v1985
      %v3080 = vsel %vm3071, %v3043, %v1987
      %v3081 = vsel %vm3071, %v3044, %v1989
      %v3082 = vsel %vm3071, %v3045, %v1991
      %v3083 = vsel %vm3071, %v3046, %v1993
      %v3084 = vsel %vm3071, %v3047, %v1995
      %v3085 = vsel %vm3071, %v3048, %v1997
      %v3086 = vsel %vm3071, %v3049, %v1999
      %v3087 = vsel %vm3071, %v3050, %v2001
      %v3088 = vsel %vm3071, %v3051, %v2003
      %v3089 = vsel %vm3071, %v3052, %v2005
      %v3090 = vsel %vm3071, %v3053, %v2007
      %v3091 = vsel %vm3071, %v3054, %v2009
      %v3092 = vsel %vm3071, %v3055, %v2011
      %v3093 = vsel %vm3071, %v3056, %v2013
      %v3094 = vsel %vm3071, %v3057, %v2015
      %v3095 = vsel %vm3071, %v3058, %v2017
      %v3096 = vsel %vm3071, %v3059, %v2019
      %v3097 = vsel %vm3071, %v3060, %v2021
      %v3098 = vsel %vm3071, %v3061, %v2023
      %v3099 = vsel %vm3071, %v3062, %v2025
      %v3100 = vsel %vm3071, %v3063, %v2027
      %v3101 = vsel %vm3071, %v3064, %v2029
      %v3102 = vsel %vm3071, %v3065, %v2031
      %v3103 = vsel %vm3071, %v3066, %v2033
      %v3104 = vsel %vm3071, %v3067, %v2035
      %v3105 = vsel %vm3071, %v3068, %v2037
      %v3106 = vsel %vm3071, %v3069, %v2039
      %v3107 = vsel %vm3071, %v3070, %v2041
      %vm3108 = vcmask 72704
      %v3109 = vsel %vm3108, %v3072, %v2085
      %v3110 = vsel %vm3108, %v3073, %v2087
      %v3111 = vsel %vm3108, %v3074, %v2089
      %v3112 = vsel %vm3108, %v3075, %v2091
      %v3113 = vsel %vm3108, %v3076, %v2093
      %v3114 = vsel %vm3108, %v3077, %v2095
      %v3115 = vsel %vm3108, %v3078, %v2097
      %v3116 = vsel %vm3108, %v3079, %v2099
      %v3117 = vsel %vm3108, %v3080, %v2101
      %v3118 = vsel %vm3108, %v3081, %v2103
      %v3119 = vsel %vm3108, %v3082, %v2105
      %v3120 = vsel %vm3108, %v3083, %v2107
      %v3121 = vsel %vm3108, %v3084, %v2109
      %v3122 = vsel %vm3108, %v3085, %v2111
      %v3123 = vsel %vm3108, %v3086, %v2113
      %v3124 = vsel %vm3108, %v3087, %v2115
      %v3125 = vsel %vm3108, %v3088, %v2117
      %v3126 = vsel %vm3108, %v3089, %v2119
      %v3127 = vsel %vm3108, %v3090, %v2121
      %v3128 = vsel %vm3108, %v3091, %v2123
      %v3129 = vsel %vm3108, %v3092, %v2125
      %v3130 = vsel %vm3108, %v3093, %v2127
      %v3131 = vsel %vm3108, %v3094, %v2129
      %v3132 = vsel %vm3108, %v3095, %v2131
      %v3133 = vsel %vm3108, %v3096, %v2133
      %v3134 = vsel %vm3108, %v3097, %v2135
      %v3135 = vsel %vm3108, %v3098, %v2137
      %v3136 = vsel %vm3108, %v3099, %v2139
      %v3137 = vsel %vm3108, %v3100, %v2141
      %v3138 = vsel %vm3108, %v3101, %v2143
      %v3139 = vsel %vm3108, %v3102, %v2145
      %v3140 = vsel %vm3108, %v3103, %v2147
      %v3141 = vsel %vm3108, %v3104, %v2149
      %v3142 = vsel %vm3108, %v3105, %v2151
      %v3143 = vsel %vm3108, %v3106, %v2153
      %v3144 = vsel %vm3108, %v3107, %v2155
      %vm3145 = vcmask 97280
      %v3146 = vsel %vm3145, %v3109, %v2267
      %v3147 = vsel %vm3145, %v3110, %v2269
      %v3148 = vsel %vm3145, %v3111, %v2271
      %v3149 = vsel %vm3145, %v3112, %v2273
      %v3150 = vsel %vm3145, %v3113, %v2275
      %v3151 = vsel %vm3145, %v3114, %v2277
      %v3152 = vsel %vm3145, %v3115, %v2279
      %v3153 = vsel %vm3145, %v3116, %v2281
      %v3154 = vsel %vm3145, %v3117, %v2283
      %v3155 = vsel %vm3145, %v3118, %v2285
      %v3156 = vsel %vm3145, %v3119, %v2287
      %v3157 = vsel %vm3145, %v3120, %v2289
      %v3158 = vsel %vm3145, %v3121, %v2291
      %v3159 = vsel %vm3145, %v3122, %v2293
      %v3160 = vsel %vm3145, %v3123, %v2295
      %v3161 = vsel %vm3145, %v3124, %v2297
      %v3162 = vsel %vm3145, %v3125, %v2299
      %v3163 = vsel %vm3145, %v3126, %v2301
      %v3164 = vsel %vm3145, %v3127, %v2303
      %v3165 = vsel %vm3145, %v3128, %v2305
      %v3166 = vsel %vm3145, %v3129, %v2307
      %v3167 = vsel %vm3145, %v3130, %v2309
      %v3168 = vsel %vm3145, %v3131, %v2311
      %v3169 = vsel %vm3145, %v3132, %v2313
      %v3170 = vsel %vm3145, %v3133, %v2315
      %v3171 = vsel %vm3145, %v3134, %v2317
      %v3172 = vsel %vm3145, %v3135, %v2319
      %v3173 = vsel %vm3145, %v3136, %v2321
      %v3174 = vsel %vm3145, %v3137, %v2323
      %v3175 = vsel %vm3145, %v3138, %v2325
      %v3176 = vsel %vm3145, %v3139, %v2327
      %v3177 = vsel %vm3145, %v3140, %v2329
      %v3178 = vsel %vm3145, %v3141, %v2331
      %v3179 = vsel %vm3145, %v3142, %v2333
      %v3180 = vsel %vm3145, %v3143, %v2335
      %v3181 = vsel %vm3145, %v3144, %v2337
      %vm3182 = vcmask 121856
      %v3183 = vsel %vm3182, %v3146, %v2449
      %v3184 = vsel %vm3182, %v3147, %v2451
      %v3185 = vsel %vm3182, %v3148, %v2453
      %v3186 = vsel %vm3182, %v3149, %v2455
      %v3187 = vsel %vm3182, %v3150, %v2457
      %v3188 = vsel %vm3182, %v3151, %v2459
      %v3189 = vsel %vm3182, %v3152, %v2461
      %v3190 = vsel %vm3182, %v3153, %v2463
      %v3191 = vsel %vm3182, %v3154, %v2465
      %v3192 = vsel %vm3182, %v3155, %v2467
      %v3193 = vsel %vm3182, %v3156, %v2469
      %v3194 = vsel %vm3182, %v3157, %v2471
      %v3195 = vsel %vm3182, %v3158, %v2473
      %v3196 = vsel %vm3182, %v3159, %v2475
      %v3197 = vsel %vm3182, %v3160, %v2477
      %v3198 = vsel %vm3182, %v3161, %v2479
      %v3199 = vsel %vm3182, %v3162, %v2481
      %v3200 = vsel %vm3182, %v3163, %v2483
      %v3201 = vsel %vm3182, %v3164, %v2485
      %v3202 = vsel %vm3182, %v3165, %v2487
      %v3203 = vsel %vm3182, %v3166, %v2489
      %v3204 = vsel %vm3182, %v3167, %v2491
      %v3205 = vsel %vm3182, %v3168, %v2493
      %v3206 = vsel %vm3182, %v3169, %v2495
      %v3207 = vsel %vm3182, %v3170, %v2497
      %v3208 = vsel %vm3182, %v3171, %v2499
      %v3209 = vsel %vm3182, %v3172, %v2501
      %v3210 = vsel %vm3182, %v3173, %v2503
      %v3211 = vsel %vm3182, %v3174, %v2505
      %v3212 = vsel %vm3182, %v3175, %v2507
      %v3213 = vsel %vm3182, %v3176, %v2509
      %v3214 = vsel %vm3182, %v3177, %v2511
      %v3215 = vsel %vm3182, %v3178, %v2513
      %v3216 = vsel %vm3182, %v3179, %v2515
      %v3217 = vsel %vm3182, %v3180, %v2517
      %v3218 = vsel %vm3182, %v3181, %v2519
      %vm3219 = vcmask 146432
      %v3220 = vsel %vm3219, %v3183, %v2563
      %v3221 = vsel %vm3219, %v3184, %v2565
      %v3222 = vsel %vm3219, %v3185, %v2567
      %v3223 = vsel %vm3219, %v3186, %v2569
      %v3224 = vsel %vm3219, %v3187, %v2571
      %v3225 = vsel %vm3219, %v3188, %v2573
      %v3226 = vsel %vm3219, %v3189, %v2575
      %v3227 = vsel %vm3219, %v3190, %v2577
      %v3228 = vsel %vm3219, %v3191, %v2579
      %v3229 = vsel %vm3219, %v3192, %v2581
      %v3230 = vsel %vm3219, %v3193, %v2583
      %v3231 = vsel %vm3219, %v3194, %v2585
      %v3232 = vsel %vm3219, %v3195, %v2587
      %v3233 = vsel %vm3219, %v3196, %v2589
      %v3234 = vsel %vm3219, %v3197, %v2591
      %v3235 = vsel %vm3219, %v3198, %v2593
      %v3236 = vsel %vm3219, %v3199, %v2595
      %v3237 = vsel %vm3219, %v3200, %v2597
      %v3238 = vsel %vm3219, %v3201, %v2599
      %v3239 = vsel %vm3219, %v3202, %v2601
      %v3240 = vsel %vm3219, %v3203, %v2603
      %v3241 = vsel %vm3219, %v3204, %v2605
      %v3242 = vsel %vm3219, %v3205, %v2607
      %v3243 = vsel %vm3219, %v3206, %v2609
      %v3244 = vsel %vm3219, %v3207, %v2611
      %v3245 = vsel %vm3219, %v3208, %v2613
      %v3246 = vsel %vm3219, %v3209, %v2615
      %v3247 = vsel %vm3219, %v3210, %v2617
      %v3248 = vsel %vm3219, %v3211, %v2619
      %v3249 = vsel %vm3219, %v3212, %v2621
      %v3250 = vsel %vm3219, %v3213, %v2623
      %v3251 = vsel %vm3219, %v3214, %v2625
      %v3252 = vsel %vm3219, %v3215, %v2627
      %v3253 = vsel %vm3219, %v3216, %v2629
      %v3254 = vsel %vm3219, %v3217, %v2631
      %v3255 = vsel %vm3219, %v3218, %v2633
      %vm3256 = vcmask 171008
      %v3257 = vsel %vm3256, %v3220, %v2745
      %v3258 = vsel %vm3256, %v3221, %v2747
      %v3259 = vsel %vm3256, %v3222, %v2749
      %v3260 = vsel %vm3256, %v3223, %v2751
      %v3261 = vsel %vm3256, %v3224, %v2753
      %v3262 = vsel %vm3256, %v3225, %v2755
      %v3263 = vsel %vm3256, %v3226, %v2757
      %v3264 = vsel %vm3256, %v3227, %v2759
      %v3265 = vsel %vm3256, %v3228, %v2761
      %v3266 = vsel %vm3256, %v3229, %v2763
      %v3267 = vsel %vm3256, %v3230, %v2765
      %v3268 = vsel %vm3256, %v3231, %v2767
      %v3269 = vsel %vm3256, %v3232, %v2769
      %v3270 = vsel %vm3256, %v3233, %v2771
      %v3271 = vsel %vm3256, %v3234, %v2773
      %v3272 = vsel %vm3256, %v3235, %v2775
      %v3273 = vsel %vm3256, %v3236, %v2777
      %v3274 = vsel %vm3256, %v3237, %v2779
      %v3275 = vsel %vm3256, %v3238, %v2781
      %v3276 = vsel %vm3256, %v3239, %v2783
      %v3277 = vsel %vm3256, %v3240, %v2785
      %v3278 = vsel %vm3256, %v3241, %v2787
      %v3279 = vsel %vm3256, %v3242, %v2789
      %v3280 = vsel %vm3256, %v3243, %v2791
      %v3281 = vsel %vm3256, %v3244, %v2793
      %v3282 = vsel %vm3256, %v3245, %v2795
      %v3283 = vsel %vm3256, %v3246, %v2797
      %v3284 = vsel %vm3256, %v3247, %v2799
      %v3285 = vsel %vm3256, %v3248, %v2801
      %v3286 = vsel %vm3256, %v3249, %v2803
      %v3287 = vsel %vm3256, %v3250, %v2805
      %v3288 = vsel %vm3256, %v3251, %v2807
      %v3289 = vsel %vm3256, %v3252, %v2809
      %v3290 = vsel %vm3256, %v3253, %v2811
      %v3291 = vsel %vm3256, %v3254, %v2813
      %v3292 = vsel %vm3256, %v3255, %v2815
      %vm3293 = vcmask 195584
      %v3294 = vsel %vm3293, %v3257, %v2927
      %v3295 = vsel %vm3293, %v3258, %v2929
      %v3296 = vsel %vm3293, %v3259, %v2931
      %v3297 = vsel %vm3293, %v3260, %v2933
      %v3298 = vsel %vm3293, %v3261, %v2935
      %v3299 = vsel %vm3293, %v3262, %v2937
      %v3300 = vsel %vm3293, %v3263, %v2939
      %v3301 = vsel %vm3293, %v3264, %v2941
      %v3302 = vsel %vm3293, %v3265, %v2943
      %v3303 = vsel %vm3293, %v3266, %v2945
      %v3304 = vsel %vm3293, %v3267, %v2947
      %v3305 = vsel %vm3293, %v3268, %v2949
      %v3306 = vsel %vm3293, %v3269, %v2951
      %v3307 = vsel %vm3293, %v3270, %v2953
      %v3308 = vsel %vm3293, %v3271, %v2955
      %v3309 = vsel %vm3293, %v3272, %v2957
      %v3310 = vsel %vm3293, %v3273, %v2959
      %v3311 = vsel %vm3293, %v3274, %v2961
      %v3312 = vsel %vm3293, %v3275, %v2963
      %v3313 = vsel %vm3293, %v3276, %v2965
      %v3314 = vsel %vm3293, %v3277, %v2967
      %v3315 = vsel %vm3293, %v3278, %v2969
      %v3316 = vsel %vm3293, %v3279, %v2971
      %v3317 = vsel %vm3293, %v3280, %v2973
      %v3318 = vsel %vm3293, %v3281, %v2975
      %v3319 = vsel %vm3293, %v3282, %v2977
      %v3320 = vsel %vm3293, %v3283, %v2979
      %v3321 = vsel %vm3293, %v3284, %v2981
      %v3322 = vsel %vm3293, %v3285, %v2983
      %v3323 = vsel %vm3293, %v3286, %v2985
      %v3324 = vsel %vm3293, %v3287, %v2987
      %v3325 = vsel %vm3293, %v3288, %v2989
      %v3326 = vsel %vm3293, %v3289, %v2991
      %v3327 = vsel %vm3293, %v3290, %v2993
      %v3328 = vsel %vm3293, %v3291, %v2995
      %v3329 = vsel %vm3293, %v3292, %v2997
      %v3330 = vpack.c.bf16 %v3295, %v3294
      %v3331 = vpack.c.bf16 %v3297, %v3296
      %v3332 = vpack.c.bf16 %v3299, %v3298
      %v3333 = vpack.c.bf16 %v3301, %v3300
      %v3334 = vpack.c.bf16 %v3303, %v3302
      %v3335 = vpack.c.bf16 %v3305, %v3304
      %v3336 = vpack.c.bf16 %v3307, %v3306
      %v3337 = vpack.c.bf16 %v3309, %v3308
      %v3338 = vpack.c.bf16 %v3311, %v3310
      %v3339 = vpack.c.bf16 %v3313, %v3312
      %v3340 = vpack.c.bf16 %v3315, %v3314
      %v3341 = vpack.c.bf16 %v3317, %v3316
      %v3342 = vpack.c.bf16 %v3319, %v3318
      %v3343 = vpack.c.bf16 %v3321, %v3320
      %v3344 = vpack.c.bf16 %v3323, %v3322
      %v3345 = vpack.c.bf16 %v3325, %v3324
      %v3346 = vpack.c.bf16 %v3327, %v3326
      %v3347 = vpack.c.bf16 %v3329, %v3328
      %v3348 = vld [vmem:[%s1] sm:$0xf]
      %v3349 = vld [vmem:[%s1 + $0x4] sm:$0xf]
      %v3350 = vld [vmem:[%s1 + $0x8] sm:$0xf]
      %v3351 = vld [vmem:[%s1 + $0xc] sm:$0x3]
      %v3352 = vld [vmem:[%s2] sm:$0x1]
      %v3354 = vperm.slane %v3352, 0
      %v3360 = vunpack.c.l.b16 %v3348
      %v3361 = vunpack.c.l.b16 %v3349
      %v3362 = vunpack.c.l.b16 %v3350
      %v3363 = vunpack.c.l.b16 %v3351
      %v3364 = vpack.c.b16 %v3361, %v3360
      %v3365 = vpack.c.b16 %v3363, %v3362
      %vm3367 = vcmask 220160
      %v3369 = vsel %vm3367, %v3330, 0
      %v3372 = vsel %vm3367, %v3331, 0
      %v3375 = vsel %vm3367, %v3332, 0
      %v3378 = vsel %vm3367, %v3333, 0
      %v3381 = vsel %vm3367, %v3334, 0
      %v3384 = vsel %vm3367, %v3335, 0
      %v3387 = vsel %vm3367, %v3336, 0
      %v3390 = vsel %vm3367, %v3337, 0
      %v3393 = vsel %vm3367, %v3338, 0
      %v3396 = vsel %vm3367, %v3339, 0
      %v3399 = vsel %vm3367, %v3340, 0
      %v3402 = vsel %vm3367, %v3341, 0
      %v3405 = vsel %vm3367, %v3342, 0
      %v3408 = vsel %vm3367, %v3343, 0
      %v3411 = vsel %vm3367, %v3344, 0
      %v3414 = vsel %vm3367, %v3345, 0
      %v3417 = vsel %vm3367, %v3346, 0
      %v3420 = vsel %vm3367, %v3347, 0
      %v3422 = vsel %vm2192, 4294967295, 65535
      %v3423 = vsel %vm1896, %v3422, 0
      %v3425 = vand.u32 %v3365, %v3423
      %3427 = vmatpush.bf16.msra.mxu0 0
      %3428 = vmatpush.bf16.msra.mxu0 0
      %3429 = vmatpush.bf16.msra.mxu0 0
      %3430 = vmatpush.bf16.msra.mxu0 0
      %3431 = vmatpush.bf16.msra.mxu0 0
      %3432 = vmatpush.bf16.msra.mxu0 0
      %3433 = vmatpush.bf16.msra.mxu0 %v3425
      %3434 = vmatpush.bf16.msra.mxu0 %v3364
      %3435 = vmatmul.bf16.gmra.mxu0 %v3369
      %v3436 = vpop.f32.mrf.mxu0
      %v3437 = vadd.f32 %v3354, %v3436
      %v3438 = vpop.f32.mrf.mxu0
      %v3439 = vadd.f32 %v3354, %v3438
      %3440 = vmatmul.bf16.gmra.mxu0 %v3372
      %v3441 = vpop.f32.mrf.mxu0
      %v3442 = vadd.f32 %v3354, %v3441
      %v3443 = vpop.f32.mrf.mxu0
      %v3444 = vadd.f32 %v3354, %v3443
      %3445 = vmatmul.bf16.gmra.mxu0 %v3375
      %v3446 = vpop.f32.mrf.mxu0
      %v3447 = vadd.f32 %v3354, %v3446
      %v3448 = vpop.f32.mrf.mxu0
      %v3449 = vadd.f32 %v3354, %v3448
      %3450 = vmatmul.bf16.gmra.mxu0 %v3378
      %v3451 = vpop.f32.mrf.mxu0
      %v3452 = vadd.f32 %v3354, %v3451
      %v3453 = vpop.f32.mrf.mxu0
      %v3454 = vadd.f32 %v3354, %v3453
      %3455 = vmatmul.bf16.gmra.mxu0 %v3381
      %v3456 = vpop.f32.mrf.mxu0
      %v3457 = vadd.f32 %v3354, %v3456
      %v3458 = vpop.f32.mrf.mxu0
      %v3459 = vadd.f32 %v3354, %v3458
      %3460 = vmatmul.bf16.gmra.mxu0 %v3384
      %v3461 = vpop.f32.mrf.mxu0
      %v3462 = vadd.f32 %v3354, %v3461
      %v3463 = vpop.f32.mrf.mxu0
      %v3464 = vadd.f32 %v3354, %v3463
      %3465 = vmatmul.bf16.gmra.mxu0 %v3387
      %v3466 = vpop.f32.mrf.mxu0
      %v3467 = vadd.f32 %v3354, %v3466
      %v3468 = vpop.f32.mrf.mxu0
      %v3469 = vadd.f32 %v3354, %v3468
      %3470 = vmatmul.bf16.gmra.mxu0 %v3390
      %v3471 = vpop.f32.mrf.mxu0
      %v3472 = vadd.f32 %v3354, %v3471
      %v3473 = vpop.f32.mrf.mxu0
      %v3474 = vadd.f32 %v3354, %v3473
      %3475 = vmatmul.bf16.gmra.mxu0 %v3393
      %v3476 = vpop.f32.mrf.mxu0
      %v3477 = vadd.f32 %v3354, %v3476
      %v3478 = vpop.f32.mrf.mxu0
      %v3479 = vadd.f32 %v3354, %v3478
      %3480 = vmatmul.bf16.gmra.mxu0 %v3396
      %v3481 = vpop.f32.mrf.mxu0
      %v3482 = vadd.f32 %v3354, %v3481
      %v3483 = vpop.f32.mrf.mxu0
      %v3484 = vadd.f32 %v3354, %v3483
      %3485 = vmatmul.bf16.gmra.mxu0 %v3399
      %v3486 = vpop.f32.mrf.mxu0
      %v3487 = vadd.f32 %v3354, %v3486
      %v3488 = vpop.f32.mrf.mxu0
      %v3489 = vadd.f32 %v3354, %v3488
      %3490 = vmatmul.bf16.gmra.mxu0 %v3402
      %v3491 = vpop.f32.mrf.mxu0
      %v3492 = vadd.f32 %v3354, %v3491
      %v3493 = vpop.f32.mrf.mxu0
      %v3494 = vadd.f32 %v3354, %v3493
      %3495 = vmatmul.bf16.gmra.mxu0 %v3405
      %v3496 = vpop.f32.mrf.mxu0
      %v3497 = vadd.f32 %v3354, %v3496
      %v3498 = vpop.f32.mrf.mxu0
      %v3499 = vadd.f32 %v3354, %v3498
      %3500 = vmatmul.bf16.gmra.mxu0 %v3408
      %v3501 = vpop.f32.mrf.mxu0
      %v3502 = vadd.f32 %v3354, %v3501
      %v3503 = vpop.f32.mrf.mxu0
      %v3504 = vadd.f32 %v3354, %v3503
      %3505 = vmatmul.bf16.gmra.mxu0 %v3411
      %v3506 = vpop.f32.mrf.mxu0
      %v3507 = vadd.f32 %v3354, %v3506
      %v3508 = vpop.f32.mrf.mxu0
      %v3509 = vadd.f32 %v3354, %v3508
      %3510 = vmatmul.bf16.gmra.mxu0 %v3414
      %v3511 = vpop.f32.mrf.mxu0
      %v3512 = vadd.f32 %v3354, %v3511
      %v3513 = vpop.f32.mrf.mxu0
      %v3514 = vadd.f32 %v3354, %v3513
      %3515 = vmatmul.bf16.gmra.mxu0 %v3417
      %v3516 = vpop.f32.mrf.mxu0
      %v3517 = vadd.f32 %v3354, %v3516
      %v3518 = vpop.f32.mrf.mxu0
      %v3519 = vadd.f32 %v3354, %v3518
      %3520 = vmatmul.bf16.gmra.mxu0 %v3420
      %v3521 = vpop.f32.mrf.mxu0
      %v3522 = vadd.f32 %v3354, %v3521
      %v3523 = vpop.f32.mrf.mxu0
      %v3524 = vadd.f32 %v3354, %v3523
      %3525 = vdwg.mxu0
      %v3526 = vmul.f32 %v3437, %v1641
      %v3527 = vmul.f32 %v3439, %v1642
      %v3528 = vmul.f32 %v3442, %v1643
      %v3529 = vmul.f32 %v3444, %v1644
      %v3530 = vmul.f32 %v3447, %v1645
      %v3531 = vmul.f32 %v3449, %v1646
      %v3532 = vmul.f32 %v3452, %v1647
      %v3533 = vmul.f32 %v3454, %v1648
      %v3534 = vmul.f32 %v3457, %v1649
      %v3535 = vmul.f32 %v3459, %v1650
      %v3536 = vmul.f32 %v3462, %v1651
      %v3537 = vmul.f32 %v3464, %v1652
      %v3538 = vmul.f32 %v3467, %v1653
      %v3539 = vmul.f32 %v3469, %v1654
      %v3540 = vmul.f32 %v3472, %v1655
      %v3541 = vmul.f32 %v3474, %v1656
      %v3542 = vmul.f32 %v3477, %v1657
      %v3543 = vmul.f32 %v3479, %v1658
      %v3544 = vmul.f32 %v3482, %v1659
      %v3545 = vmul.f32 %v3484, %v1660
      %v3546 = vmul.f32 %v3487, %v1661
      %v3547 = vmul.f32 %v3489, %v1662
      %v3548 = vmul.f32 %v3492, %v1663
      %v3549 = vmul.f32 %v3494, %v1664
      %v3550 = vmul.f32 %v3497, %v1665
      %v3551 = vmul.f32 %v3499, %v1666
      %v3552 = vmul.f32 %v3502, %v1667
      %v3553 = vmul.f32 %v3504, %v1668
      %v3554 = vmul.f32 %v3507, %v1669
      %v3555 = vmul.f32 %v3509, %v1670
      %v3556 = vmul.f32 %v3512, %v1671
      %v3557 = vmul.f32 %v3514, %v1672
      %v3558 = vmul.f32 %v3517, %v1673
      %v3559 = vmul.f32 %v3519, %v1674
      %v3560 = vmul.f32 %v3522, %v1675
      %v3561 = vmul.f32 %v3524, %v1676
      %vm3562 = vcmask 31744
      %v3563 = vsel %vm3562, %v3526, 0.0
      %v3564 = vsel %vm3562, %v3527, 0.0
      %v3565 = vadd.f32 %v3563, %v3564
      %v3566 = vsel %vm3562, %v3528, 0.0
      %v3567 = vadd.f32 %v3565, %v3566
      %v3568 = vsel %vm3562, %v3529, 0.0
      %v3569 = vadd.f32 %v3567, %v3568
      %v3570 = vsel %vm3562, %v3530, 0.0
      %v3571 = vadd.f32 %v3569, %v3570
      %v3572 = vsel %vm3562, %v3531, 0.0
      %v3573 = vadd.f32 %v3571, %v3572
      %v3574 = vsel %vm3562, %v3532, 0.0
      %v3575 = vadd.f32 %v3573, %v3574
      %v3576 = vsel %vm3562, %v3533, 0.0
      %v3577 = vadd.f32 %v3575, %v3576
      %v3578 = vsel %vm3562, %v3534, 0.0
      %v3579 = vadd.f32 %v3577, %v3578
      %v3580 = vsel %vm3562, %v3535, 0.0
      %v3581 = vadd.f32 %v3579, %v3580
      %v3582 = vsel %vm3562, %v3536, 0.0
      %v3583 = vadd.f32 %v3581, %v3582
      %v3584 = vsel %vm3562, %v3537, 0.0
      %v3585 = vadd.f32 %v3583, %v3584
      %v3586 = vsel %vm3562, %v3538, 0.0
      %v3587 = vadd.f32 %v3585, %v3586
      %v3588 = vsel %vm3562, %v3539, 0.0
      %v3589 = vadd.f32 %v3587, %v3588
      %v3590 = vsel %vm3562, %v3540, 0.0
      %v3591 = vadd.f32 %v3589, %v3590
      %v3592 = vsel %vm3562, %v3541, 0.0
      %v3593 = vadd.f32 %v3591, %v3592
      %v3594 = vsel %vm3562, %v3542, 0.0
      %v3595 = vadd.f32 %v3593, %v3594
      %v3596 = vsel %vm3562, %v3543, 0.0
      %v3597 = vadd.f32 %v3595, %v3596
      %v3598 = vsel %vm3562, %v3544, 0.0
      %v3599 = vadd.f32 %v3597, %v3598
      %v3600 = vsel %vm3562, %v3545, 0.0
      %v3601 = vadd.f32 %v3599, %v3600
      %v3602 = vsel %vm3562, %v3546, 0.0
      %v3603 = vadd.f32 %v3601, %v3602
      %v3604 = vsel %vm3562, %v3547, 0.0
      %v3605 = vadd.f32 %v3603, %v3604
      %v3606 = vsel %vm3562, %v3548, 0.0
      %v3607 = vadd.f32 %v3605, %v3606
      %v3608 = vsel %vm3562, %v3549, 0.0
      %v3609 = vadd.f32 %v3607, %v3608
      %v3610 = vsel %vm3562, %v3550, 0.0
      %v3611 = vadd.f32 %v3609, %v3610
      %v3612 = vsel %vm3562, %v3551, 0.0
      %v3613 = vadd.f32 %v3611, %v3612
      %v3614 = vsel %vm3562, %v3552, 0.0
      %v3615 = vadd.f32 %v3613, %v3614
      %v3616 = vsel %vm3562, %v3553, 0.0
      %v3617 = vadd.f32 %v3615, %v3616
      %v3618 = vsel %vm3562, %v3554, 0.0
      %v3619 = vadd.f32 %v3617, %v3618
      %v3620 = vsel %vm3562, %v3555, 0.0
      %v3621 = vadd.f32 %v3619, %v3620
      %v3622 = vsel %vm3562, %v3556, 0.0
      %v3623 = vadd.f32 %v3621, %v3622
      %v3624 = vsel %vm3562, %v3557, 0.0
      %v3625 = vadd.f32 %v3623, %v3624
      %v3626 = vsel %vm3562, %v3558, 0.0
      %v3627 = vadd.f32 %v3625, %v3626
      %v3628 = vsel %vm3562, %v3559, 0.0
      %v3629 = vadd.f32 %v3627, %v3628
      %v3630 = vsel %vm3562, %v3560, 0.0
      %v3631 = vadd.f32 %v3629, %v3630
      %v3632 = vsel %vm3562, %v3561, 0.0
      %v3633 = vadd.f32 %v3631, %v3632
      %v3634 = vrot.slane %v3633, 4
      %v3635 = vadd.f32 %v3633, %v3634
      %v3636 = vrot.slane %v3635, 2
      %v3637 = vadd.f32 %v3635, %v3636
      %v3638 = vrot.slane %v3637, 1
      %v3639 = vadd.f32 %v3637, %v3638
      %v3640 = vmul.f32 %v3639, 0.00390625
      %v3641 = vmul.f32 %v3526, %v3526
      %v3642 = vmul.f32 %v3527, %v3527
      %v3643 = vmul.f32 %v3528, %v3528
      %v3644 = vmul.f32 %v3529, %v3529
      %v3645 = vmul.f32 %v3530, %v3530
      %v3646 = vmul.f32 %v3531, %v3531
      %v3647 = vmul.f32 %v3532, %v3532
      %v3648 = vmul.f32 %v3533, %v3533
      %v3649 = vmul.f32 %v3534, %v3534
      %v3650 = vmul.f32 %v3535, %v3535
      %v3651 = vmul.f32 %v3536, %v3536
      %v3652 = vmul.f32 %v3537, %v3537
      %v3653 = vmul.f32 %v3538, %v3538
      %v3654 = vmul.f32 %v3539, %v3539
      %v3655 = vmul.f32 %v3540, %v3540
      %v3656 = vmul.f32 %v3541, %v3541
      %v3657 = vmul.f32 %v3542, %v3542
      %v3658 = vmul.f32 %v3543, %v3543
      %v3659 = vmul.f32 %v3544, %v3544
      %v3660 = vmul.f32 %v3545, %v3545
      %v3661 = vmul.f32 %v3546, %v3546
      %v3662 = vmul.f32 %v3547, %v3547
      %v3663 = vmul.f32 %v3548, %v3548
      %v3664 = vmul.f32 %v3549, %v3549
      %v3665 = vmul.f32 %v3550, %v3550
      %v3666 = vmul.f32 %v3551, %v3551
      %v3667 = vmul.f32 %v3552, %v3552
      %v3668 = vmul.f32 %v3553, %v3553
      %v3669 = vmul.f32 %v3554, %v3554
      %v3670 = vmul.f32 %v3555, %v3555
      %v3671 = vmul.f32 %v3556, %v3556
      %v3672 = vmul.f32 %v3557, %v3557
      %v3673 = vmul.f32 %v3558, %v3558
      %v3674 = vmul.f32 %v3559, %v3559
      %v3675 = vmul.f32 %v3560, %v3560
      %v3676 = vmul.f32 %v3561, %v3561
      %v3677 = vsel %vm3562, %v3641, 0.0
      %v3678 = vsel %vm3562, %v3642, 0.0
      %v3679 = vadd.f32 %v3677, %v3678
      %v3680 = vsel %vm3562, %v3643, 0.0
      %v3681 = vadd.f32 %v3679, %v3680
      %v3682 = vsel %vm3562, %v3644, 0.0
      %v3683 = vadd.f32 %v3681, %v3682
      %v3684 = vsel %vm3562, %v3645, 0.0
      %v3685 = vadd.f32 %v3683, %v3684
      %v3686 = vsel %vm3562, %v3646, 0.0
      %v3687 = vadd.f32 %v3685, %v3686
      %v3688 = vsel %vm3562, %v3647, 0.0
      %v3689 = vadd.f32 %v3687, %v3688
      %v3690 = vsel %vm3562, %v3648, 0.0
      %v3691 = vadd.f32 %v3689, %v3690
      %v3692 = vsel %vm3562, %v3649, 0.0
      %v3693 = vadd.f32 %v3691, %v3692
      %v3694 = vsel %vm3562, %v3650, 0.0
      %v3695 = vadd.f32 %v3693, %v3694
      %v3696 = vsel %vm3562, %v3651, 0.0
      %v3697 = vadd.f32 %v3695, %v3696
      %v3698 = vsel %vm3562, %v3652, 0.0
      %v3699 = vadd.f32 %v3697, %v3698
      %v3700 = vsel %vm3562, %v3653, 0.0
      %v3701 = vadd.f32 %v3699, %v3700
      %v3702 = vsel %vm3562, %v3654, 0.0
      %v3703 = vadd.f32 %v3701, %v3702
      %v3704 = vsel %vm3562, %v3655, 0.0
      %v3705 = vadd.f32 %v3703, %v3704
      %v3706 = vsel %vm3562, %v3656, 0.0
      %v3707 = vadd.f32 %v3705, %v3706
      %v3708 = vsel %vm3562, %v3657, 0.0
      %v3709 = vadd.f32 %v3707, %v3708
      %v3710 = vsel %vm3562, %v3658, 0.0
      %v3711 = vadd.f32 %v3709, %v3710
      %v3712 = vsel %vm3562, %v3659, 0.0
      %v3713 = vadd.f32 %v3711, %v3712
      %v3714 = vsel %vm3562, %v3660, 0.0
      %v3715 = vadd.f32 %v3713, %v3714
      %v3716 = vsel %vm3562, %v3661, 0.0
      %v3717 = vadd.f32 %v3715, %v3716
      %v3718 = vsel %vm3562, %v3662, 0.0
      %v3719 = vadd.f32 %v3717, %v3718
      %v3720 = vsel %vm3562, %v3663, 0.0
      %v3721 = vadd.f32 %v3719, %v3720
      %v3722 = vsel %vm3562, %v3664, 0.0
      %v3723 = vadd.f32 %v3721, %v3722
      %v3724 = vsel %vm3562, %v3665, 0.0
      %v3725 = vadd.f32 %v3723, %v3724
      %v3726 = vsel %vm3562, %v3666, 0.0
      %v3727 = vadd.f32 %v3725, %v3726
      %v3728 = vsel %vm3562, %v3667, 0.0
      %v3729 = vadd.f32 %v3727, %v3728
      %v3730 = vsel %vm3562, %v3668, 0.0
      %v3731 = vadd.f32 %v3729, %v3730
      %v3732 = vsel %vm3562, %v3669, 0.0
      %v3733 = vadd.f32 %v3731, %v3732
      %v3734 = vsel %vm3562, %v3670, 0.0
      %v3735 = vadd.f32 %v3733, %v3734
      %v3736 = vsel %vm3562, %v3671, 0.0
      %v3737 = vadd.f32 %v3735, %v3736
      %v3738 = vsel %vm3562, %v3672, 0.0
      %v3739 = vadd.f32 %v3737, %v3738
      %v3740 = vsel %vm3562, %v3673, 0.0
      %v3741 = vadd.f32 %v3739, %v3740
      %v3742 = vsel %vm3562, %v3674, 0.0
      %v3743 = vadd.f32 %v3741, %v3742
      %v3744 = vsel %vm3562, %v3675, 0.0
      %v3745 = vadd.f32 %v3743, %v3744
      %v3746 = vsel %vm3562, %v3676, 0.0
      %v3747 = vadd.f32 %v3745, %v3746
      %v3748 = vrot.slane %v3747, 4
      %v3749 = vadd.f32 %v3747, %v3748
      %v3750 = vrot.slane %v3749, 2
      %v3751 = vadd.f32 %v3749, %v3750
      %v3752 = vrot.slane %v3751, 1
      %v3753 = vadd.f32 %v3751, %v3752
      %v3754 = vmul.f32 %v3753, 0.00390625
      %v3755 = vmul.f32 %v3640, %v3640
      %v3756 = vsub.f32 %v3754, %v3755
      %v3757 = vmax.f32 %v3756, 0.0
      %v3758 = vsub.f32 %v3526, %v3640
      %v3759 = vsub.f32 %v3527, %v3640
      %v3760 = vsub.f32 %v3528, %v3640
      %v3761 = vsub.f32 %v3529, %v3640
      %v3762 = vsub.f32 %v3530, %v3640
      %v3763 = vsub.f32 %v3531, %v3640
      %v3764 = vsub.f32 %v3532, %v3640
      %v3765 = vsub.f32 %v3533, %v3640
      %v3766 = vsub.f32 %v3534, %v3640
      %v3767 = vsub.f32 %v3535, %v3640
      %v3768 = vsub.f32 %v3536, %v3640
      %v3769 = vsub.f32 %v3537, %v3640
      %v3770 = vsub.f32 %v3538, %v3640
      %v3771 = vsub.f32 %v3539, %v3640
      %v3772 = vsub.f32 %v3540, %v3640
      %v3773 = vsub.f32 %v3541, %v3640
      %v3774 = vsub.f32 %v3542, %v3640
      %v3775 = vsub.f32 %v3543, %v3640
      %v3776 = vsub.f32 %v3544, %v3640
      %v3777 = vsub.f32 %v3545, %v3640
      %v3778 = vsub.f32 %v3546, %v3640
      %v3779 = vsub.f32 %v3547, %v3640
      %v3780 = vsub.f32 %v3548, %v3640
      %v3781 = vsub.f32 %v3549, %v3640
      %v3782 = vsub.f32 %v3550, %v3640
      %v3783 = vsub.f32 %v3551, %v3640
      %v3784 = vsub.f32 %v3552, %v3640
      %v3785 = vsub.f32 %v3553, %v3640
      %v3786 = vsub.f32 %v3554, %v3640
      %v3787 = vsub.f32 %v3555, %v3640
      %v3788 = vsub.f32 %v3556, %v3640
      %v3789 = vsub.f32 %v3557, %v3640
      %v3790 = vsub.f32 %v3558, %v3640
      %v3791 = vsub.f32 %v3559, %v3640
      %v3792 = vsub.f32 %v3560, %v3640
      %v3793 = vsub.f32 %v3561, %v3640
      %v3794 = vadd.f32 %v3757, 1e-05
      %v3795 = vrsqrt.pop %v3794
      %v3796 = vmul.f32 %v3795, %v3794
      %v3797 = vmul.f32 %v3796, %v3795
      %v3798 = vmul.f32 0.5, %v3797
      %v3799 = vsub.f32 1.5, %v3798
      %v3800 = vmul.f32 %v3795, %v3799
      %vm3801 = vweird.f32 %v3794
      %vm3802 = vweird.f32 %v3795
      %vm3803 = vmor %vm3801, %vm3802
      %v3804 = vsel %vm3803, %v3795, %v3800
      %v3805 = vmul.f32 %v3758, %v3804
      %v3806 = vmul.f32 %v3759, %v3804
      %v3807 = vmul.f32 %v3760, %v3804
      %v3808 = vmul.f32 %v3761, %v3804
      %v3809 = vmul.f32 %v3762, %v3804
      %v3810 = vmul.f32 %v3763, %v3804
      %v3811 = vmul.f32 %v3764, %v3804
      %v3812 = vmul.f32 %v3765, %v3804
      %v3813 = vmul.f32 %v3766, %v3804
      %v3814 = vmul.f32 %v3767, %v3804
      %v3815 = vmul.f32 %v3768, %v3804
      %v3816 = vmul.f32 %v3769, %v3804
      %v3817 = vmul.f32 %v3770, %v3804
      %v3818 = vmul.f32 %v3771, %v3804
      %v3819 = vmul.f32 %v3772, %v3804
      %v3820 = vmul.f32 %v3773, %v3804
      %v3821 = vmul.f32 %v3774, %v3804
      %v3822 = vmul.f32 %v3775, %v3804
      %v3823 = vmul.f32 %v3776, %v3804
      %v3824 = vmul.f32 %v3777, %v3804
      %v3825 = vmul.f32 %v3778, %v3804
      %v3826 = vmul.f32 %v3779, %v3804
      %v3827 = vmul.f32 %v3780, %v3804
      %v3828 = vmul.f32 %v3781, %v3804
      %v3829 = vmul.f32 %v3782, %v3804
      %v3830 = vmul.f32 %v3783, %v3804
      %v3831 = vmul.f32 %v3784, %v3804
      %v3832 = vmul.f32 %v3785, %v3804
      %v3833 = vmul.f32 %v3786, %v3804
      %v3834 = vmul.f32 %v3787, %v3804
      %v3835 = vmul.f32 %v3788, %v3804
      %v3836 = vmul.f32 %v3789, %v3804
      %v3837 = vmul.f32 %v3790, %v3804
      %v3838 = vmul.f32 %v3791, %v3804
      %v3839 = vmul.f32 %v3792, %v3804
      %v3840 = vmul.f32 %v3793, %v3804
      %v3841 = vld [vmem:[%s3] sm:$0x1]
      %v3843 = vperm.slane %v3841, 0
      %v3845 = vmul.f32 %v3805, %v3843
      %v3846 = vmul.f32 %v3806, %v3843
      %v3847 = vmul.f32 %v3807, %v3843
      %v3848 = vmul.f32 %v3808, %v3843
      %v3849 = vmul.f32 %v3809, %v3843
      %v3850 = vmul.f32 %v3810, %v3843
      %v3851 = vmul.f32 %v3811, %v3843
      %v3852 = vmul.f32 %v3812, %v3843
      %v3853 = vmul.f32 %v3813, %v3843
      %v3854 = vmul.f32 %v3814, %v3843
      %v3855 = vmul.f32 %v3815, %v3843
      %v3856 = vmul.f32 %v3816, %v3843
      %v3857 = vmul.f32 %v3817, %v3843
      %v3858 = vmul.f32 %v3818, %v3843
      %v3859 = vmul.f32 %v3819, %v3843
      %v3860 = vmul.f32 %v3820, %v3843
      %v3861 = vmul.f32 %v3821, %v3843
      %v3862 = vmul.f32 %v3822, %v3843
      %v3863 = vmul.f32 %v3823, %v3843
      %v3864 = vmul.f32 %v3824, %v3843
      %v3865 = vmul.f32 %v3825, %v3843
      %v3866 = vmul.f32 %v3826, %v3843
      %v3867 = vmul.f32 %v3827, %v3843
      %v3868 = vmul.f32 %v3828, %v3843
      %v3869 = vmul.f32 %v3829, %v3843
      %v3870 = vmul.f32 %v3830, %v3843
      %v3871 = vmul.f32 %v3831, %v3843
      %v3872 = vmul.f32 %v3832, %v3843
      %v3873 = vmul.f32 %v3833, %v3843
      %v3874 = vmul.f32 %v3834, %v3843
      %v3875 = vmul.f32 %v3835, %v3843
      %v3876 = vmul.f32 %v3836, %v3843
      %v3877 = vmul.f32 %v3837, %v3843
      %v3878 = vmul.f32 %v3838, %v3843
      %v3879 = vmul.f32 %v3839, %v3843
      %v3880 = vmul.f32 %v3840, %v3843
      %v3881 = vld [vmem:[%s4] sm:$0x1]
      %v3883 = vperm.slane %v3881, 0
      %v3885 = vadd.f32 %v3845, %v3883
      %v3886 = vadd.f32 %v3846, %v3883
      %v3887 = vadd.f32 %v3847, %v3883
      %v3888 = vadd.f32 %v3848, %v3883
      %v3889 = vadd.f32 %v3849, %v3883
      %v3890 = vadd.f32 %v3850, %v3883
      %v3891 = vadd.f32 %v3851, %v3883
      %v3892 = vadd.f32 %v3852, %v3883
      %v3893 = vadd.f32 %v3853, %v3883
      %v3894 = vadd.f32 %v3854, %v3883
      %v3895 = vadd.f32 %v3855, %v3883
      %v3896 = vadd.f32 %v3856, %v3883
      %v3897 = vadd.f32 %v3857, %v3883
      %v3898 = vadd.f32 %v3858, %v3883
      %v3899 = vadd.f32 %v3859, %v3883
      %v3900 = vadd.f32 %v3860, %v3883
      %v3901 = vadd.f32 %v3861, %v3883
      %v3902 = vadd.f32 %v3862, %v3883
      %v3903 = vadd.f32 %v3863, %v3883
      %v3904 = vadd.f32 %v3864, %v3883
      %v3905 = vadd.f32 %v3865, %v3883
      %v3906 = vadd.f32 %v3866, %v3883
      %v3907 = vadd.f32 %v3867, %v3883
      %v3908 = vadd.f32 %v3868, %v3883
      %v3909 = vadd.f32 %v3869, %v3883
      %v3910 = vadd.f32 %v3870, %v3883
      %v3911 = vadd.f32 %v3871, %v3883
      %v3912 = vadd.f32 %v3872, %v3883
      %v3913 = vadd.f32 %v3873, %v3883
      %v3914 = vadd.f32 %v3874, %v3883
      %v3915 = vadd.f32 %v3875, %v3883
      %v3916 = vadd.f32 %v3876, %v3883
      %v3917 = vadd.f32 %v3877, %v3883
      %v3918 = vadd.f32 %v3878, %v3883
      %v3919 = vadd.f32 %v3879, %v3883
      %v3920 = vadd.f32 %v3880, %v3883
      %v3921 = vmax.f32 %v3885, 0.0
      %v3922 = vmax.f32 %v3886, 0.0
      %v3923 = vmax.f32 %v3887, 0.0
      %v3924 = vmax.f32 %v3888, 0.0
      %v3925 = vmax.f32 %v3889, 0.0
      %v3926 = vmax.f32 %v3890, 0.0
      %v3927 = vmax.f32 %v3891, 0.0
      %v3928 = vmax.f32 %v3892, 0.0
      %v3929 = vmax.f32 %v3893, 0.0
      %v3930 = vmax.f32 %v3894, 0.0
      %v3931 = vmax.f32 %v3895, 0.0
      %v3932 = vmax.f32 %v3896, 0.0
      %v3933 = vmax.f32 %v3897, 0.0
      %v3934 = vmax.f32 %v3898, 0.0
      %v3935 = vmax.f32 %v3899, 0.0
      %v3936 = vmax.f32 %v3900, 0.0
      %v3937 = vmax.f32 %v3901, 0.0
      %v3938 = vmax.f32 %v3902, 0.0
      %v3939 = vmax.f32 %v3903, 0.0
      %v3940 = vmax.f32 %v3904, 0.0
      %v3941 = vmax.f32 %v3905, 0.0
      %v3942 = vmax.f32 %v3906, 0.0
      %v3943 = vmax.f32 %v3907, 0.0
      %v3944 = vmax.f32 %v3908, 0.0
      %v3945 = vmax.f32 %v3909, 0.0
      %v3946 = vmax.f32 %v3910, 0.0
      %v3947 = vmax.f32 %v3911, 0.0
      %v3948 = vmax.f32 %v3912, 0.0
      %v3949 = vmax.f32 %v3913, 0.0
      %v3950 = vmax.f32 %v3914, 0.0
      %v3951 = vmax.f32 %v3915, 0.0
      %v3952 = vmax.f32 %v3916, 0.0
      %v3953 = vmax.f32 %v3917, 0.0
      %v3954 = vmax.f32 %v3918, 0.0
      %v3955 = vmax.f32 %v3919, 0.0
      %v3956 = vmax.f32 %v3920, 0.0
      %v3957 = vmul.f32 %v3921, %v1641
      %v3958 = vmul.f32 %v3922, %v1642
      %v3959 = vmul.f32 %v3923, %v1643
      %v3960 = vmul.f32 %v3924, %v1644
      %v3961 = vmul.f32 %v3925, %v1645
      %v3962 = vmul.f32 %v3926, %v1646
      %v3963 = vmul.f32 %v3927, %v1647
      %v3964 = vmul.f32 %v3928, %v1648
      %v3965 = vmul.f32 %v3929, %v1649
      %v3966 = vmul.f32 %v3930, %v1650
      %v3967 = vmul.f32 %v3931, %v1651
      %v3968 = vmul.f32 %v3932, %v1652
      %v3969 = vmul.f32 %v3933, %v1653
      %v3970 = vmul.f32 %v3934, %v1654
      %v3971 = vmul.f32 %v3935, %v1655
      %v3972 = vmul.f32 %v3936, %v1656
      %v3973 = vmul.f32 %v3937, %v1657
      %v3974 = vmul.f32 %v3938, %v1658
      %v3975 = vmul.f32 %v3939, %v1659
      %v3976 = vmul.f32 %v3940, %v1660
      %v3977 = vmul.f32 %v3941, %v1661
      %v3978 = vmul.f32 %v3942, %v1662
      %v3979 = vmul.f32 %v3943, %v1663
      %v3980 = vmul.f32 %v3944, %v1664
      %v3981 = vmul.f32 %v3945, %v1665
      %v3982 = vmul.f32 %v3946, %v1666
      %v3983 = vmul.f32 %v3947, %v1667
      %v3984 = vmul.f32 %v3948, %v1668
      %v3985 = vmul.f32 %v3949, %v1669
      %v3986 = vmul.f32 %v3950, %v1670
      %v3987 = vmul.f32 %v3951, %v1671
      %v3988 = vmul.f32 %v3952, %v1672
      %v3989 = vmul.f32 %v3953, %v1673
      %v3990 = vmul.f32 %v3954, %v1674
      %v3991 = vmul.f32 %v3955, %v1675
      %v3992 = vmul.f32 %v3956, %v1676
      %v4029 = vrot.slane %v3957, 5
      %v4030 = vrot.slane %v3958, 5
      %v4031 = vsel %vm2670, %v4029, %v4030
      %v4032 = vrot.slane %v3959, 5
      %v4033 = vsel %vm2670, %v4030, %v4032
      %v4034 = vrot.slane %v3960, 5
      %v4035 = vsel %vm2670, %v4032, %v4034
      %v4036 = vrot.slane %v3961, 5
      %v4037 = vsel %vm2670, %v4034, %v4036
      %v4038 = vrot.slane %v3962, 5
      %v4039 = vsel %vm2670, %v4036, %v4038
      %v4040 = vrot.slane %v3963, 5
      %v4041 = vsel %vm2670, %v4038, %v4040
      %v4042 = vrot.slane %v3964, 5
      %v4043 = vsel %vm2670, %v4040, %v4042
      %v4044 = vrot.slane %v3965, 5
      %v4045 = vsel %vm2670, %v4042, %v4044
      %v4046 = vrot.slane %v3966, 5
      %v4047 = vsel %vm2670, %v4044, %v4046
      %v4048 = vrot.slane %v3967, 5
      %v4049 = vsel %vm2670, %v4046, %v4048
      %v4050 = vrot.slane %v3968, 5
      %v4051 = vsel %vm2670, %v4048, %v4050
      %v4052 = vrot.slane %v3969, 5
      %v4053 = vsel %vm2670, %v4050, %v4052
      %v4054 = vrot.slane %v3970, 5
      %v4055 = vsel %vm2670, %v4052, %v4054
      %v4056 = vrot.slane %v3971, 5
      %v4057 = vsel %vm2670, %v4054, %v4056
      %v4058 = vrot.slane %v3972, 5
      %v4059 = vsel %vm2670, %v4056, %v4058
      %v4060 = vrot.slane %v3973, 5
      %v4061 = vsel %vm2670, %v4058, %v4060
      %v4062 = vrot.slane %v3974, 5
      %v4063 = vsel %vm2670, %v4060, %v4062
      %v4064 = vrot.slane %v3975, 5
      %v4065 = vsel %vm2670, %v4062, %v4064
      %v4066 = vrot.slane %v3976, 5
      %v4067 = vsel %vm2670, %v4064, %v4066
      %v4068 = vrot.slane %v3977, 5
      %v4069 = vsel %vm2670, %v4066, %v4068
      %v4070 = vrot.slane %v3978, 5
      %v4071 = vsel %vm2670, %v4068, %v4070
      %v4072 = vrot.slane %v3979, 5
      %v4073 = vsel %vm2670, %v4070, %v4072
      %v4074 = vrot.slane %v3980, 5
      %v4075 = vsel %vm2670, %v4072, %v4074
      %v4076 = vrot.slane %v3981, 5
      %v4077 = vsel %vm2670, %v4074, %v4076
      %v4078 = vrot.slane %v3982, 5
      %v4079 = vsel %vm2670, %v4076, %v4078
      %v4080 = vrot.slane %v3983, 5
      %v4081 = vsel %vm2670, %v4078, %v4080
      %v4082 = vrot.slane %v3984, 5
      %v4083 = vsel %vm2670, %v4080, %v4082
      %v4084 = vrot.slane %v3985, 5
      %v4085 = vsel %vm2670, %v4082, %v4084
      %v4086 = vrot.slane %v3986, 5
      %v4087 = vsel %vm2670, %v4084, %v4086
      %v4088 = vrot.slane %v3987, 5
      %v4089 = vsel %vm2670, %v4086, %v4088
      %v4090 = vrot.slane %v3988, 5
      %v4091 = vsel %vm2670, %v4088, %v4090
      %v4092 = vrot.slane %v3989, 5
      %v4093 = vsel %vm2670, %v4090, %v4092
      %v4094 = vrot.slane %v3990, 5
      %v4095 = vsel %vm2670, %v4092, %v4094
      %v4096 = vrot.slane %v3991, 5
      %v4097 = vsel %vm2670, %v4094, %v4096
      %v4098 = vrot.slane %v3992, 5
      %v4099 = vsel %vm2670, %v4096, %v4098
      %v4137 = vsel %vm2670, 0.0, %v4029
      %v4138 = vsel %vm2670, %v4098, 0.0
      %v4139 = vpack.c.bf16 0.0, 0.0
      %v4140 = vpack.c.bf16 %v4137, %v4137
      %v4141 = vpack.c.bf16 %v4031, %v4031
      %v4142 = vpack.c.bf16 %v4033, %v4033
      %v4143 = vpack.c.bf16 %v4035, %v4035
      %v4144 = vpack.c.bf16 %v4037, %v4037
      %v4145 = vpack.c.bf16 %v4039, %v4039
      %v4146 = vpack.c.bf16 %v4041, %v4041
      %v4147 = vpack.c.bf16 %v4043, %v4043
      %v4148 = vpack.c.bf16 %v4045, %v4045
      %v4149 = vpack.c.bf16 %v4047, %v4047
      %v4150 = vpack.c.bf16 %v4049, %v4049
      %v4151 = vpack.c.bf16 %v4051, %v4051
      %v4152 = vpack.c.bf16 %v4053, %v4053
      %v4153 = vpack.c.bf16 %v4055, %v4055
      %v4154 = vpack.c.bf16 %v4057, %v4057
      %v4155 = vpack.c.bf16 %v4059, %v4059
      %v4156 = vpack.c.bf16 %v4061, %v4061
      %v4157 = vpack.c.bf16 %v4063, %v4063
      %v4158 = vpack.c.bf16 %v4065, %v4065
      %v4159 = vpack.c.bf16 %v4067, %v4067
      %v4160 = vpack.c.bf16 %v4069, %v4069
      %v4161 = vpack.c.bf16 %v4071, %v4071
      %v4162 = vpack.c.bf16 %v4073, %v4073
      %v4163 = vpack.c.bf16 %v4075, %v4075
      %v4164 = vpack.c.bf16 %v4077, %v4077
      %v4165 = vpack.c.bf16 %v4079, %v4079
      %v4166 = vpack.c.bf16 %v4081, %v4081
      %v4167 = vpack.c.bf16 %v4083, %v4083
      %v4168 = vpack.c.bf16 %v4085, %v4085
      %v4169 = vpack.c.bf16 %v4087, %v4087
      %v4170 = vpack.c.bf16 %v4089, %v4089
      %v4171 = vpack.c.bf16 %v4091, %v4091
      %v4172 = vpack.c.bf16 %v4093, %v4093
      %v4173 = vpack.c.bf16 %v4095, %v4095
      %v4174 = vpack.c.bf16 %v4097, %v4097
      %v4175 = vpack.c.bf16 %v4099, %v4099
      %v4176 = vpack.c.bf16 %v4138, %v4138
      %vm4177 = vcmask 27648
      %4178 = vst.msk [vmem:[%s224] sm:$0xf] %vm4177, %v4139
      %4179 = vst.msk [vmem:[%s224 + $0x4] sm:$0xf] %vm4177, %v4139
      %4180 = vst.msk [vmem:[%s224 + $0x8] sm:$0xf] %vm4177, %v4140
      %4181 = vst.msk [vmem:[%s224 + $0xc] sm:$0xf] %vm4177, %v4141
      %4182 = vst.msk [vmem:[%s224 + $0x10] sm:$0xf] %vm4177, %v4142
      %4183 = vst.msk [vmem:[%s224 + $0x14] sm:$0xf] %vm4177, %v4143
      %4184 = vst.msk [vmem:[%s224 + $0x18] sm:$0xf] %vm4177, %v4144
      %4185 = vst.msk [vmem:[%s224 + $0x1c] sm:$0xf] %vm4177, %v4145
      %4186 = vst.msk [vmem:[%s224 + $0x20] sm:$0xf] %vm4177, %v4146
      %4187 = vst.msk [vmem:[%s224 + $0x24] sm:$0xf] %vm4177, %v4147
      %4188 = vst.msk [vmem:[%s224 + $0x28] sm:$0xf] %vm4177, %v4148
      %4189 = vst.msk [vmem:[%s224 + $0x2c] sm:$0xf] %vm4177, %v4149
      %4190 = vst.msk [vmem:[%s224 + $0x30] sm:$0xf] %vm4177, %v4150
      %4191 = vst.msk [vmem:[%s224 + $0x34] sm:$0xf] %vm4177, %v4151
      %4192 = vst.msk [vmem:[%s224 + $0x38] sm:$0xf] %vm4177, %v4152
      %4193 = vst.msk [vmem:[%s224 + $0x3c] sm:$0xf] %vm4177, %v4153
      %4194 = vst.msk [vmem:[%s224 + $0x40] sm:$0xf] %vm4177, %v4154
      %4195 = vst.msk [vmem:[%s224 + $0x44] sm:$0xf] %vm4177, %v4155
      %4196 = vst.msk [vmem:[%s224 + $0x48] sm:$0xf] %vm4177, %v4156
      %4197 = vst.msk [vmem:[%s224 + $0x4c] sm:$0xf] %vm4177, %v4157
      %4198 = vst.msk [vmem:[%s224 + $0x50] sm:$0xf] %vm4177, %v4158
      %4199 = vst.msk [vmem:[%s224 + $0x54] sm:$0xf] %vm4177, %v4159
      %4200 = vst.msk [vmem:[%s224 + $0x58] sm:$0xf] %vm4177, %v4160
      %4201 = vst.msk [vmem:[%s224 + $0x5c] sm:$0xf] %vm4177, %v4161
      %4202 = vst.msk [vmem:[%s224 + $0x60] sm:$0xf] %vm4177, %v4162
      %4203 = vst.msk [vmem:[%s224 + $0x64] sm:$0xf] %vm4177, %v4163
      %4204 = vst.msk [vmem:[%s224 + $0x68] sm:$0xf] %vm4177, %v4164
      %4205 = vst.msk [vmem:[%s224 + $0x6c] sm:$0xf] %vm4177, %v4165
      %4206 = vst.msk [vmem:[%s224 + $0x70] sm:$0xf] %vm4177, %v4166
      %4207 = vst.msk [vmem:[%s224 + $0x74] sm:$0xf] %vm4177, %v4167
      %4208 = vst.msk [vmem:[%s224 + $0x78] sm:$0xf] %vm4177, %v4168
      %4209 = vst.msk [vmem:[%s224 + $0x7c] sm:$0xf] %vm4177, %v4169
      %4210 = vst.msk [vmem:[%s224 + $0x80] sm:$0xf] %vm4177, %v4170
      %4211 = vst.msk [vmem:[%s224 + $0x84] sm:$0xf] %vm4177, %v4171
      %4212 = vst.msk [vmem:[%s224 + $0x88] sm:$0xf] %vm4177, %v4172
      %4213 = vst.msk [vmem:[%s224 + $0x8c] sm:$0xf] %vm4177, %v4173
      %4214 = vst.msk [vmem:[%s224 + $0x90] sm:$0xf] %vm4177, %v4174
      %4215 = vst.msk [vmem:[%s224 + $0x94] sm:$0xf] %vm4177, %v4175
      %4216 = vst.msk [vmem:[%s224 + $0x98] sm:$0xf] %vm4177, %v4176
      %4217 = vst.msk [vmem:[%s224 + $0x9c] sm:$0xf] %vm4177, %v4139
      %4218 = vst.msk [vmem:[%s224 + $0xa0] sm:$0xf] %vm4177, %v4139
      %4219 = vst.msk [vmem:[%s224 + $0xa4] sm:$0xf] %vm4177, %v4139
      %p4220 = scmp.lt.s32.totalorder %s16, 1
      %s4221 = scalar_select %p4220, %s16, 1
      %s4222 = smul.addr %s4221, 42
      %s4223 = smul.addr %s4222, 4
      %s4224 = scalar_lea.vmem %s5, %s4223
      // Predicated region
      $region41: #{_lambda_.4} parent=39 // pred_check
        %p4225 = pneg %p144
      $region42: #{_lambda_.4} parent=39 // pred_check_branch
        %4227 = sbr.rel (%p4225) target = $region44
      $region43: #{_lambda_.4} parent=39 // pred_region
        _
      $region44: #{_lambda_.4} parent=39 // pred_fallthru
        _
    $region40: #{_lambda_.4} parent=5 // pred_fallthru
      _
    %p4228 = scmp.le.s32.totalorder 2, %s11
    // Predicated region
    $region45: #{_lambda_.4} parent=5 // pred_check
      %p4229 = pneg %p4228
    $region46: #{_lambda_.4} parent=5 // pred_check_branch
      %4231 = sbr.rel (%p4229) target = $region48
    $region47: #{_lambda_.4} parent=5 // pred_region
      %s4232 = ssub.s32 %s11, 2
      // Predicated region
      $region49: #{_lambda_.4} parent=47 // pred_check
        %p4233 = pneg %p150
      $region50: #{_lambda_.4} parent=47 // pred_check_branch
        %4235 = sbr.rel (%p4233) target = $region52
      $region51: #{_lambda_.4} parent=47 // pred_region
        %p4236 = scmp.lt.s32.totalorder %s17, 1
        %s4237 = scalar_select %p4236, %s17, 1
        %s4238 = smul.addr %s4237, 42
        %s4239 = smul.addr %s4238, 4
        %s4240 = scalar_lea.vmem %s5, %s4239
      $region52: #{_lambda_.4} parent=47 // pred_fallthru
        _
    $region48: #{_lambda_.4} parent=5 // pred_fallthru
      _
  $region6: #{_lambda_.4} parent=0 // loop_footer
    %s15 = sadd.s32 1, %s11
  $region7: #{_lambda_.4} parent=0 // loop_footer_branch
    %10 = sbr.rel target = $region3
  $region8: #{_lambda_.4} parent=0 // loop_exit
    _

// kernel: _lambda_.7
$region0: #{_lambda_.7}
  #allocation0 [shape = 'u32[]', space=smem, size = 0x4, offset = 0x4, fixed_abs, tag = 'smem constant byte address 0x4 - core index']
  #allocation1 [shape = 'u32[72,128]{1,0:T(1,128)}', space=vmem, size = 0x9000, scoped, tag = 'internal scratch']
  %s0 = inlined_call_operand.vmem [shape: bf16[2,896], index: 0, kind: input, shape index: {}]
  %s1 = inlined_call_operand.vmem [shape: bf16[896,32], index: 1, kind: input, shape index: {}]
  %s2 = inlined_call_operand.vmem [shape: f32[1,32], index: 2, kind: input, shape index: {}]
  %s3 = inlined_call_operand.vmem [shape: bf16[32,32], index: 3, kind: input, shape index: {}]
  %s4 = inlined_call_operand.vmem [shape: f32[1,32], index: 4, kind: input, shape index: {}]
  %s5 = inlined_call_operand.vmem [shape: bf16[32,16], index: 5, kind: input, shape index: {}]
  %s6 = inlined_call_operand.vmem [shape: f32[1,16], index: 6, kind: input, shape index: {}]
  %s7 = inlined_call_operand.vmem [shape: bf16[16,16], index: 7, kind: input, shape index: {}]
  %s8 = inlined_call_operand.vmem [shape: f32[1,16], index: 8, kind: input, shape index: {}]
  %s9 = inlined_call_operand.hbm [shape: f32[2,16], index: 9, kind: output, shape index: {}]
  %s10 = sld [smem:[#allocation0]]
  $region46: #{_lambda_.7} parent=0
    _
  %s12 = ssub.s32 1, %s10
  %s13 = scalar_select 0, %s12, %s10
  $region1: #{_lambda_.7} parent=0
    #allocation2 [shape = 'u8[1024]{0}', space=vmem, size = 0x400, scoped, tag = 'output window, operand 0, single buffered']
    #allocation3 [shape = 's32[1]{0}', space=sflag, size = 0x4, scoped, tag = 'scoped memory for _lambda_.7']
    %14 = vsyncpa [#allocation3], 0
    // Predicated region
    $region2: #{_lambda_.7} parent=1 // pred_check
      _
    $region3: #{_lambda_.7} parent=1 // pred_check_branch
      %16 = sbr.rel (0) target = $region5
    $region4: #{_lambda_.7} parent=1 // pred_region
      _
    $region5: #{_lambda_.7} parent=1 // pred_fallthru
      _
    // Predicated region
    $region6: #{_lambda_.7} parent=1 // pred_check
      _
    $region7: #{_lambda_.7} parent=1 // pred_check_branch
      %18 = sbr.rel (0) target = $region9
    $region8: #{_lambda_.7} parent=1 // pred_region
      _
    $region9: #{_lambda_.7} parent=1 // pred_fallthru
      _
    // Predicated region
    $region10: #{_lambda_.7} parent=1 // pred_check
      _
    $region11: #{_lambda_.7} parent=1 // pred_check_branch
      %20 = sbr.rel (0) target = $region13
    $region12: #{_lambda_.7} parent=1 // pred_region
      _
    $region13: #{_lambda_.7} parent=1 // pred_fallthru
      _
    // Predicated region
    $region14: #{_lambda_.7} parent=1 // pred_check
      _
    $region15: #{_lambda_.7} parent=1 // pred_check_branch
      %22 = sbr.rel (0) target = $region17
    $region16: #{_lambda_.7} parent=1 // pred_region
      _
    $region17: #{_lambda_.7} parent=1 // pred_fallthru
      _
    // Predicated region
    $region18: #{_lambda_.7} parent=1 // pred_check
      _
    $region19: #{_lambda_.7} parent=1 // pred_check_branch
      %24 = sbr.rel (0) target = $region21
    $region20: #{_lambda_.7} parent=1 // pred_region
      _
    $region21: #{_lambda_.7} parent=1 // pred_fallthru
      _
    // Predicated region
    $region22: #{_lambda_.7} parent=1 // pred_check
      _
    $region23: #{_lambda_.7} parent=1 // pred_check_branch
      %26 = sbr.rel (0) target = $region25
    $region24: #{_lambda_.7} parent=1 // pred_region
      _
    $region25: #{_lambda_.7} parent=1 // pred_fallthru
      _
    // Predicated region
    $region26: #{_lambda_.7} parent=1 // pred_check
      _
    $region27: #{_lambda_.7} parent=1 // pred_check_branch
      %28 = sbr.rel (0) target = $region29
    $region28: #{_lambda_.7} parent=1 // pred_region
      _
    $region29: #{_lambda_.7} parent=1 // pred_fallthru
      _
    // Predicated region
    $region30: #{_lambda_.7} parent=1 // pred_check
      _
    $region31: #{_lambda_.7} parent=1 // pred_check_branch
      %30 = sbr.rel (0) target = $region33
    $region32: #{_lambda_.7} parent=1 // pred_region
      _
    $region33: #{_lambda_.7} parent=1 // pred_fallthru
      _
    // Predicated region
    $region34: #{_lambda_.7} parent=1 // pred_check
      _
    $region35: #{_lambda_.7} parent=1 // pred_check_branch
      %32 = sbr.rel (0) target = $region37
    $region36: #{_lambda_.7} parent=1 // pred_region
      _
    $region37: #{_lambda_.7} parent=1 // pred_fallthru
      _
    %v34 = vld [vmem:[%s0] sm:$0x7f]
    %v35 = vld [vmem:[%s1] sm:$0xf]
    %v36 = vld [vmem:[%s1 + $0x4] sm:$0xf]
    %v37 = vld [vmem:[%s1 + $0x8] sm:$0xf]
    %v38 = vld [vmem:[%s1 + $0xc] sm:$0xf]
    %v39 = vld [vmem:[%s1 + $0x10] sm:$0xf]
    %v40 = vld [vmem:[%s1 + $0x14] sm:$0xf]
    %v41 = vld [vmem:[%s1 + $0x18] sm:$0xf]
    %v42 = vld [vmem:[%s1 + $0x1c] sm:$0xf]
    %v43 = vld [vmem:[%s1 + $0x20] sm:$0xf]
    %v44 = vld [vmem:[%s1 + $0x24] sm:$0xf]
    %v45 = vld [vmem:[%s1 + $0x28] sm:$0xf]
    %v46 = vld [vmem:[%s1 + $0x2c] sm:$0xf]
    %v47 = vld [vmem:[%s1 + $0x30] sm:$0xf]
    %v48 = vld [vmem:[%s1 + $0x34] sm:$0xf]
    %v49 = vld [vmem:[%s1 + $0x38] sm:$0xf]
    %v50 = vld [vmem:[%s1 + $0x3c] sm:$0xf]
    %v51 = vld [vmem:[%s1 + $0x40] sm:$0xf]
    %v52 = vld [vmem:[%s1 + $0x44] sm:$0xf]
    %v53 = vld [vmem:[%s1 + $0x48] sm:$0xf]
    %v54 = vld [vmem:[%s1 + $0x4c] sm:$0xf]
    %v55 = vld [vmem:[%s1 + $0x50] sm:$0xf]
    %v56 = vld [vmem:[%s1 + $0x54] sm:$0xf]
    %v57 = vld [vmem:[%s1 + $0x58] sm:$0xf]
    %v58 = vld [vmem:[%s1 + $0x5c] sm:$0xf]
    %v59 = vld [vmem:[%s1 + $0x60] sm:$0xf]
    %v60 = vld [vmem:[%s1 + $0x64] sm:$0xf]
    %v61 = vld [vmem:[%s1 + $0x68] sm:$0xf]
    %v62 = vld [vmem:[%s1 + $0x6c] sm:$0xf]
    %v63 = vld [vmem:[%s1 + $0x70] sm:$0xf]
    %v64 = vld [vmem:[%s1 + $0x74] sm:$0xf]
    %v65 = vld [vmem:[%s1 + $0x78] sm:$0xf]
    %v66 = vld [vmem:[%s1 + $0x7c] sm:$0xf]
    %v67 = vld [vmem:[%s1 + $0x80] sm:$0xf]
    %v68 = vld [vmem:[%s1 + $0x84] sm:$0xf]
    %v69 = vld [vmem:[%s1 + $0x88] sm:$0xf]
    %v70 = vld [vmem:[%s1 + $0x8c] sm:$0xf]
    %v71 = vld [vmem:[%s1 + $0x90] sm:$0xf]
    %v72 = vld [vmem:[%s1 + $0x94] sm:$0xf]
    %v73 = vld [vmem:[%s1 + $0x98] sm:$0xf]
    %v74 = vld [vmem:[%s1 + $0x9c] sm:$0xf]
    %v75 = vld [vmem:[%s1 + $0xa0] sm:$0xf]
    %v76 = vld [vmem:[%s1 + $0xa4] sm:$0xf]
    %v77 = vld [vmem:[%s1 + $0xa8] sm:$0xf]
    %v78 = vld [vmem:[%s1 + $0xac] sm:$0xf]
    %v79 = vld [vmem:[%s1 + $0xb0] sm:$0xf]
    %v80 = vld [vmem:[%s1 + $0xb4] sm:$0xf]
    %v81 = vld [vmem:[%s1 + $0xb8] sm:$0xf]
    %v82 = vld [vmem:[%s1 + $0xbc] sm:$0xf]
    %v83 = vld [vmem:[%s1 + $0xc0] sm:$0xf]
    %v84 = vld [vmem:[%s1 + $0xc4] sm:$0xf]
    %v85 = vld [vmem:[%s1 + $0xc8] sm:$0xf]
    %v86 = vld [vmem:[%s1 + $0xcc] sm:$0xf]
    %v87 = vld [vmem:[%s1 + $0xd0] sm:$0xf]
    %v88 = vld [vmem:[%s1 + $0xd4] sm:$0xf]
    %v89 = vld [vmem:[%s1 + $0xd8] sm:$0xf]
    %v90 = vld [vmem:[%s1 + $0xdc] sm:$0xf]
    %v91 = vld [vmem:[%s1 + $0xe0] sm:$0xf]
    %v92 = vld [vmem:[%s1 + $0xe4] sm:$0xf]
    %v93 = vld [vmem:[%s1 + $0xe8] sm:$0xf]
    %v94 = vld [vmem:[%s1 + $0xec] sm:$0xf]
    %v95 = vld [vmem:[%s1 + $0xf0] sm:$0xf]
    %v96 = vld [vmem:[%s1 + $0xf4] sm:$0xf]
    %v97 = vld [vmem:[%s1 + $0xf8] sm:$0xf]
    %v98 = vld [vmem:[%s1 + $0xfc] sm:$0xf]
    %v99 = vld [vmem:[%s1 + $0x100] sm:$0xf]
    %v100 = vld [vmem:[%s1 + $0x104] sm:$0xf]
    %v101 = vld [vmem:[%s1 + $0x108] sm:$0xf]
    %v102 = vld [vmem:[%s1 + $0x10c] sm:$0xf]
    %v103 = vld [vmem:[%s1 + $0x110] sm:$0xf]
    %v104 = vld [vmem:[%s1 + $0x114] sm:$0xf]
    %v105 = vld [vmem:[%s1 + $0x118] sm:$0xf]
    %v106 = vld [vmem:[%s1 + $0x11c] sm:$0xf]
    %v107 = vld [vmem:[%s1 + $0x120] sm:$0xf]
    %v108 = vld [vmem:[%s1 + $0x124] sm:$0xf]
    %v109 = vld [vmem:[%s1 + $0x128] sm:$0xf]
    %v110 = vld [vmem:[%s1 + $0x12c] sm:$0xf]
    %v111 = vld [vmem:[%s1 + $0x130] sm:$0xf]
    %v112 = vld [vmem:[%s1 + $0x134] sm:$0xf]
    %v113 = vld [vmem:[%s1 + $0x138] sm:$0xf]
    %v114 = vld [vmem:[%s1 + $0x13c] sm:$0xf]
    %v115 = vld [vmem:[%s1 + $0x140] sm:$0xf]
    %v116 = vld [vmem:[%s1 + $0x144] sm:$0xf]
    %v117 = vld [vmem:[%s1 + $0x148] sm:$0xf]
    %v118 = vld [vmem:[%s1 + $0x14c] sm:$0xf]
    %v119 = vld [vmem:[%s1 + $0x150] sm:$0xf]
    %v120 = vld [vmem:[%s1 + $0x154] sm:$0xf]
    %v121 = vld [vmem:[%s1 + $0x158] sm:$0xf]
    %v122 = vld [vmem:[%s1 + $0x15c] sm:$0xf]
    %v123 = vld [vmem:[%s1 + $0x160] sm:$0xf]
    %v124 = vld [vmem:[%s1 + $0x164] sm:$0xf]
    %v125 = vld [vmem:[%s1 + $0x168] sm:$0xf]
    %v126 = vld [vmem:[%s1 + $0x16c] sm:$0xf]
    %v127 = vld [vmem:[%s1 + $0x170] sm:$0xf]
    %v128 = vld [vmem:[%s1 + $0x174] sm:$0xf]
    %v129 = vld [vmem:[%s1 + $0x178] sm:$0xf]
    %v130 = vld [vmem:[%s1 + $0x17c] sm:$0xf]
    %v131 = vld [vmem:[%s1 + $0x180] sm:$0xf]
    %v132 = vld [vmem:[%s1 + $0x184] sm:$0xf]
    %v133 = vld [vmem:[%s1 + $0x188] sm:$0xf]
    %v134 = vld [vmem:[%s1 + $0x18c] sm:$0xf]
    %v135 = vld [vmem:[%s1 + $0x190] sm:$0xf]
    %v136 = vld [vmem:[%s1 + $0x194] sm:$0xf]
    %v137 = vld [vmem:[%s1 + $0x198] sm:$0xf]
    %v138 = vld [vmem:[%s1 + $0x19c] sm:$0xf]
    %v139 = vld [vmem:[%s1 + $0x1a0] sm:$0xf]
    %v140 = vld [vmem:[%s1 + $0x1a4] sm:$0xf]
    %v141 = vld [vmem:[%s1 + $0x1a8] sm:$0xf]
    %v142 = vld [vmem:[%s1 + $0x1ac] sm:$0xf]
    %v143 = vld [vmem:[%s1 + $0x1b0] sm:$0xf]
    %v144 = vld [vmem:[%s1 + $0x1b4] sm:$0xf]
    %v145 = vld [vmem:[%s1 + $0x1b8] sm:$0xf]
    %v146 = vld [vmem:[%s1 + $0x1bc] sm:$0xf]
    %v147 = vld [vmem:[%s2] sm:$0x1]
    %v149 = vperm.slane %v147, 0
    %152 = vst [vmem:[#allocation1] ss:$9 sm:$0xff] %v34
    %v153 = vld [vmem:[#allocation1] sm:$0xff]
    %v154 = vld [vmem:[#allocation1 + $0x9] sm:$0xff]
    %v155 = vld [vmem:[#allocation1 + $0x12] sm:$0xff]
    %v156 = vld [vmem:[#allocation1 + $0x1b] sm:$0xff]
    %v157 = vld [vmem:[#allocation1 + $0x24] sm:$0xff]
    %v158 = vld [vmem:[#allocation1 + $0x2d] sm:$0xff]
    %v159 = vld [vmem:[#allocation1 + $0x36] sm:$0xff]
    %v279 = vunpack.c.l.b16 %v35
    %v280 = vunpack.c.l.b16 %v36
    %v281 = vunpack.c.l.b16 %v37
    %v282 = vunpack.c.l.b16 %v38
    %v283 = vunpack.c.l.b16 %v39
    %v284 = vunpack.c.l.b16 %v40
    %v285 = vunpack.c.l.b16 %v41
    %v286 = vunpack.c.l.b16 %v42
    %v287 = vunpack.c.l.b16 %v43
    %v288 = vunpack.c.l.b16 %v44
    %v289 = vunpack.c.l.b16 %v45
    %v290 = vunpack.c.l.b16 %v46
    %v291 = vunpack.c.l.b16 %v47
    %v292 = vunpack.c.l.b16 %v48
    %v293 = vunpack.c.l.b16 %v49
    %v294 = vunpack.c.l.b16 %v50
    %v295 = vunpack.c.l.b16 %v51
    %v296 = vunpack.c.l.b16 %v52
    %v297 = vunpack.c.l.b16 %v53
    %v298 = vunpack.c.l.b16 %v54
    %v299 = vunpack.c.l.b16 %v55
    %v300 = vunpack.c.l.b16 %v56
    %v301 = vunpack.c.l.b16 %v57
    %v302 = vunpack.c.l.b16 %v58
    %v303 = vunpack.c.l.b16 %v59
    %v304 = vunpack.c.l.b16 %v60
    %v305 = vunpack.c.l.b16 %v61
    %v306 = vunpack.c.l.b16 %v62
    %v307 = vunpack.c.l.b16 %v63
    %v308 = vunpack.c.l.b16 %v64
    %v309 = vunpack.c.l.b16 %v65
    %v310 = vunpack.c.l.b16 %v66
    %v311 = vunpack.c.l.b16 %v67
    %v312 = vunpack.c.l.b16 %v68
    %v313 = vunpack.c.l.b16 %v69
    %v314 = vunpack.c.l.b16 %v70
    %v315 = vunpack.c.l.b16 %v71
    %v316 = vunpack.c.l.b16 %v72
    %v317 = vunpack.c.l.b16 %v73
    %v318 = vunpack.c.l.b16 %v74
    %v319 = vunpack.c.l.b16 %v75
    %v320 = vunpack.c.l.b16 %v76
    %v321 = vunpack.c.l.b16 %v77
    %v322 = vunpack.c.l.b16 %v78
    %v323 = vunpack.c.l.b16 %v79
    %v324 = vunpack.c.l.b16 %v80
    %v325 = vunpack.c.l.b16 %v81
    %v326 = vunpack.c.l.b16 %v82
    %v327 = vunpack.c.l.b16 %v83
    %v328 = vunpack.c.l.b16 %v84
    %v329 = vunpack.c.l.b16 %v85
    %v330 = vunpack.c.l.b16 %v86
    %v331 = vunpack.c.l.b16 %v87
    %v332 = vunpack.c.l.b16 %v88
    %v333 = vunpack.c.l.b16 %v89
    %v334 = vunpack.c.l.b16 %v90
    %v335 = vunpack.c.l.b16 %v91
    %v336 = vunpack.c.l.b16 %v92
    %v337 = vunpack.c.l.b16 %v93
    %v338 = vunpack.c.l.b16 %v94
    %v339 = vunpack.c.l.b16 %v95
    %v340 = vunpack.c.l.b16 %v96
    %v341 = vunpack.c.l.b16 %v97
    %v342 = vunpack.c.l.b16 %v98
    %v343 = vunpack.c.l.b16 %v99
    %v344 = vunpack.c.l.b16 %v100
    %v345 = vunpack.c.l.b16 %v101
    %v346 = vunpack.c.l.b16 %v102
    %v347 = vunpack.c.l.b16 %v103
    %v348 = vunpack.c.l.b16 %v104
    %v349 = vunpack.c.l.b16 %v105
    %v350 = vunpack.c.l.b16 %v106
    %v351 = vunpack.c.l.b16 %v107
    %v352 = vunpack.c.l.b16 %v108
    %v353 = vunpack.c.l.b16 %v109
    %v354 = vunpack.c.l.b16 %v110
    %v355 = vunpack.c.l.b16 %v111
    %v356 = vunpack.c.l.b16 %v112
    %v357 = vunpack.c.l.b16 %v113
    %v358 = vunpack.c.l.b16 %v114
    %v359 = vunpack.c.l.b16 %v115
    %v360 = vunpack.c.l.b16 %v116
    %v361 = vunpack.c.l.b16 %v117
    %v362 = vunpack.c.l.b16 %v118
    %v363 = vunpack.c.l.b16 %v119
    %v364 = vunpack.c.l.b16 %v120
    %v365 = vunpack.c.l.b16 %v121
    %v366 = vunpack.c.l.b16 %v122
    %v367 = vunpack.c.l.b16 %v123
    %v368 = vunpack.c.l.b16 %v124
    %v369 = vunpack.c.l.b16 %v125
    %v370 = vunpack.c.l.b16 %v126
    %v371 = vunpack.c.l.b16 %v127
    %v372 = vunpack.c.l.b16 %v128
    %v373 = vunpack.c.l.b16 %v129
    %v374 = vunpack.c.l.b16 %v130
    %v375 = vunpack.c.l.b16 %v131
    %v376 = vunpack.c.l.b16 %v132
    %v377 = vunpack.c.l.b16 %v133
    %v378 = vunpack.c.l.b16 %v134
    %v379 = vunpack.c.l.b16 %v135
    %v380 = vunpack.c.l.b16 %v136
    %v381 = vunpack.c.l.b16 %v137
    %v382 = vunpack.c.l.b16 %v138
    %v383 = vunpack.c.l.b16 %v139
    %v384 = vunpack.c.l.b16 %v140
    %v385 = vunpack.c.l.b16 %v141
    %v386 = vunpack.c.l.b16 %v142
    %v387 = vunpack.c.l.b16 %v143
    %v388 = vunpack.c.l.b16 %v144
    %v389 = vunpack.c.l.b16 %v145
    %v390 = vunpack.c.l.b16 %v146
    %v391 = vpack.c.b16 %v280, %v279
    %v392 = vpack.c.b16 %v282, %v281
    %v393 = vpack.c.b16 %v284, %v283
    %v394 = vpack.c.b16 %v286, %v285
    %v395 = vpack.c.b16 %v288, %v287
    %v396 = vpack.c.b16 %v290, %v289
    %v397 = vpack.c.b16 %v292, %v291
    %v398 = vpack.c.b16 %v294, %v293
    %v399 = vpack.c.b16 %v296, %v295
    %v400 = vpack.c.b16 %v298, %v297
    %v401 = vpack.c.b16 %v300, %v299
    %v402 = vpack.c.b16 %v302, %v301
    %v403 = vpack.c.b16 %v304, %v303
    %v404 = vpack.c.b16 %v306, %v305
    %v405 = vpack.c.b16 %v308, %v307
    %v406 = vpack.c.b16 %v310, %v309
    %v407 = vpack.c.b16 %v312, %v311
    %v408 = vpack.c.b16 %v314, %v313
    %v409 = vpack.c.b16 %v316, %v315
    %v410 = vpack.c.b16 %v318, %v317
    %v411 = vpack.c.b16 %v320, %v319
    %v412 = vpack.c.b16 %v322, %v321
    %v413 = vpack.c.b16 %v324, %v323
    %v414 = vpack.c.b16 %v326, %v325
    %v415 = vpack.c.b16 %v328, %v327
    %v416 = vpack.c.b16 %v330, %v329
    %v417 = vpack.c.b16 %v332, %v331
    %v418 = vpack.c.b16 %v334, %v333
    %v419 = vpack.c.b16 %v336, %v335
    %v420 = vpack.c.b16 %v338, %v337
    %v421 = vpack.c.b16 %v340, %v339
    %v422 = vpack.c.b16 %v342, %v341
    %v423 = vpack.c.b16 %v344, %v343
    %v424 = vpack.c.b16 %v346, %v345
    %v425 = vpack.c.b16 %v348, %v347
    %v426 = vpack.c.b16 %v350, %v349
    %v427 = vpack.c.b16 %v352, %v351
    %v428 = vpack.c.b16 %v354, %v353
    %v429 = vpack.c.b16 %v356, %v355
    %v430 = vpack.c.b16 %v358, %v357
    %v431 = vpack.c.b16 %v360, %v359
    %v432 = vpack.c.b16 %v362, %v361
    %v433 = vpack.c.b16 %v364, %v363
    %v434 = vpack.c.b16 %v366, %v365
    %v435 = vpack.c.b16 %v368, %v367
    %v436 = vpack.c.b16 %v370, %v369
    %v437 = vpack.c.b16 %v372, %v371
    %v438 = vpack.c.b16 %v374, %v373
    %v439 = vpack.c.b16 %v376, %v375
    %v440 = vpack.c.b16 %v378, %v377
    %v441 = vpack.c.b16 %v380, %v379
    %v442 = vpack.c.b16 %v382, %v381
    %v443 = vpack.c.b16 %v384, %v383
    %v444 = vpack.c.b16 %v386, %v385
    %v445 = vpack.c.b16 %v388, %v387
    %v446 = vpack.c.b16 %v390, %v389
    %503 = vmatpush.bf16.msra.mxu0 %v398
    %504 = vmatpush.bf16.msra.mxu0 %v397
    %505 = vmatpush.bf16.msra.mxu0 %v396
    %506 = vmatpush.bf16.msra.mxu0 %v395
    %507 = vmatpush.bf16.msra.mxu0 %v394
    %508 = vmatpush.bf16.msra.mxu0 %v393
    %509 = vmatpush.bf16.msra.mxu0 %v392
    %510 = vmatpush.bf16.msra.mxu0 %v391
    %511 = vmatmul.bf16.gmra.mxu0 %v153
    %v512 = vpop.f32.mrf.mxu0
    %v513 = vadd.f32 %v149, %v512
    %v514 = vpop.f32.mrf.mxu0
    %515 = vdwg.mxu0
    %516 = vmatpush.bf16.msra.mxu0 %v406
    %517 = vmatpush.bf16.msra.mxu0 %v405
    %518 = vmatpush.bf16.msra.mxu0 %v404
    %519 = vmatpush.bf16.msra.mxu0 %v403
    %520 = vmatpush.bf16.msra.mxu0 %v402
    %521 = vmatpush.bf16.msra.mxu0 %v401
    %522 = vmatpush.bf16.msra.mxu0 %v400
    %523 = vmatpush.bf16.msra.mxu0 %v399
    %524 = vmatmul.bf16.gmra.mxu0 %v154
    %v525 = vpop.f32.mrf.mxu0
    %v526 = vadd.f32 %v513, %v525
    %v527 = vpop.f32.mrf.mxu0
    %528 = vdwg.mxu0
    %529 = vmatpush.bf16.msra.mxu0 %v414
    %530 = vmatpush.bf16.msra.mxu0 %v413
    %531 = vmatpush.bf16.msra.mxu0 %v412
    %532 = vmatpush.bf16.msra.mxu0 %v411
    %533 = vmatpush.bf16.msra.mxu0 %v410
    %534 = vmatpush.bf16.msra.mxu0 %v409
    %535 = vmatpush.bf16.msra.mxu0 %v408
    %536 = vmatpush.bf16.msra.mxu0 %v407
    %537 = vmatmul.bf16.gmra.mxu0 %v155
    %v538 = vpop.f32.mrf.mxu0
    %v539 = vadd.f32 %v526, %v538
    %v540 = vpop.f32.mrf.mxu0
    %541 = vdwg.mxu0
    %542 = vmatpush.bf16.msra.mxu0 %v422
    %543 = vmatpush.bf16.msra.mxu0 %v421
    %544 = vmatpush.bf16.msra.mxu0 %v420
    %545 = vmatpush.bf16.msra.mxu0 %v419
    %546 = vmatpush.bf16.msra.mxu0 %v418
    %547 = vmatpush.bf16.msra.mxu0 %v417
    %548 = vmatpush.bf16.msra.mxu0 %v416
    %549 = vmatpush.bf16.msra.mxu0 %v415
    %550 = vmatmul.bf16.gmra.mxu0 %v156
    %v551 = vpop.f32.mrf.mxu0
    %v552 = vadd.f32 %v539, %v551
    %v553 = vpop.f32.mrf.mxu0
    %554 = vdwg.mxu0
    %555 = vmatpush.bf16.msra.mxu0 %v430
    %556 = vmatpush.bf16.msra.mxu0 %v429
    %557 = vmatpush.bf16.msra.mxu0 %v428
    %558 = vmatpush.bf16.msra.mxu0 %v427
    %559 = vmatpush.bf16.msra.mxu0 %v426
    %560 = vmatpush.bf16.msra.mxu0 %v425
    %561 = vmatpush.bf16.msra.mxu0 %v424
    %562 = vmatpush.bf16.msra.mxu0 %v423
    %563 = vmatmul.bf16.gmra.mxu0 %v157
    %v564 = vpop.f32.mrf.mxu0
    %v565 = vadd.f32 %v552, %v564
    %v566 = vpop.f32.mrf.mxu0
    %567 = vdwg.mxu0
    %568 = vmatpush.bf16.msra.mxu0 %v438
    %569 = vmatpush.bf16.msra.mxu0 %v437
    %570 = vmatpush.bf16.msra.mxu0 %v436
    %571 = vmatpush.bf16.msra.mxu0 %v435
    %572 = vmatpush.bf16.msra.mxu0 %v434
    %573 = vmatpush.bf16.msra.mxu0 %v433
    %574 = vmatpush.bf16.msra.mxu0 %v432
    %575 = vmatpush.bf16.msra.mxu0 %v431
    %576 = vmatmul.bf16.gmra.mxu0 %v158
    %v577 = vpop.f32.mrf.mxu0
    %v578 = vadd.f32 %v565, %v577
    %v579 = vpop.f32.mrf.mxu0
    %580 = vdwg.mxu0
    %581 = vmatpush.bf16.msra.mxu0 %v446
    %582 = vmatpush.bf16.msra.mxu0 %v445
    %583 = vmatpush.bf16.msra.mxu0 %v444
    %584 = vmatpush.bf16.msra.mxu0 %v443
    %585 = vmatpush.bf16.msra.mxu0 %v442
    %586 = vmatpush.bf16.msra.mxu0 %v441
    %587 = vmatpush.bf16.msra.mxu0 %v440
    %588 = vmatpush.bf16.msra.mxu0 %v439
    %589 = vmatmul.bf16.gmra.mxu0 %v159
    %v590 = vpop.f32.mrf.mxu0
    %v591 = vadd.f32 %v578, %v590
    %v592 = vpop.f32.mrf.mxu0
    %593 = vdwg.mxu0
    %v594 = vmax.f32 %v591, 0.0
    %v595 = vpack.c.bf16 %v594, %v594
    %v596 = vld [vmem:[%s3] sm:$0xf]
    %v597 = vld [vmem:[%s3 + $0x4] sm:$0xf]
    %v598 = vld [vmem:[%s3 + $0x8] sm:$0xf]
    %v599 = vld [vmem:[%s3 + $0xc] sm:$0xf]
    %v600 = vld [vmem:[%s4] sm:$0x1]
    %v602 = vperm.slane %v600, 0
    %v608 = vunpack.c.l.b16 %v596
    %v609 = vunpack.c.l.b16 %v597
    %v610 = vunpack.c.l.b16 %v598
    %v611 = vunpack.c.l.b16 %v599
    %v612 = vpack.c.b16 %v609, %v608
    %v613 = vpack.c.b16 %v611, %v610
    %vm616 = vcmask 261120
    %v618 = vsel %vm616, %v595, 0
    %620 = vmatpush.bf16.msra.mxu0 0
    %621 = vmatpush.bf16.msra.mxu0 0
    %622 = vmatpush.bf16.msra.mxu0 0
    %623 = vmatpush.bf16.msra.mxu0 0
    %624 = vmatpush.bf16.msra.mxu0 0
    %625 = vmatpush.bf16.msra.mxu0 0
    %626 = vmatpush.bf16.msra.mxu0 %v613
    %627 = vmatpush.bf16.msra.mxu0 %v612
    %628 = vmatmul.bf16.gmra.mxu0 %v618
    %v629 = vpop.f32.mrf.mxu0
    %v630 = vadd.f32 %v602, %v629
    %v631 = vpop.f32.mrf.mxu0
    %632 = vdwg.mxu0
    %v633 = vmax.f32 %v630, 0.0
    %v634 = vpack.c.bf16 %v633, %v633
    %v635 = vld [vmem:[%s5] sm:$0xf]
    %v636 = vld [vmem:[%s5 + $0x4] sm:$0xf]
    %v637 = vld [vmem:[%s5 + $0x8] sm:$0xf]
    %v638 = vld [vmem:[%s5 + $0xc] sm:$0xf]
    %v639 = vld [vmem:[%s6] sm:$0x1]
    %v641 = vperm.slane %v639, 0
    %v647 = vunpack.c.l.b16 %v635
    %v648 = vunpack.c.l.b16 %v636
    %v649 = vunpack.c.l.b16 %v637
    %v650 = vunpack.c.l.b16 %v638
    %v651 = vpack.c.b16 %v648, %v647
    %v652 = vpack.c.b16 %v650, %v649
    %v656 = vsel %vm616, %v634, 0
    %658 = vmatpush.bf16.msra.mxu0 0
    %659 = vmatpush.bf16.msra.mxu0 0
    %660 = vmatpush.bf16.msra.mxu0 0
    %661 = vmatpush.bf16.msra.mxu0 0
    %662 = vmatpush.bf16.msra.mxu0 0
    %663 = vmatpush.bf16.msra.mxu0 0
    %664 = vmatpush.bf16.msra.mxu0 %v652
    %665 = vmatpush.bf16.msra.mxu0 %v651
    %666 = vmatmul.bf16.gmra.mxu0 %v656
    %v667 = vpop.f32.mrf.mxu0
    %v668 = vadd.f32 %v641, %v667
    %v669 = vpop.f32.mrf.mxu0
    %670 = vdwg.mxu0
    %v671 = vtanh.pop %v668
    %v672 = vpack.c.bf16 %v671, %v671
    %v673 = vld [vmem:[%s7] sm:$0xf]
    %v674 = vld [vmem:[%s7 + $0x4] sm:$0xf]
    %v675 = vld [vmem:[%s8] sm:$0x1]
    %v677 = vperm.slane %v675, 0
    %v681 = vunpack.c.l.b16 %v673
    %v682 = vunpack.c.l.b16 %v674
    %v683 = vpack.c.b16 %v682, %v681
    %vm685 = vcmask 130048
    %v687 = vsel %vm685, %v672, 0
    %689 = vmatpush.bf16.msra.mxu0 0
    %690 = vmatpush.bf16.msra.mxu0 0
    %691 = vmatpush.bf16.msra.mxu0 0
    %692 = vmatpush.bf16.msra.mxu0 0
    %693 = vmatpush.bf16.msra.mxu0 0
    %694 = vmatpush.bf16.msra.mxu0 0
    %695 = vmatpush.bf16.msra.mxu0 0
    %696 = vmatpush.bf16.msra.mxu0 %v683
    %697 = vmatmul.bf16.gmra.mxu0 %v687
    %v698 = vpop.f32.mrf.mxu0
    %v699 = vadd.f32 %v677, %v698
    %v700 = vpop.f32.mrf.mxu0
    %701 = vdwg.mxu0
    %vm702 = vcmask 123904
    %703 = vst.msk [vmem:[#allocation2] sm:$0x3] %vm702, %v699
    // Predicated region
    $region38: #{_lambda_.7} parent=1 // pred_check
      _
    $region39: #{_lambda_.7} parent=1 // pred_check_branch
      %705 = sbr.rel (0) target = $region41
    $region40: #{_lambda_.7} parent=1 // pred_region
      %707 = vsyncadd [#allocation3], 0
      %s709 = sshll.u32 [#allocation2], 4
      %s710 = int_to_ptr.vmem [resolvable:$true] %s709
      %s711 = sshll.u32 %s9, 4
      %s712 = int_to_ptr.hbm [resolvable:$true] %s711
      %714 = dma.vmem_to_hbm [thread:$0]  %s710, 32, %s712, [#allocation3]
    $region41: #{_lambda_.7} parent=1 // pred_fallthru
      _
    // Predicated region
    $region42: #{_lambda_.7} parent=1 // pred_check
      _
    $region43: #{_lambda_.7} parent=1 // pred_check_branch
      %716 = sbr.rel (0) target = $region45
    $region44: #{_lambda_.7} parent=1 // pred_region
      %718 = dma.done [#allocation3], 32
    $region45: #{_lambda_.7} parent=1 // pred_fallthru
      _
    %719 = vsyncpa [#allocation3], 1

</llo_original>
